<compile_context>
chip_gen: v5e
topology: v5e:2x2
jax: 0.10.0
libtpu: 0.0.40
codegen_flags: <defaults>
</compile_context>

<pallas_src>
import jax
import jax.numpy as jnp
from jax import lax
from jax.experimental import pallas as pl
from jax.experimental.pallas import tpu as pltpu


# ----------------------------------------------------------------------------
# Fused kernel (one grid step = one batch tile of TB samples)
# ----------------------------------------------------------------------------
def _fused_cnn_kernel(x_ref, w1_ref, b1_ref, w2_hbm, b2_ref, wfc1_hbm,
                      bfc1_ref, wfc2_ref, bfc2_ref, out_ref,
                      w2_ref, wfc1_ref, dma_sem,
                      x1_ref, m1_ref, p1_ref, x2_ref, m2_ref, xf_ref):
    """Whole forward for one batch tile, fully VMEM resident.

    Row layout is y-major within the tile: row = y*TB + b.
      x_ref   : (16*TB, 512)  bf16  zero-padded NHWC input (ypad, b, xpad*32+ci)
      w1_ref  : (2560, 384)   bf16  conv1 block-Toeplitz weights (VMEM resident)
      w2_hbm  : (960, 384)    bf16  conv2 weights, HBM, manual DMA -> w2_ref
      wfc1_hbm: (576, 1024)   bf16  fc1 weights,  HBM, manual DMA -> wfc1_ref
      out_ref : (TB, 3)       f32
    """
    f32 = jnp.float32
    TB = out_ref.shape[0]

    # Kick off the conv2 / fc1 weight DMAs now; they are only needed after the
    # conv1 (resp. conv2) matmul, so the transfer hides behind compute.
    w2_cp = pltpu.make_async_copy(w2_hbm, w2_ref, dma_sem.at[0])
    wfc1_cp = pltpu.make_async_copy(wfc1_hbm, wfc1_ref, dma_sem.at[1])
    w2_cp.start()
    wfc1_cp.start()

    # Zero only the 2+2 y-padding row bands of the pooled conv1 map (these are
    # conv2's y-padding); the interior rows are fully rewritten below.
    p1_ref[0:2 * TB, :] = jnp.zeros((2 * TB, p1_ref.shape[1]), p1_ref.dtype)
    p1_ref[8 * TB:10 * TB, :] = jnp.zeros((2 * TB, p1_ref.shape[1]), p1_ref.dtype)

    # ------------------ conv1 + ReLU + 2x2 max-pool -------------------------
    # y-tap im2col: one contiguous slab copy per tap (pure bf16 moves).
    #   x1[y*TB+b, dy*512 + xp*32 + ci] = xpad(b, y+dy, xp, ci)
    for dy in range(5):
        x1_ref[:, dy * 512:(dy + 1) * 512] = x_ref[dy * TB:(dy + 12) * TB, :]
    acc1 = jnp.dot(x1_ref[...], w1_ref[...], preferred_element_type=f32)
    acc1 = jnp.maximum(acc1 + b1_ref[...], 0.0)          # (12*TB, 12*32)
    # Horizontal pool pairs + lane compaction: x = 2*xo, 2*xo+1 -> xo (0..5).
    for xo in range(6):
        m1_ref[:, xo * 32:(xo + 1) * 32] = jnp.maximum(
            acc1[:, 64 * xo:64 * xo + 32], acc1[:, 64 * xo + 32:64 * xo + 64])
    # Vertical pool pairs: whole-tile slab maxes into the y-padded conv2 input.
    for yo in range(6):
        p1_ref[(2 + yo) * TB:(3 + yo) * TB, :] = jnp.maximum(
            m1_ref[(2 * yo) * TB:(2 * yo + 1) * TB, :],
            m1_ref[(2 * yo + 1) * TB:(2 * yo + 2) * TB, :]).astype(p1_ref.dtype)

    # ------------------ conv2 + ReLU + 2x2 max-pool -------------------------
    for dy in range(5):
        x2_ref[:, dy * 192:(dy + 1) * 192] = p1_ref[dy * TB:(dy + 6) * TB, :]
    w2_cp.wait()                      # DMA has been hiding behind conv1
    acc2 = jnp.dot(x2_ref[...], w2_ref[...], preferred_element_type=f32)
    acc2 = jnp.maximum(acc2 + b2_ref[...], 0.0)          # (6*TB, 6*64)
    for xo in range(3):
        m2_ref[:, xo * 64:(xo + 1) * 64] = jnp.maximum(
            acc2[:, 128 * xo:128 * xo + 64],
            acc2[:, 128 * xo + 64:128 * xo + 128])
    # Vertical pool straight into the compact (576-lane) fc1 input row.
    for yo in range(3):
        xf_ref[:, yo * 192:(yo + 1) * 192] = jnp.maximum(
            m2_ref[(2 * yo) * TB:(2 * yo + 1) * TB, :],
            m2_ref[(2 * yo + 1) * TB:(2 * yo + 2) * TB, :]).astype(xf_ref.dtype)

    # ------------------ fc1 + ReLU, fc2 --------------------------------------
    wfc1_cp.wait()                    # hidden behind conv1 + conv2
    h = jnp.dot(xf_ref[...], wfc1_ref[...], preferred_element_type=f32)
    h = jnp.maximum(h + bfc1_ref[...], 0.0)              # (TB, 1024)
    logits = jnp.dot(h.astype(jnp.bfloat16), wfc2_ref[...],
                     preferred_element_type=f32)
    out_ref[...] = (logits + bfc2_ref[...]).astype(out_ref.dtype)


# ----------------------------------------------------------------------------
# Wrapper: layout plumbing + pallas_call
# ----------------------------------------------------------------------------
def vanilla_classifier_cnn_forward(x_nchw, packed):
    B, C, H, W = x_nchw.shape
    assert (C, H, W) == (32, 12, 12), "module implies (B, 32, 12, 12) inputs"
    assert packed["w1"].shape == (2560, 384)
    assert packed["w2"].shape == (960, 384)
    assert packed["wfc1"].shape == (576, 1024)
    nout = packed["wfc2"].shape[1]

    # Batch tiling: one grid step per tile of TB samples.  Packed weights use
    # constant index maps so they stay VMEM-resident across tiles; the batch
    # axis is "parallel" (v7x dual-core sharding; no-op on v5e/v6e or at B<=8).
    if B <= 8:
        TB = B
    else:
        TB = 8
        assert B % 8 == 0, "for B > 8 this wrapper needs B % 8 == 0"
    ntiles = B // TB

    # NCHW -> NHWC, zero-pad spatial by 2, pre-cast to bf16 (so the in-kernel
    # im2col copies are pure moves), and order rows (tile, y_pad, sample) so
    # every conv y-tap is one contiguous slab copy.
    x = jnp.transpose(x_nchw, (0, 2, 3, 1)).astype(jnp.bfloat16)
    x = jnp.pad(x, ((0, 0), (2, 2), (2, 2), (0, 0)))            # (B,16,16,32)
    x = x.reshape(ntiles, TB, 16, 16 * 32).transpose(0, 2, 1, 3)
    x2d = x.reshape(ntiles * 16 * TB, 16 * 32)

    def w_const(shape):
        return pl.BlockSpec(shape, lambda i: (0, 0))

    return pl.pallas_call(
        _fused_cnn_kernel,
        out_shape=jax.ShapeDtypeStruct((B, nout), jnp.float32),
        grid=(ntiles,),
        in_specs=[
            pl.BlockSpec((16 * TB, 512), lambda i: (i, 0)),      # x tile
            w_const(packed["w1"].shape),                         # w1 resident
            w_const(packed["b1"].shape),
            pl.BlockSpec(memory_space=pl.ANY),                   # w2 in HBM
            w_const(packed["b2"].shape),
            pl.BlockSpec(memory_space=pl.ANY),                   # wfc1 in HBM
            w_const(packed["bfc1"].shape),
            w_const(packed["wfc2"].shape),
            w_const(packed["bfc2"].shape),
        ],
        out_specs=pl.BlockSpec((TB, nout), lambda i: (i, 0)),
        scratch_shapes=[
            pltpu.VMEM(packed["w2"].shape, packed["w2"].dtype),      # w2 buf
            pltpu.VMEM(packed["wfc1"].shape, packed["wfc1"].dtype),  # wfc1 buf
            pltpu.SemaphoreType.DMA((2,)),
            pltpu.VMEM((12 * TB, 2560), jnp.bfloat16),   # x1: conv1 im2col
            pltpu.VMEM((12 * TB, 192), jnp.float32),     # m1: conv1 hpool
            pltpu.VMEM((10 * TB, 192), jnp.bfloat16),    # p1: pool1 (+y pad)
            pltpu.VMEM((6 * TB, 960), jnp.bfloat16),     # x2: conv2 im2col
            pltpu.VMEM((6 * TB, 192), jnp.float32),      # m2: conv2 hpool
            pltpu.VMEM((TB, 576), jnp.bfloat16),         # xf: fc1 input
        ],
        compiler_params=pltpu.CompilerParams(
            dimension_semantics=("parallel",),
            vmem_limit_bytes=32 * 1024 * 1024,
        ),
    )(x2d, packed["w1"], packed["b1"], packed["w2"], packed["b2"],
      packed["wfc1"], packed["bfc1"], packed["wfc2"], packed["bfc2"])


# ----------------------------------------------------------------------------
# One-time host-side weight packing (plain JAX, done once per model)
# ----------------------------------------------------------------------------
def pack_params(p, dtype=jnp.bfloat16):
    """Pack conv/fc weights into the compact matmul layouts used by the kernel."""
    # conv1 -> (5*16*32, 12*32): row = dy*512 + xp*32 + ci, col = x*32 + co
    w1t = jnp.transpose(p["conv1_w"], (2, 3, 1, 0))            # (dy, dx, ci, co)
    s1 = (jnp.arange(16)[None, :, None] ==
          (jnp.arange(12)[None, None, :] +
           jnp.arange(5)[:, None, None])).astype(w1t.dtype)    # (dx, xp, x)
    w1big = jnp.einsum("kpx,ykio->ypixo", s1, w1t)             # (5,16,32,12,32)
    w1big = w1big.reshape(5 * 16 * 32, 12 * 32).astype(dtype)
    b1rep = jnp.tile(p["conv1_b"], 12).reshape(1, 384).astype(jnp.float32)

    # conv2 -> (5*6*32, 6*64): row = dy*192 + xo*32 + ci (xo = pooled x 0..5),
    # col = x2*64 + co.  Pooled lanes are compacted in-kernel, so the old
    # structurally-zero half of the rows is gone.
    w2t = jnp.transpose(p["conv2_w"], (2, 3, 1, 0))            # (dy, dx, ci, co)
    s2 = (jnp.arange(6)[None, :, None] ==
          (jnp.arange(6)[None, None, :] +
           jnp.arange(5)[:, None, None] - 2)).astype(w2t.dtype)  # (dx, xo, x2)
    w2big = jnp.einsum("kpx,ykio->ypixo", s2, w2t)             # (5,6,32,6,64)
    w2big = w2big.reshape(5 * 6 * 32, 6 * 64).astype(dtype)
    b2rep = jnp.tile(p["conv2_b"], 6).reshape(1, 384).astype(jnp.float32)

    # fc1 -> (576, 1024): kernel xf row layout is yo*192 + xo*64 + co,
    # PyTorch NCHW flatten order is co*9 + yo*3 + xo.
    wfc1big = (p["fc1_w"].reshape(64, 3, 3, 1024)
               .transpose(1, 2, 0, 3).reshape(576, 1024).astype(dtype))

    return dict(
        w1=w1big, b1=b1rep,
        w2=w2big, b2=b2rep,
        wfc1=wfc1big, bfc1=p["fc1_b"].reshape(1, -1).astype(jnp.float32),
        wfc2=p["fc2_w"].astype(dtype),
        bfc2=p["fc2_b"].reshape(1, -1).astype(jnp.float32),
    )


def init_params(key, num_attacks=3):
    ks = jax.random.split(key, 8)
    s = 0.05
    return {
        "conv1_w": s * jax.random.normal(ks[0], (32, 32, 5, 5), jnp.float32),
        "conv1_b": s * jax.random.normal(ks[1], (32,), jnp.float32),
        "conv2_w": s * jax.random.normal(ks[2], (64, 32, 5, 5), jnp.float32),
        "conv2_b": s * jax.random.normal(ks[3], (64,), jnp.float32),
        "fc1_w": s * jax.random.normal(ks[4], (576, 1024), jnp.float32),
        "fc1_b": s * jax.random.normal(ks[5], (1024,), jnp.float32),
        "fc2_w": s * jax.random.normal(ks[6], (1024, num_attacks), jnp.float32),
        "fc2_b": s * jax.random.normal(ks[7], (num_attacks,), jnp.float32),
    }


# ----------------------------------------------------------------------------
# Pure-JAX reference (same bf16-operand / f32-accumulate policy as the kernel)
# ----------------------------------------------------------------------------
def reference_forward(x_nchw, p):
    f32, bf = jnp.float32, jnp.bfloat16

    def conv(x, w, b):
        y = lax.conv_general_dilated(
            x.astype(bf), w.astype(bf), (1, 1), [(2, 2), (2, 2)],
            dimension_numbers=("NCHW", "OIHW", "NCHW"),
            preferred_element_type=f32)
        return jax.nn.relu(y + b[None, :, None, None])

    def pool(x):
        return lax.reduce_window(x, -jnp.inf, lax.max,
                                 (1, 1, 2, 2), (1, 1, 2, 2), "VALID")

    x = pool(conv(x_nchw, p["conv1_w"], p["conv1_b"]))
    x = pool(conv(x, p["conv2_w"], p["conv2_b"]))
    flat = x.reshape(x.shape[0], -1)                        # NCHW flatten
    h = jax.nn.relu(jnp.dot(flat.astype(bf), p["fc1_w"].astype(bf),
                            preferred_element_type=f32) + p["fc1_b"])
    return jnp.dot(h.astype(bf), p["fc2_w"].astype(bf),
                   preferred_element_type=f32) + p["fc2_b"]


if __name__ == "__main__":
    key = jax.random.PRNGKey(0)
    k_x, k_p = jax.random.split(key)
    # input shape implied by fc1 = Linear(3*3*64, 1024): (B, 32, 12, 12) NCHW
    x = jax.random.normal(k_x, (2, 32, 12, 12), jnp.float32)
    params = init_params(k_p, num_attacks=3)
    packed = pack_params(params)                 # one-time weight re-packing

    fwd = jax.jit(vanilla_classifier_cnn_forward)
    out = jax.block_until_ready(fwd(x, packed))
    assert out.shape == (2, 3)

    ref = jax.block_until_ready(reference_forward(x, params))
    err = float(jnp.max(jnp.abs(out - ref)))
    assert jnp.allclose(out, ref, rtol=2e-2, atol=2e-2), f"max abs err {err}"

    # Also exercise the multi-tile batched path (grid over batch tiles,
    # resident weights, parallel batch axis).
    xb = jax.random.normal(jax.random.PRNGKey(1), (32, 32, 12, 12), jnp.float32)
    outb = jax.block_until_ready(fwd(xb, packed))
    refb = jax.block_until_ready(reference_forward(xb, params))
    errb = float(jnp.max(jnp.abs(outb - refb)))
    assert jnp.allclose(outb, refb, rtol=2e-2, atol=2e-2), f"max abs err {errb}"

    print("KERNEL_OK")
</pallas_src>

<mosaic_0001>
module attributes {stable_mosaic.version = 11 : i64} {
  func.func @_fused_cnn_kernel(%arg0: i32, %arg1: memref<32x512xbf16, #tpu.memory_space<vmem>>, %arg2: memref<2560x384xbf16, #tpu.memory_space<vmem>>, %arg3: memref<1x384xf32, #tpu.memory_space<vmem>>, %arg4: memref<960x384xbf16, #tpu.memory_space<any>>, %arg5: memref<1x384xf32, #tpu.memory_space<vmem>>, %arg6: memref<576x1024xbf16, #tpu.memory_space<any>>, %arg7: memref<1x1024xf32, #tpu.memory_space<vmem>>, %arg8: memref<1024x3xbf16, #tpu.memory_space<vmem>>, %arg9: memref<1x3xf32, #tpu.memory_space<vmem>>, %arg10: memref<2x3xf32, #tpu.memory_space<vmem>>, %arg11: memref<960x384xbf16, #tpu.memory_space<vmem>>, %arg12: memref<576x1024xbf16, #tpu.memory_space<vmem>>, %arg13: memref<2x!tpu.dma_semaphore, #tpu.memory_space<semaphore_mem>>, %arg14: memref<24x2560xbf16, #tpu.memory_space<vmem>>, %arg15: memref<24x192xf32, #tpu.memory_space<vmem>>, %arg16: memref<20x192xbf16, #tpu.memory_space<vmem>>, %arg17: memref<12x960xbf16, #tpu.memory_space<vmem>>, %arg18: memref<12x192xf32, #tpu.memory_space<vmem>>, %arg19: memref<2x576xbf16, #tpu.memory_space<vmem>>) attributes {dimension_semantics = [#tpu.dimension_semantics<parallel>], iteration_bounds = array<i64: 1>, scalar_prefetch = 0 : i64, scratch_operands = 9 : i64, tpu.core_type = #tpu.core_type<tc>, window_params = [{transform_indices = @transform_0, window_bounds = array<i64: 32, 512>}, {pipeline_mode = #tpu.pipeline_mode<synchronous>, transform_indices = @transform_1, window_bounds = array<i64: 2560, 384>}, {pipeline_mode = #tpu.pipeline_mode<synchronous>, transform_indices = @transform_2, window_bounds = array<i64: 1, 384>}, {}, {pipeline_mode = #tpu.pipeline_mode<synchronous>, transform_indices = @transform_4, window_bounds = array<i64: 1, 384>}, {}, {pipeline_mode = #tpu.pipeline_mode<synchronous>, transform_indices = @transform_6, window_bounds = array<i64: 1, 1024>}, {pipeline_mode = #tpu.pipeline_mode<synchronous>, transform_indices = @transform_7, window_bounds = array<i64: 1024, 3>}, {pipeline_mode = #tpu.pipeline_mode<synchronous>, transform_indices = @transform_8, window_bounds = array<i64: 1, 3>}, {transform_indices = @transform_9, window_bounds = array<i64: 2, 3>}]} {
    %c0_i32 = arith.constant 0 : i32
    %0 = tpu.memref_slice %arg13[%c0_i32] : memref<2x!tpu.dma_semaphore, #tpu.memory_space<semaphore_mem>> -> memref<1x!tpu.dma_semaphore, #tpu.memory_space<semaphore_mem>>
    %1 = tpu.memref_squeeze %0 : memref<1x!tpu.dma_semaphore, #tpu.memory_space<semaphore_mem>> -> memref<!tpu.dma_semaphore, #tpu.memory_space<semaphore_mem>>
    tpu.enqueue_dma source(%arg4 : memref<960x384xbf16, #tpu.memory_space<any>>) target(%arg11 : memref<960x384xbf16, #tpu.memory_space<vmem>>) target_semaphore(%1 : memref<!tpu.dma_semaphore, #tpu.memory_space<semaphore_mem>>)
    %c1_i32 = arith.constant 1 : i32
    %2 = tpu.memref_slice %arg13[%c1_i32] : memref<2x!tpu.dma_semaphore, #tpu.memory_space<semaphore_mem>> -> memref<1x!tpu.dma_semaphore, #tpu.memory_space<semaphore_mem>>
    %3 = tpu.memref_squeeze %2 : memref<1x!tpu.dma_semaphore, #tpu.memory_space<semaphore_mem>> -> memref<!tpu.dma_semaphore, #tpu.memory_space<semaphore_mem>>
    tpu.enqueue_dma source(%arg6 : memref<576x1024xbf16, #tpu.memory_space<any>>) target(%arg12 : memref<576x1024xbf16, #tpu.memory_space<vmem>>) target_semaphore(%3 : memref<!tpu.dma_semaphore, #tpu.memory_space<semaphore_mem>>)
    %cst = arith.constant 0.000000e+00 : bf16
    %4 = vector.broadcast %cst : bf16 to vector<4x192xbf16>
    %c0 = arith.constant 0 : index
    %c0_0 = arith.constant 0 : index
    %5 = vector.load %arg16[%c0, %c0_0] : memref<20x192xbf16, #tpu.memory_space<vmem>>, vector<4x192xbf16>
    tpu.vector_store %arg16[%c0, %c0_0], %4 {strides = array<i32>} : memref<20x192xbf16, #tpu.memory_space<vmem>>, vector<4x192xbf16>,
    %cst_1 = arith.constant 0.000000e+00 : bf16
    %6 = vector.broadcast %cst_1 : bf16 to vector<4x192xbf16>
    %c16 = arith.constant 16 : index
    %c0_2 = arith.constant 0 : index
    %7 = vector.load %arg16[%c16, %c0_2] : memref<20x192xbf16, #tpu.memory_space<vmem>>, vector<4x192xbf16>
    tpu.vector_store %arg16[%c16, %c0_2], %6 {strides = array<i32>} : memref<20x192xbf16, #tpu.memory_space<vmem>>, vector<4x192xbf16>,
    %c0_3 = arith.constant 0 : index
    %c0_4 = arith.constant 0 : index
    %8 = vector.load %arg1[%c0_3, %c0_4] : memref<32x512xbf16, #tpu.memory_space<vmem>>, vector<24x512xbf16>
    %c0_5 = arith.constant 0 : index
    %c0_6 = arith.constant 0 : index
    %9 = vector.load %arg14[%c0_5, %c0_6] : memref<24x2560xbf16, #tpu.memory_space<vmem>>, vector<24x512xbf16>
    tpu.vector_store %arg14[%c0_5, %c0_6], %8 {strides = array<i32>} : memref<24x2560xbf16, #tpu.memory_space<vmem>>, vector<24x512xbf16>,
    %c2 = arith.constant 2 : index
    %c0_7 = arith.constant 0 : index
    %10 = vector.load %arg1[%c2, %c0_7] : memref<32x512xbf16, #tpu.memory_space<vmem>>, vector<24x512xbf16>
    %c0_8 = arith.constant 0 : index
    %c512 = arith.constant 512 : index
    %11 = vector.load %arg14[%c0_8, %c512] : memref<24x2560xbf16, #tpu.memory_space<vmem>>, vector<24x512xbf16>
    tpu.vector_store %arg14[%c0_8, %c512], %10 {strides = array<i32>} : memref<24x2560xbf16, #tpu.memory_space<vmem>>, vector<24x512xbf16>,
    %c4 = arith.constant 4 : index
    %c0_9 = arith.constant 0 : index
    %12 = vector.load %arg1[%c4, %c0_9] : memref<32x512xbf16, #tpu.memory_space<vmem>>, vector<24x512xbf16>
    %c0_10 = arith.constant 0 : index
    %c1024 = arith.constant 1024 : index
    %13 = vector.load %arg14[%c0_10, %c1024] : memref<24x2560xbf16, #tpu.memory_space<vmem>>, vector<24x512xbf16>
    tpu.vector_store %arg14[%c0_10, %c1024], %12 {strides = array<i32>} : memref<24x2560xbf16, #tpu.memory_space<vmem>>, vector<24x512xbf16>,
    %c6 = arith.constant 6 : index
    %c0_11 = arith.constant 0 : index
    %14 = vector.load %arg1[%c6, %c0_11] : memref<32x512xbf16, #tpu.memory_space<vmem>>, vector<24x512xbf16>
    %c0_12 = arith.constant 0 : index
    %c1536 = arith.constant 1536 : index
    %15 = vector.load %arg14[%c0_12, %c1536] : memref<24x2560xbf16, #tpu.memory_space<vmem>>, vector<24x512xbf16>
    tpu.vector_store %arg14[%c0_12, %c1536], %14 {strides = array<i32>} : memref<24x2560xbf16, #tpu.memory_space<vmem>>, vector<24x512xbf16>,
    %c8 = arith.constant 8 : index
    %c0_13 = arith.constant 0 : index
    %16 = vector.load %arg1[%c8, %c0_13] : memref<32x512xbf16, #tpu.memory_space<vmem>>, vector<24x512xbf16>
    %c0_14 = arith.constant 0 : index
    %c2048 = arith.constant 2048 : index
    %17 = vector.load %arg14[%c0_14, %c2048] : memref<24x2560xbf16, #tpu.memory_space<vmem>>, vector<24x512xbf16>
    tpu.vector_store %arg14[%c0_14, %c2048], %16 {strides = array<i32>} : memref<24x2560xbf16, #tpu.memory_space<vmem>>, vector<24x512xbf16>,
    %c0_15 = arith.constant 0 : index
    %c0_16 = arith.constant 0 : index
    %18 = vector.load %arg14[%c0_15, %c0_16] : memref<24x2560xbf16, #tpu.memory_space<vmem>>, vector<24x2560xbf16>
    %c0_17 = arith.constant 0 : index
    %c0_18 = arith.constant 0 : index
    %19 = vector.load %arg2[%c0_17, %c0_18] : memref<2560x384xbf16, #tpu.memory_space<vmem>>, vector<2560x384xbf16>
    %cst_19 = arith.constant dense<0.000000e+00> : vector<24x384xf32>
    %20 = tpu.matmul %18, %19, %cst_19 {dimension_numbers = #tpu.dot_dimension_numbers<[1], [0], [0], [1], [0, 0, 1, 1], [], []>} : vector<24x2560xbf16>, vector<2560x384xbf16>, vector<24x384xf32> -> vector<24x384xf32>
    %c0_20 = arith.constant 0 : index
    %c0_21 = arith.constant 0 : index
    %21 = vector.load %arg3[%c0_20, %c0_21] : memref<1x384xf32, #tpu.memory_space<vmem>>, vector<1x384xf32>
    %22 = vector.broadcast %21 : vector<1x384xf32> to vector<24x384xf32>
    %23 = arith.addf %20, %22 : vector<24x384xf32>
    %cst_22 = arith.constant 0.000000e+00 : f32
    %24 = vector.broadcast %cst_22 : f32 to vector<24x384xf32>
    %25 = arith.maximumf %23, %24 : vector<24x384xf32>
    %26 = vector.extract_strided_slice %25 {offsets = [0, 0], sizes = [24, 32], strides = [1, 1]} : vector<24x384xf32> to vector<24x32xf32>
    %27 = vector.extract_strided_slice %25 {offsets = [0, 32], sizes = [24, 32], strides = [1, 1]} : vector<24x384xf32> to vector<24x32xf32>
    %28 = arith.maximumf %26, %27 : vector<24x32xf32>
    %c0_23 = arith.constant 0 : index
    %c0_24 = arith.constant 0 : index
    %29 = vector.load %arg15[%c0_23, %c0_24] : memref<24x192xf32, #tpu.memory_space<vmem>>, vector<24x32xf32>
    tpu.vector_store %arg15[%c0_23, %c0_24], %28 {strides = array<i32>} : memref<24x192xf32, #tpu.memory_space<vmem>>, vector<24x32xf32>,
    %30 = vector.extract_strided_slice %25 {offsets = [0, 64], sizes = [24, 32], strides = [1, 1]} : vector<24x384xf32> to vector<24x32xf32>
    %31 = vector.extract_strided_slice %25 {offsets = [0, 96], sizes = [24, 32], strides = [1, 1]} : vector<24x384xf32> to vector<24x32xf32>
    %32 = arith.maximumf %30, %31 : vector<24x32xf32>
    %c0_25 = arith.constant 0 : index
    %c32 = arith.constant 32 : index
    %33 = vector.load %arg15[%c0_25, %c32] : memref<24x192xf32, #tpu.memory_space<vmem>>, vector<24x32xf32>
    tpu.vector_store %arg15[%c0_25, %c32], %32 {strides = array<i32>} : memref<24x192xf32, #tpu.memory_space<vmem>>, vector<24x32xf32>,
    %34 = vector.extract_strided_slice %25 {offsets = [0, 128], sizes = [24, 32], strides = [1, 1]} : vector<24x384xf32> to vector<24x32xf32>
    %35 = vector.extract_strided_slice %25 {offsets = [0, 160], sizes = [24, 32], strides = [1, 1]} : vector<24x384xf32> to vector<24x32xf32>
    %36 = arith.maximumf %34, %35 : vector<24x32xf32>
    %c0_26 = arith.constant 0 : index
    %c64 = arith.constant 64 : index
    %37 = vector.load %arg15[%c0_26, %c64] : memref<24x192xf32, #tpu.memory_space<vmem>>, vector<24x32xf32>
    tpu.vector_store %arg15[%c0_26, %c64], %36 {strides = array<i32>} : memref<24x192xf32, #tpu.memory_space<vmem>>, vector<24x32xf32>,
    %38 = vector.extract_strided_slice %25 {offsets = [0, 192], sizes = [24, 32], strides = [1, 1]} : vector<24x384xf32> to vector<24x32xf32>
    %39 = vector.extract_strided_slice %25 {offsets = [0, 224], sizes = [24, 32], strides = [1, 1]} : vector<24x384xf32> to vector<24x32xf32>
    %40 = arith.maximumf %38, %39 : vector<24x32xf32>
    %c0_27 = arith.constant 0 : index
    %c96 = arith.constant 96 : index
    %41 = vector.load %arg15[%c0_27, %c96] : memref<24x192xf32, #tpu.memory_space<vmem>>, vector<24x32xf32>
    tpu.vector_store %arg15[%c0_27, %c96], %40 {strides = array<i32>} : memref<24x192xf32, #tpu.memory_space<vmem>>, vector<24x32xf32>,
    %42 = vector.extract_strided_slice %25 {offsets = [0, 256], sizes = [24, 32], strides = [1, 1]} : vector<24x384xf32> to vector<24x32xf32>
    %43 = vector.extract_strided_slice %25 {offsets = [0, 288], sizes = [24, 32], strides = [1, 1]} : vector<24x384xf32> to vector<24x32xf32>
    %44 = arith.maximumf %42, %43 : vector<24x32xf32>
    %c0_28 = arith.constant 0 : index
    %c128 = arith.constant 128 : index
    %45 = vector.load %arg15[%c0_28, %c128] : memref<24x192xf32, #tpu.memory_space<vmem>>, vector<24x32xf32>
    tpu.vector_store %arg15[%c0_28, %c128], %44 {strides = array<i32>} : memref<24x192xf32, #tpu.memory_space<vmem>>, vector<24x32xf32>,
    %46 = vector.extract_strided_slice %25 {offsets = [0, 320], sizes = [24, 32], strides = [1, 1]} : vector<24x384xf32> to vector<24x32xf32>
    %47 = vector.extract_strided_slice %25 {offsets = [0, 352], sizes = [24, 32], strides = [1, 1]} : vector<24x384xf32> to vector<24x32xf32>
    %48 = arith.maximumf %46, %47 : vector<24x32xf32>
    %c0_29 = arith.constant 0 : index
    %c160 = arith.constant 160 : index
    %49 = vector.load %arg15[%c0_29, %c160] : memref<24x192xf32, #tpu.memory_space<vmem>>, vector<24x32xf32>
    tpu.vector_store %arg15[%c0_29, %c160], %48 {strides = array<i32>} : memref<24x192xf32, #tpu.memory_space<vmem>>, vector<24x32xf32>,
    %c0_30 = arith.constant 0 : index
    %c0_31 = arith.constant 0 : index
    %50 = vector.load %arg15[%c0_30, %c0_31] : memref<24x192xf32, #tpu.memory_space<vmem>>, vector<2x192xf32>
    %c2_32 = arith.constant 2 : index
    %c0_33 = arith.constant 0 : index
    %51 = vector.load %arg15[%c2_32, %c0_33] : memref<24x192xf32, #tpu.memory_space<vmem>>, vector<2x192xf32>
    %52 = arith.maximumf %50, %51 : vector<2x192xf32>
    %53 = arith.truncf %52 : vector<2x192xf32> to vector<2x192xbf16>
    %c4_34 = arith.constant 4 : index
    %c0_35 = arith.constant 0 : index
    %54 = vector.load %arg16[%c4_34, %c0_35] : memref<20x192xbf16, #tpu.memory_space<vmem>>, vector<2x192xbf16>
    tpu.vector_store %arg16[%c4_34, %c0_35], %53 {strides = array<i32>} : memref<20x192xbf16, #tpu.memory_space<vmem>>, vector<2x192xbf16>,
    %c4_36 = arith.constant 4 : index
    %c0_37 = arith.constant 0 : index
    %55 = vector.load %arg15[%c4_36, %c0_37] : memref<24x192xf32, #tpu.memory_space<vmem>>, vector<2x192xf32>
    %c6_38 = arith.constant 6 : index
    %c0_39 = arith.constant 0 : index
    %56 = vector.load %arg15[%c6_38, %c0_39] : memref<24x192xf32, #tpu.memory_space<vmem>>, vector<2x192xf32>
    %57 = arith.maximumf %55, %56 : vector<2x192xf32>
    %58 = arith.truncf %57 : vector<2x192xf32> to vector<2x192xbf16>
    %c6_40 = arith.constant 6 : index
    %c0_41 = arith.constant 0 : index
    %59 = vector.load %arg16[%c6_40, %c0_41] : memref<20x192xbf16, #tpu.memory_space<vmem>>, vector<2x192xbf16>
    tpu.vector_store %arg16[%c6_40, %c0_41], %58 {strides = array<i32>} : memref<20x192xbf16, #tpu.memory_space<vmem>>, vector<2x192xbf16>,
    %c8_42 = arith.constant 8 : index
    %c0_43 = arith.constant 0 : index
    %60 = vector.load %arg15[%c8_42, %c0_43] : memref<24x192xf32, #tpu.memory_space<vmem>>, vector<2x192xf32>
    %c10 = arith.constant 10 : index
    %c0_44 = arith.constant 0 : index
    %61 = vector.load %arg15[%c10, %c0_44] : memref<24x192xf32, #tpu.memory_space<vmem>>, vector<2x192xf32>
    %62 = arith.maximumf %60, %61 : vector<2x192xf32>
    %63 = arith.truncf %62 : vector<2x192xf32> to vector<2x192xbf16>
    %c8_45 = arith.constant 8 : index
    %c0_46 = arith.constant 0 : index
    %64 = vector.load %arg16[%c8_45, %c0_46] : memref<20x192xbf16, #tpu.memory_space<vmem>>, vector<2x192xbf16>
    tpu.vector_store %arg16[%c8_45, %c0_46], %63 {strides = array<i32>} : memref<20x192xbf16, #tpu.memory_space<vmem>>, vector<2x192xbf16>,
    %c12 = arith.constant 12 : index
    %c0_47 = arith.constant 0 : index
    %65 = vector.load %arg15[%c12, %c0_47] : memref<24x192xf32, #tpu.memory_space<vmem>>, vector<2x192xf32>
    %c14 = arith.constant 14 : index
    %c0_48 = arith.constant 0 : index
    %66 = vector.load %arg15[%c14, %c0_48] : memref<24x192xf32, #tpu.memory_space<vmem>>, vector<2x192xf32>
    %67 = arith.maximumf %65, %66 : vector<2x192xf32>
    %68 = arith.truncf %67 : vector<2x192xf32> to vector<2x192xbf16>
    %c10_49 = arith.constant 10 : index
    %c0_50 = arith.constant 0 : index
    %69 = vector.load %arg16[%c10_49, %c0_50] : memref<20x192xbf16, #tpu.memory_space<vmem>>, vector<2x192xbf16>
    tpu.vector_store %arg16[%c10_49, %c0_50], %68 {strides = array<i32>} : memref<20x192xbf16, #tpu.memory_space<vmem>>, vector<2x192xbf16>,
    %c16_51 = arith.constant 16 : index
    %c0_52 = arith.constant 0 : index
    %70 = vector.load %arg15[%c16_51, %c0_52] : memref<24x192xf32, #tpu.memory_space<vmem>>, vector<2x192xf32>
    %c18 = arith.constant 18 : index
    %c0_53 = arith.constant 0 : index
    %71 = vector.load %arg15[%c18, %c0_53] : memref<24x192xf32, #tpu.memory_space<vmem>>, vector<2x192xf32>
    %72 = arith.maximumf %70, %71 : vector<2x192xf32>
    %73 = arith.truncf %72 : vector<2x192xf32> to vector<2x192xbf16>
    %c12_54 = arith.constant 12 : index
    %c0_55 = arith.constant 0 : index
    %74 = vector.load %arg16[%c12_54, %c0_55] : memref<20x192xbf16, #tpu.memory_space<vmem>>, vector<2x192xbf16>
    tpu.vector_store %arg16[%c12_54, %c0_55], %73 {strides = array<i32>} : memref<20x192xbf16, #tpu.memory_space<vmem>>, vector<2x192xbf16>,
    %c20 = arith.constant 20 : index
    %c0_56 = arith.constant 0 : index
    %75 = vector.load %arg15[%c20, %c0_56] : memref<24x192xf32, #tpu.memory_space<vmem>>, vector<2x192xf32>
    %c22 = arith.constant 22 : index
    %c0_57 = arith.constant 0 : index
    %76 = vector.load %arg15[%c22, %c0_57] : memref<24x192xf32, #tpu.memory_space<vmem>>, vector<2x192xf32>
    %77 = arith.maximumf %75, %76 : vector<2x192xf32>
    %78 = arith.truncf %77 : vector<2x192xf32> to vector<2x192xbf16>
    %c14_58 = arith.constant 14 : index
    %c0_59 = arith.constant 0 : index
    %79 = vector.load %arg16[%c14_58, %c0_59] : memref<20x192xbf16, #tpu.memory_space<vmem>>, vector<2x192xbf16>
    tpu.vector_store %arg16[%c14_58, %c0_59], %78 {strides = array<i32>} : memref<20x192xbf16, #tpu.memory_space<vmem>>, vector<2x192xbf16>,
    %c0_60 = arith.constant 0 : index
    %c0_61 = arith.constant 0 : index
    %80 = vector.load %arg16[%c0_60, %c0_61] : memref<20x192xbf16, #tpu.memory_space<vmem>>, vector<12x192xbf16>
    %c0_62 = arith.constant 0 : index
    %c0_63 = arith.constant 0 : index
    %81 = vector.load %arg17[%c0_62, %c0_63] : memref<12x960xbf16, #tpu.memory_space<vmem>>, vector<12x192xbf16>
    tpu.vector_store %arg17[%c0_62, %c0_63], %80 {strides = array<i32>} : memref<12x960xbf16, #tpu.memory_space<vmem>>, vector<12x192xbf16>,
    %c2_64 = arith.constant 2 : index
    %c0_65 = arith.constant 0 : index
    %82 = vector.load %arg16[%c2_64, %c0_65] : memref<20x192xbf16, #tpu.memory_space<vmem>>, vector<12x192xbf16>
    %c0_66 = arith.constant 0 : index
    %c192 = arith.constant 192 : index
    %83 = vector.load %arg17[%c0_66, %c192] : memref<12x960xbf16, #tpu.memory_space<vmem>>, vector<12x192xbf16>
    tpu.vector_store %arg17[%c0_66, %c192], %82 {strides = array<i32>} : memref<12x960xbf16, #tpu.memory_space<vmem>>, vector<12x192xbf16>,
    %c4_67 = arith.constant 4 : index
    %c0_68 = arith.constant 0 : index
    %84 = vector.load %arg16[%c4_67, %c0_68] : memref<20x192xbf16, #tpu.memory_space<vmem>>, vector<12x192xbf16>
    %c0_69 = arith.constant 0 : index
    %c384 = arith.constant 384 : index
    %85 = vector.load %arg17[%c0_69, %c384] : memref<12x960xbf16, #tpu.memory_space<vmem>>, vector<12x192xbf16>
    tpu.vector_store %arg17[%c0_69, %c384], %84 {strides = array<i32>} : memref<12x960xbf16, #tpu.memory_space<vmem>>, vector<12x192xbf16>,
    %c6_70 = arith.constant 6 : index
    %c0_71 = arith.constant 0 : index
    %86 = vector.load %arg16[%c6_70, %c0_71] : memref<20x192xbf16, #tpu.memory_space<vmem>>, vector<12x192xbf16>
    %c0_72 = arith.constant 0 : index
    %c576 = arith.constant 576 : index
    %87 = vector.load %arg17[%c0_72, %c576] : memref<12x960xbf16, #tpu.memory_space<vmem>>, vector<12x192xbf16>
    tpu.vector_store %arg17[%c0_72, %c576], %86 {strides = array<i32>} : memref<12x960xbf16, #tpu.memory_space<vmem>>, vector<12x192xbf16>,
    %c8_73 = arith.constant 8 : index
    %c0_74 = arith.constant 0 : index
    %88 = vector.load %arg16[%c8_73, %c0_74] : memref<20x192xbf16, #tpu.memory_space<vmem>>, vector<12x192xbf16>
    %c0_75 = arith.constant 0 : index
    %c768 = arith.constant 768 : index
    %89 = vector.load %arg17[%c0_75, %c768] : memref<12x960xbf16, #tpu.memory_space<vmem>>, vector<12x192xbf16>
    tpu.vector_store %arg17[%c0_75, %c768], %88 {strides = array<i32>} : memref<12x960xbf16, #tpu.memory_space<vmem>>, vector<12x192xbf16>,
    %c0_i32_76 = arith.constant 0 : i32
    %90 = tpu.memref_slice %arg13[%c0_i32_76] : memref<2x!tpu.dma_semaphore, #tpu.memory_space<semaphore_mem>> -> memref<1x!tpu.dma_semaphore, #tpu.memory_space<semaphore_mem>>
    %91 = tpu.memref_squeeze %90 : memref<1x!tpu.dma_semaphore, #tpu.memory_space<semaphore_mem>> -> memref<!tpu.dma_semaphore, #tpu.memory_space<semaphore_mem>>
    tpu.wait_dma2 semaphore(%91 : memref<!tpu.dma_semaphore, #tpu.memory_space<semaphore_mem>>) src(%arg4 : memref<960x384xbf16, #tpu.memory_space<any>>) dst(%arg11 : memref<960x384xbf16, #tpu.memory_space<vmem>>)
    %c0_77 = arith.constant 0 : index
    %c0_78 = arith.constant 0 : index
    %92 = vector.load %arg17[%c0_77, %c0_78] : memref<12x960xbf16, #tpu.memory_space<vmem>>, vector<12x960xbf16>
    %c0_79 = arith.constant 0 : index
    %c0_80 = arith.constant 0 : index
    %93 = vector.load %arg11[%c0_79, %c0_80] : memref<960x384xbf16, #tpu.memory_space<vmem>>, vector<960x384xbf16>
    %cst_81 = arith.constant dense<0.000000e+00> : vector<12x384xf32>
    %94 = tpu.matmul %92, %93, %cst_81 {dimension_numbers = #tpu.dot_dimension_numbers<[1], [0], [0], [1], [0, 0, 1, 1], [], []>} : vector<12x960xbf16>, vector<960x384xbf16>, vector<12x384xf32> -> vector<12x384xf32>
    %c0_82 = arith.constant 0 : index
    %c0_83 = arith.constant 0 : index
    %95 = vector.load %arg5[%c0_82, %c0_83] : memref<1x384xf32, #tpu.memory_space<vmem>>, vector<1x384xf32>
    %96 = vector.broadcast %95 : vector<1x384xf32> to vector<12x384xf32>
    %97 = arith.addf %94, %96 : vector<12x384xf32>
    %cst_84 = arith.constant 0.000000e+00 : f32
    %98 = vector.broadcast %cst_84 : f32 to vector<12x384xf32>
    %99 = arith.maximumf %97, %98 : vector<12x384xf32>
    %100 = vector.extract_strided_slice %99 {offsets = [0, 0], sizes = [12, 64], strides = [1, 1]} : vector<12x384xf32> to vector<12x64xf32>
    %101 = vector.extract_strided_slice %99 {offsets = [0, 64], sizes = [12, 64], strides = [1, 1]} : vector<12x384xf32> to vector<12x64xf32>
    %102 = arith.maximumf %100, %101 : vector<12x64xf32>
    %c0_85 = arith.constant 0 : index
    %c0_86 = arith.constant 0 : index
    %103 = vector.load %arg18[%c0_85, %c0_86] : memref<12x192xf32, #tpu.memory_space<vmem>>, vector<12x64xf32>
    tpu.vector_store %arg18[%c0_85, %c0_86], %102 {strides = array<i32>} : memref<12x192xf32, #tpu.memory_space<vmem>>, vector<12x64xf32>,
    %104 = vector.extract_strided_slice %99 {offsets = [0, 128], sizes = [12, 64], strides = [1, 1]} : vector<12x384xf32> to vector<12x64xf32>
    %105 = vector.extract_strided_slice %99 {offsets = [0, 192], sizes = [12, 64], strides = [1, 1]} : vector<12x384xf32> to vector<12x64xf32>
    %106 = arith.maximumf %104, %105 : vector<12x64xf32>
    %c0_87 = arith.constant 0 : index
    %c64_88 = arith.constant 64 : index
    %107 = vector.load %arg18[%c0_87, %c64_88] : memref<12x192xf32, #tpu.memory_space<vmem>>, vector<12x64xf32>
    tpu.vector_store %arg18[%c0_87, %c64_88], %106 {strides = array<i32>} : memref<12x192xf32, #tpu.memory_space<vmem>>, vector<12x64xf32>,
    %108 = vector.extract_strided_slice %99 {offsets = [0, 256], sizes = [12, 64], strides = [1, 1]} : vector<12x384xf32> to vector<12x64xf32>
    %109 = vector.extract_strided_slice %99 {offsets = [0, 320], sizes = [12, 64], strides = [1, 1]} : vector<12x384xf32> to vector<12x64xf32>
    %110 = arith.maximumf %108, %109 : vector<12x64xf32>
    %c0_89 = arith.constant 0 : index
    %c128_90 = arith.constant 128 : index
    %111 = vector.load %arg18[%c0_89, %c128_90] : memref<12x192xf32, #tpu.memory_space<vmem>>, vector<12x64xf32>
    tpu.vector_store %arg18[%c0_89, %c128_90], %110 {strides = array<i32>} : memref<12x192xf32, #tpu.memory_space<vmem>>, vector<12x64xf32>,
    %c0_91 = arith.constant 0 : index
    %c0_92 = arith.constant 0 : index
    %112 = vector.load %arg18[%c0_91, %c0_92] : memref<12x192xf32, #tpu.memory_space<vmem>>, vector<2x192xf32>
    %c2_93 = arith.constant 2 : index
    %c0_94 = arith.constant 0 : index
    %113 = vector.load %arg18[%c2_93, %c0_94] : memref<12x192xf32, #tpu.memory_space<vmem>>, vector<2x192xf32>
    %114 = arith.maximumf %112, %113 : vector<2x192xf32>
    %115 = arith.truncf %114 : vector<2x192xf32> to vector<2x192xbf16>
    %c0_95 = arith.constant 0 : index
    %c0_96 = arith.constant 0 : index
    %116 = vector.load %arg19[%c0_95, %c0_96] : memref<2x576xbf16, #tpu.memory_space<vmem>>, vector<2x192xbf16>
    tpu.vector_store %arg19[%c0_95, %c0_96], %115 {strides = array<i32>} : memref<2x576xbf16, #tpu.memory_space<vmem>>, vector<2x192xbf16>,
    %c4_97 = arith.constant 4 : index
    %c0_98 = arith.constant 0 : index
    %117 = vector.load %arg18[%c4_97, %c0_98] : memref<12x192xf32, #tpu.memory_space<vmem>>, vector<2x192xf32>
    %c6_99 = arith.constant 6 : index
    %c0_100 = arith.constant 0 : index
    %118 = vector.load %arg18[%c6_99, %c0_100] : memref<12x192xf32, #tpu.memory_space<vmem>>, vector<2x192xf32>
    %119 = arith.maximumf %117, %118 : vector<2x192xf32>
    %120 = arith.truncf %119 : vector<2x192xf32> to vector<2x192xbf16>
    %c0_101 = arith.constant 0 : index
    %c192_102 = arith.constant 192 : index
    %121 = vector.load %arg19[%c0_101, %c192_102] : memref<2x576xbf16, #tpu.memory_space<vmem>>, vector<2x192xbf16>
    tpu.vector_store %arg19[%c0_101, %c192_102], %120 {strides = array<i32>} : memref<2x576xbf16, #tpu.memory_space<vmem>>, vector<2x192xbf16>,
    %c8_103 = arith.constant 8 : index
    %c0_104 = arith.constant 0 : index
    %122 = vector.load %arg18[%c8_103, %c0_104] : memref<12x192xf32, #tpu.memory_space<vmem>>, vector<2x192xf32>
    %c10_105 = arith.constant 10 : index
    %c0_106 = arith.constant 0 : index
    %123 = vector.load %arg18[%c10_105, %c0_106] : memref<12x192xf32, #tpu.memory_space<vmem>>, vector<2x192xf32>
    %124 = arith.maximumf %122, %123 : vector<2x192xf32>
    %125 = arith.truncf %124 : vector<2x192xf32> to vector<2x192xbf16>
    %c0_107 = arith.constant 0 : index
    %c384_108 = arith.constant 384 : index
    %126 = vector.load %arg19[%c0_107, %c384_108] : memref<2x576xbf16, #tpu.memory_space<vmem>>, vector<2x192xbf16>
    tpu.vector_store %arg19[%c0_107, %c384_108], %125 {strides = array<i32>} : memref<2x576xbf16, #tpu.memory_space<vmem>>, vector<2x192xbf16>,
    %c1_i32_109 = arith.constant 1 : i32
    %127 = tpu.memref_slice %arg13[%c1_i32_109] : memref<2x!tpu.dma_semaphore, #tpu.memory_space<semaphore_mem>> -> memref<1x!tpu.dma_semaphore, #tpu.memory_space<semaphore_mem>>
    %128 = tpu.memref_squeeze %127 : memref<1x!tpu.dma_semaphore, #tpu.memory_space<semaphore_mem>> -> memref<!tpu.dma_semaphore, #tpu.memory_space<semaphore_mem>>
    tpu.wait_dma2 semaphore(%128 : memref<!tpu.dma_semaphore, #tpu.memory_space<semaphore_mem>>) src(%arg6 : memref<576x1024xbf16, #tpu.memory_space<any>>) dst(%arg12 : memref<576x1024xbf16, #tpu.memory_space<vmem>>)
    %c0_110 = arith.constant 0 : index
    %c0_111 = arith.constant 0 : index
    %129 = vector.load %arg19[%c0_110, %c0_111] : memref<2x576xbf16, #tpu.memory_space<vmem>>, vector<2x576xbf16>
    %c0_112 = arith.constant 0 : index
    %c0_113 = arith.constant 0 : index
    %130 = vector.load %arg12[%c0_112, %c0_113] : memref<576x1024xbf16, #tpu.memory_space<vmem>>, vector<576x1024xbf16>
    %cst_114 = arith.constant dense<0.000000e+00> : vector<2x1024xf32>
    %131 = tpu.matmul %129, %130, %cst_114 {dimension_numbers = #tpu.dot_dimension_numbers<[1], [0], [0], [1], [0, 0, 1, 1], [], []>} : vector<2x576xbf16>, vector<576x1024xbf16>, vector<2x1024xf32> -> vector<2x1024xf32>
    %c0_115 = arith.constant 0 : index
    %c0_116 = arith.constant 0 : index
    %132 = vector.load %arg7[%c0_115, %c0_116] : memref<1x1024xf32, #tpu.memory_space<vmem>>, vector<1x1024xf32>
    %133 = vector.broadcast %132 : vector<1x1024xf32> to vector<2x1024xf32>
    %134 = arith.addf %131, %133 : vector<2x1024xf32>
    %cst_117 = arith.constant 0.000000e+00 : f32
    %135 = vector.broadcast %cst_117 : f32 to vector<2x1024xf32>
    %136 = arith.maximumf %134, %135 : vector<2x1024xf32>
    %137 = arith.truncf %136 : vector<2x1024xf32> to vector<2x1024xbf16>
    %c0_118 = arith.constant 0 : index
    %c0_119 = arith.constant 0 : index
    %138 = vector.load %arg8[%c0_118, %c0_119] : memref<1024x3xbf16, #tpu.memory_space<vmem>>, vector<1024x3xbf16>
    %cst_120 = arith.constant dense<0.000000e+00> : vector<2x3xf32>
    %139 = tpu.matmul %137, %138, %cst_120 {dimension_numbers = #tpu.dot_dimension_numbers<[1], [0], [0], [1], [0, 0, 1, 1], [], []>} : vector<2x1024xbf16>, vector<1024x3xbf16>, vector<2x3xf32> -> vector<2x3xf32>
    %c0_121 = arith.constant 0 : index
    %c0_122 = arith.constant 0 : index
    %140 = vector.load %arg9[%c0_121, %c0_122] : memref<1x3xf32, #tpu.memory_space<vmem>>, vector<1x3xf32>
    %141 = vector.broadcast %140 : vector<1x3xf32> to vector<2x3xf32>
    %142 = arith.addf %139, %141 : vector<2x3xf32>
    %c0_123 = arith.constant 0 : index
    %c0_124 = arith.constant 0 : index
    %143 = vector.load %arg10[%c0_123, %c0_124] : memref<2x3xf32, #tpu.memory_space<vmem>>, vector<2x3xf32>
    tpu.vector_store %arg10[%c0_123, %c0_124], %142 {strides = array<i32>} : memref<2x3xf32, #tpu.memory_space<vmem>>, vector<2x3xf32>,
    return
  }
  func.func @transform_0(%arg0: i32) -> (i32, i32) {
    %c0_i32 = arith.constant 0 : i32
    %c0_i32_0 = arith.constant 0 : i32
    return %arg0, %c0_i32 : i32, i32
  }
  func.func @transform_1(%arg0: i32) -> (i32, i32) {
    %c0_i32 = arith.constant 0 : i32
    %c0_i32_0 = arith.constant 0 : i32
    %c0_i32_1 = arith.constant 0 : i32
    return %c0_i32, %c0_i32_0 : i32, i32
  }
  func.func @transform_2(%arg0: i32) -> (i32, i32) {
    %c0_i32 = arith.constant 0 : i32
    %c0_i32_0 = arith.constant 0 : i32
    %c0_i32_1 = arith.constant 0 : i32
    return %c0_i32, %c0_i32_0 : i32, i32
  }
  func.func @transform_4(%arg0: i32) -> (i32, i32) {
    %c0_i32 = arith.constant 0 : i32
    %c0_i32_0 = arith.constant 0 : i32
    %c0_i32_1 = arith.constant 0 : i32
    return %c0_i32, %c0_i32_0 : i32, i32
  }
  func.func @transform_6(%arg0: i32) -> (i32, i32) {
    %c0_i32 = arith.constant 0 : i32
    %c0_i32_0 = arith.constant 0 : i32
    %c0_i32_1 = arith.constant 0 : i32
    return %c0_i32, %c0_i32_0 : i32, i32
  }
  func.func @transform_7(%arg0: i32) -> (i32, i32) {
    %c0_i32 = arith.constant 0 : i32
    %c0_i32_0 = arith.constant 0 : i32
    %c0_i32_1 = arith.constant 0 : i32
    return %c0_i32, %c0_i32_0 : i32, i32
  }
  func.func @transform_8(%arg0: i32) -> (i32, i32) {
    %c0_i32 = arith.constant 0 : i32
    %c0_i32_0 = arith.constant 0 : i32
    %c0_i32_1 = arith.constant 0 : i32
    return %c0_i32, %c0_i32_0 : i32, i32
  }
  func.func @transform_9(%arg0: i32) -> (i32, i32) {
    %c0_i32 = arith.constant 0 : i32
    %c0_i32_0 = arith.constant 0 : i32
    return %arg0, %c0_i32 : i32, i32
  }
}

</mosaic_0001>

<llo_original>
// kernel: vanilla_classifier_cnn_forward.1
$region0: #{vanilla_classifier_cnn_forward.1}
  #allocation0 [shape = 'u32[]', space=smem, size = 0x4, offset = 0x4, fixed_abs, tag = 'smem constant byte address 0x4 - core index']
  #allocation1 [shape = 'u32[72,128]{1,0:T(1,128)}', space=vmem, size = 0x9000, scoped, tag = 'internal scratch']
  #allocation2 [shape = 'bf16[960,384]{1,0:T(8,128)(2,1)}', space=vmem, size = 0xb4000, scoped, tag = 'scratch operand']
  #allocation3 [shape = 'bf16[576,1024]{1,0:T(8,128)(2,1)}', space=vmem, size = 0x120000, scoped, tag = 'scratch operand']
  #allocation4 [shape = 's32[2]{0}', space=sflag, size = 0x8, scoped, tag = 'scratch operand']
  #allocation5 [shape = 'bf16[24,2560]{1,0:T(8,128)(2,1)}', space=vmem, size = 0x1e000, scoped, tag = 'scratch operand']
  #allocation6 [shape = 'f32[24,192]{1,0:T(8,128)}', space=vmem, size = 0x6000, scoped, tag = 'scratch operand']
  #allocation7 [shape = 'bf16[20,192]{1,0:T(8,128)(2,1)}', space=vmem, size = 0x3000, scoped, tag = 'scratch operand']
  #allocation8 [shape = 'bf16[12,960]{1,0:T(8,128)(2,1)}', space=vmem, size = 0x8000, scoped, tag = 'scratch operand']
  #allocation9 [shape = 'f32[12,192]{1,0:T(8,128)}', space=vmem, size = 0x4000, scoped, tag = 'scratch operand']
  #allocation10 [shape = 'bf16[2,576]{1,0:T(2,128)(2,1)}', space=vmem, size = 0xa00, scoped, tag = 'scratch operand']
  #allocation21 [shape = 's32[]', space=sflag, size = 0x4, offset = 0, fixed_abs, tag = 'sflag constant byte address 0x0 - dummy sync flag']
  #allocation22 [shape = 's32[]', space=sflag, size = 0x4, offset = 0, fixed_abs, tag = 'sflag constant byte address 0x0 - dummy sync flag']
  #allocation23 [shape = 'u32[]', space=smem, size = 0x4, offset = 0x44, fixed_abs, tag = 'smem constant byte address 0x44 - assertion arg 0']
  #allocation24 [shape = 'u32[]', space=smem, size = 0x4, offset = 0x48, fixed_abs, tag = 'smem constant byte address 0x48 - assertion arg 1']
  #allocation25 [shape = 's32[]', space=sflag, size = 0x4, offset = 0, fixed_abs, tag = 'sflag constant byte address 0x0 - dummy sync flag']
  #allocation26 [shape = 's32[]', space=sflag, size = 0x4, offset = 0, fixed_abs, tag = 'sflag constant byte address 0x0 - dummy sync flag']
  %s0 = inlined_call_operand.vmem [shape: bf16[32,512], index: 0, kind: input, shape index: {}]
  %s1 = inlined_call_operand.hbm [shape: bf16[2560,384], index: 1, kind: input, shape index: {}]
  %s2 = inlined_call_operand.hbm [shape: f32[1,384], index: 2, kind: input, shape index: {}]
  %s3 = inlined_call_operand.hbm [shape: bf16[960,384], index: 3, kind: input, shape index: {}]
  %s4 = inlined_call_operand.hbm [shape: f32[1,384], index: 4, kind: input, shape index: {}]
  %s5 = inlined_call_operand.hbm [shape: bf16[576,1024], index: 5, kind: input, shape index: {}]
  %s6 = inlined_call_operand.hbm [shape: f32[1,1024], index: 6, kind: input, shape index: {}]
  %s7 = inlined_call_operand.vmem [shape: bf16[1024,3], index: 7, kind: input, shape index: {}]
  %s8 = inlined_call_operand.hbm [shape: f32[1,3], index: 8, kind: input, shape index: {}]
  %s9 = inlined_call_operand.hbm [shape: f32[2,3], index: 9, kind: output, shape index: {}]
  %s10 = sld [smem:[#allocation0]]
  $region66: #{vanilla_classifier_cnn_forward.1} parent=0
    _
  %s12 = ssub.s32 1, %s10
  %s13 = scalar_select 0, %s12, %s10
  $region1: #{vanilla_classifier_cnn_forward.1} parent=0
    #allocation11 [shape = 'u8[1966080]{0}', space=vmem, size = 0x1e0000, scoped, tag = 'input window, operand 1, single buffered']
    #allocation12 [shape = 's32[1]{0}', space=sflag, size = 0x4, scoped, tag = 'scoped memory for vanilla_classifier_cnn_forward.1']
    #allocation13 [shape = 's32[1]{0}', space=sflag, size = 0x4, scoped, tag = 'scoped memory for vanilla_classifier_cnn_forward.1']
    #allocation14 [shape = 'u8[1536]{0}', space=vmem, size = 0x800, scoped, tag = 'input window, operand 2, single buffered']
    #allocation15 [shape = 's32[1]{0}', space=sflag, size = 0x4, scoped, tag = 'scoped memory for vanilla_classifier_cnn_forward.1']
    #allocation16 [shape = 'u8[1536]{0}', space=vmem, size = 0x800, scoped, tag = 'input window, operand 4, single buffered']
    #allocation17 [shape = 'u8[4096]{0}', space=vmem, size = 0x1000, scoped, tag = 'input window, operand 6, single buffered']
    #allocation18 [shape = 's32[1]{0}', space=sflag, size = 0x4, scoped, tag = 'scoped memory for vanilla_classifier_cnn_forward.1']
    #allocation19 [shape = 'u8[512]{0}', space=vmem, size = 0x400, scoped, tag = 'input window, operand 8, single buffered']
    #allocation20 [shape = 'u8[1024]{0}', space=vmem, size = 0x400, scoped, tag = 'output window, operand 0, single buffered']
    %14 = vsyncpa [#allocation12], 0
    %15 = vsyncpa [#allocation15], 0
    %16 = vsyncpa [#allocation18], 0
    %17 = vsyncpa [#allocation13], 0
    // Predicated region
    $region2: #{vanilla_classifier_cnn_forward.1} parent=1 // pred_check
      _
    $region3: #{vanilla_classifier_cnn_forward.1} parent=1 // pred_check_branch
      %19 = sbr.rel (0) target = $region5
    $region4: #{vanilla_classifier_cnn_forward.1} parent=1 // pred_region
      _
    $region5: #{vanilla_classifier_cnn_forward.1} parent=1 // pred_fallthru
      _
    // Predicated region
    $region6: #{vanilla_classifier_cnn_forward.1} parent=1 // pred_check
      _
    $region7: #{vanilla_classifier_cnn_forward.1} parent=1 // pred_check_branch
      %21 = sbr.rel (0) target = $region9
    $region8: #{vanilla_classifier_cnn_forward.1} parent=1 // pred_region
      %23 = vsyncadd [#allocation12], 0
      %s24 = sshll.u32 %s1, 4
      %s25 = int_to_ptr.hbm [resolvable:$true] %s24
      %s26 = sshll.u32 [#allocation11], 4
      %s27 = int_to_ptr.vmem [resolvable:$true] %s26
      %32 = dma.hbm_to_vmem [thread:$0]  %s25, 61440, %s27, [#allocation12], 192, 192, 12
    $region9: #{vanilla_classifier_cnn_forward.1} parent=1 // pred_fallthru
      _
    // Predicated region
    $region10: #{vanilla_classifier_cnn_forward.1} parent=1 // pred_check
      _
    $region11: #{vanilla_classifier_cnn_forward.1} parent=1 // pred_check_branch
      %34 = sbr.rel (0) target = $region13
    $region12: #{vanilla_classifier_cnn_forward.1} parent=1 // pred_region
      %36 = vsyncadd [#allocation15], 0
      %s38 = sshll.u32 %s2, 4
      %s39 = int_to_ptr.hbm [resolvable:$true] %s38
      %s40 = sshll.u32 [#allocation14], 4
      %s41 = int_to_ptr.vmem [resolvable:$true] %s40
      %43 = dma.hbm_to_vmem [thread:$0]  %s39, 48, %s41, [#allocation15]
    $region13: #{vanilla_classifier_cnn_forward.1} parent=1 // pred_fallthru
      _
    // Predicated region
    $region14: #{vanilla_classifier_cnn_forward.1} parent=1 // pred_check
      _
    $region15: #{vanilla_classifier_cnn_forward.1} parent=1 // pred_check_branch
      %45 = sbr.rel (0) target = $region17
    $region16: #{vanilla_classifier_cnn_forward.1} parent=1 // pred_region
      %47 = vsyncadd [#allocation15], 0
      %s49 = sshll.u32 %s4, 4
      %s50 = int_to_ptr.hbm [resolvable:$true] %s49
      %s51 = sshll.u32 [#allocation16], 4
      %s52 = int_to_ptr.vmem [resolvable:$true] %s51
      %54 = dma.hbm_to_vmem [thread:$0]  %s50, 48, %s52, [#allocation15]
    $region17: #{vanilla_classifier_cnn_forward.1} parent=1 // pred_fallthru
      _
    // Predicated region
    $region18: #{vanilla_classifier_cnn_forward.1} parent=1 // pred_check
      _
    $region19: #{vanilla_classifier_cnn_forward.1} parent=1 // pred_check_branch
      %56 = sbr.rel (0) target = $region21
    $region20: #{vanilla_classifier_cnn_forward.1} parent=1 // pred_region
      %58 = vsyncadd [#allocation18], 0
      %s60 = sshll.u32 %s6, 4
      %s61 = int_to_ptr.hbm [resolvable:$true] %s60
      %s62 = sshll.u32 [#allocation17], 4
      %s63 = int_to_ptr.vmem [resolvable:$true] %s62
      %65 = dma.hbm_to_vmem [thread:$0]  %s61, 128, %s63, [#allocation18]
    $region21: #{vanilla_classifier_cnn_forward.1} parent=1 // pred_fallthru
      _
    // Predicated region
    $region22: #{vanilla_classifier_cnn_forward.1} parent=1 // pred_check
      _
    $region23: #{vanilla_classifier_cnn_forward.1} parent=1 // pred_check_branch
      %67 = sbr.rel (0) target = $region25
    $region24: #{vanilla_classifier_cnn_forward.1} parent=1 // pred_region
      _
    $region25: #{vanilla_classifier_cnn_forward.1} parent=1 // pred_fallthru
      _
    // Predicated region
    $region26: #{vanilla_classifier_cnn_forward.1} parent=1 // pred_check
      _
    $region27: #{vanilla_classifier_cnn_forward.1} parent=1 // pred_check_branch
      %69 = sbr.rel (0) target = $region29
    $region28: #{vanilla_classifier_cnn_forward.1} parent=1 // pred_region
      %71 = vsyncadd [#allocation18], 0
      %s73 = sshll.u32 %s8, 4
      %s74 = int_to_ptr.hbm [resolvable:$true] %s73
      %s75 = sshll.u32 [#allocation19], 4
      %s76 = int_to_ptr.vmem [resolvable:$true] %s75
      %78 = dma.hbm_to_vmem [thread:$0]  %s74, 16, %s76, [#allocation18]
    $region29: #{vanilla_classifier_cnn_forward.1} parent=1 // pred_fallthru
      _
    // Predicated region
    $region30: #{vanilla_classifier_cnn_forward.1} parent=1 // pred_check
      _
    $region31: #{vanilla_classifier_cnn_forward.1} parent=1 // pred_check_branch
      %80 = sbr.rel (0) target = $region33
    $region32: #{vanilla_classifier_cnn_forward.1} parent=1 // pred_region
      %82 = dma.done [#allocation12], 61440
    $region33: #{vanilla_classifier_cnn_forward.1} parent=1 // pred_fallthru
      _
    // Predicated region
    $region34: #{vanilla_classifier_cnn_forward.1} parent=1 // pred_check
      _
    $region35: #{vanilla_classifier_cnn_forward.1} parent=1 // pred_check_branch
      %84 = sbr.rel (0) target = $region37
    $region36: #{vanilla_classifier_cnn_forward.1} parent=1 // pred_region
      %86 = dma.done [#allocation15], 48
    $region37: #{vanilla_classifier_cnn_forward.1} parent=1 // pred_fallthru
      _
    // Predicated region
    $region38: #{vanilla_classifier_cnn_forward.1} parent=1 // pred_check
      _
    $region39: #{vanilla_classifier_cnn_forward.1} parent=1 // pred_check_branch
      %88 = sbr.rel (0) target = $region41
    $region40: #{vanilla_classifier_cnn_forward.1} parent=1 // pred_region
      %90 = dma.done [#allocation15], 48
    $region41: #{vanilla_classifier_cnn_forward.1} parent=1 // pred_fallthru
      _
    // Predicated region
    $region42: #{vanilla_classifier_cnn_forward.1} parent=1 // pred_check
      _
    $region43: #{vanilla_classifier_cnn_forward.1} parent=1 // pred_check_branch
      %92 = sbr.rel (0) target = $region45
    $region44: #{vanilla_classifier_cnn_forward.1} parent=1 // pred_region
      %94 = dma.done [#allocation18], 128
    $region45: #{vanilla_classifier_cnn_forward.1} parent=1 // pred_fallthru
      _
    // Predicated region
    $region46: #{vanilla_classifier_cnn_forward.1} parent=1 // pred_check
      _
    $region47: #{vanilla_classifier_cnn_forward.1} parent=1 // pred_check_branch
      %96 = sbr.rel (0) target = $region49
    $region48: #{vanilla_classifier_cnn_forward.1} parent=1 // pred_region
      %98 = dma.done [#allocation18], 16
    $region49: #{vanilla_classifier_cnn_forward.1} parent=1 // pred_fallthru
      _
    // Predicated region
    $region50: #{vanilla_classifier_cnn_forward.1} parent=1 // pred_check
      _
    $region51: #{vanilla_classifier_cnn_forward.1} parent=1 // pred_check_branch
      %101 = sbr.rel target = $region53
    $region52: #{vanilla_classifier_cnn_forward.1} parent=1 // pred_region
      %102 = sst [smem:[#allocation23]] [#allocation22]
      %103 = sst [smem:[#allocation24]] [#allocation21]
    $region53: #{vanilla_classifier_cnn_forward.1} parent=1 // pred_fallthru
      _
    %105 = shalt.err (0)
    %s107 = sshll.u32 %s3, 4
    %s108 = int_to_ptr.hbm [resolvable:$true] %s107
    %s109 = sshll.u32 [#allocation2], 4
    %s110 = int_to_ptr.vmem [resolvable:$true] %s109
    %112 = dma.hbm_to_vmem [thread:$0]  %s108, 23040, %s110, [#allocation4]
    %s113 = scalar_lea.sflag [#allocation4], 1
    // Predicated region
    $region54: #{vanilla_classifier_cnn_forward.1} parent=1 // pred_check
      _
    $region55: #{vanilla_classifier_cnn_forward.1} parent=1 // pred_check_branch
      %115 = sbr.rel target = $region57
    $region56: #{vanilla_classifier_cnn_forward.1} parent=1 // pred_region
      %116 = sst [smem:[#allocation23]] [#allocation26]
      %117 = sst [smem:[#allocation24]] [#allocation25]
    $region57: #{vanilla_classifier_cnn_forward.1} parent=1 // pred_fallthru
      _
    %119 = shalt.err (0)
    %s121 = sshll.u32 %s5, 4
    %s122 = int_to_ptr.hbm [resolvable:$true] %s121
    %s123 = sshll.u32 [#allocation3], 4
    %s124 = int_to_ptr.vmem [resolvable:$true] %s123
    %126 = dma.hbm_to_vmem [thread:$0]  %s122, 36864, %s124, %s113
    %vm127 = vcmask 1041408
    %vm128 = vcmask 521220
    %vm129 = vmor %vm128, %vm127
    %130 = vst.msk [vmem:[#allocation7] sm:$0x33] %vm129, 0
    %131 = vst.msk [vmem:[#allocation7 + $0x10] sm:$0x33] %vm129, 0
    %v132 = vld [vmem:[%s0] sm:$0xff]
    %v133 = vld [vmem:[%s0 + $0x8] sm:$0xff]
    %v134 = vld [vmem:[%s0 + $0x10] sm:$0xff]
    %v135 = vld [vmem:[%s0 + $0x18] sm:$0xff]
    %v136 = vld [vmem:[%s0 + $0x20] sm:$0xff]
    %v137 = vld [vmem:[%s0 + $0x28] sm:$0xff]
    %138 = vst [vmem:[#allocation5] sm:$0xff] %v132
    %139 = vst [vmem:[#allocation5 + $0x8] sm:$0xff] %v133
    %140 = vst [vmem:[#allocation5 + $0x50] sm:$0xff] %v134
    %141 = vst [vmem:[#allocation5 + $0x58] sm:$0xff] %v135
    %142 = vst [vmem:[#allocation5 + $0xa0] sm:$0xff] %v136
    %143 = vst [vmem:[#allocation5 + $0xa8] sm:$0xff] %v137
    %v144 = vld [vmem:[%s0] sm:$0xee]
    %v145 = vld [vmem:[%s0 + $0x8] sm:$0xee]
    %v146 = vld [vmem:[%s0 + $0x10] sm:$0xff]
    %v147 = vld [vmem:[%s0 + $0x18] sm:$0xff]
    %v148 = vld [vmem:[%s0 + $0x20] sm:$0xff]
    %v149 = vld [vmem:[%s0 + $0x28] sm:$0xff]
    %v150 = vld [vmem:[%s0 + $0x30] sm:$0x11]
    %v151 = vld [vmem:[%s0 + $0x38] sm:$0x11]
    %vm160 = vcmask 1042432
    %vm161 = vcmask 1046532
    %vm162 = vmor %vm160, %vm161
    %v163 = vrot.slane %v144, 5
    %v164 = vrot.slane %v163, 4
    %v165 = vrot.slane %v146, 5
    %v166 = vsel %vm162, %v164, %v165
    %v167 = vrot.slane %v145, 5
    %v168 = vrot.slane %v167, 4
    %v169 = vrot.slane %v147, 5
    %v170 = vsel %vm162, %v168, %v169
    %v171 = vrot.slane %v165, 4
    %v172 = vrot.slane %v148, 5
    %v173 = vsel %vm162, %v171, %v172
    %v174 = vrot.slane %v169, 4
    %v175 = vrot.slane %v149, 5
    %v176 = vsel %vm162, %v174, %v175
    %v177 = vrot.slane %v172, 4
    %v178 = vrot.slane %v150, 5
    %v179 = vsel %vm162, %v177, %v178
    %v180 = vrot.slane %v175, 4
    %v181 = vrot.slane %v151, 5
    %v182 = vsel %vm162, %v180, %v181
    %189 = vst [vmem:[#allocation5 + $0x10] sm:$0xff] %v166
    %190 = vst [vmem:[#allocation5 + $0x18] sm:$0xff] %v170
    %191 = vst [vmem:[#allocation5 + $0x60] sm:$0xff] %v173
    %192 = vst [vmem:[#allocation5 + $0x68] sm:$0xff] %v176
    %193 = vst [vmem:[#allocation5 + $0xb0] sm:$0xff] %v179
    %194 = vst [vmem:[#allocation5 + $0xb8] sm:$0xff] %v182
    %v195 = vld [vmem:[%s0] sm:$0xcc]
    %v196 = vld [vmem:[%s0 + $0x8] sm:$0xcc]
    %v197 = vld [vmem:[%s0 + $0x10] sm:$0xff]
    %v198 = vld [vmem:[%s0 + $0x18] sm:$0xff]
    %v199 = vld [vmem:[%s0 + $0x20] sm:$0xff]
    %v200 = vld [vmem:[%s0 + $0x28] sm:$0xff]
    %v201 = vld [vmem:[%s0 + $0x30] sm:$0x33]
    %v202 = vld [vmem:[%s0 + $0x38] sm:$0x33]
    %vm211 = vcmask 1041408
    %vm212 = vcmask 1045508
    %vm213 = vmor %vm211, %vm212
    %v214 = vrot.slane %v195, 6
    %v215 = vrot.slane %v214, 4
    %v216 = vrot.slane %v197, 6
    %v217 = vsel %vm213, %v215, %v216
    %v218 = vrot.slane %v196, 6
    %v219 = vrot.slane %v218, 4
    %v220 = vrot.slane %v198, 6
    %v221 = vsel %vm213, %v219, %v220
    %v222 = vrot.slane %v216, 4
    %v223 = vrot.slane %v199, 6
    %v224 = vsel %vm213, %v222, %v223
    %v225 = vrot.slane %v220, 4
    %v226 = vrot.slane %v200, 6
    %v227 = vsel %vm213, %v225, %v226
    %v228 = vrot.slane %v223, 4
    %v229 = vrot.slane %v201, 6
    %v230 = vsel %vm213, %v228, %v229
    %v231 = vrot.slane %v226, 4
    %v232 = vrot.slane %v202, 6
    %v233 = vsel %vm213, %v231, %v232
    %240 = vst [vmem:[#allocation5 + $0x20] sm:$0xff] %v217
    %241 = vst [vmem:[#allocation5 + $0x28] sm:$0xff] %v221
    %242 = vst [vmem:[#allocation5 + $0x70] sm:$0xff] %v224
    %243 = vst [vmem:[#allocation5 + $0x78] sm:$0xff] %v227
    %244 = vst [vmem:[#allocation5 + $0xc0] sm:$0xff] %v230
    %245 = vst [vmem:[#allocation5 + $0xc8] sm:$0xff] %v233
    %v246 = vld [vmem:[%s0] sm:$0x88]
    %v247 = vld [vmem:[%s0 + $0x8] sm:$0x88]
    %v248 = vld [vmem:[%s0 + $0x10] sm:$0xff]
    %v249 = vld [vmem:[%s0 + $0x18] sm:$0xff]
    %v250 = vld [vmem:[%s0 + $0x20] sm:$0xff]
    %v251 = vld [vmem:[%s0 + $0x28] sm:$0xff]
    %v252 = vld [vmem:[%s0 + $0x30] sm:$0x77]
    %v253 = vld [vmem:[%s0 + $0x38] sm:$0x77]
    %vm262 = vcmask 1040384
    %vm263 = vcmask 1044484
    %vm264 = vmor %vm262, %vm263
    %v265 = vrot.slane %v246, 7
    %v266 = vrot.slane %v265, 4
    %v267 = vrot.slane %v248, 7
    %v268 = vsel %vm264, %v266, %v267
    %v269 = vrot.slane %v247, 7
    %v270 = vrot.slane %v269, 4
    %v271 = vrot.slane %v249, 7
    %v272 = vsel %vm264, %v270, %v271
    %v273 = vrot.slane %v267, 4
    %v274 = vrot.slane %v250, 7
    %v275 = vsel %vm264, %v273, %v274
    %v276 = vrot.slane %v271, 4
    %v277 = vrot.slane %v251, 7
    %v278 = vsel %vm264, %v276, %v277
    %v279 = vrot.slane %v274, 4
    %v280 = vrot.slane %v252, 7
    %v281 = vsel %vm264, %v279, %v280
    %v282 = vrot.slane %v277, 4
    %v283 = vrot.slane %v253, 7
    %v284 = vsel %vm264, %v282, %v283
    %291 = vst [vmem:[#allocation5 + $0x30] sm:$0xff] %v268
    %292 = vst [vmem:[#allocation5 + $0x38] sm:$0xff] %v272
    %293 = vst [vmem:[#allocation5 + $0x80] sm:$0xff] %v275
    %294 = vst [vmem:[#allocation5 + $0x88] sm:$0xff] %v278
    %295 = vst [vmem:[#allocation5 + $0xd0] sm:$0xff] %v281
    %296 = vst [vmem:[#allocation5 + $0xd8] sm:$0xff] %v284
    %v297 = vld [vmem:[%s0 + $0x10] sm:$0xff]
    %v298 = vld [vmem:[%s0 + $0x18] sm:$0xff]
    %v299 = vld [vmem:[%s0 + $0x20] sm:$0xff]
    %v300 = vld [vmem:[%s0 + $0x28] sm:$0xff]
    %v301 = vld [vmem:[%s0 + $0x30] sm:$0xff]
    %v302 = vld [vmem:[%s0 + $0x38] sm:$0xff]
    %303 = vst [vmem:[#allocation5 + $0x40] sm:$0xff] %v297
    %304 = vst [vmem:[#allocation5 + $0x48] sm:$0xff] %v298
    %305 = vst [vmem:[#allocation5 + $0x90] sm:$0xff] %v299
    %306 = vst [vmem:[#allocation5 + $0x98] sm:$0xff] %v300
    %307 = vst [vmem:[#allocation5 + $0xe0] sm:$0xff] %v301
    %308 = vst [vmem:[#allocation5 + $0xe8] sm:$0xff] %v302
    %v309 = vld [vmem:[#allocation5] sm:$0xff]
    %v310 = vld [vmem:[#allocation5 + $0x8] sm:$0xff]
    %v311 = vld [vmem:[#allocation5 + $0x10] sm:$0xff]
    %v312 = vld [vmem:[#allocation5 + $0x18] sm:$0xff]
    %v313 = vld [vmem:[#allocation5 + $0x20] sm:$0xff]
    %v314 = vld [vmem:[#allocation5 + $0x28] sm:$0xff]
    %v315 = vld [vmem:[#allocation5 + $0x30] sm:$0xff]
    %v316 = vld [vmem:[#allocation5 + $0x38] sm:$0xff]
    %v317 = vld [vmem:[#allocation5 + $0x40] sm:$0xff]
    %v318 = vld [vmem:[#allocation5 + $0x48] sm:$0xff]
    %v319 = vld [vmem:[#allocation5 + $0x50] sm:$0xff]
    %v320 = vld [vmem:[#allocation5 + $0x58] sm:$0xff]
    %v321 = vld [vmem:[#allocation5 + $0x60] sm:$0xff]
    %v322 = vld [vmem:[#allocation5 + $0x68] sm:$0xff]
    %v323 = vld [vmem:[#allocation5 + $0x70] sm:$0xff]
    %v324 = vld [vmem:[#allocation5 + $0x78] sm:$0xff]
    %v325 = vld [vmem:[#allocation5 + $0x80] sm:$0xff]
    %v326 = vld [vmem:[#allocation5 + $0x88] sm:$0xff]
    %v327 = vld [vmem:[#allocation5 + $0x90] sm:$0xff]
    %v328 = vld [vmem:[#allocation5 + $0x98] sm:$0xff]
    %v329 = vld [vmem:[#allocation5 + $0xa0] sm:$0xff]
    %v330 = vld [vmem:[#allocation5 + $0xa8] sm:$0xff]
    %v331 = vld [vmem:[#allocation5 + $0xb0] sm:$0xff]
    %v332 = vld [vmem:[#allocation5 + $0xb8] sm:$0xff]
    %v333 = vld [vmem:[#allocation5 + $0xc0] sm:$0xff]
    %v334 = vld [vmem:[#allocation5 + $0xc8] sm:$0xff]
    %v335 = vld [vmem:[#allocation5 + $0xd0] sm:$0xff]
    %v336 = vld [vmem:[#allocation5 + $0xd8] sm:$0xff]
    %v337 = vld [vmem:[#allocation5 + $0xe0] sm:$0xff]
    %v338 = vld [vmem:[#allocation5 + $0xe8] sm:$0xff]
    %v339 = vld [vmem:[#allocation11] sm:$0xff]
    %v340 = vld [vmem:[#allocation11 + $0x8] sm:$0xf]
    %v341 = vld [vmem:[#allocation11 + $0xc] sm:$0xff]
    %v342 = vld [vmem:[#allocation11 + $0x14] sm:$0xf]
    %v343 = vld [vmem:[#allocation11 + $0x18] sm:$0xff]
    %v344 = vld [vmem:[#allocation11 + $0x20] sm:$0xf]
    %v345 = vld [vmem:[#allocation11 + $0x24] sm:$0xff]
    %v346 = vld [vmem:[#allocation11 + $0x2c] sm:$0xf]
    %v347 = vld [vmem:[#allocation11 + $0x30] sm:$0xff]
    %v348 = vld [vmem:[#allocation11 + $0x38] sm:$0xf]
    %v349 = vld [vmem:[#allocation11 + $0x3c] sm:$0xff]
    %v350 = vld [vmem:[#allocation11 + $0x44] sm:$0xf]
    %v351 = vld [vmem:[#allocation11 + $0x48] sm:$0xff]
    %v352 = vld [vmem:[#allocation11 + $0x50] sm:$0xf]
    %v353 = vld [vmem:[#allocation11 + $0x54] sm:$0xff]
    %v354 = vld [vmem:[#allocation11 + $0x5c] sm:$0xf]
    %v355 = vld [vmem:[#allocation11 + $0x60] sm:$0xff]
    %v356 = vld [vmem:[#allocation11 + $0x68] sm:$0xf]
    %v357 = vld [vmem:[#allocation11 + $0x6c] sm:$0xff]
    %v358 = vld [vmem:[#allocation11 + $0x74] sm:$0xf]
    %v359 = vld [vmem:[#allocation11 + $0x78] sm:$0xff]
    %v360 = vld [vmem:[#allocation11 + $0x80] sm:$0xf]
    %v361 = vld [vmem:[#allocation11 + $0x84] sm:$0xff]
    %v362 = vld [vmem:[#allocation11 + $0x8c] sm:$0xf]
    %v363 = vld [vmem:[#allocation11 + $0x90] sm:$0xff]
    %v364 = vld [vmem:[#allocation11 + $0x98] sm:$0xf]
    %v365 = vld [vmem:[#allocation11 + $0x9c] sm:$0xff]
    %v366 = vld [vmem:[#allocation11 + $0xa4] sm:$0xf]
    %v367 = vld [vmem:[#allocation11 + $0xa8] sm:$0xff]
    %v368 = vld [vmem:[#allocation11 + $0xb0] sm:$0xf]
    %v369 = vld [vmem:[#allocation11 + $0xb4] sm:$0xff]
    %v370 = vld [vmem:[#allocation11 + $0xbc] sm:$0xf]
    %v371 = vld [vmem:[#allocation11 + $0xc0] sm:$0xff]
    %v372 = vld [vmem:[#allocation11 + $0xc8] sm:$0xf]
    %v373 = vld [vmem:[#allocation11 + $0xcc] sm:$0xff]
    %v374 = vld [vmem:[#allocation11 + $0xd4] sm:$0xf]
    %v375 = vld [vmem:[#allocation11 + $0xd8] sm:$0xff]
    %v376 = vld [vmem:[#allocation11 + $0xe0] sm:$0xf]
    %v377 = vld [vmem:[#allocation11 + $0xe4] sm:$0xff]
    %v378 = vld [vmem:[#allocation11 + $0xec] sm:$0xf]
    %v379 = vld [vmem:[#allocation11 + $0xf0] sm:$0xff]
    %v380 = vld [vmem:[#allocation11 + $0xf8] sm:$0xf]
    %v381 = vld [vmem:[#allocation11 + $0xfc] sm:$0xff]
    %v382 = vld [vmem:[#allocation11 + $0x104] sm:$0xf]
    %v383 = vld [vmem:[#allocation11 + $0x108] sm:$0xff]
    %v384 = vld [vmem:[#allocation11 + $0x110] sm:$0xf]
    %v385 = vld [vmem:[#allocation11 + $0x114] sm:$0xff]
    %v386 = vld [vmem:[#allocation11 + $0x11c] sm:$0xf]
    %v387 = vld [vmem:[#allocation11 + $0x120] sm:$0xff]
    %v388 = vld [vmem:[#allocation11 + $0x128] sm:$0xf]
    %v389 = vld [vmem:[#allocation11 + $0x12c] sm:$0xff]
    %v390 = vld [vmem:[#allocation11 + $0x134] sm:$0xf]
    %v391 = vld [vmem:[#allocation11 + $0x138] sm:$0xff]
    %v392 = vld [vmem:[#allocation11 + $0x140] sm:$0xf]
    %v393 = vld [vmem:[#allocation11 + $0x144] sm:$0xff]
    %v394 = vld [vmem:[#allocation11 + $0x14c] sm:$0xf]
    %v395 = vld [vmem:[#allocation11 + $0x150] sm:$0xff]
    %v396 = vld [vmem:[#allocation11 + $0x158] sm:$0xf]
    %v397 = vld [vmem:[#allocation11 + $0x15c] sm:$0xff]
    %v398 = vld [vmem:[#allocation11 + $0x164] sm:$0xf]
    %v399 = vld [vmem:[#allocation11 + $0x168] sm:$0xff]
    %v400 = vld [vmem:[#allocation11 + $0x170] sm:$0xf]
    %v401 = vld [vmem:[#allocation11 + $0x174] sm:$0xff]
    %v402 = vld [vmem:[#allocation11 + $0x17c] sm:$0xf]
    %v403 = vld [vmem:[#allocation11 + $0x180] sm:$0xff]
    %v404 = vld [vmem:[#allocation11 + $0x188] sm:$0xf]
    %v405 = vld [vmem:[#allocation11 + $0x18c] sm:$0xff]
    %v406 = vld [vmem:[#allocation11 + $0x194] sm:$0xf]
    %v407 = vld [vmem:[#allocation11 + $0x198] sm:$0xff]
    %v408 = vld [vmem:[#allocation11 + $0x1a0] sm:$0xf]
    %v409 = vld [vmem:[#allocation11 + $0x1a4] sm:$0xff]
    %v410 = vld [vmem:[#allocation11 + $0x1ac] sm:$0xf]
    %v411 = vld [vmem:[#allocation11 + $0x1b0] sm:$0xff]
    %v412 = vld [vmem:[#allocation11 + $0x1b8] sm:$0xf]
    %v413 = vld [vmem:[#allocation11 + $0x1bc] sm:$0xff]
    %v414 = vld [vmem:[#allocation11 + $0x1c4] sm:$0xf]
    %v415 = vld [vmem:[#allocation11 + $0x1c8] sm:$0xff]
    %v416 = vld [vmem:[#allocation11 + $0x1d0] sm:$0xf]
    %v417 = vld [vmem:[#allocation11 + $0x1d4] sm:$0xff]
    %v418 = vld [vmem:[#allocation11 + $0x1dc] sm:$0xf]
    %v419 = vld [vmem:[#allocation11 + $0x1e0] sm:$0xff]
    %v420 = vld [vmem:[#allocation11 + $0x1e8] sm:$0xf]
    %v421 = vld [vmem:[#allocation11 + $0x1ec] sm:$0xff]
    %v422 = vld [vmem:[#allocation11 + $0x1f4] sm:$0xf]
    %v423 = vld [vmem:[#allocation11 + $0x1f8] sm:$0xff]
    %v424 = vld [vmem:[#allocation11 + $0x200] sm:$0xf]
    %v425 = vld [vmem:[#allocation11 + $0x204] sm:$0xff]
    %v426 = vld [vmem:[#allocation11 + $0x20c] sm:$0xf]
    %v427 = vld [vmem:[#allocation11 + $0x210] sm:$0xff]
    %v428 = vld [vmem:[#allocation11 + $0x218] sm:$0xf]
    %v429 = vld [vmem:[#allocation11 + $0x21c] sm:$0xff]
    %v430 = vld [vmem:[#allocation11 + $0x224] sm:$0xf]
    %v431 = vld [vmem:[#allocation11 + $0x228] sm:$0xff]
    %v432 = vld [vmem:[#allocation11 + $0x230] sm:$0xf]
    %v433 = vld [vmem:[#allocation11 + $0x234] sm:$0xff]
    %v434 = vld [vmem:[#allocation11 + $0x23c] sm:$0xf]
    %v435 = vld [vmem:[#allocation11 + $0x240] sm:$0xff]
    %v436 = vld [vmem:[#allocation11 + $0x248] sm:$0xf]
    %v437 = vld [vmem:[#allocation11 + $0x24c] sm:$0xff]
    %v438 = vld [vmem:[#allocation11 + $0x254] sm:$0xf]
    %v439 = vld [vmem:[#allocation11 + $0x258] sm:$0xff]
    %v440 = vld [vmem:[#allocation11 + $0x260] sm:$0xf]
    %v441 = vld [vmem:[#allocation11 + $0x264] sm:$0xff]
    %v442 = vld [vmem:[#allocation11 + $0x26c] sm:$0xf]
    %v443 = vld [vmem:[#allocation11 + $0x270] sm:$0xff]
    %v444 = vld [vmem:[#allocation11 + $0x278] sm:$0xf]
    %v445 = vld [vmem:[#allocation11 + $0x27c] sm:$0xff]
    %v446 = vld [vmem:[#allocation11 + $0x284] sm:$0xf]
    %v447 = vld [vmem:[#allocation11 + $0x288] sm:$0xff]
    %v448 = vld [vmem:[#allocation11 + $0x290] sm:$0xf]
    %v449 = vld [vmem:[#allocation11 + $0x294] sm:$0xff]
    %v450 = vld [vmem:[#allocation11 + $0x29c] sm:$0xf]
    %v451 = vld [vmem:[#allocation11 + $0x2a0] sm:$0xff]
    %v452 = vld [vmem:[#allocation11 + $0x2a8] sm:$0xf]
    %v453 = vld [vmem:[#allocation11 + $0x2ac] sm:$0xff]
    %v454 = vld [vmem:[#allocation11 + $0x2b4] sm:$0xf]
    %v455 = vld [vmem:[#allocation11 + $0x2b8] sm:$0xff]
    %v456 = vld [vmem:[#allocation11 + $0x2c0] sm:$0xf]
    %v457 = vld [vmem:[#allocation11 + $0x2c4] sm:$0xff]
    %v458 = vld [vmem:[#allocation11 + $0x2cc] sm:$0xf]
    %v459 = vld [vmem:[#allocation11 + $0x2d0] sm:$0xff]
    %v460 = vld [vmem:[#allocation11 + $0x2d8] sm:$0xf]
    %v461 = vld [vmem:[#allocation11 + $0x2dc] sm:$0xff]
    %v462 = vld [vmem:[#allocation11 + $0x2e4] sm:$0xf]
    %v463 = vld [vmem:[#allocation11 + $0x2e8] sm:$0xff]
    %v464 = vld [vmem:[#allocation11 + $0x2f0] sm:$0xf]
    %v465 = vld [vmem:[#allocation11 + $0x2f4] sm:$0xff]
    %v466 = vld [vmem:[#allocation11 + $0x2fc] sm:$0xf]
    %v467 = vld [vmem:[#allocation11 + $0x300] sm:$0xff]
    %v468 = vld [vmem:[#allocation11 + $0x308] sm:$0xf]
    %v469 = vld [vmem:[#allocation11 + $0x30c] sm:$0xff]
    %v470 = vld [vmem:[#allocation11 + $0x314] sm:$0xf]
    %v471 = vld [vmem:[#allocation11 + $0x318] sm:$0xff]
    %v472 = vld [vmem:[#allocation11 + $0x320] sm:$0xf]
    %v473 = vld [vmem:[#allocation11 + $0x324] sm:$0xff]
    %v474 = vld [vmem:[#allocation11 + $0x32c] sm:$0xf]
    %v475 = vld [vmem:[#allocation11 + $0x330] sm:$0xff]
    %v476 = vld [vmem:[#allocation11 + $0x338] sm:$0xf]
    %v477 = vld [vmem:[#allocation11 + $0x33c] sm:$0xff]
    %v478 = vld [vmem:[#allocation11 + $0x344] sm:$0xf]
    %v479 = vld [vmem:[#allocation11 + $0x348] sm:$0xff]
    %v480 = vld [vmem:[#allocation11 + $0x350] sm:$0xf]
    %v481 = vld [vmem:[#allocation11 + $0x354] sm:$0xff]
    %v482 = vld [vmem:[#allocation11 + $0x35c] sm:$0xf]
    %v483 = vld [vmem:[#allocation11 + $0x360] sm:$0xff]
    %v484 = vld [vmem:[#allocation11 + $0x368] sm:$0xf]
    %v485 = vld [vmem:[#allocation11 + $0x36c] sm:$0xff]
    %v486 = vld [vmem:[#allocation11 + $0x374] sm:$0xf]
    %v487 = vld [vmem:[#allocation11 + $0x378] sm:$0xff]
    %v488 = vld [vmem:[#allocation11 + $0x380] sm:$0xf]
    %v489 = vld [vmem:[#allocation11 + $0x384] sm:$0xff]
    %v490 = vld [vmem:[#allocation11 + $0x38c] sm:$0xf]
    %v491 = vld [vmem:[#allocation11 + $0x390] sm:$0xff]
    %v492 = vld [vmem:[#allocation11 + $0x398] sm:$0xf]
    %v493 = vld [vmem:[#allocation11 + $0x39c] sm:$0xff]
    %v494 = vld [vmem:[#allocation11 + $0x3a4] sm:$0xf]
    %v495 = vld [vmem:[#allocation11 + $0x3a8] sm:$0xff]
    %v496 = vld [vmem:[#allocation11 + $0x3b0] sm:$0xf]
    %v497 = vld [vmem:[#allocation11 + $0x3b4] sm:$0xff]
    %v498 = vld [vmem:[#allocation11 + $0x3bc] sm:$0xf]
    %v499 = vld [vmem:[#allocation11 + $0x3c0] sm:$0xff]
    %v500 = vld [vmem:[#allocation11 + $0x3c8] sm:$0xf]
    %v501 = vld [vmem:[#allocation11 + $0x3cc] sm:$0xff]
    %v502 = vld [vmem:[#allocation11 + $0x3d4] sm:$0xf]
    %v503 = vld [vmem:[#allocation11 + $0x3d8] sm:$0xff]
    %v504 = vld [vmem:[#allocation11 + $0x3e0] sm:$0xf]
    %v505 = vld [vmem:[#allocation11 + $0x3e4] sm:$0xff]
    %v506 = vld [vmem:[#allocation11 + $0x3ec] sm:$0xf]
    %v507 = vld [vmem:[#allocation11 + $0x3f0] sm:$0xff]
    %v508 = vld [vmem:[#allocation11 + $0x3f8] sm:$0xf]
    %v509 = vld [vmem:[#allocation11 + $0x3fc] sm:$0xff]
    %v510 = vld [vmem:[#allocation11 + $0x404] sm:$0xf]
    %v511 = vld [vmem:[#allocation11 + $0x408] sm:$0xff]
    %v512 = vld [vmem:[#allocation11 + $0x410] sm:$0xf]
    %v513 = vld [vmem:[#allocation11 + $0x414] sm:$0xff]
    %v514 = vld [vmem:[#allocation11 + $0x41c] sm:$0xf]
    %v515 = vld [vmem:[#allocation11 + $0x420] sm:$0xff]
    %v516 = vld [vmem:[#allocation11 + $0x428] sm:$0xf]
    %v517 = vld [vmem:[#allocation11 + $0x42c] sm:$0xff]
    %v518 = vld [vmem:[#allocation11 + $0x434] sm:$0xf]
    %v519 = vld [vmem:[#allocation11 + $0x438] sm:$0xff]
    %v520 = vld [vmem:[#allocation11 + $0x440] sm:$0xf]
    %v521 = vld [vmem:[#allocation11 + $0x444] sm:$0xff]
    %v522 = vld [vmem:[#allocation11 + $0x44c] sm:$0xf]
    %v523 = vld [vmem:[#allocation11 + $0x450] sm:$0xff]
    %v524 = vld [vmem:[#allocation11 + $0x458] sm:$0xf]
    %v525 = vld [vmem:[#allocation11 + $0x45c] sm:$0xff]
    %v526 = vld [vmem:[#allocation11 + $0x464] sm:$0xf]
    %v527 = vld [vmem:[#allocation11 + $0x468] sm:$0xff]
    %v528 = vld [vmem:[#allocation11 + $0x470] sm:$0xf]
    %v529 = vld [vmem:[#allocation11 + $0x474] sm:$0xff]
    %v530 = vld [vmem:[#allocation11 + $0x47c] sm:$0xf]
    %v531 = vld [vmem:[#allocation11 + $0x480] sm:$0xff]
    %v532 = vld [vmem:[#allocation11 + $0x488] sm:$0xf]
    %v533 = vld [vmem:[#allocation11 + $0x48c] sm:$0xff]
    %v534 = vld [vmem:[#allocation11 + $0x494] sm:$0xf]
    %v535 = vld [vmem:[#allocation11 + $0x498] sm:$0xff]
    %v536 = vld [vmem:[#allocation11 + $0x4a0] sm:$0xf]
    %v537 = vld [vmem:[#allocation11 + $0x4a4] sm:$0xff]
    %v538 = vld [vmem:[#allocation11 + $0x4ac] sm:$0xf]
    %v539 = vld [vmem:[#allocation11 + $0x4b0] sm:$0xff]
    %v540 = vld [vmem:[#allocation11 + $0x4b8] sm:$0xf]
    %v541 = vld [vmem:[#allocation11 + $0x4bc] sm:$0xff]
    %v542 = vld [vmem:[#allocation11 + $0x4c4] sm:$0xf]
    %v543 = vld [vmem:[#allocation11 + $0x4c8] sm:$0xff]
    %v544 = vld [vmem:[#allocation11 + $0x4d0] sm:$0xf]
    %v545 = vld [vmem:[#allocation11 + $0x4d4] sm:$0xff]
    %v546 = vld [vmem:[#allocation11 + $0x4dc] sm:$0xf]
    %v547 = vld [vmem:[#allocation11 + $0x4e0] sm:$0xff]
    %v548 = vld [vmem:[#allocation11 + $0x4e8] sm:$0xf]
    %v549 = vld [vmem:[#allocation11 + $0x4ec] sm:$0xff]
    %v550 = vld [vmem:[#allocation11 + $0x4f4] sm:$0xf]
    %v551 = vld [vmem:[#allocation11 + $0x4f8] sm:$0xff]
    %v552 = vld [vmem:[#allocation11 + $0x500] sm:$0xf]
    %v553 = vld [vmem:[#allocation11 + $0x504] sm:$0xff]
    %v554 = vld [vmem:[#allocation11 + $0x50c] sm:$0xf]
    %v555 = vld [vmem:[#allocation11 + $0x510] sm:$0xff]
    %v556 = vld [vmem:[#allocation11 + $0x518] sm:$0xf]
    %v557 = vld [vmem:[#allocation11 + $0x51c] sm:$0xff]
    %v558 = vld [vmem:[#allocation11 + $0x524] sm:$0xf]
    %v559 = vld [vmem:[#allocation11 + $0x528] sm:$0xff]
    %v560 = vld [vmem:[#allocation11 + $0x530] sm:$0xf]
    %v561 = vld [vmem:[#allocation11 + $0x534] sm:$0xff]
    %v562 = vld [vmem:[#allocation11 + $0x53c] sm:$0xf]
    %v563 = vld [vmem:[#allocation11 + $0x540] sm:$0xff]
    %v564 = vld [vmem:[#allocation11 + $0x548] sm:$0xf]
    %v565 = vld [vmem:[#allocation11 + $0x54c] sm:$0xff]
    %v566 = vld [vmem:[#allocation11 + $0x554] sm:$0xf]
    %v567 = vld [vmem:[#allocation11 + $0x558] sm:$0xff]
    %v568 = vld [vmem:[#allocation11 + $0x560] sm:$0xf]
    %v569 = vld [vmem:[#allocation11 + $0x564] sm:$0xff]
    %v570 = vld [vmem:[#allocation11 + $0x56c] sm:$0xf]
    %v571 = vld [vmem:[#allocation11 + $0x570] sm:$0xff]
    %v572 = vld [vmem:[#allocation11 + $0x578] sm:$0xf]
    %v573 = vld [vmem:[#allocation11 + $0x57c] sm:$0xff]
    %v574 = vld [vmem:[#allocation11 + $0x584] sm:$0xf]
    %v575 = vld [vmem:[#allocation11 + $0x588] sm:$0xff]
    %v576 = vld [vmem:[#allocation11 + $0x590] sm:$0xf]
    %v577 = vld [vmem:[#allocation11 + $0x594] sm:$0xff]
    %v578 = vld [vmem:[#allocation11 + $0x59c] sm:$0xf]
    %v579 = vld [vmem:[#allocation11 + $0x5a0] sm:$0xff]
    %v580 = vld [vmem:[#allocation11 + $0x5a8] sm:$0xf]
    %v581 = vld [vmem:[#allocation11 + $0x5ac] sm:$0xff]
    %v582 = vld [vmem:[#allocation11 + $0x5b4] sm:$0xf]
    %v583 = vld [vmem:[#allocation11 + $0x5b8] sm:$0xff]
    %v584 = vld [vmem:[#allocation11 + $0x5c0] sm:$0xf]
    %v585 = vld [vmem:[#allocation11 + $0x5c4] sm:$0xff]
    %v586 = vld [vmem:[#allocation11 + $0x5cc] sm:$0xf]
    %v587 = vld [vmem:[#allocation11 + $0x5d0] sm:$0xff]
    %v588 = vld [vmem:[#allocation11 + $0x5d8] sm:$0xf]
    %v589 = vld [vmem:[#allocation11 + $0x5dc] sm:$0xff]
    %v590 = vld [vmem:[#allocation11 + $0x5e4] sm:$0xf]
    %v591 = vld [vmem:[#allocation11 + $0x5e8] sm:$0xff]
    %v592 = vld [vmem:[#allocation11 + $0x5f0] sm:$0xf]
    %v593 = vld [vmem:[#allocation11 + $0x5f4] sm:$0xff]
    %v594 = vld [vmem:[#allocation11 + $0x5fc] sm:$0xf]
    %v595 = vld [vmem:[#allocation11 + $0x600] sm:$0xff]
    %v596 = vld [vmem:[#allocation11 + $0x608] sm:$0xf]
    %v597 = vld [vmem:[#allocation11 + $0x60c] sm:$0xff]
    %v598 = vld [vmem:[#allocation11 + $0x614] sm:$0xf]
    %v599 = vld [vmem:[#allocation11 + $0x618] sm:$0xff]
    %v600 = vld [vmem:[#allocation11 + $0x620] sm:$0xf]
    %v601 = vld [vmem:[#allocation11 + $0x624] sm:$0xff]
    %v602 = vld [vmem:[#allocation11 + $0x62c] sm:$0xf]
    %v603 = vld [vmem:[#allocation11 + $0x630] sm:$0xff]
    %v604 = vld [vmem:[#allocation11 + $0x638] sm:$0xf]
    %v605 = vld [vmem:[#allocation11 + $0x63c] sm:$0xff]
    %v606 = vld [vmem:[#allocation11 + $0x644] sm:$0xf]
    %v607 = vld [vmem:[#allocation11 + $0x648] sm:$0xff]
    %v608 = vld [vmem:[#allocation11 + $0x650] sm:$0xf]
    %v609 = vld [vmem:[#allocation11 + $0x654] sm:$0xff]
    %v610 = vld [vmem:[#allocation11 + $0x65c] sm:$0xf]
    %v611 = vld [vmem:[#allocation11 + $0x660] sm:$0xff]
    %v612 = vld [vmem:[#allocation11 + $0x668] sm:$0xf]
    %v613 = vld [vmem:[#allocation11 + $0x66c] sm:$0xff]
    %v614 = vld [vmem:[#allocation11 + $0x674] sm:$0xf]
    %v615 = vld [vmem:[#allocation11 + $0x678] sm:$0xff]
    %v616 = vld [vmem:[#allocation11 + $0x680] sm:$0xf]
    %v617 = vld [vmem:[#allocation11 + $0x684] sm:$0xff]
    %v618 = vld [vmem:[#allocation11 + $0x68c] sm:$0xf]
    %v619 = vld [vmem:[#allocation11 + $0x690] sm:$0xff]
    %v620 = vld [vmem:[#allocation11 + $0x698] sm:$0xf]
    %v621 = vld [vmem:[#allocation11 + $0x69c] sm:$0xff]
    %v622 = vld [vmem:[#allocation11 + $0x6a4] sm:$0xf]
    %v623 = vld [vmem:[#allocation11 + $0x6a8] sm:$0xff]
    %v624 = vld [vmem:[#allocation11 + $0x6b0] sm:$0xf]
    %v625 = vld [vmem:[#allocation11 + $0x6b4] sm:$0xff]
    %v626 = vld [vmem:[#allocation11 + $0x6bc] sm:$0xf]
    %v627 = vld [vmem:[#allocation11 + $0x6c0] sm:$0xff]
    %v628 = vld [vmem:[#allocation11 + $0x6c8] sm:$0xf]
    %v629 = vld [vmem:[#allocation11 + $0x6cc] sm:$0xff]
    %v630 = vld [vmem:[#allocation11 + $0x6d4] sm:$0xf]
    %v631 = vld [vmem:[#allocation11 + $0x6d8] sm:$0xff]
    %v632 = vld [vmem:[#allocation11 + $0x6e0] sm:$0xf]
    %v633 = vld [vmem:[#allocation11 + $0x6e4] sm:$0xff]
    %v634 = vld [vmem:[#allocation11 + $0x6ec] sm:$0xf]
    %v635 = vld [vmem:[#allocation11 + $0x6f0] sm:$0xff]
    %v636 = vld [vmem:[#allocation11 + $0x6f8] sm:$0xf]
    %v637 = vld [vmem:[#allocation11 + $0x6fc] sm:$0xff]
    %v638 = vld [vmem:[#allocation11 + $0x704] sm:$0xf]
    %v639 = vld [vmem:[#allocation11 + $0x708] sm:$0xff]
    %v640 = vld [vmem:[#allocation11 + $0x710] sm:$0xf]
    %v641 = vld [vmem:[#allocation11 + $0x714] sm:$0xff]
    %v642 = vld [vmem:[#allocation11 + $0x71c] sm:$0xf]
    %v643 = vld [vmem:[#allocation11 + $0x720] sm:$0xff]
    %v644 = vld [vmem:[#allocation11 + $0x728] sm:$0xf]
    %v645 = vld [vmem:[#allocation11 + $0x72c] sm:$0xff]
    %v646 = vld [vmem:[#allocation11 + $0x734] sm:$0xf]
    %v647 = vld [vmem:[#allocation11 + $0x738] sm:$0xff]
    %v648 = vld [vmem:[#allocation11 + $0x740] sm:$0xf]
    %v649 = vld [vmem:[#allocation11 + $0x744] sm:$0xff]
    %v650 = vld [vmem:[#allocation11 + $0x74c] sm:$0xf]
    %v651 = vld [vmem:[#allocation11 + $0x750] sm:$0xff]
    %v652 = vld [vmem:[#allocation11 + $0x758] sm:$0xf]
    %v653 = vld [vmem:[#allocation11 + $0x75c] sm:$0xff]
    %v654 = vld [vmem:[#allocation11 + $0x764] sm:$0xf]
    %v655 = vld [vmem:[#allocation11 + $0x768] sm:$0xff]
    %v656 = vld [vmem:[#allocation11 + $0x770] sm:$0xf]
    %v657 = vld [vmem:[#allocation11 + $0x774] sm:$0xff]
    %v658 = vld [vmem:[#allocation11 + $0x77c] sm:$0xf]
    %v659 = vld [vmem:[#allocation11 + $0x780] sm:$0xff]
    %v660 = vld [vmem:[#allocation11 + $0x788] sm:$0xf]
    %v661 = vld [vmem:[#allocation11 + $0x78c] sm:$0xff]
    %v662 = vld [vmem:[#allocation11 + $0x794] sm:$0xf]
    %v663 = vld [vmem:[#allocation11 + $0x798] sm:$0xff]
    %v664 = vld [vmem:[#allocation11 + $0x7a0] sm:$0xf]
    %v665 = vld [vmem:[#allocation11 + $0x7a4] sm:$0xff]
    %v666 = vld [vmem:[#allocation11 + $0x7ac] sm:$0xf]
    %v667 = vld [vmem:[#allocation11 + $0x7b0] sm:$0xff]
    %v668 = vld [vmem:[#allocation11 + $0x7b8] sm:$0xf]
    %v669 = vld [vmem:[#allocation11 + $0x7bc] sm:$0xff]
    %v670 = vld [vmem:[#allocation11 + $0x7c4] sm:$0xf]
    %v671 = vld [vmem:[#allocation11 + $0x7c8] sm:$0xff]
    %v672 = vld [vmem:[#allocation11 + $0x7d0] sm:$0xf]
    %v673 = vld [vmem:[#allocation11 + $0x7d4] sm:$0xff]
    %v674 = vld [vmem:[#allocation11 + $0x7dc] sm:$0xf]
    %v675 = vld [vmem:[#allocation11 + $0x7e0] sm:$0xff]
    %v676 = vld [vmem:[#allocation11 + $0x7e8] sm:$0xf]
    %v677 = vld [vmem:[#allocation11 + $0x7ec] sm:$0xff]
    %v678 = vld [vmem:[#allocation11 + $0x7f4] sm:$0xf]
    %v679 = vld [vmem:[#allocation11 + $0x7f8] sm:$0xff]
    %v680 = vld [vmem:[#allocation11 + $0x800] sm:$0xf]
    %v681 = vld [vmem:[#allocation11 + $0x804] sm:$0xff]
    %v682 = vld [vmem:[#allocation11 + $0x80c] sm:$0xf]
    %v683 = vld [vmem:[#allocation11 + $0x810] sm:$0xff]
    %v684 = vld [vmem:[#allocation11 + $0x818] sm:$0xf]
    %v685 = vld [vmem:[#allocation11 + $0x81c] sm:$0xff]
    %v686 = vld [vmem:[#allocation11 + $0x824] sm:$0xf]
    %v687 = vld [vmem:[#allocation11 + $0x828] sm:$0xff]
    %v688 = vld [vmem:[#allocation11 + $0x830] sm:$0xf]
    %v689 = vld [vmem:[#allocation11 + $0x834] sm:$0xff]
    %v690 = vld [vmem:[#allocation11 + $0x83c] sm:$0xf]
    %v691 = vld [vmem:[#allocation11 + $0x840] sm:$0xff]
    %v692 = vld [vmem:[#allocation11 + $0x848] sm:$0xf]
    %v693 = vld [vmem:[#allocation11 + $0x84c] sm:$0xff]
    %v694 = vld [vmem:[#allocation11 + $0x854] sm:$0xf]
    %v695 = vld [vmem:[#allocation11 + $0x858] sm:$0xff]
    %v696 = vld [vmem:[#allocation11 + $0x860] sm:$0xf]
    %v697 = vld [vmem:[#allocation11 + $0x864] sm:$0xff]
    %v698 = vld [vmem:[#allocation11 + $0x86c] sm:$0xf]
    %v699 = vld [vmem:[#allocation11 + $0x870] sm:$0xff]
    %v700 = vld [vmem:[#allocation11 + $0x878] sm:$0xf]
    %v701 = vld [vmem:[#allocation11 + $0x87c] sm:$0xff]
    %v702 = vld [vmem:[#allocation11 + $0x884] sm:$0xf]
    %v703 = vld [vmem:[#allocation11 + $0x888] sm:$0xff]
    %v704 = vld [vmem:[#allocation11 + $0x890] sm:$0xf]
    %v705 = vld [vmem:[#allocation11 + $0x894] sm:$0xff]
    %v706 = vld [vmem:[#allocation11 + $0x89c] sm:$0xf]
    %v707 = vld [vmem:[#allocation11 + $0x8a0] sm:$0xff]
    %v708 = vld [vmem:[#allocation11 + $0x8a8] sm:$0xf]
    %v709 = vld [vmem:[#allocation11 + $0x8ac] sm:$0xff]
    %v710 = vld [vmem:[#allocation11 + $0x8b4] sm:$0xf]
    %v711 = vld [vmem:[#allocation11 + $0x8b8] sm:$0xff]
    %v712 = vld [vmem:[#allocation11 + $0x8c0] sm:$0xf]
    %v713 = vld [vmem:[#allocation11 + $0x8c4] sm:$0xff]
    %v714 = vld [vmem:[#allocation11 + $0x8cc] sm:$0xf]
    %v715 = vld [vmem:[#allocation11 + $0x8d0] sm:$0xff]
    %v716 = vld [vmem:[#allocation11 + $0x8d8] sm:$0xf]
    %v717 = vld [vmem:[#allocation11 + $0x8dc] sm:$0xff]
    %v718 = vld [vmem:[#allocation11 + $0x8e4] sm:$0xf]
    %v719 = vld [vmem:[#allocation11 + $0x8e8] sm:$0xff]
    %v720 = vld [vmem:[#allocation11 + $0x8f0] sm:$0xf]
    %v721 = vld [vmem:[#allocation11 + $0x8f4] sm:$0xff]
    %v722 = vld [vmem:[#allocation11 + $0x8fc] sm:$0xf]
    %v723 = vld [vmem:[#allocation11 + $0x900] sm:$0xff]
    %v724 = vld [vmem:[#allocation11 + $0x908] sm:$0xf]
    %v725 = vld [vmem:[#allocation11 + $0x90c] sm:$0xff]
    %v726 = vld [vmem:[#allocation11 + $0x914] sm:$0xf]
    %v727 = vld [vmem:[#allocation11 + $0x918] sm:$0xff]
    %v728 = vld [vmem:[#allocation11 + $0x920] sm:$0xf]
    %v729 = vld [vmem:[#allocation11 + $0x924] sm:$0xff]
    %v730 = vld [vmem:[#allocation11 + $0x92c] sm:$0xf]
    %v731 = vld [vmem:[#allocation11 + $0x930] sm:$0xff]
    %v732 = vld [vmem:[#allocation11 + $0x938] sm:$0xf]
    %v733 = vld [vmem:[#allocation11 + $0x93c] sm:$0xff]
    %v734 = vld [vmem:[#allocation11 + $0x944] sm:$0xf]
    %v735 = vld [vmem:[#allocation11 + $0x948] sm:$0xff]
    %v736 = vld [vmem:[#allocation11 + $0x950] sm:$0xf]
    %v737 = vld [vmem:[#allocation11 + $0x954] sm:$0xff]
    %v738 = vld [vmem:[#allocation11 + $0x95c] sm:$0xf]
    %v739 = vld [vmem:[#allocation11 + $0x960] sm:$0xff]
    %v740 = vld [vmem:[#allocation11 + $0x968] sm:$0xf]
    %v741 = vld [vmem:[#allocation11 + $0x96c] sm:$0xff]
    %v742 = vld [vmem:[#allocation11 + $0x974] sm:$0xf]
    %v743 = vld [vmem:[#allocation11 + $0x978] sm:$0xff]
    %v744 = vld [vmem:[#allocation11 + $0x980] sm:$0xf]
    %v745 = vld [vmem:[#allocation11 + $0x984] sm:$0xff]
    %v746 = vld [vmem:[#allocation11 + $0x98c] sm:$0xf]
    %v747 = vld [vmem:[#allocation11 + $0x990] sm:$0xff]
    %v748 = vld [vmem:[#allocation11 + $0x998] sm:$0xf]
    %v749 = vld [vmem:[#allocation11 + $0x99c] sm:$0xff]
    %v750 = vld [vmem:[#allocation11 + $0x9a4] sm:$0xf]
    %v751 = vld [vmem:[#allocation11 + $0x9a8] sm:$0xff]
    %v752 = vld [vmem:[#allocation11 + $0x9b0] sm:$0xf]
    %v753 = vld [vmem:[#allocation11 + $0x9b4] sm:$0xff]
    %v754 = vld [vmem:[#allocation11 + $0x9bc] sm:$0xf]
    %v755 = vld [vmem:[#allocation11 + $0x9c0] sm:$0xff]
    %v756 = vld [vmem:[#allocation11 + $0x9c8] sm:$0xf]
    %v757 = vld [vmem:[#allocation11 + $0x9cc] sm:$0xff]
    %v758 = vld [vmem:[#allocation11 + $0x9d4] sm:$0xf]
    %v759 = vld [vmem:[#allocation11 + $0x9d8] sm:$0xff]
    %v760 = vld [vmem:[#allocation11 + $0x9e0] sm:$0xf]
    %v761 = vld [vmem:[#allocation11 + $0x9e4] sm:$0xff]
    %v762 = vld [vmem:[#allocation11 + $0x9ec] sm:$0xf]
    %v763 = vld [vmem:[#allocation11 + $0x9f0] sm:$0xff]
    %v764 = vld [vmem:[#allocation11 + $0x9f8] sm:$0xf]
    %v765 = vld [vmem:[#allocation11 + $0x9fc] sm:$0xff]
    %v766 = vld [vmem:[#allocation11 + $0xa04] sm:$0xf]
    %v767 = vld [vmem:[#allocation11 + $0xa08] sm:$0xff]
    %v768 = vld [vmem:[#allocation11 + $0xa10] sm:$0xf]
    %v769 = vld [vmem:[#allocation11 + $0xa14] sm:$0xff]
    %v770 = vld [vmem:[#allocation11 + $0xa1c] sm:$0xf]
    %v771 = vld [vmem:[#allocation11 + $0xa20] sm:$0xff]
    %v772 = vld [vmem:[#allocation11 + $0xa28] sm:$0xf]
    %v773 = vld [vmem:[#allocation11 + $0xa2c] sm:$0xff]
    %v774 = vld [vmem:[#allocation11 + $0xa34] sm:$0xf]
    %v775 = vld [vmem:[#allocation11 + $0xa38] sm:$0xff]
    %v776 = vld [vmem:[#allocation11 + $0xa40] sm:$0xf]
    %v777 = vld [vmem:[#allocation11 + $0xa44] sm:$0xff]
    %v778 = vld [vmem:[#allocation11 + $0xa4c] sm:$0xf]
    %v779 = vld [vmem:[#allocation11 + $0xa50] sm:$0xff]
    %v780 = vld [vmem:[#allocation11 + $0xa58] sm:$0xf]
    %v781 = vld [vmem:[#allocation11 + $0xa5c] sm:$0xff]
    %v782 = vld [vmem:[#allocation11 + $0xa64] sm:$0xf]
    %v783 = vld [vmem:[#allocation11 + $0xa68] sm:$0xff]
    %v784 = vld [vmem:[#allocation11 + $0xa70] sm:$0xf]
    %v785 = vld [vmem:[#allocation11 + $0xa74] sm:$0xff]
    %v786 = vld [vmem:[#allocation11 + $0xa7c] sm:$0xf]
    %v787 = vld [vmem:[#allocation11 + $0xa80] sm:$0xff]
    %v788 = vld [vmem:[#allocation11 + $0xa88] sm:$0xf]
    %v789 = vld [vmem:[#allocation11 + $0xa8c] sm:$0xff]
    %v790 = vld [vmem:[#allocation11 + $0xa94] sm:$0xf]
    %v791 = vld [vmem:[#allocation11 + $0xa98] sm:$0xff]
    %v792 = vld [vmem:[#allocation11 + $0xaa0] sm:$0xf]
    %v793 = vld [vmem:[#allocation11 + $0xaa4] sm:$0xff]
    %v794 = vld [vmem:[#allocation11 + $0xaac] sm:$0xf]
    %v795 = vld [vmem:[#allocation11 + $0xab0] sm:$0xff]
    %v796 = vld [vmem:[#allocation11 + $0xab8] sm:$0xf]
    %v797 = vld [vmem:[#allocation11 + $0xabc] sm:$0xff]
    %v798 = vld [vmem:[#allocation11 + $0xac4] sm:$0xf]
    %v799 = vld [vmem:[#allocation11 + $0xac8] sm:$0xff]
    %v800 = vld [vmem:[#allocation11 + $0xad0] sm:$0xf]
    %v801 = vld [vmem:[#allocation11 + $0xad4] sm:$0xff]
    %v802 = vld [vmem:[#allocation11 + $0xadc] sm:$0xf]
    %v803 = vld [vmem:[#allocation11 + $0xae0] sm:$0xff]
    %v804 = vld [vmem:[#allocation11 + $0xae8] sm:$0xf]
    %v805 = vld [vmem:[#allocation11 + $0xaec] sm:$0xff]
    %v806 = vld [vmem:[#allocation11 + $0xaf4] sm:$0xf]
    %v807 = vld [vmem:[#allocation11 + $0xaf8] sm:$0xff]
    %v808 = vld [vmem:[#allocation11 + $0xb00] sm:$0xf]
    %v809 = vld [vmem:[#allocation11 + $0xb04] sm:$0xff]
    %v810 = vld [vmem:[#allocation11 + $0xb0c] sm:$0xf]
    %v811 = vld [vmem:[#allocation11 + $0xb10] sm:$0xff]
    %v812 = vld [vmem:[#allocation11 + $0xb18] sm:$0xf]
    %v813 = vld [vmem:[#allocation11 + $0xb1c] sm:$0xff]
    %v814 = vld [vmem:[#allocation11 + $0xb24] sm:$0xf]
    %v815 = vld [vmem:[#allocation11 + $0xb28] sm:$0xff]
    %v816 = vld [vmem:[#allocation11 + $0xb30] sm:$0xf]
    %v817 = vld [vmem:[#allocation11 + $0xb34] sm:$0xff]
    %v818 = vld [vmem:[#allocation11 + $0xb3c] sm:$0xf]
    %v819 = vld [vmem:[#allocation11 + $0xb40] sm:$0xff]
    %v820 = vld [vmem:[#allocation11 + $0xb48] sm:$0xf]
    %v821 = vld [vmem:[#allocation11 + $0xb4c] sm:$0xff]
    %v822 = vld [vmem:[#allocation11 + $0xb54] sm:$0xf]
    %v823 = vld [vmem:[#allocation11 + $0xb58] sm:$0xff]
    %v824 = vld [vmem:[#allocation11 + $0xb60] sm:$0xf]
    %v825 = vld [vmem:[#allocation11 + $0xb64] sm:$0xff]
    %v826 = vld [vmem:[#allocation11 + $0xb6c] sm:$0xf]
    %v827 = vld [vmem:[#allocation11 + $0xb70] sm:$0xff]
    %v828 = vld [vmem:[#allocation11 + $0xb78] sm:$0xf]
    %v829 = vld [vmem:[#allocation11 + $0xb7c] sm:$0xff]
    %v830 = vld [vmem:[#allocation11 + $0xb84] sm:$0xf]
    %v831 = vld [vmem:[#allocation11 + $0xb88] sm:$0xff]
    %v832 = vld [vmem:[#allocation11 + $0xb90] sm:$0xf]
    %v833 = vld [vmem:[#allocation11 + $0xb94] sm:$0xff]
    %v834 = vld [vmem:[#allocation11 + $0xb9c] sm:$0xf]
    %v835 = vld [vmem:[#allocation11 + $0xba0] sm:$0xff]
    %v836 = vld [vmem:[#allocation11 + $0xba8] sm:$0xf]
    %v837 = vld [vmem:[#allocation11 + $0xbac] sm:$0xff]
    %v838 = vld [vmem:[#allocation11 + $0xbb4] sm:$0xf]
    %v839 = vld [vmem:[#allocation11 + $0xbb8] sm:$0xff]
    %v840 = vld [vmem:[#allocation11 + $0xbc0] sm:$0xf]
    %v841 = vld [vmem:[#allocation11 + $0xbc4] sm:$0xff]
    %v842 = vld [vmem:[#allocation11 + $0xbcc] sm:$0xf]
    %v843 = vld [vmem:[#allocation11 + $0xbd0] sm:$0xff]
    %v844 = vld [vmem:[#allocation11 + $0xbd8] sm:$0xf]
    %v845 = vld [vmem:[#allocation11 + $0xbdc] sm:$0xff]
    %v846 = vld [vmem:[#allocation11 + $0xbe4] sm:$0xf]
    %v847 = vld [vmem:[#allocation11 + $0xbe8] sm:$0xff]
    %v848 = vld [vmem:[#allocation11 + $0xbf0] sm:$0xf]
    %v849 = vld [vmem:[#allocation11 + $0xbf4] sm:$0xff]
    %v850 = vld [vmem:[#allocation11 + $0xbfc] sm:$0xf]
    %v851 = vld [vmem:[#allocation11 + $0xc00] sm:$0xff]
    %v852 = vld [vmem:[#allocation11 + $0xc08] sm:$0xf]
    %v853 = vld [vmem:[#allocation11 + $0xc0c] sm:$0xff]
    %v854 = vld [vmem:[#allocation11 + $0xc14] sm:$0xf]
    %v855 = vld [vmem:[#allocation11 + $0xc18] sm:$0xff]
    %v856 = vld [vmem:[#allocation11 + $0xc20] sm:$0xf]
    %v857 = vld [vmem:[#allocation11 + $0xc24] sm:$0xff]
    %v858 = vld [vmem:[#allocation11 + $0xc2c] sm:$0xf]
    %v859 = vld [vmem:[#allocation11 + $0xc30] sm:$0xff]
    %v860 = vld [vmem:[#allocation11 + $0xc38] sm:$0xf]
    %v861 = vld [vmem:[#allocation11 + $0xc3c] sm:$0xff]
    %v862 = vld [vmem:[#allocation11 + $0xc44] sm:$0xf]
    %v863 = vld [vmem:[#allocation11 + $0xc48] sm:$0xff]
    %v864 = vld [vmem:[#allocation11 + $0xc50] sm:$0xf]
    %v865 = vld [vmem:[#allocation11 + $0xc54] sm:$0xff]
    %v866 = vld [vmem:[#allocation11 + $0xc5c] sm:$0xf]
    %v867 = vld [vmem:[#allocation11 + $0xc60] sm:$0xff]
    %v868 = vld [vmem:[#allocation11 + $0xc68] sm:$0xf]
    %v869 = vld [vmem:[#allocation11 + $0xc6c] sm:$0xff]
    %v870 = vld [vmem:[#allocation11 + $0xc74] sm:$0xf]
    %v871 = vld [vmem:[#allocation11 + $0xc78] sm:$0xff]
    %v872 = vld [vmem:[#allocation11 + $0xc80] sm:$0xf]
    %v873 = vld [vmem:[#allocation11 + $0xc84] sm:$0xff]
    %v874 = vld [vmem:[#allocation11 + $0xc8c] sm:$0xf]
    %v875 = vld [vmem:[#allocation11 + $0xc90] sm:$0xff]
    %v876 = vld [vmem:[#allocation11 + $0xc98] sm:$0xf]
    %v877 = vld [vmem:[#allocation11 + $0xc9c] sm:$0xff]
    %v878 = vld [vmem:[#allocation11 + $0xca4] sm:$0xf]
    %v879 = vld [vmem:[#allocation11 + $0xca8] sm:$0xff]
    %v880 = vld [vmem:[#allocation11 + $0xcb0] sm:$0xf]
    %v881 = vld [vmem:[#allocation11 + $0xcb4] sm:$0xff]
    %v882 = vld [vmem:[#allocation11 + $0xcbc] sm:$0xf]
    %v883 = vld [vmem:[#allocation11 + $0xcc0] sm:$0xff]
    %v884 = vld [vmem:[#allocation11 + $0xcc8] sm:$0xf]
    %v885 = vld [vmem:[#allocation11 + $0xccc] sm:$0xff]
    %v886 = vld [vmem:[#allocation11 + $0xcd4] sm:$0xf]
    %v887 = vld [vmem:[#allocation11 + $0xcd8] sm:$0xff]
    %v888 = vld [vmem:[#allocation11 + $0xce0] sm:$0xf]
    %v889 = vld [vmem:[#allocation11 + $0xce4] sm:$0xff]
    %v890 = vld [vmem:[#allocation11 + $0xcec] sm:$0xf]
    %v891 = vld [vmem:[#allocation11 + $0xcf0] sm:$0xff]
    %v892 = vld [vmem:[#allocation11 + $0xcf8] sm:$0xf]
    %v893 = vld [vmem:[#allocation11 + $0xcfc] sm:$0xff]
    %v894 = vld [vmem:[#allocation11 + $0xd04] sm:$0xf]
    %v895 = vld [vmem:[#allocation11 + $0xd08] sm:$0xff]
    %v896 = vld [vmem:[#allocation11 + $0xd10] sm:$0xf]
    %v897 = vld [vmem:[#allocation11 + $0xd14] sm:$0xff]
    %v898 = vld [vmem:[#allocation11 + $0xd1c] sm:$0xf]
    %v899 = vld [vmem:[#allocation11 + $0xd20] sm:$0xff]
    %v900 = vld [vmem:[#allocation11 + $0xd28] sm:$0xf]
    %v901 = vld [vmem:[#allocation11 + $0xd2c] sm:$0xff]
    %v902 = vld [vmem:[#allocation11 + $0xd34] sm:$0xf]
    %v903 = vld [vmem:[#allocation11 + $0xd38] sm:$0xff]
    %v904 = vld [vmem:[#allocation11 + $0xd40] sm:$0xf]
    %v905 = vld [vmem:[#allocation11 + $0xd44] sm:$0xff]
    %v906 = vld [vmem:[#allocation11 + $0xd4c] sm:$0xf]
    %v907 = vld [vmem:[#allocation11 + $0xd50] sm:$0xff]
    %v908 = vld [vmem:[#allocation11 + $0xd58] sm:$0xf]
    %v909 = vld [vmem:[#allocation11 + $0xd5c] sm:$0xff]
    %v910 = vld [vmem:[#allocation11 + $0xd64] sm:$0xf]
    %v911 = vld [vmem:[#allocation11 + $0xd68] sm:$0xff]
    %v912 = vld [vmem:[#allocation11 + $0xd70] sm:$0xf]
    %v913 = vld [vmem:[#allocation11 + $0xd74] sm:$0xff]
    %v914 = vld [vmem:[#allocation11 + $0xd7c] sm:$0xf]
    %v915 = vld [vmem:[#allocation11 + $0xd80] sm:$0xff]
    %v916 = vld [vmem:[#allocation11 + $0xd88] sm:$0xf]
    %v917 = vld [vmem:[#allocation11 + $0xd8c] sm:$0xff]
    %v918 = vld [vmem:[#allocation11 + $0xd94] sm:$0xf]
    %v919 = vld [vmem:[#allocation11 + $0xd98] sm:$0xff]
    %v920 = vld [vmem:[#allocation11 + $0xda0] sm:$0xf]
    %v921 = vld [vmem:[#allocation11 + $0xda4] sm:$0xff]
    %v922 = vld [vmem:[#allocation11 + $0xdac] sm:$0xf]
    %v923 = vld [vmem:[#allocation11 + $0xdb0] sm:$0xff]
    %v924 = vld [vmem:[#allocation11 + $0xdb8] sm:$0xf]
    %v925 = vld [vmem:[#allocation11 + $0xdbc] sm:$0xff]
    %v926 = vld [vmem:[#allocation11 + $0xdc4] sm:$0xf]
    %v927 = vld [vmem:[#allocation11 + $0xdc8] sm:$0xff]
    %v928 = vld [vmem:[#allocation11 + $0xdd0] sm:$0xf]
    %v929 = vld [vmem:[#allocation11 + $0xdd4] sm:$0xff]
    %v930 = vld [vmem:[#allocation11 + $0xddc] sm:$0xf]
    %v931 = vld [vmem:[#allocation11 + $0xde0] sm:$0xff]
    %v932 = vld [vmem:[#allocation11 + $0xde8] sm:$0xf]
    %v933 = vld [vmem:[#allocation11 + $0xdec] sm:$0xff]
    %v934 = vld [vmem:[#allocation11 + $0xdf4] sm:$0xf]
    %v935 = vld [vmem:[#allocation11 + $0xdf8] sm:$0xff]
    %v936 = vld [vmem:[#allocation11 + $0xe00] sm:$0xf]
    %v937 = vld [vmem:[#allocation11 + $0xe04] sm:$0xff]
    %v938 = vld [vmem:[#allocation11 + $0xe0c] sm:$0xf]
    %v939 = vld [vmem:[#allocation11 + $0xe10] sm:$0xff]
    %v940 = vld [vmem:[#allocation11 + $0xe18] sm:$0xf]
    %v941 = vld [vmem:[#allocation11 + $0xe1c] sm:$0xff]
    %v942 = vld [vmem:[#allocation11 + $0xe24] sm:$0xf]
    %v943 = vld [vmem:[#allocation11 + $0xe28] sm:$0xff]
    %v944 = vld [vmem:[#allocation11 + $0xe30] sm:$0xf]
    %v945 = vld [vmem:[#allocation11 + $0xe34] sm:$0xff]
    %v946 = vld [vmem:[#allocation11 + $0xe3c] sm:$0xf]
    %v947 = vld [vmem:[#allocation11 + $0xe40] sm:$0xff]
    %v948 = vld [vmem:[#allocation11 + $0xe48] sm:$0xf]
    %v949 = vld [vmem:[#allocation11 + $0xe4c] sm:$0xff]
    %v950 = vld [vmem:[#allocation11 + $0xe54] sm:$0xf]
    %v951 = vld [vmem:[#allocation11 + $0xe58] sm:$0xff]
    %v952 = vld [vmem:[#allocation11 + $0xe60] sm:$0xf]
    %v953 = vld [vmem:[#allocation11 + $0xe64] sm:$0xff]
    %v954 = vld [vmem:[#allocation11 + $0xe6c] sm:$0xf]
    %v955 = vld [vmem:[#allocation11 + $0xe70] sm:$0xff]
    %v956 = vld [vmem:[#allocation11 + $0xe78] sm:$0xf]
    %v957 = vld [vmem:[#allocation11 + $0xe7c] sm:$0xff]
    %v958 = vld [vmem:[#allocation11 + $0xe84] sm:$0xf]
    %v959 = vld [vmem:[#allocation11 + $0xe88] sm:$0xff]
    %v960 = vld [vmem:[#allocation11 + $0xe90] sm:$0xf]
    %v961 = vld [vmem:[#allocation11 + $0xe94] sm:$0xff]
    %v962 = vld [vmem:[#allocation11 + $0xe9c] sm:$0xf]
    %v963 = vld [vmem:[#allocation11 + $0xea0] sm:$0xff]
    %v964 = vld [vmem:[#allocation11 + $0xea8] sm:$0xf]
    %v965 = vld [vmem:[#allocation11 + $0xeac] sm:$0xff]
    %v966 = vld [vmem:[#allocation11 + $0xeb4] sm:$0xf]
    %v967 = vld [vmem:[#allocation11 + $0xeb8] sm:$0xff]
    %v968 = vld [vmem:[#allocation11 + $0xec0] sm:$0xf]
    %v969 = vld [vmem:[#allocation11 + $0xec4] sm:$0xff]
    %v970 = vld [vmem:[#allocation11 + $0xecc] sm:$0xf]
    %v971 = vld [vmem:[#allocation11 + $0xed0] sm:$0xff]
    %v972 = vld [vmem:[#allocation11 + $0xed8] sm:$0xf]
    %v973 = vld [vmem:[#allocation11 + $0xedc] sm:$0xff]
    %v974 = vld [vmem:[#allocation11 + $0xee4] sm:$0xf]
    %v975 = vld [vmem:[#allocation11 + $0xee8] sm:$0xff]
    %v976 = vld [vmem:[#allocation11 + $0xef0] sm:$0xf]
    %v977 = vld [vmem:[#allocation11 + $0xef4] sm:$0xff]
    %v978 = vld [vmem:[#allocation11 + $0xefc] sm:$0xf]
    %v979 = vld [vmem:[#allocation14] sm:$0x7]
    %v981 = vperm.slane %v979, 0
    %v982 = vperm.slane %v979, 1
    %v983 = vperm.slane %v979, 2
    %v1017 = vunpack.c.l.b16 %v309
    %v1018 = vunpack.c.h.b16 %v309
    %v1019 = vunpack.c.l.b16 %v310
    %v1020 = vunpack.c.h.b16 %v310
    %v1021 = vunpack.c.l.b16 %v311
    %v1022 = vunpack.c.h.b16 %v311
    %v1023 = vunpack.c.l.b16 %v312
    %v1024 = vunpack.c.h.b16 %v312
    %v1025 = vunpack.c.l.b16 %v313
    %v1026 = vunpack.c.h.b16 %v313
    %v1027 = vunpack.c.l.b16 %v314
    %v1028 = vunpack.c.h.b16 %v314
    %v1029 = vunpack.c.l.b16 %v315
    %v1030 = vunpack.c.h.b16 %v315
    %v1031 = vunpack.c.l.b16 %v316
    %v1032 = vunpack.c.h.b16 %v316
    %v1033 = vunpack.c.l.b16 %v317
    %v1034 = vunpack.c.h.b16 %v317
    %v1035 = vunpack.c.l.b16 %v318
    %v1036 = vunpack.c.h.b16 %v318
    %v1037 = vunpack.c.l.b16 %v319
    %v1038 = vunpack.c.h.b16 %v319
    %v1039 = vunpack.c.l.b16 %v320
    %v1040 = vunpack.c.h.b16 %v320
    %v1041 = vunpack.c.l.b16 %v321
    %v1042 = vunpack.c.h.b16 %v321
    %v1043 = vunpack.c.l.b16 %v322
    %v1044 = vunpack.c.h.b16 %v322
    %v1045 = vunpack.c.l.b16 %v323
    %v1046 = vunpack.c.h.b16 %v323
    %v1047 = vunpack.c.l.b16 %v324
    %v1048 = vunpack.c.h.b16 %v324
    %v1049 = vunpack.c.l.b16 %v325
    %v1050 = vunpack.c.h.b16 %v325
    %v1051 = vunpack.c.l.b16 %v326
    %v1052 = vunpack.c.h.b16 %v326
    %v1053 = vunpack.c.l.b16 %v327
    %v1054 = vunpack.c.h.b16 %v327
    %v1055 = vunpack.c.l.b16 %v328
    %v1056 = vunpack.c.h.b16 %v328
    %v1057 = vunpack.c.l.b16 %v329
    %v1058 = vunpack.c.h.b16 %v329
    %v1059 = vunpack.c.l.b16 %v330
    %v1060 = vunpack.c.h.b16 %v330
    %v1061 = vunpack.c.l.b16 %v331
    %v1062 = vunpack.c.h.b16 %v331
    %v1063 = vunpack.c.l.b16 %v332
    %v1064 = vunpack.c.h.b16 %v332
    %v1065 = vunpack.c.l.b16 %v333
    %v1066 = vunpack.c.h.b16 %v333
    %v1067 = vunpack.c.l.b16 %v334
    %v1068 = vunpack.c.h.b16 %v334
    %v1069 = vunpack.c.l.b16 %v335
    %v1070 = vunpack.c.h.b16 %v335
    %v1071 = vunpack.c.l.b16 %v336
    %v1072 = vunpack.c.h.b16 %v336
    %v1073 = vunpack.c.l.b16 %v337
    %v1074 = vunpack.c.h.b16 %v337
    %v1075 = vunpack.c.l.b16 %v338
    %v1076 = vunpack.c.h.b16 %v338
    %v1077 = vpack.c.b16 %v1037, %v1017
    %v1078 = vpack.c.b16 %v1038, %v1018
    %v1079 = vpack.c.b16 %v1039, %v1019
    %v1080 = vpack.c.b16 %v1040, %v1020
    %v1081 = vpack.c.b16 %v1041, %v1021
    %v1082 = vpack.c.b16 %v1042, %v1022
    %v1083 = vpack.c.b16 %v1043, %v1023
    %v1084 = vpack.c.b16 %v1044, %v1024
    %v1085 = vpack.c.b16 %v1045, %v1025
    %v1086 = vpack.c.b16 %v1046, %v1026
    %v1087 = vpack.c.b16 %v1047, %v1027
    %v1088 = vpack.c.b16 %v1048, %v1028
    %v1089 = vpack.c.b16 %v1049, %v1029
    %v1090 = vpack.c.b16 %v1050, %v1030
    %v1091 = vpack.c.b16 %v1051, %v1031
    %v1092 = vpack.c.b16 %v1052, %v1032
    %v1093 = vpack.c.b16 %v1053, %v1033
    %v1094 = vpack.c.b16 %v1054, %v1034
    %v1095 = vpack.c.b16 %v1055, %v1035
    %v1096 = vpack.c.b16 %v1056, %v1036
    %v1097 = vpack.c.b16 %v1057, %v1057
    %v1098 = vpack.c.b16 %v1058, %v1058
    %v1099 = vpack.c.b16 %v1059, %v1059
    %v1100 = vpack.c.b16 %v1060, %v1060
    %v1101 = vpack.c.b16 %v1061, %v1061
    %v1102 = vpack.c.b16 %v1062, %v1062
    %v1103 = vpack.c.b16 %v1063, %v1063
    %v1104 = vpack.c.b16 %v1064, %v1064
    %v1105 = vpack.c.b16 %v1065, %v1065
    %v1106 = vpack.c.b16 %v1066, %v1066
    %v1107 = vpack.c.b16 %v1067, %v1067
    %v1108 = vpack.c.b16 %v1068, %v1068
    %v1109 = vpack.c.b16 %v1069, %v1069
    %v1110 = vpack.c.b16 %v1070, %v1070
    %v1111 = vpack.c.b16 %v1071, %v1071
    %v1112 = vpack.c.b16 %v1072, %v1072
    %v1113 = vpack.c.b16 %v1073, %v1073
    %v1114 = vpack.c.b16 %v1074, %v1074
    %v1115 = vpack.c.b16 %v1075, %v1075
    %v1116 = vpack.c.b16 %v1076, %v1076
    %v1797 = vunpack.c.l.b16 %v339
    %v1798 = vunpack.c.h.b16 %v339
    %v1799 = vunpack.c.l.b16 %v340
    %v1800 = vunpack.c.l.b16 %v341
    %v1801 = vunpack.c.h.b16 %v341
    %v1802 = vunpack.c.l.b16 %v342
    %v1803 = vunpack.c.l.b16 %v343
    %v1804 = vunpack.c.h.b16 %v343
    %v1805 = vunpack.c.l.b16 %v344
    %v1806 = vunpack.c.l.b16 %v345
    %v1807 = vunpack.c.h.b16 %v345
    %v1808 = vunpack.c.l.b16 %v346
    %v1809 = vunpack.c.l.b16 %v347
    %v1810 = vunpack.c.h.b16 %v347
    %v1811 = vunpack.c.l.b16 %v348
    %v1812 = vunpack.c.l.b16 %v349
    %v1813 = vunpack.c.h.b16 %v349
    %v1814 = vunpack.c.l.b16 %v350
    %v1815 = vunpack.c.l.b16 %v351
    %v1816 = vunpack.c.h.b16 %v351
    %v1817 = vunpack.c.l.b16 %v352
    %v1818 = vunpack.c.l.b16 %v353
    %v1819 = vunpack.c.h.b16 %v353
    %v1820 = vunpack.c.l.b16 %v354
    %v1821 = vunpack.c.l.b16 %v355
    %v1822 = vunpack.c.h.b16 %v355
    %v1823 = vunpack.c.l.b16 %v356
    %v1824 = vunpack.c.l.b16 %v357
    %v1825 = vunpack.c.h.b16 %v357
    %v1826 = vunpack.c.l.b16 %v358
    %v1827 = vunpack.c.l.b16 %v359
    %v1828 = vunpack.c.h.b16 %v359
    %v1829 = vunpack.c.l.b16 %v360
    %v1830 = vunpack.c.l.b16 %v361
    %v1831 = vunpack.c.h.b16 %v361
    %v1832 = vunpack.c.l.b16 %v362
    %v1833 = vunpack.c.l.b16 %v363
    %v1834 = vunpack.c.h.b16 %v363
    %v1835 = vunpack.c.l.b16 %v364
    %v1836 = vunpack.c.l.b16 %v365
    %v1837 = vunpack.c.h.b16 %v365
    %v1838 = vunpack.c.l.b16 %v366
    %v1839 = vunpack.c.l.b16 %v367
    %v1840 = vunpack.c.h.b16 %v367
    %v1841 = vunpack.c.l.b16 %v368
    %v1842 = vunpack.c.l.b16 %v369
    %v1843 = vunpack.c.h.b16 %v369
    %v1844 = vunpack.c.l.b16 %v370
    %v1845 = vunpack.c.l.b16 %v371
    %v1846 = vunpack.c.h.b16 %v371
    %v1847 = vunpack.c.l.b16 %v372
    %v1848 = vunpack.c.l.b16 %v373
    %v1849 = vunpack.c.h.b16 %v373
    %v1850 = vunpack.c.l.b16 %v374
    %v1851 = vunpack.c.l.b16 %v375
    %v1852 = vunpack.c.h.b16 %v375
    %v1853 = vunpack.c.l.b16 %v376
    %v1854 = vunpack.c.l.b16 %v377
    %v1855 = vunpack.c.h.b16 %v377
    %v1856 = vunpack.c.l.b16 %v378
    %v1857 = vunpack.c.l.b16 %v379
    %v1858 = vunpack.c.h.b16 %v379
    %v1859 = vunpack.c.l.b16 %v380
    %v1860 = vunpack.c.l.b16 %v381
    %v1861 = vunpack.c.h.b16 %v381
    %v1862 = vunpack.c.l.b16 %v382
    %v1863 = vunpack.c.l.b16 %v383
    %v1864 = vunpack.c.h.b16 %v383
    %v1865 = vunpack.c.l.b16 %v384
    %v1866 = vunpack.c.l.b16 %v385
    %v1867 = vunpack.c.h.b16 %v385
    %v1868 = vunpack.c.l.b16 %v386
    %v1869 = vunpack.c.l.b16 %v387
    %v1870 = vunpack.c.h.b16 %v387
    %v1871 = vunpack.c.l.b16 %v388
    %v1872 = vunpack.c.l.b16 %v389
    %v1873 = vunpack.c.h.b16 %v389
    %v1874 = vunpack.c.l.b16 %v390
    %v1875 = vunpack.c.l.b16 %v391
    %v1876 = vunpack.c.h.b16 %v391
    %v1877 = vunpack.c.l.b16 %v392
    %v1878 = vunpack.c.l.b16 %v393
    %v1879 = vunpack.c.h.b16 %v393
    %v1880 = vunpack.c.l.b16 %v394
    %v1881 = vunpack.c.l.b16 %v395
    %v1882 = vunpack.c.h.b16 %v395
    %v1883 = vunpack.c.l.b16 %v396
    %v1884 = vunpack.c.l.b16 %v397
    %v1885 = vunpack.c.h.b16 %v397
    %v1886 = vunpack.c.l.b16 %v398
    %v1887 = vunpack.c.l.b16 %v399
    %v1888 = vunpack.c.h.b16 %v399
    %v1889 = vunpack.c.l.b16 %v400
    %v1890 = vunpack.c.l.b16 %v401
    %v1891 = vunpack.c.h.b16 %v401
    %v1892 = vunpack.c.l.b16 %v402
    %v1893 = vunpack.c.l.b16 %v403
    %v1894 = vunpack.c.h.b16 %v403
    %v1895 = vunpack.c.l.b16 %v404
    %v1896 = vunpack.c.l.b16 %v405
    %v1897 = vunpack.c.h.b16 %v405
    %v1898 = vunpack.c.l.b16 %v406
    %v1899 = vunpack.c.l.b16 %v407
    %v1900 = vunpack.c.h.b16 %v407
    %v1901 = vunpack.c.l.b16 %v408
    %v1902 = vunpack.c.l.b16 %v409
    %v1903 = vunpack.c.h.b16 %v409
    %v1904 = vunpack.c.l.b16 %v410
    %v1905 = vunpack.c.l.b16 %v411
    %v1906 = vunpack.c.h.b16 %v411
    %v1907 = vunpack.c.l.b16 %v412
    %v1908 = vunpack.c.l.b16 %v413
    %v1909 = vunpack.c.h.b16 %v413
    %v1910 = vunpack.c.l.b16 %v414
    %v1911 = vunpack.c.l.b16 %v415
    %v1912 = vunpack.c.h.b16 %v415
    %v1913 = vunpack.c.l.b16 %v416
    %v1914 = vunpack.c.l.b16 %v417
    %v1915 = vunpack.c.h.b16 %v417
    %v1916 = vunpack.c.l.b16 %v418
    %v1917 = vunpack.c.l.b16 %v419
    %v1918 = vunpack.c.h.b16 %v419
    %v1919 = vunpack.c.l.b16 %v420
    %v1920 = vunpack.c.l.b16 %v421
    %v1921 = vunpack.c.h.b16 %v421
    %v1922 = vunpack.c.l.b16 %v422
    %v1923 = vunpack.c.l.b16 %v423
    %v1924 = vunpack.c.h.b16 %v423
    %v1925 = vunpack.c.l.b16 %v424
    %v1926 = vunpack.c.l.b16 %v425
    %v1927 = vunpack.c.h.b16 %v425
    %v1928 = vunpack.c.l.b16 %v426
    %v1929 = vunpack.c.l.b16 %v427
    %v1930 = vunpack.c.h.b16 %v427
    %v1931 = vunpack.c.l.b16 %v428
    %v1932 = vunpack.c.l.b16 %v429
    %v1933 = vunpack.c.h.b16 %v429
    %v1934 = vunpack.c.l.b16 %v430
    %v1935 = vunpack.c.l.b16 %v431
    %v1936 = vunpack.c.h.b16 %v431
    %v1937 = vunpack.c.l.b16 %v432
    %v1938 = vunpack.c.l.b16 %v433
    %v1939 = vunpack.c.h.b16 %v433
    %v1940 = vunpack.c.l.b16 %v434
    %v1941 = vunpack.c.l.b16 %v435
    %v1942 = vunpack.c.h.b16 %v435
    %v1943 = vunpack.c.l.b16 %v436
    %v1944 = vunpack.c.l.b16 %v437
    %v1945 = vunpack.c.h.b16 %v437
    %v1946 = vunpack.c.l.b16 %v438
    %v1947 = vunpack.c.l.b16 %v439
    %v1948 = vunpack.c.h.b16 %v439
    %v1949 = vunpack.c.l.b16 %v440
    %v1950 = vunpack.c.l.b16 %v441
    %v1951 = vunpack.c.h.b16 %v441
    %v1952 = vunpack.c.l.b16 %v442
    %v1953 = vunpack.c.l.b16 %v443
    %v1954 = vunpack.c.h.b16 %v443
    %v1955 = vunpack.c.l.b16 %v444
    %v1956 = vunpack.c.l.b16 %v445
    %v1957 = vunpack.c.h.b16 %v445
    %v1958 = vunpack.c.l.b16 %v446
    %v1959 = vunpack.c.l.b16 %v447
    %v1960 = vunpack.c.h.b16 %v447
    %v1961 = vunpack.c.l.b16 %v448
    %v1962 = vunpack.c.l.b16 %v449
    %v1963 = vunpack.c.h.b16 %v449
    %v1964 = vunpack.c.l.b16 %v450
    %v1965 = vunpack.c.l.b16 %v451
    %v1966 = vunpack.c.h.b16 %v451
    %v1967 = vunpack.c.l.b16 %v452
    %v1968 = vunpack.c.l.b16 %v453
    %v1969 = vunpack.c.h.b16 %v453
    %v1970 = vunpack.c.l.b16 %v454
    %v1971 = vunpack.c.l.b16 %v455
    %v1972 = vunpack.c.h.b16 %v455
    %v1973 = vunpack.c.l.b16 %v456
    %v1974 = vunpack.c.l.b16 %v457
    %v1975 = vunpack.c.h.b16 %v457
    %v1976 = vunpack.c.l.b16 %v458
    %v1977 = vunpack.c.l.b16 %v459
    %v1978 = vunpack.c.h.b16 %v459
    %v1979 = vunpack.c.l.b16 %v460
    %v1980 = vunpack.c.l.b16 %v461
    %v1981 = vunpack.c.h.b16 %v461
    %v1982 = vunpack.c.l.b16 %v462
    %v1983 = vunpack.c.l.b16 %v463
    %v1984 = vunpack.c.h.b16 %v463
    %v1985 = vunpack.c.l.b16 %v464
    %v1986 = vunpack.c.l.b16 %v465
    %v1987 = vunpack.c.h.b16 %v465
    %v1988 = vunpack.c.l.b16 %v466
    %v1989 = vunpack.c.l.b16 %v467
    %v1990 = vunpack.c.h.b16 %v467
    %v1991 = vunpack.c.l.b16 %v468
    %v1992 = vunpack.c.l.b16 %v469
    %v1993 = vunpack.c.h.b16 %v469
    %v1994 = vunpack.c.l.b16 %v470
    %v1995 = vunpack.c.l.b16 %v471
    %v1996 = vunpack.c.h.b16 %v471
    %v1997 = vunpack.c.l.b16 %v472
    %v1998 = vunpack.c.l.b16 %v473
    %v1999 = vunpack.c.h.b16 %v473
    %v2000 = vunpack.c.l.b16 %v474
    %v2001 = vunpack.c.l.b16 %v475
    %v2002 = vunpack.c.h.b16 %v475
    %v2003 = vunpack.c.l.b16 %v476
    %v2004 = vunpack.c.l.b16 %v477
    %v2005 = vunpack.c.h.b16 %v477
    %v2006 = vunpack.c.l.b16 %v478
    %v2007 = vunpack.c.l.b16 %v479
    %v2008 = vunpack.c.h.b16 %v479
    %v2009 = vunpack.c.l.b16 %v480
    %v2010 = vunpack.c.l.b16 %v481
    %v2011 = vunpack.c.h.b16 %v481
    %v2012 = vunpack.c.l.b16 %v482
    %v2013 = vunpack.c.l.b16 %v483
    %v2014 = vunpack.c.h.b16 %v483
    %v2015 = vunpack.c.l.b16 %v484
    %v2016 = vunpack.c.l.b16 %v485
    %v2017 = vunpack.c.h.b16 %v485
    %v2018 = vunpack.c.l.b16 %v486
    %v2019 = vunpack.c.l.b16 %v487
    %v2020 = vunpack.c.h.b16 %v487
    %v2021 = vunpack.c.l.b16 %v488
    %v2022 = vunpack.c.l.b16 %v489
    %v2023 = vunpack.c.h.b16 %v489
    %v2024 = vunpack.c.l.b16 %v490
    %v2025 = vunpack.c.l.b16 %v491
    %v2026 = vunpack.c.h.b16 %v491
    %v2027 = vunpack.c.l.b16 %v492
    %v2028 = vunpack.c.l.b16 %v493
    %v2029 = vunpack.c.h.b16 %v493
    %v2030 = vunpack.c.l.b16 %v494
    %v2031 = vunpack.c.l.b16 %v495
    %v2032 = vunpack.c.h.b16 %v495
    %v2033 = vunpack.c.l.b16 %v496
    %v2034 = vunpack.c.l.b16 %v497
    %v2035 = vunpack.c.h.b16 %v497
    %v2036 = vunpack.c.l.b16 %v498
    %v2037 = vunpack.c.l.b16 %v499
    %v2038 = vunpack.c.h.b16 %v499
    %v2039 = vunpack.c.l.b16 %v500
    %v2040 = vunpack.c.l.b16 %v501
    %v2041 = vunpack.c.h.b16 %v501
    %v2042 = vunpack.c.l.b16 %v502
    %v2043 = vunpack.c.l.b16 %v503
    %v2044 = vunpack.c.h.b16 %v503
    %v2045 = vunpack.c.l.b16 %v504
    %v2046 = vunpack.c.l.b16 %v505
    %v2047 = vunpack.c.h.b16 %v505
    %v2048 = vunpack.c.l.b16 %v506
    %v2049 = vunpack.c.l.b16 %v507
    %v2050 = vunpack.c.h.b16 %v507
    %v2051 = vunpack.c.l.b16 %v508
    %v2052 = vunpack.c.l.b16 %v509
    %v2053 = vunpack.c.h.b16 %v509
    %v2054 = vunpack.c.l.b16 %v510
    %v2055 = vunpack.c.l.b16 %v511
    %v2056 = vunpack.c.h.b16 %v511
    %v2057 = vunpack.c.l.b16 %v512
    %v2058 = vunpack.c.l.b16 %v513
    %v2059 = vunpack.c.h.b16 %v513
    %v2060 = vunpack.c.l.b16 %v514
    %v2061 = vunpack.c.l.b16 %v515
    %v2062 = vunpack.c.h.b16 %v515
    %v2063 = vunpack.c.l.b16 %v516
    %v2064 = vunpack.c.l.b16 %v517
    %v2065 = vunpack.c.h.b16 %v517
    %v2066 = vunpack.c.l.b16 %v518
    %v2067 = vunpack.c.l.b16 %v519
    %v2068 = vunpack.c.h.b16 %v519
    %v2069 = vunpack.c.l.b16 %v520
    %v2070 = vunpack.c.l.b16 %v521
    %v2071 = vunpack.c.h.b16 %v521
    %v2072 = vunpack.c.l.b16 %v522
    %v2073 = vunpack.c.l.b16 %v523
    %v2074 = vunpack.c.h.b16 %v523
    %v2075 = vunpack.c.l.b16 %v524
    %v2076 = vunpack.c.l.b16 %v525
    %v2077 = vunpack.c.h.b16 %v525
    %v2078 = vunpack.c.l.b16 %v526
    %v2079 = vunpack.c.l.b16 %v527
    %v2080 = vunpack.c.h.b16 %v527
    %v2081 = vunpack.c.l.b16 %v528
    %v2082 = vunpack.c.l.b16 %v529
    %v2083 = vunpack.c.h.b16 %v529
    %v2084 = vunpack.c.l.b16 %v530
    %v2085 = vunpack.c.l.b16 %v531
    %v2086 = vunpack.c.h.b16 %v531
    %v2087 = vunpack.c.l.b16 %v532
    %v2088 = vunpack.c.l.b16 %v533
    %v2089 = vunpack.c.h.b16 %v533
    %v2090 = vunpack.c.l.b16 %v534
    %v2091 = vunpack.c.l.b16 %v535
    %v2092 = vunpack.c.h.b16 %v535
    %v2093 = vunpack.c.l.b16 %v536
    %v2094 = vunpack.c.l.b16 %v537
    %v2095 = vunpack.c.h.b16 %v537
    %v2096 = vunpack.c.l.b16 %v538
    %v2097 = vunpack.c.l.b16 %v539
    %v2098 = vunpack.c.h.b16 %v539
    %v2099 = vunpack.c.l.b16 %v540
    %v2100 = vunpack.c.l.b16 %v541
    %v2101 = vunpack.c.h.b16 %v541
    %v2102 = vunpack.c.l.b16 %v542
    %v2103 = vunpack.c.l.b16 %v543
    %v2104 = vunpack.c.h.b16 %v543
    %v2105 = vunpack.c.l.b16 %v544
    %v2106 = vunpack.c.l.b16 %v545
    %v2107 = vunpack.c.h.b16 %v545
    %v2108 = vunpack.c.l.b16 %v546
    %v2109 = vunpack.c.l.b16 %v547
    %v2110 = vunpack.c.h.b16 %v547
    %v2111 = vunpack.c.l.b16 %v548
    %v2112 = vunpack.c.l.b16 %v549
    %v2113 = vunpack.c.h.b16 %v549
    %v2114 = vunpack.c.l.b16 %v550
    %v2115 = vunpack.c.l.b16 %v551
    %v2116 = vunpack.c.h.b16 %v551
    %v2117 = vunpack.c.l.b16 %v552
    %v2118 = vunpack.c.l.b16 %v553
    %v2119 = vunpack.c.h.b16 %v553
    %v2120 = vunpack.c.l.b16 %v554
    %v2121 = vunpack.c.l.b16 %v555
    %v2122 = vunpack.c.h.b16 %v555
    %v2123 = vunpack.c.l.b16 %v556
    %v2124 = vunpack.c.l.b16 %v557
    %v2125 = vunpack.c.h.b16 %v557
    %v2126 = vunpack.c.l.b16 %v558
    %v2127 = vunpack.c.l.b16 %v559
    %v2128 = vunpack.c.h.b16 %v559
    %v2129 = vunpack.c.l.b16 %v560
    %v2130 = vunpack.c.l.b16 %v561
    %v2131 = vunpack.c.h.b16 %v561
    %v2132 = vunpack.c.l.b16 %v562
    %v2133 = vunpack.c.l.b16 %v563
    %v2134 = vunpack.c.h.b16 %v563
    %v2135 = vunpack.c.l.b16 %v564
    %v2136 = vunpack.c.l.b16 %v565
    %v2137 = vunpack.c.h.b16 %v565
    %v2138 = vunpack.c.l.b16 %v566
    %v2139 = vunpack.c.l.b16 %v567
    %v2140 = vunpack.c.h.b16 %v567
    %v2141 = vunpack.c.l.b16 %v568
    %v2142 = vunpack.c.l.b16 %v569
    %v2143 = vunpack.c.h.b16 %v569
    %v2144 = vunpack.c.l.b16 %v570
    %v2145 = vunpack.c.l.b16 %v571
    %v2146 = vunpack.c.h.b16 %v571
    %v2147 = vunpack.c.l.b16 %v572
    %v2148 = vunpack.c.l.b16 %v573
    %v2149 = vunpack.c.h.b16 %v573
    %v2150 = vunpack.c.l.b16 %v574
    %v2151 = vunpack.c.l.b16 %v575
    %v2152 = vunpack.c.h.b16 %v575
    %v2153 = vunpack.c.l.b16 %v576
    %v2154 = vunpack.c.l.b16 %v577
    %v2155 = vunpack.c.h.b16 %v577
    %v2156 = vunpack.c.l.b16 %v578
    %v2157 = vunpack.c.l.b16 %v579
    %v2158 = vunpack.c.h.b16 %v579
    %v2159 = vunpack.c.l.b16 %v580
    %v2160 = vunpack.c.l.b16 %v581
    %v2161 = vunpack.c.h.b16 %v581
    %v2162 = vunpack.c.l.b16 %v582
    %v2163 = vunpack.c.l.b16 %v583
    %v2164 = vunpack.c.h.b16 %v583
    %v2165 = vunpack.c.l.b16 %v584
    %v2166 = vunpack.c.l.b16 %v585
    %v2167 = vunpack.c.h.b16 %v585
    %v2168 = vunpack.c.l.b16 %v586
    %v2169 = vunpack.c.l.b16 %v587
    %v2170 = vunpack.c.h.b16 %v587
    %v2171 = vunpack.c.l.b16 %v588
    %v2172 = vunpack.c.l.b16 %v589
    %v2173 = vunpack.c.h.b16 %v589
    %v2174 = vunpack.c.l.b16 %v590
    %v2175 = vunpack.c.l.b16 %v591
    %v2176 = vunpack.c.h.b16 %v591
    %v2177 = vunpack.c.l.b16 %v592
    %v2178 = vunpack.c.l.b16 %v593
    %v2179 = vunpack.c.h.b16 %v593
    %v2180 = vunpack.c.l.b16 %v594
    %v2181 = vunpack.c.l.b16 %v595
    %v2182 = vunpack.c.h.b16 %v595
    %v2183 = vunpack.c.l.b16 %v596
    %v2184 = vunpack.c.l.b16 %v597
    %v2185 = vunpack.c.h.b16 %v597
    %v2186 = vunpack.c.l.b16 %v598
    %v2187 = vunpack.c.l.b16 %v599
    %v2188 = vunpack.c.h.b16 %v599
    %v2189 = vunpack.c.l.b16 %v600
    %v2190 = vunpack.c.l.b16 %v601
    %v2191 = vunpack.c.h.b16 %v601
    %v2192 = vunpack.c.l.b16 %v602
    %v2193 = vunpack.c.l.b16 %v603
    %v2194 = vunpack.c.h.b16 %v603
    %v2195 = vunpack.c.l.b16 %v604
    %v2196 = vunpack.c.l.b16 %v605
    %v2197 = vunpack.c.h.b16 %v605
    %v2198 = vunpack.c.l.b16 %v606
    %v2199 = vunpack.c.l.b16 %v607
    %v2200 = vunpack.c.h.b16 %v607
    %v2201 = vunpack.c.l.b16 %v608
    %v2202 = vunpack.c.l.b16 %v609
    %v2203 = vunpack.c.h.b16 %v609
    %v2204 = vunpack.c.l.b16 %v610
    %v2205 = vunpack.c.l.b16 %v611
    %v2206 = vunpack.c.h.b16 %v611
    %v2207 = vunpack.c.l.b16 %v612
    %v2208 = vunpack.c.l.b16 %v613
    %v2209 = vunpack.c.h.b16 %v613
    %v2210 = vunpack.c.l.b16 %v614
    %v2211 = vunpack.c.l.b16 %v615
    %v2212 = vunpack.c.h.b16 %v615
    %v2213 = vunpack.c.l.b16 %v616
    %v2214 = vunpack.c.l.b16 %v617
    %v2215 = vunpack.c.h.b16 %v617
    %v2216 = vunpack.c.l.b16 %v618
    %v2217 = vunpack.c.l.b16 %v619
    %v2218 = vunpack.c.h.b16 %v619
    %v2219 = vunpack.c.l.b16 %v620
    %v2220 = vunpack.c.l.b16 %v621
    %v2221 = vunpack.c.h.b16 %v621
    %v2222 = vunpack.c.l.b16 %v622
    %v2223 = vunpack.c.l.b16 %v623
    %v2224 = vunpack.c.h.b16 %v623
    %v2225 = vunpack.c.l.b16 %v624
    %v2226 = vunpack.c.l.b16 %v625
    %v2227 = vunpack.c.h.b16 %v625
    %v2228 = vunpack.c.l.b16 %v626
    %v2229 = vunpack.c.l.b16 %v627
    %v2230 = vunpack.c.h.b16 %v627
    %v2231 = vunpack.c.l.b16 %v628
    %v2232 = vunpack.c.l.b16 %v629
    %v2233 = vunpack.c.h.b16 %v629
    %v2234 = vunpack.c.l.b16 %v630
    %v2235 = vunpack.c.l.b16 %v631
    %v2236 = vunpack.c.h.b16 %v631
    %v2237 = vunpack.c.l.b16 %v632
    %v2238 = vunpack.c.l.b16 %v633
    %v2239 = vunpack.c.h.b16 %v633
    %v2240 = vunpack.c.l.b16 %v634
    %v2241 = vunpack.c.l.b16 %v635
    %v2242 = vunpack.c.h.b16 %v635
    %v2243 = vunpack.c.l.b16 %v636
    %v2244 = vunpack.c.l.b16 %v637
    %v2245 = vunpack.c.h.b16 %v637
    %v2246 = vunpack.c.l.b16 %v638
    %v2247 = vunpack.c.l.b16 %v639
    %v2248 = vunpack.c.h.b16 %v639
    %v2249 = vunpack.c.l.b16 %v640
    %v2250 = vunpack.c.l.b16 %v641
    %v2251 = vunpack.c.h.b16 %v641
    %v2252 = vunpack.c.l.b16 %v642
    %v2253 = vunpack.c.l.b16 %v643
    %v2254 = vunpack.c.h.b16 %v643
    %v2255 = vunpack.c.l.b16 %v644
    %v2256 = vunpack.c.l.b16 %v645
    %v2257 = vunpack.c.h.b16 %v645
    %v2258 = vunpack.c.l.b16 %v646
    %v2259 = vunpack.c.l.b16 %v647
    %v2260 = vunpack.c.h.b16 %v647
    %v2261 = vunpack.c.l.b16 %v648
    %v2262 = vunpack.c.l.b16 %v649
    %v2263 = vunpack.c.h.b16 %v649
    %v2264 = vunpack.c.l.b16 %v650
    %v2265 = vunpack.c.l.b16 %v651
    %v2266 = vunpack.c.h.b16 %v651
    %v2267 = vunpack.c.l.b16 %v652
    %v2268 = vunpack.c.l.b16 %v653
    %v2269 = vunpack.c.h.b16 %v653
    %v2270 = vunpack.c.l.b16 %v654
    %v2271 = vunpack.c.l.b16 %v655
    %v2272 = vunpack.c.h.b16 %v655
    %v2273 = vunpack.c.l.b16 %v656
    %v2274 = vunpack.c.l.b16 %v657
    %v2275 = vunpack.c.h.b16 %v657
    %v2276 = vunpack.c.l.b16 %v658
    %v2277 = vunpack.c.l.b16 %v659
    %v2278 = vunpack.c.h.b16 %v659
    %v2279 = vunpack.c.l.b16 %v660
    %v2280 = vunpack.c.l.b16 %v661
    %v2281 = vunpack.c.h.b16 %v661
    %v2282 = vunpack.c.l.b16 %v662
    %v2283 = vunpack.c.l.b16 %v663
    %v2284 = vunpack.c.h.b16 %v663
    %v2285 = vunpack.c.l.b16 %v664
    %v2286 = vunpack.c.l.b16 %v665
    %v2287 = vunpack.c.h.b16 %v665
    %v2288 = vunpack.c.l.b16 %v666
    %v2289 = vunpack.c.l.b16 %v667
    %v2290 = vunpack.c.h.b16 %v667
    %v2291 = vunpack.c.l.b16 %v668
    %v2292 = vunpack.c.l.b16 %v669
    %v2293 = vunpack.c.h.b16 %v669
    %v2294 = vunpack.c.l.b16 %v670
    %v2295 = vunpack.c.l.b16 %v671
    %v2296 = vunpack.c.h.b16 %v671
    %v2297 = vunpack.c.l.b16 %v672
    %v2298 = vunpack.c.l.b16 %v673
    %v2299 = vunpack.c.h.b16 %v673
    %v2300 = vunpack.c.l.b16 %v674
    %v2301 = vunpack.c.l.b16 %v675
    %v2302 = vunpack.c.h.b16 %v675
    %v2303 = vunpack.c.l.b16 %v676
    %v2304 = vunpack.c.l.b16 %v677
    %v2305 = vunpack.c.h.b16 %v677
    %v2306 = vunpack.c.l.b16 %v678
    %v2307 = vunpack.c.l.b16 %v679
    %v2308 = vunpack.c.h.b16 %v679
    %v2309 = vunpack.c.l.b16 %v680
    %v2310 = vunpack.c.l.b16 %v681
    %v2311 = vunpack.c.h.b16 %v681
    %v2312 = vunpack.c.l.b16 %v682
    %v2313 = vunpack.c.l.b16 %v683
    %v2314 = vunpack.c.h.b16 %v683
    %v2315 = vunpack.c.l.b16 %v684
    %v2316 = vunpack.c.l.b16 %v685
    %v2317 = vunpack.c.h.b16 %v685
    %v2318 = vunpack.c.l.b16 %v686
    %v2319 = vunpack.c.l.b16 %v687
    %v2320 = vunpack.c.h.b16 %v687
    %v2321 = vunpack.c.l.b16 %v688
    %v2322 = vunpack.c.l.b16 %v689
    %v2323 = vunpack.c.h.b16 %v689
    %v2324 = vunpack.c.l.b16 %v690
    %v2325 = vunpack.c.l.b16 %v691
    %v2326 = vunpack.c.h.b16 %v691
    %v2327 = vunpack.c.l.b16 %v692
    %v2328 = vunpack.c.l.b16 %v693
    %v2329 = vunpack.c.h.b16 %v693
    %v2330 = vunpack.c.l.b16 %v694
    %v2331 = vunpack.c.l.b16 %v695
    %v2332 = vunpack.c.h.b16 %v695
    %v2333 = vunpack.c.l.b16 %v696
    %v2334 = vunpack.c.l.b16 %v697
    %v2335 = vunpack.c.h.b16 %v697
    %v2336 = vunpack.c.l.b16 %v698
    %v2337 = vunpack.c.l.b16 %v699
    %v2338 = vunpack.c.h.b16 %v699
    %v2339 = vunpack.c.l.b16 %v700
    %v2340 = vunpack.c.l.b16 %v701
    %v2341 = vunpack.c.h.b16 %v701
    %v2342 = vunpack.c.l.b16 %v702
    %v2343 = vunpack.c.l.b16 %v703
    %v2344 = vunpack.c.h.b16 %v703
    %v2345 = vunpack.c.l.b16 %v704
    %v2346 = vunpack.c.l.b16 %v705
    %v2347 = vunpack.c.h.b16 %v705
    %v2348 = vunpack.c.l.b16 %v706
    %v2349 = vunpack.c.l.b16 %v707
    %v2350 = vunpack.c.h.b16 %v707
    %v2351 = vunpack.c.l.b16 %v708
    %v2352 = vunpack.c.l.b16 %v709
    %v2353 = vunpack.c.h.b16 %v709
    %v2354 = vunpack.c.l.b16 %v710
    %v2355 = vunpack.c.l.b16 %v711
    %v2356 = vunpack.c.h.b16 %v711
    %v2357 = vunpack.c.l.b16 %v712
    %v2358 = vunpack.c.l.b16 %v713
    %v2359 = vunpack.c.h.b16 %v713
    %v2360 = vunpack.c.l.b16 %v714
    %v2361 = vunpack.c.l.b16 %v715
    %v2362 = vunpack.c.h.b16 %v715
    %v2363 = vunpack.c.l.b16 %v716
    %v2364 = vunpack.c.l.b16 %v717
    %v2365 = vunpack.c.h.b16 %v717
    %v2366 = vunpack.c.l.b16 %v718
    %v2367 = vunpack.c.l.b16 %v719
    %v2368 = vunpack.c.h.b16 %v719
    %v2369 = vunpack.c.l.b16 %v720
    %v2370 = vunpack.c.l.b16 %v721
    %v2371 = vunpack.c.h.b16 %v721
    %v2372 = vunpack.c.l.b16 %v722
    %v2373 = vunpack.c.l.b16 %v723
    %v2374 = vunpack.c.h.b16 %v723
    %v2375 = vunpack.c.l.b16 %v724
    %v2376 = vunpack.c.l.b16 %v725
    %v2377 = vunpack.c.h.b16 %v725
    %v2378 = vunpack.c.l.b16 %v726
    %v2379 = vunpack.c.l.b16 %v727
    %v2380 = vunpack.c.h.b16 %v727
    %v2381 = vunpack.c.l.b16 %v728
    %v2382 = vunpack.c.l.b16 %v729
    %v2383 = vunpack.c.h.b16 %v729
    %v2384 = vunpack.c.l.b16 %v730
    %v2385 = vunpack.c.l.b16 %v731
    %v2386 = vunpack.c.h.b16 %v731
    %v2387 = vunpack.c.l.b16 %v732
    %v2388 = vunpack.c.l.b16 %v733
    %v2389 = vunpack.c.h.b16 %v733
    %v2390 = vunpack.c.l.b16 %v734
    %v2391 = vunpack.c.l.b16 %v735
    %v2392 = vunpack.c.h.b16 %v735
    %v2393 = vunpack.c.l.b16 %v736
    %v2394 = vunpack.c.l.b16 %v737
    %v2395 = vunpack.c.h.b16 %v737
    %v2396 = vunpack.c.l.b16 %v738
    %v2397 = vunpack.c.l.b16 %v739
    %v2398 = vunpack.c.h.b16 %v739
    %v2399 = vunpack.c.l.b16 %v740
    %v2400 = vunpack.c.l.b16 %v741
    %v2401 = vunpack.c.h.b16 %v741
    %v2402 = vunpack.c.l.b16 %v742
    %v2403 = vunpack.c.l.b16 %v743
    %v2404 = vunpack.c.h.b16 %v743
    %v2405 = vunpack.c.l.b16 %v744
    %v2406 = vunpack.c.l.b16 %v745
    %v2407 = vunpack.c.h.b16 %v745
    %v2408 = vunpack.c.l.b16 %v746
    %v2409 = vunpack.c.l.b16 %v747
    %v2410 = vunpack.c.h.b16 %v747
    %v2411 = vunpack.c.l.b16 %v748
    %v2412 = vunpack.c.l.b16 %v749
    %v2413 = vunpack.c.h.b16 %v749
    %v2414 = vunpack.c.l.b16 %v750
    %v2415 = vunpack.c.l.b16 %v751
    %v2416 = vunpack.c.h.b16 %v751
    %v2417 = vunpack.c.l.b16 %v752
    %v2418 = vunpack.c.l.b16 %v753
    %v2419 = vunpack.c.h.b16 %v753
    %v2420 = vunpack.c.l.b16 %v754
    %v2421 = vunpack.c.l.b16 %v755
    %v2422 = vunpack.c.h.b16 %v755
    %v2423 = vunpack.c.l.b16 %v756
    %v2424 = vunpack.c.l.b16 %v757
    %v2425 = vunpack.c.h.b16 %v757
    %v2426 = vunpack.c.l.b16 %v758
    %v2427 = vunpack.c.l.b16 %v759
    %v2428 = vunpack.c.h.b16 %v759
    %v2429 = vunpack.c.l.b16 %v760
    %v2430 = vunpack.c.l.b16 %v761
    %v2431 = vunpack.c.h.b16 %v761
    %v2432 = vunpack.c.l.b16 %v762
    %v2433 = vunpack.c.l.b16 %v763
    %v2434 = vunpack.c.h.b16 %v763
    %v2435 = vunpack.c.l.b16 %v764
    %v2436 = vunpack.c.l.b16 %v765
    %v2437 = vunpack.c.h.b16 %v765
    %v2438 = vunpack.c.l.b16 %v766
    %v2439 = vunpack.c.l.b16 %v767
    %v2440 = vunpack.c.h.b16 %v767
    %v2441 = vunpack.c.l.b16 %v768
    %v2442 = vunpack.c.l.b16 %v769
    %v2443 = vunpack.c.h.b16 %v769
    %v2444 = vunpack.c.l.b16 %v770
    %v2445 = vunpack.c.l.b16 %v771
    %v2446 = vunpack.c.h.b16 %v771
    %v2447 = vunpack.c.l.b16 %v772
    %v2448 = vunpack.c.l.b16 %v773
    %v2449 = vunpack.c.h.b16 %v773
    %v2450 = vunpack.c.l.b16 %v774
    %v2451 = vunpack.c.l.b16 %v775
    %v2452 = vunpack.c.h.b16 %v775
    %v2453 = vunpack.c.l.b16 %v776
    %v2454 = vunpack.c.l.b16 %v777
    %v2455 = vunpack.c.h.b16 %v777
    %v2456 = vunpack.c.l.b16 %v778
    %v2457 = vunpack.c.l.b16 %v779
    %v2458 = vunpack.c.h.b16 %v779
    %v2459 = vunpack.c.l.b16 %v780
    %v2460 = vunpack.c.l.b16 %v781
    %v2461 = vunpack.c.h.b16 %v781
    %v2462 = vunpack.c.l.b16 %v782
    %v2463 = vunpack.c.l.b16 %v783
    %v2464 = vunpack.c.h.b16 %v783
    %v2465 = vunpack.c.l.b16 %v784
    %v2466 = vunpack.c.l.b16 %v785
    %v2467 = vunpack.c.h.b16 %v785
    %v2468 = vunpack.c.l.b16 %v786
    %v2469 = vunpack.c.l.b16 %v787
    %v2470 = vunpack.c.h.b16 %v787
    %v2471 = vunpack.c.l.b16 %v788
    %v2472 = vunpack.c.l.b16 %v789
    %v2473 = vunpack.c.h.b16 %v789
    %v2474 = vunpack.c.l.b16 %v790
    %v2475 = vunpack.c.l.b16 %v791
    %v2476 = vunpack.c.h.b16 %v791
    %v2477 = vunpack.c.l.b16 %v792
    %v2478 = vunpack.c.l.b16 %v793
    %v2479 = vunpack.c.h.b16 %v793
    %v2480 = vunpack.c.l.b16 %v794
    %v2481 = vunpack.c.l.b16 %v795
    %v2482 = vunpack.c.h.b16 %v795
    %v2483 = vunpack.c.l.b16 %v796
    %v2484 = vunpack.c.l.b16 %v797
    %v2485 = vunpack.c.h.b16 %v797
    %v2486 = vunpack.c.l.b16 %v798
    %v2487 = vunpack.c.l.b16 %v799
    %v2488 = vunpack.c.h.b16 %v799
    %v2489 = vunpack.c.l.b16 %v800
    %v2490 = vunpack.c.l.b16 %v801
    %v2491 = vunpack.c.h.b16 %v801
    %v2492 = vunpack.c.l.b16 %v802
    %v2493 = vunpack.c.l.b16 %v803
    %v2494 = vunpack.c.h.b16 %v803
    %v2495 = vunpack.c.l.b16 %v804
    %v2496 = vunpack.c.l.b16 %v805
    %v2497 = vunpack.c.h.b16 %v805
    %v2498 = vunpack.c.l.b16 %v806
    %v2499 = vunpack.c.l.b16 %v807
    %v2500 = vunpack.c.h.b16 %v807
    %v2501 = vunpack.c.l.b16 %v808
    %v2502 = vunpack.c.l.b16 %v809
    %v2503 = vunpack.c.h.b16 %v809
    %v2504 = vunpack.c.l.b16 %v810
    %v2505 = vunpack.c.l.b16 %v811
    %v2506 = vunpack.c.h.b16 %v811
    %v2507 = vunpack.c.l.b16 %v812
    %v2508 = vunpack.c.l.b16 %v813
    %v2509 = vunpack.c.h.b16 %v813
    %v2510 = vunpack.c.l.b16 %v814
    %v2511 = vunpack.c.l.b16 %v815
    %v2512 = vunpack.c.h.b16 %v815
    %v2513 = vunpack.c.l.b16 %v816
    %v2514 = vunpack.c.l.b16 %v817
    %v2515 = vunpack.c.h.b16 %v817
    %v2516 = vunpack.c.l.b16 %v818
    %v2517 = vunpack.c.l.b16 %v819
    %v2518 = vunpack.c.h.b16 %v819
    %v2519 = vunpack.c.l.b16 %v820
    %v2520 = vunpack.c.l.b16 %v821
    %v2521 = vunpack.c.h.b16 %v821
    %v2522 = vunpack.c.l.b16 %v822
    %v2523 = vunpack.c.l.b16 %v823
    %v2524 = vunpack.c.h.b16 %v823
    %v2525 = vunpack.c.l.b16 %v824
    %v2526 = vunpack.c.l.b16 %v825
    %v2527 = vunpack.c.h.b16 %v825
    %v2528 = vunpack.c.l.b16 %v826
    %v2529 = vunpack.c.l.b16 %v827
    %v2530 = vunpack.c.h.b16 %v827
    %v2531 = vunpack.c.l.b16 %v828
    %v2532 = vunpack.c.l.b16 %v829
    %v2533 = vunpack.c.h.b16 %v829
    %v2534 = vunpack.c.l.b16 %v830
    %v2535 = vunpack.c.l.b16 %v831
    %v2536 = vunpack.c.h.b16 %v831
    %v2537 = vunpack.c.l.b16 %v832
    %v2538 = vunpack.c.l.b16 %v833
    %v2539 = vunpack.c.h.b16 %v833
    %v2540 = vunpack.c.l.b16 %v834
    %v2541 = vunpack.c.l.b16 %v835
    %v2542 = vunpack.c.h.b16 %v835
    %v2543 = vunpack.c.l.b16 %v836
    %v2544 = vunpack.c.l.b16 %v837
    %v2545 = vunpack.c.h.b16 %v837
    %v2546 = vunpack.c.l.b16 %v838
    %v2547 = vunpack.c.l.b16 %v839
    %v2548 = vunpack.c.h.b16 %v839
    %v2549 = vunpack.c.l.b16 %v840
    %v2550 = vunpack.c.l.b16 %v841
    %v2551 = vunpack.c.h.b16 %v841
    %v2552 = vunpack.c.l.b16 %v842
    %v2553 = vunpack.c.l.b16 %v843
    %v2554 = vunpack.c.h.b16 %v843
    %v2555 = vunpack.c.l.b16 %v844
    %v2556 = vunpack.c.l.b16 %v845
    %v2557 = vunpack.c.h.b16 %v845
    %v2558 = vunpack.c.l.b16 %v846
    %v2559 = vunpack.c.l.b16 %v847
    %v2560 = vunpack.c.h.b16 %v847
    %v2561 = vunpack.c.l.b16 %v848
    %v2562 = vunpack.c.l.b16 %v849
    %v2563 = vunpack.c.h.b16 %v849
    %v2564 = vunpack.c.l.b16 %v850
    %v2565 = vunpack.c.l.b16 %v851
    %v2566 = vunpack.c.h.b16 %v851
    %v2567 = vunpack.c.l.b16 %v852
    %v2568 = vunpack.c.l.b16 %v853
    %v2569 = vunpack.c.h.b16 %v853
    %v2570 = vunpack.c.l.b16 %v854
    %v2571 = vunpack.c.l.b16 %v855
    %v2572 = vunpack.c.h.b16 %v855
    %v2573 = vunpack.c.l.b16 %v856
    %v2574 = vunpack.c.l.b16 %v857
    %v2575 = vunpack.c.h.b16 %v857
    %v2576 = vunpack.c.l.b16 %v858
    %v2577 = vunpack.c.l.b16 %v859
    %v2578 = vunpack.c.h.b16 %v859
    %v2579 = vunpack.c.l.b16 %v860
    %v2580 = vunpack.c.l.b16 %v861
    %v2581 = vunpack.c.h.b16 %v861
    %v2582 = vunpack.c.l.b16 %v862
    %v2583 = vunpack.c.l.b16 %v863
    %v2584 = vunpack.c.h.b16 %v863
    %v2585 = vunpack.c.l.b16 %v864
    %v2586 = vunpack.c.l.b16 %v865
    %v2587 = vunpack.c.h.b16 %v865
    %v2588 = vunpack.c.l.b16 %v866
    %v2589 = vunpack.c.l.b16 %v867
    %v2590 = vunpack.c.h.b16 %v867
    %v2591 = vunpack.c.l.b16 %v868
    %v2592 = vunpack.c.l.b16 %v869
    %v2593 = vunpack.c.h.b16 %v869
    %v2594 = vunpack.c.l.b16 %v870
    %v2595 = vunpack.c.l.b16 %v871
    %v2596 = vunpack.c.h.b16 %v871
    %v2597 = vunpack.c.l.b16 %v872
    %v2598 = vunpack.c.l.b16 %v873
    %v2599 = vunpack.c.h.b16 %v873
    %v2600 = vunpack.c.l.b16 %v874
    %v2601 = vunpack.c.l.b16 %v875
    %v2602 = vunpack.c.h.b16 %v875
    %v2603 = vunpack.c.l.b16 %v876
    %v2604 = vunpack.c.l.b16 %v877
    %v2605 = vunpack.c.h.b16 %v877
    %v2606 = vunpack.c.l.b16 %v878
    %v2607 = vunpack.c.l.b16 %v879
    %v2608 = vunpack.c.h.b16 %v879
    %v2609 = vunpack.c.l.b16 %v880
    %v2610 = vunpack.c.l.b16 %v881
    %v2611 = vunpack.c.h.b16 %v881
    %v2612 = vunpack.c.l.b16 %v882
    %v2613 = vunpack.c.l.b16 %v883
    %v2614 = vunpack.c.h.b16 %v883
    %v2615 = vunpack.c.l.b16 %v884
    %v2616 = vunpack.c.l.b16 %v885
    %v2617 = vunpack.c.h.b16 %v885
    %v2618 = vunpack.c.l.b16 %v886
    %v2619 = vunpack.c.l.b16 %v887
    %v2620 = vunpack.c.h.b16 %v887
    %v2621 = vunpack.c.l.b16 %v888
    %v2622 = vunpack.c.l.b16 %v889
    %v2623 = vunpack.c.h.b16 %v889
    %v2624 = vunpack.c.l.b16 %v890
    %v2625 = vunpack.c.l.b16 %v891
    %v2626 = vunpack.c.h.b16 %v891
    %v2627 = vunpack.c.l.b16 %v892
    %v2628 = vunpack.c.l.b16 %v893
    %v2629 = vunpack.c.h.b16 %v893
    %v2630 = vunpack.c.l.b16 %v894
    %v2631 = vunpack.c.l.b16 %v895
    %v2632 = vunpack.c.h.b16 %v895
    %v2633 = vunpack.c.l.b16 %v896
    %v2634 = vunpack.c.l.b16 %v897
    %v2635 = vunpack.c.h.b16 %v897
    %v2636 = vunpack.c.l.b16 %v898
    %v2637 = vunpack.c.l.b16 %v899
    %v2638 = vunpack.c.h.b16 %v899
    %v2639 = vunpack.c.l.b16 %v900
    %v2640 = vunpack.c.l.b16 %v901
    %v2641 = vunpack.c.h.b16 %v901
    %v2642 = vunpack.c.l.b16 %v902
    %v2643 = vunpack.c.l.b16 %v903
    %v2644 = vunpack.c.h.b16 %v903
    %v2645 = vunpack.c.l.b16 %v904
    %v2646 = vunpack.c.l.b16 %v905
    %v2647 = vunpack.c.h.b16 %v905
    %v2648 = vunpack.c.l.b16 %v906
    %v2649 = vunpack.c.l.b16 %v907
    %v2650 = vunpack.c.h.b16 %v907
    %v2651 = vunpack.c.l.b16 %v908
    %v2652 = vunpack.c.l.b16 %v909
    %v2653 = vunpack.c.h.b16 %v909
    %v2654 = vunpack.c.l.b16 %v910
    %v2655 = vunpack.c.l.b16 %v911
    %v2656 = vunpack.c.h.b16 %v911
    %v2657 = vunpack.c.l.b16 %v912
    %v2658 = vunpack.c.l.b16 %v913
    %v2659 = vunpack.c.h.b16 %v913
    %v2660 = vunpack.c.l.b16 %v914
    %v2661 = vunpack.c.l.b16 %v915
    %v2662 = vunpack.c.h.b16 %v915
    %v2663 = vunpack.c.l.b16 %v916
    %v2664 = vunpack.c.l.b16 %v917
    %v2665 = vunpack.c.h.b16 %v917
    %v2666 = vunpack.c.l.b16 %v918
    %v2667 = vunpack.c.l.b16 %v919
    %v2668 = vunpack.c.h.b16 %v919
    %v2669 = vunpack.c.l.b16 %v920
    %v2670 = vunpack.c.l.b16 %v921
    %v2671 = vunpack.c.h.b16 %v921
    %v2672 = vunpack.c.l.b16 %v922
    %v2673 = vunpack.c.l.b16 %v923
    %v2674 = vunpack.c.h.b16 %v923
    %v2675 = vunpack.c.l.b16 %v924
    %v2676 = vunpack.c.l.b16 %v925
    %v2677 = vunpack.c.h.b16 %v925
    %v2678 = vunpack.c.l.b16 %v926
    %v2679 = vunpack.c.l.b16 %v927
    %v2680 = vunpack.c.h.b16 %v927
    %v2681 = vunpack.c.l.b16 %v928
    %v2682 = vunpack.c.l.b16 %v929
    %v2683 = vunpack.c.h.b16 %v929
    %v2684 = vunpack.c.l.b16 %v930
    %v2685 = vunpack.c.l.b16 %v931
    %v2686 = vunpack.c.h.b16 %v931
    %v2687 = vunpack.c.l.b16 %v932
    %v2688 = vunpack.c.l.b16 %v933
    %v2689 = vunpack.c.h.b16 %v933
    %v2690 = vunpack.c.l.b16 %v934
    %v2691 = vunpack.c.l.b16 %v935
    %v2692 = vunpack.c.h.b16 %v935
    %v2693 = vunpack.c.l.b16 %v936
    %v2694 = vunpack.c.l.b16 %v937
    %v2695 = vunpack.c.h.b16 %v937
    %v2696 = vunpack.c.l.b16 %v938
    %v2697 = vunpack.c.l.b16 %v939
    %v2698 = vunpack.c.h.b16 %v939
    %v2699 = vunpack.c.l.b16 %v940
    %v2700 = vunpack.c.l.b16 %v941
    %v2701 = vunpack.c.h.b16 %v941
    %v2702 = vunpack.c.l.b16 %v942
    %v2703 = vunpack.c.l.b16 %v943
    %v2704 = vunpack.c.h.b16 %v943
    %v2705 = vunpack.c.l.b16 %v944
    %v2706 = vunpack.c.l.b16 %v945
    %v2707 = vunpack.c.h.b16 %v945
    %v2708 = vunpack.c.l.b16 %v946
    %v2709 = vunpack.c.l.b16 %v947
    %v2710 = vunpack.c.h.b16 %v947
    %v2711 = vunpack.c.l.b16 %v948
    %v2712 = vunpack.c.l.b16 %v949
    %v2713 = vunpack.c.h.b16 %v949
    %v2714 = vunpack.c.l.b16 %v950
    %v2715 = vunpack.c.l.b16 %v951
    %v2716 = vunpack.c.h.b16 %v951
    %v2717 = vunpack.c.l.b16 %v952
    %v2718 = vunpack.c.l.b16 %v953
    %v2719 = vunpack.c.h.b16 %v953
    %v2720 = vunpack.c.l.b16 %v954
    %v2721 = vunpack.c.l.b16 %v955
    %v2722 = vunpack.c.h.b16 %v955
    %v2723 = vunpack.c.l.b16 %v956
    %v2724 = vunpack.c.l.b16 %v957
    %v2725 = vunpack.c.h.b16 %v957
    %v2726 = vunpack.c.l.b16 %v958
    %v2727 = vunpack.c.l.b16 %v959
    %v2728 = vunpack.c.h.b16 %v959
    %v2729 = vunpack.c.l.b16 %v960
    %v2730 = vunpack.c.l.b16 %v961
    %v2731 = vunpack.c.h.b16 %v961
    %v2732 = vunpack.c.l.b16 %v962
    %v2733 = vunpack.c.l.b16 %v963
    %v2734 = vunpack.c.h.b16 %v963
    %v2735 = vunpack.c.l.b16 %v964
    %v2736 = vunpack.c.l.b16 %v965
    %v2737 = vunpack.c.h.b16 %v965
    %v2738 = vunpack.c.l.b16 %v966
    %v2739 = vunpack.c.l.b16 %v967
    %v2740 = vunpack.c.h.b16 %v967
    %v2741 = vunpack.c.l.b16 %v968
    %v2742 = vunpack.c.l.b16 %v969
    %v2743 = vunpack.c.h.b16 %v969
    %v2744 = vunpack.c.l.b16 %v970
    %v2745 = vunpack.c.l.b16 %v971
    %v2746 = vunpack.c.h.b16 %v971
    %v2747 = vunpack.c.l.b16 %v972
    %v2748 = vunpack.c.l.b16 %v973
    %v2749 = vunpack.c.h.b16 %v973
    %v2750 = vunpack.c.l.b16 %v974
    %v2751 = vunpack.c.l.b16 %v975
    %v2752 = vunpack.c.h.b16 %v975
    %v2753 = vunpack.c.l.b16 %v976
    %v2754 = vunpack.c.l.b16 %v977
    %v2755 = vunpack.c.h.b16 %v977
    %v2756 = vunpack.c.l.b16 %v978
    %v2757 = vpack.c.b16 %v1800, %v1797
    %v2758 = vpack.c.b16 %v1801, %v1798
    %v2759 = vpack.c.b16 %v1802, %v1799
    %v2760 = vpack.c.b16 %v1806, %v1803
    %v2761 = vpack.c.b16 %v1807, %v1804
    %v2762 = vpack.c.b16 %v1808, %v1805
    %v2763 = vpack.c.b16 %v1812, %v1809
    %v2764 = vpack.c.b16 %v1813, %v1810
    %v2765 = vpack.c.b16 %v1814, %v1811
    %v2766 = vpack.c.b16 %v1818, %v1815
    %v2767 = vpack.c.b16 %v1819, %v1816
    %v2768 = vpack.c.b16 %v1820, %v1817
    %v2769 = vpack.c.b16 %v1824, %v1821
    %v2770 = vpack.c.b16 %v1825, %v1822
    %v2771 = vpack.c.b16 %v1826, %v1823
    %v2772 = vpack.c.b16 %v1830, %v1827
    %v2773 = vpack.c.b16 %v1831, %v1828
    %v2774 = vpack.c.b16 %v1832, %v1829
    %v2775 = vpack.c.b16 %v1836, %v1833
    %v2776 = vpack.c.b16 %v1837, %v1834
    %v2777 = vpack.c.b16 %v1838, %v1835
    %v2778 = vpack.c.b16 %v1842, %v1839
    %v2779 = vpack.c.b16 %v1843, %v1840
    %v2780 = vpack.c.b16 %v1844, %v1841
    %v2781 = vpack.c.b16 %v1848, %v1845
    %v2782 = vpack.c.b16 %v1849, %v1846
    %v2783 = vpack.c.b16 %v1850, %v1847
    %v2784 = vpack.c.b16 %v1854, %v1851
    %v2785 = vpack.c.b16 %v1855, %v1852
    %v2786 = vpack.c.b16 %v1856, %v1853
    %v2787 = vpack.c.b16 %v1860, %v1857
    %v2788 = vpack.c.b16 %v1861, %v1858
    %v2789 = vpack.c.b16 %v1862, %v1859
    %v2790 = vpack.c.b16 %v1866, %v1863
    %v2791 = vpack.c.b16 %v1867, %v1864
    %v2792 = vpack.c.b16 %v1868, %v1865
    %v2793 = vpack.c.b16 %v1872, %v1869
    %v2794 = vpack.c.b16 %v1873, %v1870
    %v2795 = vpack.c.b16 %v1874, %v1871
    %v2796 = vpack.c.b16 %v1878, %v1875
    %v2797 = vpack.c.b16 %v1879, %v1876
    %v2798 = vpack.c.b16 %v1880, %v1877
    %v2799 = vpack.c.b16 %v1884, %v1881
    %v2800 = vpack.c.b16 %v1885, %v1882
    %v2801 = vpack.c.b16 %v1886, %v1883
    %v2802 = vpack.c.b16 %v1890, %v1887
    %v2803 = vpack.c.b16 %v1891, %v1888
    %v2804 = vpack.c.b16 %v1892, %v1889
    %v2805 = vpack.c.b16 %v1896, %v1893
    %v2806 = vpack.c.b16 %v1897, %v1894
    %v2807 = vpack.c.b16 %v1898, %v1895
    %v2808 = vpack.c.b16 %v1902, %v1899
    %v2809 = vpack.c.b16 %v1903, %v1900
    %v2810 = vpack.c.b16 %v1904, %v1901
    %v2811 = vpack.c.b16 %v1908, %v1905
    %v2812 = vpack.c.b16 %v1909, %v1906
    %v2813 = vpack.c.b16 %v1910, %v1907
    %v2814 = vpack.c.b16 %v1914, %v1911
    %v2815 = vpack.c.b16 %v1915, %v1912
    %v2816 = vpack.c.b16 %v1916, %v1913
    %v2817 = vpack.c.b16 %v1920, %v1917
    %v2818 = vpack.c.b16 %v1921, %v1918
    %v2819 = vpack.c.b16 %v1922, %v1919
    %v2820 = vpack.c.b16 %v1926, %v1923
    %v2821 = vpack.c.b16 %v1927, %v1924
    %v2822 = vpack.c.b16 %v1928, %v1925
    %v2823 = vpack.c.b16 %v1932, %v1929
    %v2824 = vpack.c.b16 %v1933, %v1930
    %v2825 = vpack.c.b16 %v1934, %v1931
    %v2826 = vpack.c.b16 %v1938, %v1935
    %v2827 = vpack.c.b16 %v1939, %v1936
    %v2828 = vpack.c.b16 %v1940, %v1937
    %v2829 = vpack.c.b16 %v1944, %v1941
    %v2830 = vpack.c.b16 %v1945, %v1942
    %v2831 = vpack.c.b16 %v1946, %v1943
    %v2832 = vpack.c.b16 %v1950, %v1947
    %v2833 = vpack.c.b16 %v1951, %v1948
    %v2834 = vpack.c.b16 %v1952, %v1949
    %v2835 = vpack.c.b16 %v1956, %v1953
    %v2836 = vpack.c.b16 %v1957, %v1954
    %v2837 = vpack.c.b16 %v1958, %v1955
    %v2838 = vpack.c.b16 %v1962, %v1959
    %v2839 = vpack.c.b16 %v1963, %v1960
    %v2840 = vpack.c.b16 %v1964, %v1961
    %v2841 = vpack.c.b16 %v1968, %v1965
    %v2842 = vpack.c.b16 %v1969, %v1966
    %v2843 = vpack.c.b16 %v1970, %v1967
    %v2844 = vpack.c.b16 %v1974, %v1971
    %v2845 = vpack.c.b16 %v1975, %v1972
    %v2846 = vpack.c.b16 %v1976, %v1973
    %v2847 = vpack.c.b16 %v1980, %v1977
    %v2848 = vpack.c.b16 %v1981, %v1978
    %v2849 = vpack.c.b16 %v1982, %v1979
    %v2850 = vpack.c.b16 %v1986, %v1983
    %v2851 = vpack.c.b16 %v1987, %v1984
    %v2852 = vpack.c.b16 %v1988, %v1985
    %v2853 = vpack.c.b16 %v1992, %v1989
    %v2854 = vpack.c.b16 %v1993, %v1990
    %v2855 = vpack.c.b16 %v1994, %v1991
    %v2856 = vpack.c.b16 %v1998, %v1995
    %v2857 = vpack.c.b16 %v1999, %v1996
    %v2858 = vpack.c.b16 %v2000, %v1997
    %v2859 = vpack.c.b16 %v2004, %v2001
    %v2860 = vpack.c.b16 %v2005, %v2002
    %v2861 = vpack.c.b16 %v2006, %v2003
    %v2862 = vpack.c.b16 %v2010, %v2007
    %v2863 = vpack.c.b16 %v2011, %v2008
    %v2864 = vpack.c.b16 %v2012, %v2009
    %v2865 = vpack.c.b16 %v2016, %v2013
    %v2866 = vpack.c.b16 %v2017, %v2014
    %v2867 = vpack.c.b16 %v2018, %v2015
    %v2868 = vpack.c.b16 %v2022, %v2019
    %v2869 = vpack.c.b16 %v2023, %v2020
    %v2870 = vpack.c.b16 %v2024, %v2021
    %v2871 = vpack.c.b16 %v2028, %v2025
    %v2872 = vpack.c.b16 %v2029, %v2026
    %v2873 = vpack.c.b16 %v2030, %v2027
    %v2874 = vpack.c.b16 %v2034, %v2031
    %v2875 = vpack.c.b16 %v2035, %v2032
    %v2876 = vpack.c.b16 %v2036, %v2033
    %v2877 = vpack.c.b16 %v2040, %v2037
    %v2878 = vpack.c.b16 %v2041, %v2038
    %v2879 = vpack.c.b16 %v2042, %v2039
    %v2880 = vpack.c.b16 %v2046, %v2043
    %v2881 = vpack.c.b16 %v2047, %v2044
    %v2882 = vpack.c.b16 %v2048, %v2045
    %v2883 = vpack.c.b16 %v2052, %v2049
    %v2884 = vpack.c.b16 %v2053, %v2050
    %v2885 = vpack.c.b16 %v2054, %v2051
    %v2886 = vpack.c.b16 %v2058, %v2055
    %v2887 = vpack.c.b16 %v2059, %v2056
    %v2888 = vpack.c.b16 %v2060, %v2057
    %v2889 = vpack.c.b16 %v2064, %v2061
    %v2890 = vpack.c.b16 %v2065, %v2062
    %v2891 = vpack.c.b16 %v2066, %v2063
    %v2892 = vpack.c.b16 %v2070, %v2067
    %v2893 = vpack.c.b16 %v2071, %v2068
    %v2894 = vpack.c.b16 %v2072, %v2069
    %v2895 = vpack.c.b16 %v2076, %v2073
    %v2896 = vpack.c.b16 %v2077, %v2074
    %v2897 = vpack.c.b16 %v2078, %v2075
    %v2898 = vpack.c.b16 %v2082, %v2079
    %v2899 = vpack.c.b16 %v2083, %v2080
    %v2900 = vpack.c.b16 %v2084, %v2081
    %v2901 = vpack.c.b16 %v2088, %v2085
    %v2902 = vpack.c.b16 %v2089, %v2086
    %v2903 = vpack.c.b16 %v2090, %v2087
    %v2904 = vpack.c.b16 %v2094, %v2091
    %v2905 = vpack.c.b16 %v2095, %v2092
    %v2906 = vpack.c.b16 %v2096, %v2093
    %v2907 = vpack.c.b16 %v2100, %v2097
    %v2908 = vpack.c.b16 %v2101, %v2098
    %v2909 = vpack.c.b16 %v2102, %v2099
    %v2910 = vpack.c.b16 %v2106, %v2103
    %v2911 = vpack.c.b16 %v2107, %v2104
    %v2912 = vpack.c.b16 %v2108, %v2105
    %v2913 = vpack.c.b16 %v2112, %v2109
    %v2914 = vpack.c.b16 %v2113, %v2110
    %v2915 = vpack.c.b16 %v2114, %v2111
    %v2916 = vpack.c.b16 %v2118, %v2115
    %v2917 = vpack.c.b16 %v2119, %v2116
    %v2918 = vpack.c.b16 %v2120, %v2117
    %v2919 = vpack.c.b16 %v2124, %v2121
    %v2920 = vpack.c.b16 %v2125, %v2122
    %v2921 = vpack.c.b16 %v2126, %v2123
    %v2922 = vpack.c.b16 %v2130, %v2127
    %v2923 = vpack.c.b16 %v2131, %v2128
    %v2924 = vpack.c.b16 %v2132, %v2129
    %v2925 = vpack.c.b16 %v2136, %v2133
    %v2926 = vpack.c.b16 %v2137, %v2134
    %v2927 = vpack.c.b16 %v2138, %v2135
    %v2928 = vpack.c.b16 %v2142, %v2139
    %v2929 = vpack.c.b16 %v2143, %v2140
    %v2930 = vpack.c.b16 %v2144, %v2141
    %v2931 = vpack.c.b16 %v2148, %v2145
    %v2932 = vpack.c.b16 %v2149, %v2146
    %v2933 = vpack.c.b16 %v2150, %v2147
    %v2934 = vpack.c.b16 %v2154, %v2151
    %v2935 = vpack.c.b16 %v2155, %v2152
    %v2936 = vpack.c.b16 %v2156, %v2153
    %v2937 = vpack.c.b16 %v2160, %v2157
    %v2938 = vpack.c.b16 %v2161, %v2158
    %v2939 = vpack.c.b16 %v2162, %v2159
    %v2940 = vpack.c.b16 %v2166, %v2163
    %v2941 = vpack.c.b16 %v2167, %v2164
    %v2942 = vpack.c.b16 %v2168, %v2165
    %v2943 = vpack.c.b16 %v2172, %v2169
    %v2944 = vpack.c.b16 %v2173, %v2170
    %v2945 = vpack.c.b16 %v2174, %v2171
    %v2946 = vpack.c.b16 %v2178, %v2175
    %v2947 = vpack.c.b16 %v2179, %v2176
    %v2948 = vpack.c.b16 %v2180, %v2177
    %v2949 = vpack.c.b16 %v2184, %v2181
    %v2950 = vpack.c.b16 %v2185, %v2182
    %v2951 = vpack.c.b16 %v2186, %v2183
    %v2952 = vpack.c.b16 %v2190, %v2187
    %v2953 = vpack.c.b16 %v2191, %v2188
    %v2954 = vpack.c.b16 %v2192, %v2189
    %v2955 = vpack.c.b16 %v2196, %v2193
    %v2956 = vpack.c.b16 %v2197, %v2194
    %v2957 = vpack.c.b16 %v2198, %v2195
    %v2958 = vpack.c.b16 %v2202, %v2199
    %v2959 = vpack.c.b16 %v2203, %v2200
    %v2960 = vpack.c.b16 %v2204, %v2201
    %v2961 = vpack.c.b16 %v2208, %v2205
    %v2962 = vpack.c.b16 %v2209, %v2206
    %v2963 = vpack.c.b16 %v2210, %v2207
    %v2964 = vpack.c.b16 %v2214, %v2211
    %v2965 = vpack.c.b16 %v2215, %v2212
    %v2966 = vpack.c.b16 %v2216, %v2213
    %v2967 = vpack.c.b16 %v2220, %v2217
    %v2968 = vpack.c.b16 %v2221, %v2218
    %v2969 = vpack.c.b16 %v2222, %v2219
    %v2970 = vpack.c.b16 %v2226, %v2223
    %v2971 = vpack.c.b16 %v2227, %v2224
    %v2972 = vpack.c.b16 %v2228, %v2225
    %v2973 = vpack.c.b16 %v2232, %v2229
    %v2974 = vpack.c.b16 %v2233, %v2230
    %v2975 = vpack.c.b16 %v2234, %v2231
    %v2976 = vpack.c.b16 %v2238, %v2235
    %v2977 = vpack.c.b16 %v2239, %v2236
    %v2978 = vpack.c.b16 %v2240, %v2237
    %v2979 = vpack.c.b16 %v2244, %v2241
    %v2980 = vpack.c.b16 %v2245, %v2242
    %v2981 = vpack.c.b16 %v2246, %v2243
    %v2982 = vpack.c.b16 %v2250, %v2247
    %v2983 = vpack.c.b16 %v2251, %v2248
    %v2984 = vpack.c.b16 %v2252, %v2249
    %v2985 = vpack.c.b16 %v2256, %v2253
    %v2986 = vpack.c.b16 %v2257, %v2254
    %v2987 = vpack.c.b16 %v2258, %v2255
    %v2988 = vpack.c.b16 %v2262, %v2259
    %v2989 = vpack.c.b16 %v2263, %v2260
    %v2990 = vpack.c.b16 %v2264, %v2261
    %v2991 = vpack.c.b16 %v2268, %v2265
    %v2992 = vpack.c.b16 %v2269, %v2266
    %v2993 = vpack.c.b16 %v2270, %v2267
    %v2994 = vpack.c.b16 %v2274, %v2271
    %v2995 = vpack.c.b16 %v2275, %v2272
    %v2996 = vpack.c.b16 %v2276, %v2273
    %v2997 = vpack.c.b16 %v2280, %v2277
    %v2998 = vpack.c.b16 %v2281, %v2278
    %v2999 = vpack.c.b16 %v2282, %v2279
    %v3000 = vpack.c.b16 %v2286, %v2283
    %v3001 = vpack.c.b16 %v2287, %v2284
    %v3002 = vpack.c.b16 %v2288, %v2285
    %v3003 = vpack.c.b16 %v2292, %v2289
    %v3004 = vpack.c.b16 %v2293, %v2290
    %v3005 = vpack.c.b16 %v2294, %v2291
    %v3006 = vpack.c.b16 %v2298, %v2295
    %v3007 = vpack.c.b16 %v2299, %v2296
    %v3008 = vpack.c.b16 %v2300, %v2297
    %v3009 = vpack.c.b16 %v2304, %v2301
    %v3010 = vpack.c.b16 %v2305, %v2302
    %v3011 = vpack.c.b16 %v2306, %v2303
    %v3012 = vpack.c.b16 %v2310, %v2307
    %v3013 = vpack.c.b16 %v2311, %v2308
    %v3014 = vpack.c.b16 %v2312, %v2309
    %v3015 = vpack.c.b16 %v2316, %v2313
    %v3016 = vpack.c.b16 %v2317, %v2314
    %v3017 = vpack.c.b16 %v2318, %v2315
    %v3018 = vpack.c.b16 %v2322, %v2319
    %v3019 = vpack.c.b16 %v2323, %v2320
    %v3020 = vpack.c.b16 %v2324, %v2321
    %v3021 = vpack.c.b16 %v2328, %v2325
    %v3022 = vpack.c.b16 %v2329, %v2326
    %v3023 = vpack.c.b16 %v2330, %v2327
    %v3024 = vpack.c.b16 %v2334, %v2331
    %v3025 = vpack.c.b16 %v2335, %v2332
    %v3026 = vpack.c.b16 %v2336, %v2333
    %v3027 = vpack.c.b16 %v2340, %v2337
    %v3028 = vpack.c.b16 %v2341, %v2338
    %v3029 = vpack.c.b16 %v2342, %v2339
    %v3030 = vpack.c.b16 %v2346, %v2343
    %v3031 = vpack.c.b16 %v2347, %v2344
    %v3032 = vpack.c.b16 %v2348, %v2345
    %v3033 = vpack.c.b16 %v2352, %v2349
    %v3034 = vpack.c.b16 %v2353, %v2350
    %v3035 = vpack.c.b16 %v2354, %v2351
    %v3036 = vpack.c.b16 %v2358, %v2355
    %v3037 = vpack.c.b16 %v2359, %v2356
    %v3038 = vpack.c.b16 %v2360, %v2357
    %v3039 = vpack.c.b16 %v2364, %v2361
    %v3040 = vpack.c.b16 %v2365, %v2362
    %v3041 = vpack.c.b16 %v2366, %v2363
    %v3042 = vpack.c.b16 %v2370, %v2367
    %v3043 = vpack.c.b16 %v2371, %v2368
    %v3044 = vpack.c.b16 %v2372, %v2369
    %v3045 = vpack.c.b16 %v2376, %v2373
    %v3046 = vpack.c.b16 %v2377, %v2374
    %v3047 = vpack.c.b16 %v2378, %v2375
    %v3048 = vpack.c.b16 %v2382, %v2379
    %v3049 = vpack.c.b16 %v2383, %v2380
    %v3050 = vpack.c.b16 %v2384, %v2381
    %v3051 = vpack.c.b16 %v2388, %v2385
    %v3052 = vpack.c.b16 %v2389, %v2386
    %v3053 = vpack.c.b16 %v2390, %v2387
    %v3054 = vpack.c.b16 %v2394, %v2391
    %v3055 = vpack.c.b16 %v2395, %v2392
    %v3056 = vpack.c.b16 %v2396, %v2393
    %v3057 = vpack.c.b16 %v2400, %v2397
    %v3058 = vpack.c.b16 %v2401, %v2398
    %v3059 = vpack.c.b16 %v2402, %v2399
    %v3060 = vpack.c.b16 %v2406, %v2403
    %v3061 = vpack.c.b16 %v2407, %v2404
    %v3062 = vpack.c.b16 %v2408, %v2405
    %v3063 = vpack.c.b16 %v2412, %v2409
    %v3064 = vpack.c.b16 %v2413, %v2410
    %v3065 = vpack.c.b16 %v2414, %v2411
    %v3066 = vpack.c.b16 %v2418, %v2415
    %v3067 = vpack.c.b16 %v2419, %v2416
    %v3068 = vpack.c.b16 %v2420, %v2417
    %v3069 = vpack.c.b16 %v2424, %v2421
    %v3070 = vpack.c.b16 %v2425, %v2422
    %v3071 = vpack.c.b16 %v2426, %v2423
    %v3072 = vpack.c.b16 %v2430, %v2427
    %v3073 = vpack.c.b16 %v2431, %v2428
    %v3074 = vpack.c.b16 %v2432, %v2429
    %v3075 = vpack.c.b16 %v2436, %v2433
    %v3076 = vpack.c.b16 %v2437, %v2434
    %v3077 = vpack.c.b16 %v2438, %v2435
    %v3078 = vpack.c.b16 %v2442, %v2439
    %v3079 = vpack.c.b16 %v2443, %v2440
    %v3080 = vpack.c.b16 %v2444, %v2441
    %v3081 = vpack.c.b16 %v2448, %v2445
    %v3082 = vpack.c.b16 %v2449, %v2446
    %v3083 = vpack.c.b16 %v2450, %v2447
    %v3084 = vpack.c.b16 %v2454, %v2451
    %v3085 = vpack.c.b16 %v2455, %v2452
    %v3086 = vpack.c.b16 %v2456, %v2453
    %v3087 = vpack.c.b16 %v2460, %v2457
    %v3088 = vpack.c.b16 %v2461, %v2458
    %v3089 = vpack.c.b16 %v2462, %v2459
    %v3090 = vpack.c.b16 %v2466, %v2463
    %v3091 = vpack.c.b16 %v2467, %v2464
    %v3092 = vpack.c.b16 %v2468, %v2465
    %v3093 = vpack.c.b16 %v2472, %v2469
    %v3094 = vpack.c.b16 %v2473, %v2470
    %v3095 = vpack.c.b16 %v2474, %v2471
    %v3096 = vpack.c.b16 %v2478, %v2475
    %v3097 = vpack.c.b16 %v2479, %v2476
    %v3098 = vpack.c.b16 %v2480, %v2477
    %v3099 = vpack.c.b16 %v2484, %v2481
    %v3100 = vpack.c.b16 %v2485, %v2482
    %v3101 = vpack.c.b16 %v2486, %v2483
    %v3102 = vpack.c.b16 %v2490, %v2487
    %v3103 = vpack.c.b16 %v2491, %v2488
    %v3104 = vpack.c.b16 %v2492, %v2489
    %v3105 = vpack.c.b16 %v2496, %v2493
    %v3106 = vpack.c.b16 %v2497, %v2494
    %v3107 = vpack.c.b16 %v2498, %v2495
    %v3108 = vpack.c.b16 %v2502, %v2499
    %v3109 = vpack.c.b16 %v2503, %v2500
    %v3110 = vpack.c.b16 %v2504, %v2501
    %v3111 = vpack.c.b16 %v2508, %v2505
    %v3112 = vpack.c.b16 %v2509, %v2506
    %v3113 = vpack.c.b16 %v2510, %v2507
    %v3114 = vpack.c.b16 %v2514, %v2511
    %v3115 = vpack.c.b16 %v2515, %v2512
    %v3116 = vpack.c.b16 %v2516, %v2513
    %v3117 = vpack.c.b16 %v2520, %v2517
    %v3118 = vpack.c.b16 %v2521, %v2518
    %v3119 = vpack.c.b16 %v2522, %v2519
    %v3120 = vpack.c.b16 %v2526, %v2523
    %v3121 = vpack.c.b16 %v2527, %v2524
    %v3122 = vpack.c.b16 %v2528, %v2525
    %v3123 = vpack.c.b16 %v2532, %v2529
    %v3124 = vpack.c.b16 %v2533, %v2530
    %v3125 = vpack.c.b16 %v2534, %v2531
    %v3126 = vpack.c.b16 %v2538, %v2535
    %v3127 = vpack.c.b16 %v2539, %v2536
    %v3128 = vpack.c.b16 %v2540, %v2537
    %v3129 = vpack.c.b16 %v2544, %v2541
    %v3130 = vpack.c.b16 %v2545, %v2542
    %v3131 = vpack.c.b16 %v2546, %v2543
    %v3132 = vpack.c.b16 %v2550, %v2547
    %v3133 = vpack.c.b16 %v2551, %v2548
    %v3134 = vpack.c.b16 %v2552, %v2549
    %v3135 = vpack.c.b16 %v2556, %v2553
    %v3136 = vpack.c.b16 %v2557, %v2554
    %v3137 = vpack.c.b16 %v2558, %v2555
    %v3138 = vpack.c.b16 %v2562, %v2559
    %v3139 = vpack.c.b16 %v2563, %v2560
    %v3140 = vpack.c.b16 %v2564, %v2561
    %v3141 = vpack.c.b16 %v2568, %v2565
    %v3142 = vpack.c.b16 %v2569, %v2566
    %v3143 = vpack.c.b16 %v2570, %v2567
    %v3144 = vpack.c.b16 %v2574, %v2571
    %v3145 = vpack.c.b16 %v2575, %v2572
    %v3146 = vpack.c.b16 %v2576, %v2573
    %v3147 = vpack.c.b16 %v2580, %v2577
    %v3148 = vpack.c.b16 %v2581, %v2578
    %v3149 = vpack.c.b16 %v2582, %v2579
    %v3150 = vpack.c.b16 %v2586, %v2583
    %v3151 = vpack.c.b16 %v2587, %v2584
    %v3152 = vpack.c.b16 %v2588, %v2585
    %v3153 = vpack.c.b16 %v2592, %v2589
    %v3154 = vpack.c.b16 %v2593, %v2590
    %v3155 = vpack.c.b16 %v2594, %v2591
    %v3156 = vpack.c.b16 %v2598, %v2595
    %v3157 = vpack.c.b16 %v2599, %v2596
    %v3158 = vpack.c.b16 %v2600, %v2597
    %v3159 = vpack.c.b16 %v2604, %v2601
    %v3160 = vpack.c.b16 %v2605, %v2602
    %v3161 = vpack.c.b16 %v2606, %v2603
    %v3162 = vpack.c.b16 %v2610, %v2607
    %v3163 = vpack.c.b16 %v2611, %v2608
    %v3164 = vpack.c.b16 %v2612, %v2609
    %v3165 = vpack.c.b16 %v2616, %v2613
    %v3166 = vpack.c.b16 %v2617, %v2614
    %v3167 = vpack.c.b16 %v2618, %v2615
    %v3168 = vpack.c.b16 %v2622, %v2619
    %v3169 = vpack.c.b16 %v2623, %v2620
    %v3170 = vpack.c.b16 %v2624, %v2621
    %v3171 = vpack.c.b16 %v2628, %v2625
    %v3172 = vpack.c.b16 %v2629, %v2626
    %v3173 = vpack.c.b16 %v2630, %v2627
    %v3174 = vpack.c.b16 %v2634, %v2631
    %v3175 = vpack.c.b16 %v2635, %v2632
    %v3176 = vpack.c.b16 %v2636, %v2633
    %v3177 = vpack.c.b16 %v2640, %v2637
    %v3178 = vpack.c.b16 %v2641, %v2638
    %v3179 = vpack.c.b16 %v2642, %v2639
    %v3180 = vpack.c.b16 %v2646, %v2643
    %v3181 = vpack.c.b16 %v2647, %v2644
    %v3182 = vpack.c.b16 %v2648, %v2645
    %v3183 = vpack.c.b16 %v2652, %v2649
    %v3184 = vpack.c.b16 %v2653, %v2650
    %v3185 = vpack.c.b16 %v2654, %v2651
    %v3186 = vpack.c.b16 %v2658, %v2655
    %v3187 = vpack.c.b16 %v2659, %v2656
    %v3188 = vpack.c.b16 %v2660, %v2657
    %v3189 = vpack.c.b16 %v2664, %v2661
    %v3190 = vpack.c.b16 %v2665, %v2662
    %v3191 = vpack.c.b16 %v2666, %v2663
    %v3192 = vpack.c.b16 %v2670, %v2667
    %v3193 = vpack.c.b16 %v2671, %v2668
    %v3194 = vpack.c.b16 %v2672, %v2669
    %v3195 = vpack.c.b16 %v2676, %v2673
    %v3196 = vpack.c.b16 %v2677, %v2674
    %v3197 = vpack.c.b16 %v2678, %v2675
    %v3198 = vpack.c.b16 %v2682, %v2679
    %v3199 = vpack.c.b16 %v2683, %v2680
    %v3200 = vpack.c.b16 %v2684, %v2681
    %v3201 = vpack.c.b16 %v2688, %v2685
    %v3202 = vpack.c.b16 %v2689, %v2686
    %v3203 = vpack.c.b16 %v2690, %v2687
    %v3204 = vpack.c.b16 %v2694, %v2691
    %v3205 = vpack.c.b16 %v2695, %v2692
    %v3206 = vpack.c.b16 %v2696, %v2693
    %v3207 = vpack.c.b16 %v2700, %v2697
    %v3208 = vpack.c.b16 %v2701, %v2698
    %v3209 = vpack.c.b16 %v2702, %v2699
    %v3210 = vpack.c.b16 %v2706, %v2703
    %v3211 = vpack.c.b16 %v2707, %v2704
    %v3212 = vpack.c.b16 %v2708, %v2705
    %v3213 = vpack.c.b16 %v2712, %v2709
    %v3214 = vpack.c.b16 %v2713, %v2710
    %v3215 = vpack.c.b16 %v2714, %v2711
    %v3216 = vpack.c.b16 %v2718, %v2715
    %v3217 = vpack.c.b16 %v2719, %v2716
    %v3218 = vpack.c.b16 %v2720, %v2717
    %v3219 = vpack.c.b16 %v2724, %v2721
    %v3220 = vpack.c.b16 %v2725, %v2722
    %v3221 = vpack.c.b16 %v2726, %v2723
    %v3222 = vpack.c.b16 %v2730, %v2727
    %v3223 = vpack.c.b16 %v2731, %v2728
    %v3224 = vpack.c.b16 %v2732, %v2729
    %v3225 = vpack.c.b16 %v2736, %v2733
    %v3226 = vpack.c.b16 %v2737, %v2734
    %v3227 = vpack.c.b16 %v2738, %v2735
    %v3228 = vpack.c.b16 %v2742, %v2739
    %v3229 = vpack.c.b16 %v2743, %v2740
    %v3230 = vpack.c.b16 %v2744, %v2741
    %v3231 = vpack.c.b16 %v2748, %v2745
    %v3232 = vpack.c.b16 %v2749, %v2746
    %v3233 = vpack.c.b16 %v2750, %v2747
    %v3234 = vpack.c.b16 %v2754, %v2751
    %v3235 = vpack.c.b16 %v2755, %v2752
    %v3236 = vpack.c.b16 %v2756, %v2753
    %3717 = vmatpush.bf16.msra.mxu0 %v2778
    %3718 = vmatpush.bf16.msra.mxu0 %v2775
    %3719 = vmatpush.bf16.msra.mxu0 %v2772
    %3720 = vmatpush.bf16.msra.mxu0 %v2769
    %3721 = vmatpush.bf16.msra.mxu0 %v2766
    %3722 = vmatpush.bf16.msra.mxu0 %v2763
    %3723 = vmatpush.bf16.msra.mxu0 %v2760
    %3724 = vmatpush.bf16.msra.mxu0 %v2757
    %3725 = vmatmul.bf16.gmra.mxu0 %v1077
    %v3726 = vpop.f32.mrf.mxu0
    %v3727 = vadd.f32 %v981, %v3726
    %v3728 = vpop.f32.mrf.mxu0
    %v3729 = vadd.f32 %v981, %v3728
    %3730 = vmatmul.bf16.gmra.mxu0 %v1097
    %v3731 = vpop.f32.mrf.mxu0
    %v3732 = vadd.f32 %v981, %v3731
    %v3733 = vpop.f32.mrf.mxu0
    %3734 = vdwg.mxu0
    %3735 = vmatpush.bf16.msra.mxu0 %v2802
    %3736 = vmatpush.bf16.msra.mxu0 %v2799
    %3737 = vmatpush.bf16.msra.mxu0 %v2796
    %3738 = vmatpush.bf16.msra.mxu0 %v2793
    %3739 = vmatpush.bf16.msra.mxu0 %v2790
    %3740 = vmatpush.bf16.msra.mxu0 %v2787
    %3741 = vmatpush.bf16.msra.mxu0 %v2784
    %3742 = vmatpush.bf16.msra.mxu0 %v2781
    %3743 = vmatmul.bf16.gmra.mxu0 %v1078
    %v3744 = vpop.f32.mrf.mxu0
    %v3745 = vadd.f32 %v3727, %v3744
    %v3746 = vpop.f32.mrf.mxu0
    %v3747 = vadd.f32 %v3729, %v3746
    %3748 = vmatmul.bf16.gmra.mxu0 %v1098
    %v3749 = vpop.f32.mrf.mxu0
    %v3750 = vadd.f32 %v3732, %v3749
    %v3751 = vpop.f32.mrf.mxu0
    %3752 = vdwg.mxu0
    %3753 = vmatpush.bf16.msra.mxu0 %v2826
    %3754 = vmatpush.bf16.msra.mxu0 %v2823
    %3755 = vmatpush.bf16.msra.mxu0 %v2820
    %3756 = vmatpush.bf16.msra.mxu0 %v2817
    %3757 = vmatpush.bf16.msra.mxu0 %v2814
    %3758 = vmatpush.bf16.msra.mxu0 %v2811
    %3759 = vmatpush.bf16.msra.mxu0 %v2808
    %3760 = vmatpush.bf16.msra.mxu0 %v2805
    %3761 = vmatmul.bf16.gmra.mxu0 %v1079
    %v3762 = vpop.f32.mrf.mxu0
    %v3763 = vadd.f32 %v3745, %v3762
    %v3764 = vpop.f32.mrf.mxu0
    %v3765 = vadd.f32 %v3747, %v3764
    %3766 = vmatmul.bf16.gmra.mxu0 %v1099
    %v3767 = vpop.f32.mrf.mxu0
    %v3768 = vadd.f32 %v3750, %v3767
    %v3769 = vpop.f32.mrf.mxu0
    %3770 = vdwg.mxu0
    %3771 = vmatpush.bf16.msra.mxu0 %v2850
    %3772 = vmatpush.bf16.msra.mxu0 %v2847
    %3773 = vmatpush.bf16.msra.mxu0 %v2844
    %3774 = vmatpush.bf16.msra.mxu0 %v2841
    %3775 = vmatpush.bf16.msra.mxu0 %v2838
    %3776 = vmatpush.bf16.msra.mxu0 %v2835
    %3777 = vmatpush.bf16.msra.mxu0 %v2832
    %3778 = vmatpush.bf16.msra.mxu0 %v2829
    %3779 = vmatmul.bf16.gmra.mxu0 %v1080
    %v3780 = vpop.f32.mrf.mxu0
    %v3781 = vadd.f32 %v3763, %v3780
    %v3782 = vpop.f32.mrf.mxu0
    %v3783 = vadd.f32 %v3765, %v3782
    %3784 = vmatmul.bf16.gmra.mxu0 %v1100
    %v3785 = vpop.f32.mrf.mxu0
    %v3786 = vadd.f32 %v3768, %v3785
    %v3787 = vpop.f32.mrf.mxu0
    %3788 = vdwg.mxu0
    %3789 = vmatpush.bf16.msra.mxu0 %v2874
    %3790 = vmatpush.bf16.msra.mxu0 %v2871
    %3791 = vmatpush.bf16.msra.mxu0 %v2868
    %3792 = vmatpush.bf16.msra.mxu0 %v2865
    %3793 = vmatpush.bf16.msra.mxu0 %v2862
    %3794 = vmatpush.bf16.msra.mxu0 %v2859
    %3795 = vmatpush.bf16.msra.mxu0 %v2856
    %3796 = vmatpush.bf16.msra.mxu0 %v2853
    %3797 = vmatmul.bf16.gmra.mxu0 %v1081
    %v3798 = vpop.f32.mrf.mxu0
    %v3799 = vadd.f32 %v3781, %v3798
    %v3800 = vpop.f32.mrf.mxu0
    %v3801 = vadd.f32 %v3783, %v3800
    %3802 = vmatmul.bf16.gmra.mxu0 %v1101
    %v3803 = vpop.f32.mrf.mxu0
    %v3804 = vadd.f32 %v3786, %v3803
    %v3805 = vpop.f32.mrf.mxu0
    %3806 = vdwg.mxu0
    %3807 = vmatpush.bf16.msra.mxu0 %v2898
    %3808 = vmatpush.bf16.msra.mxu0 %v2895
    %3809 = vmatpush.bf16.msra.mxu0 %v2892
    %3810 = vmatpush.bf16.msra.mxu0 %v2889
    %3811 = vmatpush.bf16.msra.mxu0 %v2886
    %3812 = vmatpush.bf16.msra.mxu0 %v2883
    %3813 = vmatpush.bf16.msra.mxu0 %v2880
    %3814 = vmatpush.bf16.msra.mxu0 %v2877
    %3815 = vmatmul.bf16.gmra.mxu0 %v1082
    %v3816 = vpop.f32.mrf.mxu0
    %v3817 = vadd.f32 %v3799, %v3816
    %v3818 = vpop.f32.mrf.mxu0
    %v3819 = vadd.f32 %v3801, %v3818
    %3820 = vmatmul.bf16.gmra.mxu0 %v1102
    %v3821 = vpop.f32.mrf.mxu0
    %v3822 = vadd.f32 %v3804, %v3821
    %v3823 = vpop.f32.mrf.mxu0
    %3824 = vdwg.mxu0
    %3825 = vmatpush.bf16.msra.mxu0 %v2922
    %3826 = vmatpush.bf16.msra.mxu0 %v2919
    %3827 = vmatpush.bf16.msra.mxu0 %v2916
    %3828 = vmatpush.bf16.msra.mxu0 %v2913
    %3829 = vmatpush.bf16.msra.mxu0 %v2910
    %3830 = vmatpush.bf16.msra.mxu0 %v2907
    %3831 = vmatpush.bf16.msra.mxu0 %v2904
    %3832 = vmatpush.bf16.msra.mxu0 %v2901
    %3833 = vmatmul.bf16.gmra.mxu0 %v1083
    %v3834 = vpop.f32.mrf.mxu0
    %v3835 = vadd.f32 %v3817, %v3834
    %v3836 = vpop.f32.mrf.mxu0
    %v3837 = vadd.f32 %v3819, %v3836
    %3838 = vmatmul.bf16.gmra.mxu0 %v1103
    %v3839 = vpop.f32.mrf.mxu0
    %v3840 = vadd.f32 %v3822, %v3839
    %v3841 = vpop.f32.mrf.mxu0
    %3842 = vdwg.mxu0
    %3843 = vmatpush.bf16.msra.mxu0 %v2946
    %3844 = vmatpush.bf16.msra.mxu0 %v2943
    %3845 = vmatpush.bf16.msra.mxu0 %v2940
    %3846 = vmatpush.bf16.msra.mxu0 %v2937
    %3847 = vmatpush.bf16.msra.mxu0 %v2934
    %3848 = vmatpush.bf16.msra.mxu0 %v2931
    %3849 = vmatpush.bf16.msra.mxu0 %v2928
    %3850 = vmatpush.bf16.msra.mxu0 %v2925
    %3851 = vmatmul.bf16.gmra.mxu0 %v1084
    %v3852 = vpop.f32.mrf.mxu0
    %v3853 = vadd.f32 %v3835, %v3852
    %v3854 = vpop.f32.mrf.mxu0
    %v3855 = vadd.f32 %v3837, %v3854
    %3856 = vmatmul.bf16.gmra.mxu0 %v1104
    %v3857 = vpop.f32.mrf.mxu0
    %v3858 = vadd.f32 %v3840, %v3857
    %v3859 = vpop.f32.mrf.mxu0
    %3860 = vdwg.mxu0
    %3861 = vmatpush.bf16.msra.mxu0 %v2970
    %3862 = vmatpush.bf16.msra.mxu0 %v2967
    %3863 = vmatpush.bf16.msra.mxu0 %v2964
    %3864 = vmatpush.bf16.msra.mxu0 %v2961
    %3865 = vmatpush.bf16.msra.mxu0 %v2958
    %3866 = vmatpush.bf16.msra.mxu0 %v2955
    %3867 = vmatpush.bf16.msra.mxu0 %v2952
    %3868 = vmatpush.bf16.msra.mxu0 %v2949
    %3869 = vmatmul.bf16.gmra.mxu0 %v1085
    %v3870 = vpop.f32.mrf.mxu0
    %v3871 = vadd.f32 %v3853, %v3870
    %v3872 = vpop.f32.mrf.mxu0
    %v3873 = vadd.f32 %v3855, %v3872
    %3874 = vmatmul.bf16.gmra.mxu0 %v1105
    %v3875 = vpop.f32.mrf.mxu0
    %v3876 = vadd.f32 %v3858, %v3875
    %v3877 = vpop.f32.mrf.mxu0
    %3878 = vdwg.mxu0
    %3879 = vmatpush.bf16.msra.mxu0 %v2994
    %3880 = vmatpush.bf16.msra.mxu0 %v2991
    %3881 = vmatpush.bf16.msra.mxu0 %v2988
    %3882 = vmatpush.bf16.msra.mxu0 %v2985
    %3883 = vmatpush.bf16.msra.mxu0 %v2982
    %3884 = vmatpush.bf16.msra.mxu0 %v2979
    %3885 = vmatpush.bf16.msra.mxu0 %v2976
    %3886 = vmatpush.bf16.msra.mxu0 %v2973
    %3887 = vmatmul.bf16.gmra.mxu0 %v1086
    %v3888 = vpop.f32.mrf.mxu0
    %v3889 = vadd.f32 %v3871, %v3888
    %v3890 = vpop.f32.mrf.mxu0
    %v3891 = vadd.f32 %v3873, %v3890
    %3892 = vmatmul.bf16.gmra.mxu0 %v1106
    %v3893 = vpop.f32.mrf.mxu0
    %v3894 = vadd.f32 %v3876, %v3893
    %v3895 = vpop.f32.mrf.mxu0
    %3896 = vdwg.mxu0
    %3897 = vmatpush.bf16.msra.mxu0 %v3018
    %3898 = vmatpush.bf16.msra.mxu0 %v3015
    %3899 = vmatpush.bf16.msra.mxu0 %v3012
    %3900 = vmatpush.bf16.msra.mxu0 %v3009
    %3901 = vmatpush.bf16.msra.mxu0 %v3006
    %3902 = vmatpush.bf16.msra.mxu0 %v3003
    %3903 = vmatpush.bf16.msra.mxu0 %v3000
    %3904 = vmatpush.bf16.msra.mxu0 %v2997
    %3905 = vmatmul.bf16.gmra.mxu0 %v1087
    %v3906 = vpop.f32.mrf.mxu0
    %v3907 = vadd.f32 %v3889, %v3906
    %v3908 = vpop.f32.mrf.mxu0
    %v3909 = vadd.f32 %v3891, %v3908
    %3910 = vmatmul.bf16.gmra.mxu0 %v1107
    %v3911 = vpop.f32.mrf.mxu0
    %v3912 = vadd.f32 %v3894, %v3911
    %v3913 = vpop.f32.mrf.mxu0
    %3914 = vdwg.mxu0
    %3915 = vmatpush.bf16.msra.mxu0 %v3042
    %3916 = vmatpush.bf16.msra.mxu0 %v3039
    %3917 = vmatpush.bf16.msra.mxu0 %v3036
    %3918 = vmatpush.bf16.msra.mxu0 %v3033
    %3919 = vmatpush.bf16.msra.mxu0 %v3030
    %3920 = vmatpush.bf16.msra.mxu0 %v3027
    %3921 = vmatpush.bf16.msra.mxu0 %v3024
    %3922 = vmatpush.bf16.msra.mxu0 %v3021
    %3923 = vmatmul.bf16.gmra.mxu0 %v1088
    %v3924 = vpop.f32.mrf.mxu0
    %v3925 = vadd.f32 %v3907, %v3924
    %v3926 = vpop.f32.mrf.mxu0
    %v3927 = vadd.f32 %v3909, %v3926
    %3928 = vmatmul.bf16.gmra.mxu0 %v1108
    %v3929 = vpop.f32.mrf.mxu0
    %v3930 = vadd.f32 %v3912, %v3929
    %v3931 = vpop.f32.mrf.mxu0
    %3932 = vdwg.mxu0
    %3933 = vmatpush.bf16.msra.mxu0 %v3066
    %3934 = vmatpush.bf16.msra.mxu0 %v3063
    %3935 = vmatpush.bf16.msra.mxu0 %v3060
    %3936 = vmatpush.bf16.msra.mxu0 %v3057
    %3937 = vmatpush.bf16.msra.mxu0 %v3054
    %3938 = vmatpush.bf16.msra.mxu0 %v3051
    %3939 = vmatpush.bf16.msra.mxu0 %v3048
    %3940 = vmatpush.bf16.msra.mxu0 %v3045
    %3941 = vmatmul.bf16.gmra.mxu0 %v1089
    %v3942 = vpop.f32.mrf.mxu0
    %v3943 = vadd.f32 %v3925, %v3942
    %v3944 = vpop.f32.mrf.mxu0
    %v3945 = vadd.f32 %v3927, %v3944
    %3946 = vmatmul.bf16.gmra.mxu0 %v1109
    %v3947 = vpop.f32.mrf.mxu0
    %v3948 = vadd.f32 %v3930, %v3947
    %v3949 = vpop.f32.mrf.mxu0
    %3950 = vdwg.mxu0
    %3951 = vmatpush.bf16.msra.mxu0 %v3090
    %3952 = vmatpush.bf16.msra.mxu0 %v3087
    %3953 = vmatpush.bf16.msra.mxu0 %v3084
    %3954 = vmatpush.bf16.msra.mxu0 %v3081
    %3955 = vmatpush.bf16.msra.mxu0 %v3078
    %3956 = vmatpush.bf16.msra.mxu0 %v3075
    %3957 = vmatpush.bf16.msra.mxu0 %v3072
    %3958 = vmatpush.bf16.msra.mxu0 %v3069
    %3959 = vmatmul.bf16.gmra.mxu0 %v1090
    %v3960 = vpop.f32.mrf.mxu0
    %v3961 = vadd.f32 %v3943, %v3960
    %v3962 = vpop.f32.mrf.mxu0
    %v3963 = vadd.f32 %v3945, %v3962
    %3964 = vmatmul.bf16.gmra.mxu0 %v1110
    %v3965 = vpop.f32.mrf.mxu0
    %v3966 = vadd.f32 %v3948, %v3965
    %v3967 = vpop.f32.mrf.mxu0
    %3968 = vdwg.mxu0
    %3969 = vmatpush.bf16.msra.mxu0 %v3114
    %3970 = vmatpush.bf16.msra.mxu0 %v3111
    %3971 = vmatpush.bf16.msra.mxu0 %v3108
    %3972 = vmatpush.bf16.msra.mxu0 %v3105
    %3973 = vmatpush.bf16.msra.mxu0 %v3102
    %3974 = vmatpush.bf16.msra.mxu0 %v3099
    %3975 = vmatpush.bf16.msra.mxu0 %v3096
    %3976 = vmatpush.bf16.msra.mxu0 %v3093
    %3977 = vmatmul.bf16.gmra.mxu0 %v1091
    %v3978 = vpop.f32.mrf.mxu0
    %v3979 = vadd.f32 %v3961, %v3978
    %v3980 = vpop.f32.mrf.mxu0
    %v3981 = vadd.f32 %v3963, %v3980
    %3982 = vmatmul.bf16.gmra.mxu0 %v1111
    %v3983 = vpop.f32.mrf.mxu0
    %v3984 = vadd.f32 %v3966, %v3983
    %v3985 = vpop.f32.mrf.mxu0
    %3986 = vdwg.mxu0
    %3987 = vmatpush.bf16.msra.mxu0 %v3138
    %3988 = vmatpush.bf16.msra.mxu0 %v3135
    %3989 = vmatpush.bf16.msra.mxu0 %v3132
    %3990 = vmatpush.bf16.msra.mxu0 %v3129
    %3991 = vmatpush.bf16.msra.mxu0 %v3126
    %3992 = vmatpush.bf16.msra.mxu0 %v3123
    %3993 = vmatpush.bf16.msra.mxu0 %v3120
    %3994 = vmatpush.bf16.msra.mxu0 %v3117
    %3995 = vmatmul.bf16.gmra.mxu0 %v1092
    %v3996 = vpop.f32.mrf.mxu0
    %v3997 = vadd.f32 %v3979, %v3996
    %v3998 = vpop.f32.mrf.mxu0
    %v3999 = vadd.f32 %v3981, %v3998
    %4000 = vmatmul.bf16.gmra.mxu0 %v1112
    %v4001 = vpop.f32.mrf.mxu0
    %v4002 = vadd.f32 %v3984, %v4001
    %v4003 = vpop.f32.mrf.mxu0
    %4004 = vdwg.mxu0
    %4005 = vmatpush.bf16.msra.mxu0 %v3162
    %4006 = vmatpush.bf16.msra.mxu0 %v3159
    %4007 = vmatpush.bf16.msra.mxu0 %v3156
    %4008 = vmatpush.bf16.msra.mxu0 %v3153
    %4009 = vmatpush.bf16.msra.mxu0 %v3150
    %4010 = vmatpush.bf16.msra.mxu0 %v3147
    %4011 = vmatpush.bf16.msra.mxu0 %v3144
    %4012 = vmatpush.bf16.msra.mxu0 %v3141
    %4013 = vmatmul.bf16.gmra.mxu0 %v1093
    %v4014 = vpop.f32.mrf.mxu0
    %v4015 = vadd.f32 %v3997, %v4014
    %v4016 = vpop.f32.mrf.mxu0
    %v4017 = vadd.f32 %v3999, %v4016
    %4018 = vmatmul.bf16.gmra.mxu0 %v1113
    %v4019 = vpop.f32.mrf.mxu0
    %v4020 = vadd.f32 %v4002, %v4019
    %v4021 = vpop.f32.mrf.mxu0
    %4022 = vdwg.mxu0
    %4023 = vmatpush.bf16.msra.mxu0 %v3186
    %4024 = vmatpush.bf16.msra.mxu0 %v3183
    %4025 = vmatpush.bf16.msra.mxu0 %v3180
    %4026 = vmatpush.bf16.msra.mxu0 %v3177
    %4027 = vmatpush.bf16.msra.mxu0 %v3174
    %4028 = vmatpush.bf16.msra.mxu0 %v3171
    %4029 = vmatpush.bf16.msra.mxu0 %v3168
    %4030 = vmatpush.bf16.msra.mxu0 %v3165
    %4031 = vmatmul.bf16.gmra.mxu0 %v1094
    %v4032 = vpop.f32.mrf.mxu0
    %v4033 = vadd.f32 %v4015, %v4032
    %v4034 = vpop.f32.mrf.mxu0
    %v4035 = vadd.f32 %v4017, %v4034
    %4036 = vmatmul.bf16.gmra.mxu0 %v1114
    %v4037 = vpop.f32.mrf.mxu0
    %v4038 = vadd.f32 %v4020, %v4037
    %v4039 = vpop.f32.mrf.mxu0
    %4040 = vdwg.mxu0
    %4041 = vmatpush.bf16.msra.mxu0 %v3210
    %4042 = vmatpush.bf16.msra.mxu0 %v3207
    %4043 = vmatpush.bf16.msra.mxu0 %v3204
    %4044 = vmatpush.bf16.msra.mxu0 %v3201
    %4045 = vmatpush.bf16.msra.mxu0 %v3198
    %4046 = vmatpush.bf16.msra.mxu0 %v3195
    %4047 = vmatpush.bf16.msra.mxu0 %v3192
    %4048 = vmatpush.bf16.msra.mxu0 %v3189
    %4049 = vmatmul.bf16.gmra.mxu0 %v1095
    %v4050 = vpop.f32.mrf.mxu0
    %v4051 = vadd.f32 %v4033, %v4050
    %v4052 = vpop.f32.mrf.mxu0
    %v4053 = vadd.f32 %v4035, %v4052
    %4054 = vmatmul.bf16.gmra.mxu0 %v1115
    %v4055 = vpop.f32.mrf.mxu0
    %v4056 = vadd.f32 %v4038, %v4055
    %v4057 = vpop.f32.mrf.mxu0
    %4058 = vdwg.mxu0
    %4059 = vmatpush.bf16.msra.mxu0 %v3234
    %4060 = vmatpush.bf16.msra.mxu0 %v3231
    %4061 = vmatpush.bf16.msra.mxu0 %v3228
    %4062 = vmatpush.bf16.msra.mxu0 %v3225
    %4063 = vmatpush.bf16.msra.mxu0 %v3222
    %4064 = vmatpush.bf16.msra.mxu0 %v3219
    %4065 = vmatpush.bf16.msra.mxu0 %v3216
    %4066 = vmatpush.bf16.msra.mxu0 %v3213
    %4067 = vmatmul.bf16.gmra.mxu0 %v1096
    %v4068 = vpop.f32.mrf.mxu0
    %v4069 = vadd.f32 %v4051, %v4068
    %v4070 = vpop.f32.mrf.mxu0
    %v4071 = vadd.f32 %v4053, %v4070
    %4072 = vmatmul.bf16.gmra.mxu0 %v1116
    %v4073 = vpop.f32.mrf.mxu0
    %v4074 = vadd.f32 %v4056, %v4073
    %v4075 = vpop.f32.mrf.mxu0
    %4076 = vdwg.mxu0
    %4077 = vmatpush.bf16.msra.mxu0 %v2779
    %4078 = vmatpush.bf16.msra.mxu0 %v2776
    %4079 = vmatpush.bf16.msra.mxu0 %v2773
    %4080 = vmatpush.bf16.msra.mxu0 %v2770
    %4081 = vmatpush.bf16.msra.mxu0 %v2767
    %4082 = vmatpush.bf16.msra.mxu0 %v2764
    %4083 = vmatpush.bf16.msra.mxu0 %v2761
    %4084 = vmatpush.bf16.msra.mxu0 %v2758
    %4085 = vmatmul.bf16.gmra.mxu0 %v1077
    %v4086 = vpop.f32.mrf.mxu0
    %v4087 = vadd.f32 %v982, %v4086
    %v4088 = vpop.f32.mrf.mxu0
    %v4089 = vadd.f32 %v982, %v4088
    %4090 = vmatmul.bf16.gmra.mxu0 %v1097
    %v4091 = vpop.f32.mrf.mxu0
    %v4092 = vadd.f32 %v982, %v4091
    %v4093 = vpop.f32.mrf.mxu0
    %4094 = vdwg.mxu0
    %4095 = vmatpush.bf16.msra.mxu0 %v2803
    %4096 = vmatpush.bf16.msra.mxu0 %v2800
    %4097 = vmatpush.bf16.msra.mxu0 %v2797
    %4098 = vmatpush.bf16.msra.mxu0 %v2794
    %4099 = vmatpush.bf16.msra.mxu0 %v2791
    %4100 = vmatpush.bf16.msra.mxu0 %v2788
    %4101 = vmatpush.bf16.msra.mxu0 %v2785
    %4102 = vmatpush.bf16.msra.mxu0 %v2782
    %4103 = vmatmul.bf16.gmra.mxu0 %v1078
    %v4104 = vpop.f32.mrf.mxu0
    %v4105 = vadd.f32 %v4087, %v4104
    %v4106 = vpop.f32.mrf.mxu0
    %v4107 = vadd.f32 %v4089, %v4106
    %4108 = vmatmul.bf16.gmra.mxu0 %v1098
    %v4109 = vpop.f32.mrf.mxu0
    %v4110 = vadd.f32 %v4092, %v4109
    %v4111 = vpop.f32.mrf.mxu0
    %4112 = vdwg.mxu0
    %4113 = vmatpush.bf16.msra.mxu0 %v2827
    %4114 = vmatpush.bf16.msra.mxu0 %v2824
    %4115 = vmatpush.bf16.msra.mxu0 %v2821
    %4116 = vmatpush.bf16.msra.mxu0 %v2818
    %4117 = vmatpush.bf16.msra.mxu0 %v2815
    %4118 = vmatpush.bf16.msra.mxu0 %v2812
    %4119 = vmatpush.bf16.msra.mxu0 %v2809
    %4120 = vmatpush.bf16.msra.mxu0 %v2806
    %4121 = vmatmul.bf16.gmra.mxu0 %v1079
    %v4122 = vpop.f32.mrf.mxu0
    %v4123 = vadd.f32 %v4105, %v4122
    %v4124 = vpop.f32.mrf.mxu0
    %v4125 = vadd.f32 %v4107, %v4124
    %4126 = vmatmul.bf16.gmra.mxu0 %v1099
    %v4127 = vpop.f32.mrf.mxu0
    %v4128 = vadd.f32 %v4110, %v4127
    %v4129 = vpop.f32.mrf.mxu0
    %4130 = vdwg.mxu0
    %4131 = vmatpush.bf16.msra.mxu0 %v2851
    %4132 = vmatpush.bf16.msra.mxu0 %v2848
    %4133 = vmatpush.bf16.msra.mxu0 %v2845
    %4134 = vmatpush.bf16.msra.mxu0 %v2842
    %4135 = vmatpush.bf16.msra.mxu0 %v2839
    %4136 = vmatpush.bf16.msra.mxu0 %v2836
    %4137 = vmatpush.bf16.msra.mxu0 %v2833
    %4138 = vmatpush.bf16.msra.mxu0 %v2830
    %4139 = vmatmul.bf16.gmra.mxu0 %v1080
    %v4140 = vpop.f32.mrf.mxu0
    %v4141 = vadd.f32 %v4123, %v4140
    %v4142 = vpop.f32.mrf.mxu0
    %v4143 = vadd.f32 %v4125, %v4142
    %4144 = vmatmul.bf16.gmra.mxu0 %v1100
    %v4145 = vpop.f32.mrf.mxu0
    %v4146 = vadd.f32 %v4128, %v4145
    %v4147 = vpop.f32.mrf.mxu0
    %4148 = vdwg.mxu0
    %4149 = vmatpush.bf16.msra.mxu0 %v2875
    %4150 = vmatpush.bf16.msra.mxu0 %v2872
    %4151 = vmatpush.bf16.msra.mxu0 %v2869
    %4152 = vmatpush.bf16.msra.mxu0 %v2866
    %4153 = vmatpush.bf16.msra.mxu0 %v2863
    %4154 = vmatpush.bf16.msra.mxu0 %v2860
    %4155 = vmatpush.bf16.msra.mxu0 %v2857
    %4156 = vmatpush.bf16.msra.mxu0 %v2854
    %4157 = vmatmul.bf16.gmra.mxu0 %v1081
    %v4158 = vpop.f32.mrf.mxu0
    %v4159 = vadd.f32 %v4141, %v4158
    %v4160 = vpop.f32.mrf.mxu0
    %v4161 = vadd.f32 %v4143, %v4160
    %4162 = vmatmul.bf16.gmra.mxu0 %v1101
    %v4163 = vpop.f32.mrf.mxu0
    %v4164 = vadd.f32 %v4146, %v4163
    %v4165 = vpop.f32.mrf.mxu0
    %4166 = vdwg.mxu0
    %4167 = vmatpush.bf16.msra.mxu0 %v2899
    %4168 = vmatpush.bf16.msra.mxu0 %v2896
    %4169 = vmatpush.bf16.msra.mxu0 %v2893
    %4170 = vmatpush.bf16.msra.mxu0 %v2890
    %4171 = vmatpush.bf16.msra.mxu0 %v2887
    %4172 = vmatpush.bf16.msra.mxu0 %v2884
    %4173 = vmatpush.bf16.msra.mxu0 %v2881
    %4174 = vmatpush.bf16.msra.mxu0 %v2878
    %4175 = vmatmul.bf16.gmra.mxu0 %v1082
    %v4176 = vpop.f32.mrf.mxu0
    %v4177 = vadd.f32 %v4159, %v4176
    %v4178 = vpop.f32.mrf.mxu0
    %v4179 = vadd.f32 %v4161, %v4178
    %4180 = vmatmul.bf16.gmra.mxu0 %v1102
    %v4181 = vpop.f32.mrf.mxu0
    %v4182 = vadd.f32 %v4164, %v4181
    %v4183 = vpop.f32.mrf.mxu0
    %4184 = vdwg.mxu0
    %4185 = vmatpush.bf16.msra.mxu0 %v2923
    %4186 = vmatpush.bf16.msra.mxu0 %v2920
    %4187 = vmatpush.bf16.msra.mxu0 %v2917
    %4188 = vmatpush.bf16.msra.mxu0 %v2914
    %4189 = vmatpush.bf16.msra.mxu0 %v2911
    %4190 = vmatpush.bf16.msra.mxu0 %v2908
    %4191 = vmatpush.bf16.msra.mxu0 %v2905
    %4192 = vmatpush.bf16.msra.mxu0 %v2902
    %4193 = vmatmul.bf16.gmra.mxu0 %v1083
    %v4194 = vpop.f32.mrf.mxu0
    %v4195 = vadd.f32 %v4177, %v4194
    %v4196 = vpop.f32.mrf.mxu0
    %v4197 = vadd.f32 %v4179, %v4196
    %4198 = vmatmul.bf16.gmra.mxu0 %v1103
    %v4199 = vpop.f32.mrf.mxu0
    %v4200 = vadd.f32 %v4182, %v4199
    %v4201 = vpop.f32.mrf.mxu0
    %4202 = vdwg.mxu0
    %4203 = vmatpush.bf16.msra.mxu0 %v2947
    %4204 = vmatpush.bf16.msra.mxu0 %v2944
    %4205 = vmatpush.bf16.msra.mxu0 %v2941
    %4206 = vmatpush.bf16.msra.mxu0 %v2938
    %4207 = vmatpush.bf16.msra.mxu0 %v2935
    %4208 = vmatpush.bf16.msra.mxu0 %v2932
    %4209 = vmatpush.bf16.msra.mxu0 %v2929
    %4210 = vmatpush.bf16.msra.mxu0 %v2926
    %4211 = vmatmul.bf16.gmra.mxu0 %v1084
    %v4212 = vpop.f32.mrf.mxu0
    %v4213 = vadd.f32 %v4195, %v4212
    %v4214 = vpop.f32.mrf.mxu0
    %v4215 = vadd.f32 %v4197, %v4214
    %4216 = vmatmul.bf16.gmra.mxu0 %v1104
    %v4217 = vpop.f32.mrf.mxu0
    %v4218 = vadd.f32 %v4200, %v4217
    %v4219 = vpop.f32.mrf.mxu0
    %4220 = vdwg.mxu0
    %4221 = vmatpush.bf16.msra.mxu0 %v2971
    %4222 = vmatpush.bf16.msra.mxu0 %v2968
    %4223 = vmatpush.bf16.msra.mxu0 %v2965
    %4224 = vmatpush.bf16.msra.mxu0 %v2962
    %4225 = vmatpush.bf16.msra.mxu0 %v2959
    %4226 = vmatpush.bf16.msra.mxu0 %v2956
    %4227 = vmatpush.bf16.msra.mxu0 %v2953
    %4228 = vmatpush.bf16.msra.mxu0 %v2950
    %4229 = vmatmul.bf16.gmra.mxu0 %v1085
    %v4230 = vpop.f32.mrf.mxu0
    %v4231 = vadd.f32 %v4213, %v4230
    %v4232 = vpop.f32.mrf.mxu0
    %v4233 = vadd.f32 %v4215, %v4232
    %4234 = vmatmul.bf16.gmra.mxu0 %v1105
    %v4235 = vpop.f32.mrf.mxu0
    %v4236 = vadd.f32 %v4218, %v4235
    %v4237 = vpop.f32.mrf.mxu0
    %4238 = vdwg.mxu0
    %4239 = vmatpush.bf16.msra.mxu0 %v2995
    %4240 = vmatpush.bf16.msra.mxu0 %v2992
    %4241 = vmatpush.bf16.msra.mxu0 %v2989
    %4242 = vmatpush.bf16.msra.mxu0 %v2986
    %4243 = vmatpush.bf16.msra.mxu0 %v2983
    %4244 = vmatpush.bf16.msra.mxu0 %v2980
    %4245 = vmatpush.bf16.msra.mxu0 %v2977
    %4246 = vmatpush.bf16.msra.mxu0 %v2974
    %4247 = vmatmul.bf16.gmra.mxu0 %v1086
    %v4248 = vpop.f32.mrf.mxu0
    %v4249 = vadd.f32 %v4231, %v4248
    %v4250 = vpop.f32.mrf.mxu0
    %v4251 = vadd.f32 %v4233, %v4250
    %4252 = vmatmul.bf16.gmra.mxu0 %v1106
    %v4253 = vpop.f32.mrf.mxu0
    %v4254 = vadd.f32 %v4236, %v4253
    %v4255 = vpop.f32.mrf.mxu0
    %4256 = vdwg.mxu0
    %4257 = vmatpush.bf16.msra.mxu0 %v3019
    %4258 = vmatpush.bf16.msra.mxu0 %v3016
    %4259 = vmatpush.bf16.msra.mxu0 %v3013
    %4260 = vmatpush.bf16.msra.mxu0 %v3010
    %4261 = vmatpush.bf16.msra.mxu0 %v3007
    %4262 = vmatpush.bf16.msra.mxu0 %v3004
    %4263 = vmatpush.bf16.msra.mxu0 %v3001
    %4264 = vmatpush.bf16.msra.mxu0 %v2998
    %4265 = vmatmul.bf16.gmra.mxu0 %v1087
    %v4266 = vpop.f32.mrf.mxu0
    %v4267 = vadd.f32 %v4249, %v4266
    %v4268 = vpop.f32.mrf.mxu0
    %v4269 = vadd.f32 %v4251, %v4268
    %4270 = vmatmul.bf16.gmra.mxu0 %v1107
    %v4271 = vpop.f32.mrf.mxu0
    %v4272 = vadd.f32 %v4254, %v4271
    %v4273 = vpop.f32.mrf.mxu0
    %4274 = vdwg.mxu0
    %4275 = vmatpush.bf16.msra.mxu0 %v3043
    %4276 = vmatpush.bf16.msra.mxu0 %v3040
    %4277 = vmatpush.bf16.msra.mxu0 %v3037
    %4278 = vmatpush.bf16.msra.mxu0 %v3034
    %4279 = vmatpush.bf16.msra.mxu0 %v3031
    %4280 = vmatpush.bf16.msra.mxu0 %v3028
    %4281 = vmatpush.bf16.msra.mxu0 %v3025
    %4282 = vmatpush.bf16.msra.mxu0 %v3022
    %4283 = vmatmul.bf16.gmra.mxu0 %v1088
    %v4284 = vpop.f32.mrf.mxu0
    %v4285 = vadd.f32 %v4267, %v4284
    %v4286 = vpop.f32.mrf.mxu0
    %v4287 = vadd.f32 %v4269, %v4286
    %4288 = vmatmul.bf16.gmra.mxu0 %v1108
    %v4289 = vpop.f32.mrf.mxu0
    %v4290 = vadd.f32 %v4272, %v4289
    %v4291 = vpop.f32.mrf.mxu0
    %4292 = vdwg.mxu0
    %4293 = vmatpush.bf16.msra.mxu0 %v3067
    %4294 = vmatpush.bf16.msra.mxu0 %v3064
    %4295 = vmatpush.bf16.msra.mxu0 %v3061
    %4296 = vmatpush.bf16.msra.mxu0 %v3058
    %4297 = vmatpush.bf16.msra.mxu0 %v3055
    %4298 = vmatpush.bf16.msra.mxu0 %v3052
    %4299 = vmatpush.bf16.msra.mxu0 %v3049
    %4300 = vmatpush.bf16.msra.mxu0 %v3046
    %4301 = vmatmul.bf16.gmra.mxu0 %v1089
    %v4302 = vpop.f32.mrf.mxu0
    %v4303 = vadd.f32 %v4285, %v4302
    %v4304 = vpop.f32.mrf.mxu0
    %v4305 = vadd.f32 %v4287, %v4304
    %4306 = vmatmul.bf16.gmra.mxu0 %v1109
    %v4307 = vpop.f32.mrf.mxu0
    %v4308 = vadd.f32 %v4290, %v4307
    %v4309 = vpop.f32.mrf.mxu0
    %4310 = vdwg.mxu0
    %4311 = vmatpush.bf16.msra.mxu0 %v3091
    %4312 = vmatpush.bf16.msra.mxu0 %v3088
    %4313 = vmatpush.bf16.msra.mxu0 %v3085
    %4314 = vmatpush.bf16.msra.mxu0 %v3082
    %4315 = vmatpush.bf16.msra.mxu0 %v3079
    %4316 = vmatpush.bf16.msra.mxu0 %v3076
    %4317 = vmatpush.bf16.msra.mxu0 %v3073
    %4318 = vmatpush.bf16.msra.mxu0 %v3070
    %4319 = vmatmul.bf16.gmra.mxu0 %v1090
    %v4320 = vpop.f32.mrf.mxu0
    %v4321 = vadd.f32 %v4303, %v4320
    %v4322 = vpop.f32.mrf.mxu0
    %v4323 = vadd.f32 %v4305, %v4322
    %4324 = vmatmul.bf16.gmra.mxu0 %v1110
    %v4325 = vpop.f32.mrf.mxu0
    %v4326 = vadd.f32 %v4308, %v4325
    %v4327 = vpop.f32.mrf.mxu0
    %4328 = vdwg.mxu0
    %4329 = vmatpush.bf16.msra.mxu0 %v3115
    %4330 = vmatpush.bf16.msra.mxu0 %v3112
    %4331 = vmatpush.bf16.msra.mxu0 %v3109
    %4332 = vmatpush.bf16.msra.mxu0 %v3106
    %4333 = vmatpush.bf16.msra.mxu0 %v3103
    %4334 = vmatpush.bf16.msra.mxu0 %v3100
    %4335 = vmatpush.bf16.msra.mxu0 %v3097
    %4336 = vmatpush.bf16.msra.mxu0 %v3094
    %4337 = vmatmul.bf16.gmra.mxu0 %v1091
    %v4338 = vpop.f32.mrf.mxu0
    %v4339 = vadd.f32 %v4321, %v4338
    %v4340 = vpop.f32.mrf.mxu0
    %v4341 = vadd.f32 %v4323, %v4340
    %4342 = vmatmul.bf16.gmra.mxu0 %v1111
    %v4343 = vpop.f32.mrf.mxu0
    %v4344 = vadd.f32 %v4326, %v4343
    %v4345 = vpop.f32.mrf.mxu0
    %4346 = vdwg.mxu0
    %4347 = vmatpush.bf16.msra.mxu0 %v3139
    %4348 = vmatpush.bf16.msra.mxu0 %v3136
    %4349 = vmatpush.bf16.msra.mxu0 %v3133
    %4350 = vmatpush.bf16.msra.mxu0 %v3130
    %4351 = vmatpush.bf16.msra.mxu0 %v3127
    %4352 = vmatpush.bf16.msra.mxu0 %v3124
    %4353 = vmatpush.bf16.msra.mxu0 %v3121
    %4354 = vmatpush.bf16.msra.mxu0 %v3118
    %4355 = vmatmul.bf16.gmra.mxu0 %v1092
    %v4356 = vpop.f32.mrf.mxu0
    %v4357 = vadd.f32 %v4339, %v4356
    %v4358 = vpop.f32.mrf.mxu0
    %v4359 = vadd.f32 %v4341, %v4358
    %4360 = vmatmul.bf16.gmra.mxu0 %v1112
    %v4361 = vpop.f32.mrf.mxu0
    %v4362 = vadd.f32 %v4344, %v4361
    %v4363 = vpop.f32.mrf.mxu0
    %4364 = vdwg.mxu0
    %4365 = vmatpush.bf16.msra.mxu0 %v3163
    %4366 = vmatpush.bf16.msra.mxu0 %v3160
    %4367 = vmatpush.bf16.msra.mxu0 %v3157
    %4368 = vmatpush.bf16.msra.mxu0 %v3154
    %4369 = vmatpush.bf16.msra.mxu0 %v3151
    %4370 = vmatpush.bf16.msra.mxu0 %v3148
    %4371 = vmatpush.bf16.msra.mxu0 %v3145
    %4372 = vmatpush.bf16.msra.mxu0 %v3142
    %4373 = vmatmul.bf16.gmra.mxu0 %v1093
    %v4374 = vpop.f32.mrf.mxu0
    %v4375 = vadd.f32 %v4357, %v4374
    %v4376 = vpop.f32.mrf.mxu0
    %v4377 = vadd.f32 %v4359, %v4376
    %4378 = vmatmul.bf16.gmra.mxu0 %v1113
    %v4379 = vpop.f32.mrf.mxu0
    %v4380 = vadd.f32 %v4362, %v4379
    %v4381 = vpop.f32.mrf.mxu0
    %4382 = vdwg.mxu0
    %4383 = vmatpush.bf16.msra.mxu0 %v3187
    %4384 = vmatpush.bf16.msra.mxu0 %v3184
    %4385 = vmatpush.bf16.msra.mxu0 %v3181
    %4386 = vmatpush.bf16.msra.mxu0 %v3178
    %4387 = vmatpush.bf16.msra.mxu0 %v3175
    %4388 = vmatpush.bf16.msra.mxu0 %v3172
    %4389 = vmatpush.bf16.msra.mxu0 %v3169
    %4390 = vmatpush.bf16.msra.mxu0 %v3166
    %4391 = vmatmul.bf16.gmra.mxu0 %v1094
    %v4392 = vpop.f32.mrf.mxu0
    %v4393 = vadd.f32 %v4375, %v4392
    %v4394 = vpop.f32.mrf.mxu0
    %v4395 = vadd.f32 %v4377, %v4394
    %4396 = vmatmul.bf16.gmra.mxu0 %v1114
    %v4397 = vpop.f32.mrf.mxu0
    %v4398 = vadd.f32 %v4380, %v4397
    %v4399 = vpop.f32.mrf.mxu0
    %4400 = vdwg.mxu0
    %4401 = vmatpush.bf16.msra.mxu0 %v3211
    %4402 = vmatpush.bf16.msra.mxu0 %v3208
    %4403 = vmatpush.bf16.msra.mxu0 %v3205
    %4404 = vmatpush.bf16.msra.mxu0 %v3202
    %4405 = vmatpush.bf16.msra.mxu0 %v3199
    %4406 = vmatpush.bf16.msra.mxu0 %v3196
    %4407 = vmatpush.bf16.msra.mxu0 %v3193
    %4408 = vmatpush.bf16.msra.mxu0 %v3190
    %4409 = vmatmul.bf16.gmra.mxu0 %v1095
    %v4410 = vpop.f32.mrf.mxu0
    %v4411 = vadd.f32 %v4393, %v4410
    %v4412 = vpop.f32.mrf.mxu0
    %v4413 = vadd.f32 %v4395, %v4412
    %4414 = vmatmul.bf16.gmra.mxu0 %v1115
    %v4415 = vpop.f32.mrf.mxu0
    %v4416 = vadd.f32 %v4398, %v4415
    %v4417 = vpop.f32.mrf.mxu0
    %4418 = vdwg.mxu0
    %4419 = vmatpush.bf16.msra.mxu0 %v3235
    %4420 = vmatpush.bf16.msra.mxu0 %v3232
    %4421 = vmatpush.bf16.msra.mxu0 %v3229
    %4422 = vmatpush.bf16.msra.mxu0 %v3226
    %4423 = vmatpush.bf16.msra.mxu0 %v3223
    %4424 = vmatpush.bf16.msra.mxu0 %v3220
    %4425 = vmatpush.bf16.msra.mxu0 %v3217
    %4426 = vmatpush.bf16.msra.mxu0 %v3214
    %4427 = vmatmul.bf16.gmra.mxu0 %v1096
    %v4428 = vpop.f32.mrf.mxu0
    %v4429 = vadd.f32 %v4411, %v4428
    %v4430 = vpop.f32.mrf.mxu0
    %v4431 = vadd.f32 %v4413, %v4430
    %4432 = vmatmul.bf16.gmra.mxu0 %v1116
    %v4433 = vpop.f32.mrf.mxu0
    %v4434 = vadd.f32 %v4416, %v4433
    %v4435 = vpop.f32.mrf.mxu0
    %4436 = vdwg.mxu0
    %4437 = vmatpush.bf16.msra.mxu0 %v2780
    %4438 = vmatpush.bf16.msra.mxu0 %v2777
    %4439 = vmatpush.bf16.msra.mxu0 %v2774
    %4440 = vmatpush.bf16.msra.mxu0 %v2771
    %4441 = vmatpush.bf16.msra.mxu0 %v2768
    %4442 = vmatpush.bf16.msra.mxu0 %v2765
    %4443 = vmatpush.bf16.msra.mxu0 %v2762
    %4444 = vmatpush.bf16.msra.mxu0 %v2759
    %4445 = vmatmul.bf16.gmra.mxu0 %v1077
    %v4446 = vpop.f32.mrf.mxu0
    %v4447 = vadd.f32 %v983, %v4446
    %v4448 = vpop.f32.mrf.mxu0
    %v4449 = vadd.f32 %v983, %v4448
    %4450 = vmatmul.bf16.gmra.mxu0 %v1097
    %v4451 = vpop.f32.mrf.mxu0
    %v4452 = vadd.f32 %v983, %v4451
    %v4453 = vpop.f32.mrf.mxu0
    %4454 = vdwg.mxu0
    %4455 = vmatpush.bf16.msra.mxu0 %v2804
    %4456 = vmatpush.bf16.msra.mxu0 %v2801
    %4457 = vmatpush.bf16.msra.mxu0 %v2798
    %4458 = vmatpush.bf16.msra.mxu0 %v2795
    %4459 = vmatpush.bf16.msra.mxu0 %v2792
    %4460 = vmatpush.bf16.msra.mxu0 %v2789
    %4461 = vmatpush.bf16.msra.mxu0 %v2786
    %4462 = vmatpush.bf16.msra.mxu0 %v2783
    %4463 = vmatmul.bf16.gmra.mxu0 %v1078
    %v4464 = vpop.f32.mrf.mxu0
    %v4465 = vadd.f32 %v4447, %v4464
    %v4466 = vpop.f32.mrf.mxu0
    %v4467 = vadd.f32 %v4449, %v4466
    %4468 = vmatmul.bf16.gmra.mxu0 %v1098
    %v4469 = vpop.f32.mrf.mxu0
    %v4470 = vadd.f32 %v4452, %v4469
    %v4471 = vpop.f32.mrf.mxu0
    %4472 = vdwg.mxu0
    %4473 = vmatpush.bf16.msra.mxu0 %v2828
    %4474 = vmatpush.bf16.msra.mxu0 %v2825
    %4475 = vmatpush.bf16.msra.mxu0 %v2822
    %4476 = vmatpush.bf16.msra.mxu0 %v2819
    %4477 = vmatpush.bf16.msra.mxu0 %v2816
    %4478 = vmatpush.bf16.msra.mxu0 %v2813
    %4479 = vmatpush.bf16.msra.mxu0 %v2810
    %4480 = vmatpush.bf16.msra.mxu0 %v2807
    %4481 = vmatmul.bf16.gmra.mxu0 %v1079
    %v4482 = vpop.f32.mrf.mxu0
    %v4483 = vadd.f32 %v4465, %v4482
    %v4484 = vpop.f32.mrf.mxu0
    %v4485 = vadd.f32 %v4467, %v4484
    %4486 = vmatmul.bf16.gmra.mxu0 %v1099
    %v4487 = vpop.f32.mrf.mxu0
    %v4488 = vadd.f32 %v4470, %v4487
    %v4489 = vpop.f32.mrf.mxu0
    %4490 = vdwg.mxu0
    %4491 = vmatpush.bf16.msra.mxu0 %v2852
    %4492 = vmatpush.bf16.msra.mxu0 %v2849
    %4493 = vmatpush.bf16.msra.mxu0 %v2846
    %4494 = vmatpush.bf16.msra.mxu0 %v2843
    %4495 = vmatpush.bf16.msra.mxu0 %v2840
    %4496 = vmatpush.bf16.msra.mxu0 %v2837
    %4497 = vmatpush.bf16.msra.mxu0 %v2834
    %4498 = vmatpush.bf16.msra.mxu0 %v2831
    %4499 = vmatmul.bf16.gmra.mxu0 %v1080
    %v4500 = vpop.f32.mrf.mxu0
    %v4501 = vadd.f32 %v4483, %v4500
    %v4502 = vpop.f32.mrf.mxu0
    %v4503 = vadd.f32 %v4485, %v4502
    %4504 = vmatmul.bf16.gmra.mxu0 %v1100
    %v4505 = vpop.f32.mrf.mxu0
    %v4506 = vadd.f32 %v4488, %v4505
    %v4507 = vpop.f32.mrf.mxu0
    %4508 = vdwg.mxu0
    %4509 = vmatpush.bf16.msra.mxu0 %v2876
    %4510 = vmatpush.bf16.msra.mxu0 %v2873
    %4511 = vmatpush.bf16.msra.mxu0 %v2870
    %4512 = vmatpush.bf16.msra.mxu0 %v2867
    %4513 = vmatpush.bf16.msra.mxu0 %v2864
    %4514 = vmatpush.bf16.msra.mxu0 %v2861
    %4515 = vmatpush.bf16.msra.mxu0 %v2858
    %4516 = vmatpush.bf16.msra.mxu0 %v2855
    %4517 = vmatmul.bf16.gmra.mxu0 %v1081
    %v4518 = vpop.f32.mrf.mxu0
    %v4519 = vadd.f32 %v4501, %v4518
    %v4520 = vpop.f32.mrf.mxu0
    %v4521 = vadd.f32 %v4503, %v4520
    %4522 = vmatmul.bf16.gmra.mxu0 %v1101
    %v4523 = vpop.f32.mrf.mxu0
    %v4524 = vadd.f32 %v4506, %v4523
    %v4525 = vpop.f32.mrf.mxu0
    %4526 = vdwg.mxu0
    %4527 = vmatpush.bf16.msra.mxu0 %v2900
    %4528 = vmatpush.bf16.msra.mxu0 %v2897
    %4529 = vmatpush.bf16.msra.mxu0 %v2894
    %4530 = vmatpush.bf16.msra.mxu0 %v2891
    %4531 = vmatpush.bf16.msra.mxu0 %v2888
    %4532 = vmatpush.bf16.msra.mxu0 %v2885
    %4533 = vmatpush.bf16.msra.mxu0 %v2882
    %4534 = vmatpush.bf16.msra.mxu0 %v2879
    %4535 = vmatmul.bf16.gmra.mxu0 %v1082
    %v4536 = vpop.f32.mrf.mxu0
    %v4537 = vadd.f32 %v4519, %v4536
    %v4538 = vpop.f32.mrf.mxu0
    %v4539 = vadd.f32 %v4521, %v4538
    %4540 = vmatmul.bf16.gmra.mxu0 %v1102
    %v4541 = vpop.f32.mrf.mxu0
    %v4542 = vadd.f32 %v4524, %v4541
    %v4543 = vpop.f32.mrf.mxu0
    %4544 = vdwg.mxu0
    %4545 = vmatpush.bf16.msra.mxu0 %v2924
    %4546 = vmatpush.bf16.msra.mxu0 %v2921
    %4547 = vmatpush.bf16.msra.mxu0 %v2918
    %4548 = vmatpush.bf16.msra.mxu0 %v2915
    %4549 = vmatpush.bf16.msra.mxu0 %v2912
    %4550 = vmatpush.bf16.msra.mxu0 %v2909
    %4551 = vmatpush.bf16.msra.mxu0 %v2906
    %4552 = vmatpush.bf16.msra.mxu0 %v2903
    %4553 = vmatmul.bf16.gmra.mxu0 %v1083
    %v4554 = vpop.f32.mrf.mxu0
    %v4555 = vadd.f32 %v4537, %v4554
    %v4556 = vpop.f32.mrf.mxu0
    %v4557 = vadd.f32 %v4539, %v4556
    %4558 = vmatmul.bf16.gmra.mxu0 %v1103
    %v4559 = vpop.f32.mrf.mxu0
    %v4560 = vadd.f32 %v4542, %v4559
    %v4561 = vpop.f32.mrf.mxu0
    %4562 = vdwg.mxu0
    %4563 = vmatpush.bf16.msra.mxu0 %v2948
    %4564 = vmatpush.bf16.msra.mxu0 %v2945
    %4565 = vmatpush.bf16.msra.mxu0 %v2942
    %4566 = vmatpush.bf16.msra.mxu0 %v2939
    %4567 = vmatpush.bf16.msra.mxu0 %v2936
    %4568 = vmatpush.bf16.msra.mxu0 %v2933
    %4569 = vmatpush.bf16.msra.mxu0 %v2930
    %4570 = vmatpush.bf16.msra.mxu0 %v2927
    %4571 = vmatmul.bf16.gmra.mxu0 %v1084
    %v4572 = vpop.f32.mrf.mxu0
    %v4573 = vadd.f32 %v4555, %v4572
    %v4574 = vpop.f32.mrf.mxu0
    %v4575 = vadd.f32 %v4557, %v4574
    %4576 = vmatmul.bf16.gmra.mxu0 %v1104
    %v4577 = vpop.f32.mrf.mxu0
    %v4578 = vadd.f32 %v4560, %v4577
    %v4579 = vpop.f32.mrf.mxu0
    %4580 = vdwg.mxu0
    %4581 = vmatpush.bf16.msra.mxu0 %v2972
    %4582 = vmatpush.bf16.msra.mxu0 %v2969
    %4583 = vmatpush.bf16.msra.mxu0 %v2966
    %4584 = vmatpush.bf16.msra.mxu0 %v2963
    %4585 = vmatpush.bf16.msra.mxu0 %v2960
    %4586 = vmatpush.bf16.msra.mxu0 %v2957
    %4587 = vmatpush.bf16.msra.mxu0 %v2954
    %4588 = vmatpush.bf16.msra.mxu0 %v2951
    %4589 = vmatmul.bf16.gmra.mxu0 %v1085
    %v4590 = vpop.f32.mrf.mxu0
    %v4591 = vadd.f32 %v4573, %v4590
    %v4592 = vpop.f32.mrf.mxu0
    %v4593 = vadd.f32 %v4575, %v4592
    %4594 = vmatmul.bf16.gmra.mxu0 %v1105
    %v4595 = vpop.f32.mrf.mxu0
    %v4596 = vadd.f32 %v4578, %v4595
    %v4597 = vpop.f32.mrf.mxu0
    %4598 = vdwg.mxu0
    %4599 = vmatpush.bf16.msra.mxu0 %v2996
    %4600 = vmatpush.bf16.msra.mxu0 %v2993
    %4601 = vmatpush.bf16.msra.mxu0 %v2990
    %4602 = vmatpush.bf16.msra.mxu0 %v2987
    %4603 = vmatpush.bf16.msra.mxu0 %v2984
    %4604 = vmatpush.bf16.msra.mxu0 %v2981
    %4605 = vmatpush.bf16.msra.mxu0 %v2978
    %4606 = vmatpush.bf16.msra.mxu0 %v2975
    %4607 = vmatmul.bf16.gmra.mxu0 %v1086
    %v4608 = vpop.f32.mrf.mxu0
    %v4609 = vadd.f32 %v4591, %v4608
    %v4610 = vpop.f32.mrf.mxu0
    %v4611 = vadd.f32 %v4593, %v4610
    %4612 = vmatmul.bf16.gmra.mxu0 %v1106
    %v4613 = vpop.f32.mrf.mxu0
    %v4614 = vadd.f32 %v4596, %v4613
    %v4615 = vpop.f32.mrf.mxu0
    %4616 = vdwg.mxu0
    %4617 = vmatpush.bf16.msra.mxu0 %v3020
    %4618 = vmatpush.bf16.msra.mxu0 %v3017
    %4619 = vmatpush.bf16.msra.mxu0 %v3014
    %4620 = vmatpush.bf16.msra.mxu0 %v3011
    %4621 = vmatpush.bf16.msra.mxu0 %v3008
    %4622 = vmatpush.bf16.msra.mxu0 %v3005
    %4623 = vmatpush.bf16.msra.mxu0 %v3002
    %4624 = vmatpush.bf16.msra.mxu0 %v2999
    %4625 = vmatmul.bf16.gmra.mxu0 %v1087
    %v4626 = vpop.f32.mrf.mxu0
    %v4627 = vadd.f32 %v4609, %v4626
    %v4628 = vpop.f32.mrf.mxu0
    %v4629 = vadd.f32 %v4611, %v4628
    %4630 = vmatmul.bf16.gmra.mxu0 %v1107
    %v4631 = vpop.f32.mrf.mxu0
    %v4632 = vadd.f32 %v4614, %v4631
    %v4633 = vpop.f32.mrf.mxu0
    %4634 = vdwg.mxu0
    %4635 = vmatpush.bf16.msra.mxu0 %v3044
    %4636 = vmatpush.bf16.msra.mxu0 %v3041
    %4637 = vmatpush.bf16.msra.mxu0 %v3038
    %4638 = vmatpush.bf16.msra.mxu0 %v3035
    %4639 = vmatpush.bf16.msra.mxu0 %v3032
    %4640 = vmatpush.bf16.msra.mxu0 %v3029
    %4641 = vmatpush.bf16.msra.mxu0 %v3026
    %4642 = vmatpush.bf16.msra.mxu0 %v3023
    %4643 = vmatmul.bf16.gmra.mxu0 %v1088
    %v4644 = vpop.f32.mrf.mxu0
    %v4645 = vadd.f32 %v4627, %v4644
    %v4646 = vpop.f32.mrf.mxu0
    %v4647 = vadd.f32 %v4629, %v4646
    %4648 = vmatmul.bf16.gmra.mxu0 %v1108
    %v4649 = vpop.f32.mrf.mxu0
    %v4650 = vadd.f32 %v4632, %v4649
    %v4651 = vpop.f32.mrf.mxu0
    %4652 = vdwg.mxu0
    %4653 = vmatpush.bf16.msra.mxu0 %v3068
    %4654 = vmatpush.bf16.msra.mxu0 %v3065
    %4655 = vmatpush.bf16.msra.mxu0 %v3062
    %4656 = vmatpush.bf16.msra.mxu0 %v3059
    %4657 = vmatpush.bf16.msra.mxu0 %v3056
    %4658 = vmatpush.bf16.msra.mxu0 %v3053
    %4659 = vmatpush.bf16.msra.mxu0 %v3050
    %4660 = vmatpush.bf16.msra.mxu0 %v3047
    %4661 = vmatmul.bf16.gmra.mxu0 %v1089
    %v4662 = vpop.f32.mrf.mxu0
    %v4663 = vadd.f32 %v4645, %v4662
    %v4664 = vpop.f32.mrf.mxu0
    %v4665 = vadd.f32 %v4647, %v4664
    %4666 = vmatmul.bf16.gmra.mxu0 %v1109
    %v4667 = vpop.f32.mrf.mxu0
    %v4668 = vadd.f32 %v4650, %v4667
    %v4669 = vpop.f32.mrf.mxu0
    %4670 = vdwg.mxu0
    %4671 = vmatpush.bf16.msra.mxu0 %v3092
    %4672 = vmatpush.bf16.msra.mxu0 %v3089
    %4673 = vmatpush.bf16.msra.mxu0 %v3086
    %4674 = vmatpush.bf16.msra.mxu0 %v3083
    %4675 = vmatpush.bf16.msra.mxu0 %v3080
    %4676 = vmatpush.bf16.msra.mxu0 %v3077
    %4677 = vmatpush.bf16.msra.mxu0 %v3074
    %4678 = vmatpush.bf16.msra.mxu0 %v3071
    %4679 = vmatmul.bf16.gmra.mxu0 %v1090
    %v4680 = vpop.f32.mrf.mxu0
    %v4681 = vadd.f32 %v4663, %v4680
    %v4682 = vpop.f32.mrf.mxu0
    %v4683 = vadd.f32 %v4665, %v4682
    %4684 = vmatmul.bf16.gmra.mxu0 %v1110
    %v4685 = vpop.f32.mrf.mxu0
    %v4686 = vadd.f32 %v4668, %v4685
    %v4687 = vpop.f32.mrf.mxu0
    %4688 = vdwg.mxu0
    %4689 = vmatpush.bf16.msra.mxu0 %v3116
    %4690 = vmatpush.bf16.msra.mxu0 %v3113
    %4691 = vmatpush.bf16.msra.mxu0 %v3110
    %4692 = vmatpush.bf16.msra.mxu0 %v3107
    %4693 = vmatpush.bf16.msra.mxu0 %v3104
    %4694 = vmatpush.bf16.msra.mxu0 %v3101
    %4695 = vmatpush.bf16.msra.mxu0 %v3098
    %4696 = vmatpush.bf16.msra.mxu0 %v3095
    %4697 = vmatmul.bf16.gmra.mxu0 %v1091
    %v4698 = vpop.f32.mrf.mxu0
    %v4699 = vadd.f32 %v4681, %v4698
    %v4700 = vpop.f32.mrf.mxu0
    %v4701 = vadd.f32 %v4683, %v4700
    %4702 = vmatmul.bf16.gmra.mxu0 %v1111
    %v4703 = vpop.f32.mrf.mxu0
    %v4704 = vadd.f32 %v4686, %v4703
    %v4705 = vpop.f32.mrf.mxu0
    %4706 = vdwg.mxu0
    %4707 = vmatpush.bf16.msra.mxu0 %v3140
    %4708 = vmatpush.bf16.msra.mxu0 %v3137
    %4709 = vmatpush.bf16.msra.mxu0 %v3134
    %4710 = vmatpush.bf16.msra.mxu0 %v3131
    %4711 = vmatpush.bf16.msra.mxu0 %v3128
    %4712 = vmatpush.bf16.msra.mxu0 %v3125
    %4713 = vmatpush.bf16.msra.mxu0 %v3122
    %4714 = vmatpush.bf16.msra.mxu0 %v3119
    %4715 = vmatmul.bf16.gmra.mxu0 %v1092
    %v4716 = vpop.f32.mrf.mxu0
    %v4717 = vadd.f32 %v4699, %v4716
    %v4718 = vpop.f32.mrf.mxu0
    %v4719 = vadd.f32 %v4701, %v4718
    %4720 = vmatmul.bf16.gmra.mxu0 %v1112
    %v4721 = vpop.f32.mrf.mxu0
    %v4722 = vadd.f32 %v4704, %v4721
    %v4723 = vpop.f32.mrf.mxu0
    %4724 = vdwg.mxu0
    %4725 = vmatpush.bf16.msra.mxu0 %v3164
    %4726 = vmatpush.bf16.msra.mxu0 %v3161
    %4727 = vmatpush.bf16.msra.mxu0 %v3158
    %4728 = vmatpush.bf16.msra.mxu0 %v3155
    %4729 = vmatpush.bf16.msra.mxu0 %v3152
    %4730 = vmatpush.bf16.msra.mxu0 %v3149
    %4731 = vmatpush.bf16.msra.mxu0 %v3146
    %4732 = vmatpush.bf16.msra.mxu0 %v3143
    %4733 = vmatmul.bf16.gmra.mxu0 %v1093
    %v4734 = vpop.f32.mrf.mxu0
    %v4735 = vadd.f32 %v4717, %v4734
    %v4736 = vpop.f32.mrf.mxu0
    %v4737 = vadd.f32 %v4719, %v4736
    %4738 = vmatmul.bf16.gmra.mxu0 %v1113
    %v4739 = vpop.f32.mrf.mxu0
    %v4740 = vadd.f32 %v4722, %v4739
    %v4741 = vpop.f32.mrf.mxu0
    %4742 = vdwg.mxu0
    %4743 = vmatpush.bf16.msra.mxu0 %v3188
    %4744 = vmatpush.bf16.msra.mxu0 %v3185
    %4745 = vmatpush.bf16.msra.mxu0 %v3182
    %4746 = vmatpush.bf16.msra.mxu0 %v3179
    %4747 = vmatpush.bf16.msra.mxu0 %v3176
    %4748 = vmatpush.bf16.msra.mxu0 %v3173
    %4749 = vmatpush.bf16.msra.mxu0 %v3170
    %4750 = vmatpush.bf16.msra.mxu0 %v3167
    %4751 = vmatmul.bf16.gmra.mxu0 %v1094
    %v4752 = vpop.f32.mrf.mxu0
    %v4753 = vadd.f32 %v4735, %v4752
    %v4754 = vpop.f32.mrf.mxu0
    %v4755 = vadd.f32 %v4737, %v4754
    %4756 = vmatmul.bf16.gmra.mxu0 %v1114
    %v4757 = vpop.f32.mrf.mxu0
    %v4758 = vadd.f32 %v4740, %v4757
    %v4759 = vpop.f32.mrf.mxu0
    %4760 = vdwg.mxu0
    %4761 = vmatpush.bf16.msra.mxu0 %v3212
    %4762 = vmatpush.bf16.msra.mxu0 %v3209
    %4763 = vmatpush.bf16.msra.mxu0 %v3206
    %4764 = vmatpush.bf16.msra.mxu0 %v3203
    %4765 = vmatpush.bf16.msra.mxu0 %v3200
    %4766 = vmatpush.bf16.msra.mxu0 %v3197
    %4767 = vmatpush.bf16.msra.mxu0 %v3194
    %4768 = vmatpush.bf16.msra.mxu0 %v3191
    %4769 = vmatmul.bf16.gmra.mxu0 %v1095
    %v4770 = vpop.f32.mrf.mxu0
    %v4771 = vadd.f32 %v4753, %v4770
    %v4772 = vpop.f32.mrf.mxu0
    %v4773 = vadd.f32 %v4755, %v4772
    %4774 = vmatmul.bf16.gmra.mxu0 %v1115
    %v4775 = vpop.f32.mrf.mxu0
    %v4776 = vadd.f32 %v4758, %v4775
    %v4777 = vpop.f32.mrf.mxu0
    %4778 = vdwg.mxu0
    %4779 = vmatpush.bf16.msra.mxu0 %v3236
    %4780 = vmatpush.bf16.msra.mxu0 %v3233
    %4781 = vmatpush.bf16.msra.mxu0 %v3230
    %4782 = vmatpush.bf16.msra.mxu0 %v3227
    %4783 = vmatpush.bf16.msra.mxu0 %v3224
    %4784 = vmatpush.bf16.msra.mxu0 %v3221
    %4785 = vmatpush.bf16.msra.mxu0 %v3218
    %4786 = vmatpush.bf16.msra.mxu0 %v3215
    %4787 = vmatmul.bf16.gmra.mxu0 %v1096
    %v4788 = vpop.f32.mrf.mxu0
    %v4789 = vadd.f32 %v4771, %v4788
    %v4790 = vpop.f32.mrf.mxu0
    %v4791 = vadd.f32 %v4773, %v4790
    %4792 = vmatmul.bf16.gmra.mxu0 %v1116
    %v4793 = vpop.f32.mrf.mxu0
    %v4794 = vadd.f32 %v4776, %v4793
    %v4795 = vpop.f32.mrf.mxu0
    %4796 = vdwg.mxu0
    %v4797 = vmax.f32 %v4069, 0.0
    %v4798 = vmax.f32 %v4429, 0.0
    %v4799 = vmax.f32 %v4789, 0.0
    %v4800 = vmax.f32 %v4071, 0.0
    %v4801 = vmax.f32 %v4431, 0.0
    %v4802 = vmax.f32 %v4791, 0.0
    %v4803 = vmax.f32 %v4074, 0.0
    %v4804 = vmax.f32 %v4434, 0.0
    %v4805 = vmax.f32 %v4794, 0.0
    %4809 = vrot.lane.b32.xlu0 %v4797, 96
    %v4810 = vpop.permute.xlu0 %4809
    %4811 = vrot.lane.b32.xlu0 %v4800, 96
    %v4812 = vpop.permute.xlu0 %4811
    %4813 = vrot.lane.b32.xlu0 %v4803, 96
    %v4814 = vpop.permute.xlu0 %4813
    %v4818 = vmax.f32 %v4797, %v4810
    %v4819 = vmax.f32 %v4800, %v4812
    %v4820 = vmax.f32 %v4803, %v4814
    %vm4821 = vcmask 261120
    %4822 = vst.msk [vmem:[#allocation6] sm:$0xff] %vm4821, %v4818
    %4823 = vst.msk [vmem:[#allocation6 + $0x10] sm:$0xff] %vm4821, %v4819
    %4824 = vst.msk [vmem:[#allocation6 + $0x20] sm:$0xff] %vm4821, %v4820
    %4828 = vrot.lane.b32.xlu0 %v4818, 96
    %v4829 = vpop.permute.xlu0 %4828
    %4830 = vrot.lane.b32.xlu0 %v4819, 96
    %v4831 = vpop.permute.xlu0 %4830
    %4832 = vrot.lane.b32.xlu0 %v4820, 96
    %v4833 = vpop.permute.xlu0 %4832
    %vm4837 = vcmask 523520
    %4838 = vst.msk [vmem:[#allocation6] sm:$0xff] %vm4837, %v4829
    %4839 = vst.msk [vmem:[#allocation6 + $0x10] sm:$0xff] %vm4837, %v4831
    %4840 = vst.msk [vmem:[#allocation6 + $0x20] sm:$0xff] %vm4837, %v4833
    %4844 = vrot.lane.b32.xlu0 %v4798, 96
    %v4845 = vpop.permute.xlu0 %4844
    %4846 = vrot.lane.b32.xlu0 %v4801, 96
    %v4847 = vpop.permute.xlu0 %4846
    %4848 = vrot.lane.b32.xlu0 %v4804, 96
    %v4849 = vpop.permute.xlu0 %4848
    %v4853 = vmax.f32 %v4798, %v4845
    %v4854 = vmax.f32 %v4801, %v4847
    %v4855 = vmax.f32 %v4804, %v4849
    %4859 = vrot.lane.b32.xlu0 %v4853, 64
    %v4860 = vpop.permute.xlu0 %4859
    %4861 = vrot.lane.b32.xlu0 %v4854, 64
    %v4862 = vpop.permute.xlu0 %4861
    %4863 = vrot.lane.b32.xlu0 %v4855, 64
    %v4864 = vpop.permute.xlu0 %4863
    %vm4868 = vcmask 785920
    %4869 = vst.msk [vmem:[#allocation6] sm:$0xff] %vm4868, %v4860
    %4870 = vst.msk [vmem:[#allocation6 + $0x10] sm:$0xff] %vm4868, %v4862
    %4871 = vst.msk [vmem:[#allocation6 + $0x20] sm:$0xff] %vm4868, %v4864
    %4872 = vrot.lane.b32.xlu0 %v4853, 32
    %v4873 = vpop.permute.xlu0 %4872
    %4874 = vrot.lane.b32.xlu0 %v4854, 32
    %v4875 = vpop.permute.xlu0 %4874
    %4876 = vrot.lane.b32.xlu0 %v4855, 32
    %v4877 = vpop.permute.xlu0 %4876
    %vm4881 = vcmask 1048320
    %4882 = vst.msk [vmem:[#allocation6] sm:$0xff] %vm4881, %v4873
    %4883 = vst.msk [vmem:[#allocation6 + $0x10] sm:$0xff] %vm4881, %v4875
    %4884 = vst.msk [vmem:[#allocation6 + $0x20] sm:$0xff] %vm4881, %v4877
    %4888 = vrot.lane.b32.xlu0 %v4799, 96
    %v4889 = vpop.permute.xlu0 %4888
    %4890 = vrot.lane.b32.xlu0 %v4802, 96
    %v4891 = vpop.permute.xlu0 %4890
    %4892 = vrot.lane.b32.xlu0 %v4805, 96
    %v4893 = vpop.permute.xlu0 %4892
    %v4897 = vmax.f32 %v4799, %v4889
    %v4898 = vmax.f32 %v4802, %v4891
    %v4899 = vmax.f32 %v4805, %v4893
    %4900 = vst.msk [vmem:[#allocation6 + $0x8] sm:$0xff] %vm4821, %v4897
    %4901 = vst.msk [vmem:[#allocation6 + $0x18] sm:$0xff] %vm4821, %v4898
    %4902 = vst.msk [vmem:[#allocation6 + $0x28] sm:$0xff] %vm4821, %v4899
    %4906 = vrot.lane.b32.xlu0 %v4897, 96
    %v4907 = vpop.permute.xlu0 %4906
    %4908 = vrot.lane.b32.xlu0 %v4898, 96
    %v4909 = vpop.permute.xlu0 %4908
    %4910 = vrot.lane.b32.xlu0 %v4899, 96
    %v4911 = vpop.permute.xlu0 %4910
    %4915 = vst.msk [vmem:[#allocation6 + $0x8] sm:$0xff] %vm4837, %v4907
    %4916 = vst.msk [vmem:[#allocation6 + $0x18] sm:$0xff] %vm4837, %v4909
    %4917 = vst.msk [vmem:[#allocation6 + $0x28] sm:$0xff] %vm4837, %v4911
    %v4918 = vld [vmem:[#allocation6] sm:$0x3]
    %v4919 = vld [vmem:[#allocation6 + $0x8] sm:$0x3]
    %v4920 = vld [vmem:[#allocation6] sm:$0xc]
    %v4921 = vld [vmem:[#allocation6 + $0x8] sm:$0xc]
    %v4924 = vrot.slane %v4920, 2
    %v4925 = vrot.slane %v4921, 2
    %v4928 = vmax.f32 %v4918, %v4924
    %v4929 = vmax.f32 %v4919, %v4925
    %v4930 = vpack.c.bf16 %v4929, %v4928
    %v4932 = vrot.slane %v4930, 6
    %vm4934 = vcmask 1042434
    %vm4935 = vcmask 522246
    %vm4936 = vmor %vm4935, %vm4934
    %4937 = vst.msk [vmem:[#allocation7] sm:$0x44] %vm4936, %v4932
    %v4938 = vld [vmem:[#allocation6] sm:$0x30]
    %v4939 = vld [vmem:[#allocation6 + $0x8] sm:$0x30]
    %v4940 = vld [vmem:[#allocation6] sm:$0xc0]
    %v4941 = vld [vmem:[#allocation6 + $0x8] sm:$0xc0]
    %v4944 = vrot.slane %v4940, 2
    %v4945 = vrot.slane %v4941, 2
    %v4948 = vmax.f32 %v4938, %v4944
    %v4949 = vmax.f32 %v4939, %v4945
    %v4950 = vpack.c.bf16 %v4949, %v4948
    %v4952 = vrot.slane %v4950, 7
    %vm4954 = vcmask 1043459
    %vm4955 = vcmask 523271
    %vm4956 = vmor %vm4955, %vm4954
    %4957 = vst.msk [vmem:[#allocation7] sm:$0x88] %vm4956, %v4952
    %v4958 = vld [vmem:[#allocation6 + $0x10] sm:$0x3]
    %v4959 = vld [vmem:[#allocation6 + $0x18] sm:$0x3]
    %v4960 = vld [vmem:[#allocation6 + $0x10] sm:$0xc]
    %v4961 = vld [vmem:[#allocation6 + $0x18] sm:$0xc]
    %v4964 = vrot.slane %v4960, 2
    %v4965 = vrot.slane %v4961, 2
    %v4968 = vmax.f32 %v4958, %v4964
    %v4969 = vmax.f32 %v4959, %v4965
    %v4970 = vpack.c.bf16 %v4969, %v4968
    %vm4971 = vcmask 1040384
    %vm4972 = vcmask 520196
    %vm4973 = vmor %vm4972, %vm4971
    %4974 = vst.msk [vmem:[#allocation7 + $0x8] sm:$0x11] %vm4973, %v4970
    %v4975 = vld [vmem:[#allocation6 + $0x10] sm:$0x30]
    %v4976 = vld [vmem:[#allocation6 + $0x18] sm:$0x30]
    %v4977 = vld [vmem:[#allocation6 + $0x10] sm:$0xc0]
    %v4978 = vld [vmem:[#allocation6 + $0x18] sm:$0xc0]
    %v4981 = vrot.slane %v4977, 2
    %v4982 = vrot.slane %v4978, 2
    %v4985 = vmax.f32 %v4975, %v4981
    %v4986 = vmax.f32 %v4976, %v4982
    %v4987 = vpack.c.bf16 %v4986, %v4985
    %v4989 = vrot.slane %v4987, 5
    %v4990 = vrot.slane %v4989, 4
    %vm4992 = vcmask 1041409
    %vm4993 = vcmask 521221
    %vm4994 = vmor %vm4993, %vm4992
    %4995 = vst.msk [vmem:[#allocation7 + $0x8] sm:$0x22] %vm4994, %v4990
    %v4996 = vld [vmem:[#allocation6 + $0x20] sm:$0x3]
    %v4997 = vld [vmem:[#allocation6 + $0x28] sm:$0x3]
    %v4998 = vld [vmem:[#allocation6 + $0x20] sm:$0xc]
    %v4999 = vld [vmem:[#allocation6 + $0x28] sm:$0xc]
    %v5002 = vrot.slane %v4998, 2
    %v5003 = vrot.slane %v4999, 2
    %v5006 = vmax.f32 %v4996, %v5002
    %v5007 = vmax.f32 %v4997, %v5003
    %v5008 = vpack.c.bf16 %v5007, %v5006
    %v5010 = vrot.slane %v5008, 6
    %5012 = vst.msk [vmem:[#allocation7 + $0x8] sm:$0x44] %vm4936, %v5010
    %v5013 = vld [vmem:[#allocation6 + $0x20] sm:$0x30]
    %v5014 = vld [vmem:[#allocation6 + $0x28] sm:$0x30]
    %v5015 = vld [vmem:[#allocation6 + $0x20] sm:$0xc0]
    %v5016 = vld [vmem:[#allocation6 + $0x28] sm:$0xc0]
    %v5019 = vrot.slane %v5015, 2
    %v5020 = vrot.slane %v5016, 2
    %v5023 = vmax.f32 %v5013, %v5019
    %v5024 = vmax.f32 %v5014, %v5020
    %v5025 = vpack.c.bf16 %v5024, %v5023
    %v5027 = vrot.slane %v5025, 7
    %5029 = vst.msk [vmem:[#allocation7 + $0x8] sm:$0x88] %vm4956, %v5027
    %v5030 = vld [vmem:[#allocation7] sm:$0xff]
    %v5031 = vld [vmem:[#allocation7 + $0x8] sm:$0x33]
    %vm5032 = vcmask 1043456
    %vm5033 = vcmask 523268
    %vm5034 = vmor %vm5033, %vm5032
    %5035 = vst.msk [vmem:[#allocation8] sm:$0xff] %vm5034, %v5030
    %5036 = vst.msk [vmem:[#allocation8 + $0x20] sm:$0x33] %vm129, %v5031
    %v5037 = vld [vmem:[#allocation7] sm:$0xee]
    %v5038 = vld [vmem:[#allocation7 + $0x8] sm:$0x77]
    %v5041 = vrot.slane %v5037, 5
    %v5042 = vrot.slane %v5041, 4
    %v5043 = vrot.slane %v5038, 5
    %v5044 = vsel %vm162, %v5042, %v5043
    %v5045 = vrot.slane %v5043, 4
    %5046 = vrot.lane.b32.xlu0 %v5044, 64
    %v5047 = vpop.permute.xlu0 %5046
    %5048 = vrot.lane.b32.xlu0 %v5045, 64
    %v5049 = vpop.permute.xlu0 %5048
    %v5050 = vrot.slane %v5047, 4
    %v5051 = vrot.slane %v5049, 4
    %vm5052 = vcmask 523264
    %v5053 = vsel %vm5052, %v5050, %v5047
    %v5054 = vsel %vm5052, %v5051, %v5049
    %vm5057 = vcmask 1043968
    %vm5058 = vcmask 1047556
    %vm5059 = vmor %vm5058, %vm5057
    %5060 = vst.msk [vmem:[#allocation8 + $0x4] sm:$0xff] %vm5059, %v5053
    %vm5061 = vcmask 1041920
    %vm5062 = vcmask 1045508
    %vm5063 = vmor %vm5062, %vm5061
    %5064 = vst.msk [vmem:[#allocation8 + $0x24] sm:$0x33] %vm5063, %v5054
    %v5065 = vld [vmem:[#allocation7] sm:$0xcc]
    %v5066 = vld [vmem:[#allocation7 + $0x8] sm:$0xff]
    %v5069 = vrot.slane %v5065, 6
    %v5070 = vrot.slane %v5069, 4
    %v5071 = vrot.slane %v5066, 6
    %v5072 = vsel %vm213, %v5070, %v5071
    %v5073 = vrot.slane %v5071, 4
    %5076 = vst.msk [vmem:[#allocation8 + $0xc] sm:$0xff] %vm5034, %v5072
    %5077 = vst.msk [vmem:[#allocation8 + $0x2c] sm:$0x33] %vm129, %v5073
    %v5078 = vld [vmem:[#allocation7] sm:$0x88]
    %v5079 = vld [vmem:[#allocation7 + $0x8] sm:$0xff]
    %v5080 = vld [vmem:[#allocation7 + $0x10] sm:$0x11]
    %v5084 = vrot.slane %v5078, 7
    %v5085 = vrot.slane %v5084, 4
    %v5086 = vrot.slane %v5079, 7
    %v5087 = vsel %vm264, %v5085, %v5086
    %v5088 = vrot.slane %v5086, 4
    %v5089 = vrot.slane %v5080, 7
    %v5090 = vsel %vm264, %v5088, %v5089
    %5091 = vrot.lane.b32.xlu0 %v5087, 64
    %v5092 = vpop.permute.xlu0 %5091
    %5093 = vrot.lane.b32.xlu0 %v5090, 64
    %v5094 = vpop.permute.xlu0 %5093
    %v5095 = vrot.slane %v5092, 4
    %v5096 = vrot.slane %v5094, 4
    %v5097 = vsel %vm5052, %v5095, %v5092
    %v5098 = vsel %vm5052, %v5096, %v5094
    %5101 = vst.msk [vmem:[#allocation8 + $0x10] sm:$0xff] %vm5059, %v5097
    %5102 = vst.msk [vmem:[#allocation8 + $0x30] sm:$0x33] %vm5063, %v5098
    %v5103 = vld [vmem:[#allocation7 + $0x8] sm:$0xff]
    %v5104 = vld [vmem:[#allocation7 + $0x10] sm:$0x33]
    %5105 = vst.msk [vmem:[#allocation8 + $0x18] sm:$0xff] %vm5034, %v5103
    %5106 = vst.msk [vmem:[#allocation8 + $0x38] sm:$0x33] %vm129, %v5104
    %s5107 = smul.u32 4, 120
    %s5108 = smul.u32 %s5107, 3
    %s5109 = sshll.u32 %s5108, 4
    %5110 = dma.done [#allocation4], %s5109
    %v5111 = vld [vmem:[#allocation8] sm:$0xff]
    %v5112 = vld [vmem:[#allocation8 + $0x8] sm:$0xff]
    %v5113 = vld [vmem:[#allocation8 + $0x10] sm:$0xff]
    %v5114 = vld [vmem:[#allocation8 + $0x18] sm:$0xff]
    %v5115 = vld [vmem:[#allocation8 + $0x20] sm:$0x33]
    %v5116 = vld [vmem:[#allocation8 + $0x28] sm:$0x33]
    %v5117 = vld [vmem:[#allocation8 + $0x30] sm:$0x33]
    %v5118 = vld [vmem:[#allocation8 + $0x38] sm:$0x33]
    %v5119 = vld [vmem:[#allocation2] sm:$0xff]
    %v5120 = vld [vmem:[#allocation2 + $0x8] sm:$0xf]
    %v5121 = vld [vmem:[#allocation2 + $0xc] sm:$0xff]
    %v5122 = vld [vmem:[#allocation2 + $0x14] sm:$0xf]
    %v5123 = vld [vmem:[#allocation2 + $0x18] sm:$0xff]
    %v5124 = vld [vmem:[#allocation2 + $0x20] sm:$0xf]
    %v5125 = vld [vmem:[#allocation2 + $0x24] sm:$0xff]
    %v5126 = vld [vmem:[#allocation2 + $0x2c] sm:$0xf]
    %v5127 = vld [vmem:[#allocation2 + $0x30] sm:$0xff]
    %v5128 = vld [vmem:[#allocation2 + $0x38] sm:$0xf]
    %v5129 = vld [vmem:[#allocation2 + $0x3c] sm:$0xff]
    %v5130 = vld [vmem:[#allocation2 + $0x44] sm:$0xf]
    %v5131 = vld [vmem:[#allocation2 + $0x48] sm:$0xff]
    %v5132 = vld [vmem:[#allocation2 + $0x50] sm:$0xf]
    %v5133 = vld [vmem:[#allocation2 + $0x54] sm:$0xff]
    %v5134 = vld [vmem:[#allocation2 + $0x5c] sm:$0xf]
    %v5135 = vld [vmem:[#allocation2 + $0x60] sm:$0xff]
    %v5136 = vld [vmem:[#allocation2 + $0x68] sm:$0xf]
    %v5137 = vld [vmem:[#allocation2 + $0x6c] sm:$0xff]
    %v5138 = vld [vmem:[#allocation2 + $0x74] sm:$0xf]
    %v5139 = vld [vmem:[#allocation2 + $0x78] sm:$0xff]
    %v5140 = vld [vmem:[#allocation2 + $0x80] sm:$0xf]
    %v5141 = vld [vmem:[#allocation2 + $0x84] sm:$0xff]
    %v5142 = vld [vmem:[#allocation2 + $0x8c] sm:$0xf]
    %v5143 = vld [vmem:[#allocation2 + $0x90] sm:$0xff]
    %v5144 = vld [vmem:[#allocation2 + $0x98] sm:$0xf]
    %v5145 = vld [vmem:[#allocation2 + $0x9c] sm:$0xff]
    %v5146 = vld [vmem:[#allocation2 + $0xa4] sm:$0xf]
    %v5147 = vld [vmem:[#allocation2 + $0xa8] sm:$0xff]
    %v5148 = vld [vmem:[#allocation2 + $0xb0] sm:$0xf]
    %v5149 = vld [vmem:[#allocation2 + $0xb4] sm:$0xff]
    %v5150 = vld [vmem:[#allocation2 + $0xbc] sm:$0xf]
    %v5151 = vld [vmem:[#allocation2 + $0xc0] sm:$0xff]
    %v5152 = vld [vmem:[#allocation2 + $0xc8] sm:$0xf]
    %v5153 = vld [vmem:[#allocation2 + $0xcc] sm:$0xff]
    %v5154 = vld [vmem:[#allocation2 + $0xd4] sm:$0xf]
    %v5155 = vld [vmem:[#allocation2 + $0xd8] sm:$0xff]
    %v5156 = vld [vmem:[#allocation2 + $0xe0] sm:$0xf]
    %v5157 = vld [vmem:[#allocation2 + $0xe4] sm:$0xff]
    %v5158 = vld [vmem:[#allocation2 + $0xec] sm:$0xf]
    %v5159 = vld [vmem:[#allocation2 + $0xf0] sm:$0xff]
    %v5160 = vld [vmem:[#allocation2 + $0xf8] sm:$0xf]
    %v5161 = vld [vmem:[#allocation2 + $0xfc] sm:$0xff]
    %v5162 = vld [vmem:[#allocation2 + $0x104] sm:$0xf]
    %v5163 = vld [vmem:[#allocation2 + $0x108] sm:$0xff]
    %v5164 = vld [vmem:[#allocation2 + $0x110] sm:$0xf]
    %v5165 = vld [vmem:[#allocation2 + $0x114] sm:$0xff]
    %v5166 = vld [vmem:[#allocation2 + $0x11c] sm:$0xf]
    %v5167 = vld [vmem:[#allocation2 + $0x120] sm:$0xff]
    %v5168 = vld [vmem:[#allocation2 + $0x128] sm:$0xf]
    %v5169 = vld [vmem:[#allocation2 + $0x12c] sm:$0xff]
    %v5170 = vld [vmem:[#allocation2 + $0x134] sm:$0xf]
    %v5171 = vld [vmem:[#allocation2 + $0x138] sm:$0xff]
    %v5172 = vld [vmem:[#allocation2 + $0x140] sm:$0xf]
    %v5173 = vld [vmem:[#allocation2 + $0x144] sm:$0xff]
    %v5174 = vld [vmem:[#allocation2 + $0x14c] sm:$0xf]
    %v5175 = vld [vmem:[#allocation2 + $0x150] sm:$0xff]
    %v5176 = vld [vmem:[#allocation2 + $0x158] sm:$0xf]
    %v5177 = vld [vmem:[#allocation2 + $0x15c] sm:$0xff]
    %v5178 = vld [vmem:[#allocation2 + $0x164] sm:$0xf]
    %v5179 = vld [vmem:[#allocation2 + $0x168] sm:$0xff]
    %v5180 = vld [vmem:[#allocation2 + $0x170] sm:$0xf]
    %v5181 = vld [vmem:[#allocation2 + $0x174] sm:$0xff]
    %v5182 = vld [vmem:[#allocation2 + $0x17c] sm:$0xf]
    %v5183 = vld [vmem:[#allocation2 + $0x180] sm:$0xff]
    %v5184 = vld [vmem:[#allocation2 + $0x188] sm:$0xf]
    %v5185 = vld [vmem:[#allocation2 + $0x18c] sm:$0xff]
    %v5186 = vld [vmem:[#allocation2 + $0x194] sm:$0xf]
    %v5187 = vld [vmem:[#allocation2 + $0x198] sm:$0xff]
    %v5188 = vld [vmem:[#allocation2 + $0x1a0] sm:$0xf]
    %v5189 = vld [vmem:[#allocation2 + $0x1a4] sm:$0xff]
    %v5190 = vld [vmem:[#allocation2 + $0x1ac] sm:$0xf]
    %v5191 = vld [vmem:[#allocation2 + $0x1b0] sm:$0xff]
    %v5192 = vld [vmem:[#allocation2 + $0x1b8] sm:$0xf]
    %v5193 = vld [vmem:[#allocation2 + $0x1bc] sm:$0xff]
    %v5194 = vld [vmem:[#allocation2 + $0x1c4] sm:$0xf]
    %v5195 = vld [vmem:[#allocation2 + $0x1c8] sm:$0xff]
    %v5196 = vld [vmem:[#allocation2 + $0x1d0] sm:$0xf]
    %v5197 = vld [vmem:[#allocation2 + $0x1d4] sm:$0xff]
    %v5198 = vld [vmem:[#allocation2 + $0x1dc] sm:$0xf]
    %v5199 = vld [vmem:[#allocation2 + $0x1e0] sm:$0xff]
    %v5200 = vld [vmem:[#allocation2 + $0x1e8] sm:$0xf]
    %v5201 = vld [vmem:[#allocation2 + $0x1ec] sm:$0xff]
    %v5202 = vld [vmem:[#allocation2 + $0x1f4] sm:$0xf]
    %v5203 = vld [vmem:[#allocation2 + $0x1f8] sm:$0xff]
    %v5204 = vld [vmem:[#allocation2 + $0x200] sm:$0xf]
    %v5205 = vld [vmem:[#allocation2 + $0x204] sm:$0xff]
    %v5206 = vld [vmem:[#allocation2 + $0x20c] sm:$0xf]
    %v5207 = vld [vmem:[#allocation2 + $0x210] sm:$0xff]
    %v5208 = vld [vmem:[#allocation2 + $0x218] sm:$0xf]
    %v5209 = vld [vmem:[#allocation2 + $0x21c] sm:$0xff]
    %v5210 = vld [vmem:[#allocation2 + $0x224] sm:$0xf]
    %v5211 = vld [vmem:[#allocation2 + $0x228] sm:$0xff]
    %v5212 = vld [vmem:[#allocation2 + $0x230] sm:$0xf]
    %v5213 = vld [vmem:[#allocation2 + $0x234] sm:$0xff]
    %v5214 = vld [vmem:[#allocation2 + $0x23c] sm:$0xf]
    %v5215 = vld [vmem:[#allocation2 + $0x240] sm:$0xff]
    %v5216 = vld [vmem:[#allocation2 + $0x248] sm:$0xf]
    %v5217 = vld [vmem:[#allocation2 + $0x24c] sm:$0xff]
    %v5218 = vld [vmem:[#allocation2 + $0x254] sm:$0xf]
    %v5219 = vld [vmem:[#allocation2 + $0x258] sm:$0xff]
    %v5220 = vld [vmem:[#allocation2 + $0x260] sm:$0xf]
    %v5221 = vld [vmem:[#allocation2 + $0x264] sm:$0xff]
    %v5222 = vld [vmem:[#allocation2 + $0x26c] sm:$0xf]
    %v5223 = vld [vmem:[#allocation2 + $0x270] sm:$0xff]
    %v5224 = vld [vmem:[#allocation2 + $0x278] sm:$0xf]
    %v5225 = vld [vmem:[#allocation2 + $0x27c] sm:$0xff]
    %v5226 = vld [vmem:[#allocation2 + $0x284] sm:$0xf]
    %v5227 = vld [vmem:[#allocation2 + $0x288] sm:$0xff]
    %v5228 = vld [vmem:[#allocation2 + $0x290] sm:$0xf]
    %v5229 = vld [vmem:[#allocation2 + $0x294] sm:$0xff]
    %v5230 = vld [vmem:[#allocation2 + $0x29c] sm:$0xf]
    %v5231 = vld [vmem:[#allocation2 + $0x2a0] sm:$0xff]
    %v5232 = vld [vmem:[#allocation2 + $0x2a8] sm:$0xf]
    %v5233 = vld [vmem:[#allocation2 + $0x2ac] sm:$0xff]
    %v5234 = vld [vmem:[#allocation2 + $0x2b4] sm:$0xf]
    %v5235 = vld [vmem:[#allocation2 + $0x2b8] sm:$0xff]
    %v5236 = vld [vmem:[#allocation2 + $0x2c0] sm:$0xf]
    %v5237 = vld [vmem:[#allocation2 + $0x2c4] sm:$0xff]
    %v5238 = vld [vmem:[#allocation2 + $0x2cc] sm:$0xf]
    %v5239 = vld [vmem:[#allocation2 + $0x2d0] sm:$0xff]
    %v5240 = vld [vmem:[#allocation2 + $0x2d8] sm:$0xf]
    %v5241 = vld [vmem:[#allocation2 + $0x2dc] sm:$0xff]
    %v5242 = vld [vmem:[#allocation2 + $0x2e4] sm:$0xf]
    %v5243 = vld [vmem:[#allocation2 + $0x2e8] sm:$0xff]
    %v5244 = vld [vmem:[#allocation2 + $0x2f0] sm:$0xf]
    %v5245 = vld [vmem:[#allocation2 + $0x2f4] sm:$0xff]
    %v5246 = vld [vmem:[#allocation2 + $0x2fc] sm:$0xf]
    %v5247 = vld [vmem:[#allocation2 + $0x300] sm:$0xff]
    %v5248 = vld [vmem:[#allocation2 + $0x308] sm:$0xf]
    %v5249 = vld [vmem:[#allocation2 + $0x30c] sm:$0xff]
    %v5250 = vld [vmem:[#allocation2 + $0x314] sm:$0xf]
    %v5251 = vld [vmem:[#allocation2 + $0x318] sm:$0xff]
    %v5252 = vld [vmem:[#allocation2 + $0x320] sm:$0xf]
    %v5253 = vld [vmem:[#allocation2 + $0x324] sm:$0xff]
    %v5254 = vld [vmem:[#allocation2 + $0x32c] sm:$0xf]
    %v5255 = vld [vmem:[#allocation2 + $0x330] sm:$0xff]
    %v5256 = vld [vmem:[#allocation2 + $0x338] sm:$0xf]
    %v5257 = vld [vmem:[#allocation2 + $0x33c] sm:$0xff]
    %v5258 = vld [vmem:[#allocation2 + $0x344] sm:$0xf]
    %v5259 = vld [vmem:[#allocation2 + $0x348] sm:$0xff]
    %v5260 = vld [vmem:[#allocation2 + $0x350] sm:$0xf]
    %v5261 = vld [vmem:[#allocation2 + $0x354] sm:$0xff]
    %v5262 = vld [vmem:[#allocation2 + $0x35c] sm:$0xf]
    %v5263 = vld [vmem:[#allocation2 + $0x360] sm:$0xff]
    %v5264 = vld [vmem:[#allocation2 + $0x368] sm:$0xf]
    %v5265 = vld [vmem:[#allocation2 + $0x36c] sm:$0xff]
    %v5266 = vld [vmem:[#allocation2 + $0x374] sm:$0xf]
    %v5267 = vld [vmem:[#allocation2 + $0x378] sm:$0xff]
    %v5268 = vld [vmem:[#allocation2 + $0x380] sm:$0xf]
    %v5269 = vld [vmem:[#allocation2 + $0x384] sm:$0xff]
    %v5270 = vld [vmem:[#allocation2 + $0x38c] sm:$0xf]
    %v5271 = vld [vmem:[#allocation2 + $0x390] sm:$0xff]
    %v5272 = vld [vmem:[#allocation2 + $0x398] sm:$0xf]
    %v5273 = vld [vmem:[#allocation2 + $0x39c] sm:$0xff]
    %v5274 = vld [vmem:[#allocation2 + $0x3a4] sm:$0xf]
    %v5275 = vld [vmem:[#allocation2 + $0x3a8] sm:$0xff]
    %v5276 = vld [vmem:[#allocation2 + $0x3b0] sm:$0xf]
    %v5277 = vld [vmem:[#allocation2 + $0x3b4] sm:$0xff]
    %v5278 = vld [vmem:[#allocation2 + $0x3bc] sm:$0xf]
    %v5279 = vld [vmem:[#allocation2 + $0x3c0] sm:$0xff]
    %v5280 = vld [vmem:[#allocation2 + $0x3c8] sm:$0xf]
    %v5281 = vld [vmem:[#allocation2 + $0x3cc] sm:$0xff]
    %v5282 = vld [vmem:[#allocation2 + $0x3d4] sm:$0xf]
    %v5283 = vld [vmem:[#allocation2 + $0x3d8] sm:$0xff]
    %v5284 = vld [vmem:[#allocation2 + $0x3e0] sm:$0xf]
    %v5285 = vld [vmem:[#allocation2 + $0x3e4] sm:$0xff]
    %v5286 = vld [vmem:[#allocation2 + $0x3ec] sm:$0xf]
    %v5287 = vld [vmem:[#allocation2 + $0x3f0] sm:$0xff]
    %v5288 = vld [vmem:[#allocation2 + $0x3f8] sm:$0xf]
    %v5289 = vld [vmem:[#allocation2 + $0x3fc] sm:$0xff]
    %v5290 = vld [vmem:[#allocation2 + $0x404] sm:$0xf]
    %v5291 = vld [vmem:[#allocation2 + $0x408] sm:$0xff]
    %v5292 = vld [vmem:[#allocation2 + $0x410] sm:$0xf]
    %v5293 = vld [vmem:[#allocation2 + $0x414] sm:$0xff]
    %v5294 = vld [vmem:[#allocation2 + $0x41c] sm:$0xf]
    %v5295 = vld [vmem:[#allocation2 + $0x420] sm:$0xff]
    %v5296 = vld [vmem:[#allocation2 + $0x428] sm:$0xf]
    %v5297 = vld [vmem:[#allocation2 + $0x42c] sm:$0xff]
    %v5298 = vld [vmem:[#allocation2 + $0x434] sm:$0xf]
    %v5299 = vld [vmem:[#allocation2 + $0x438] sm:$0xff]
    %v5300 = vld [vmem:[#allocation2 + $0x440] sm:$0xf]
    %v5301 = vld [vmem:[#allocation2 + $0x444] sm:$0xff]
    %v5302 = vld [vmem:[#allocation2 + $0x44c] sm:$0xf]
    %v5303 = vld [vmem:[#allocation2 + $0x450] sm:$0xff]
    %v5304 = vld [vmem:[#allocation2 + $0x458] sm:$0xf]
    %v5305 = vld [vmem:[#allocation2 + $0x45c] sm:$0xff]
    %v5306 = vld [vmem:[#allocation2 + $0x464] sm:$0xf]
    %v5307 = vld [vmem:[#allocation2 + $0x468] sm:$0xff]
    %v5308 = vld [vmem:[#allocation2 + $0x470] sm:$0xf]
    %v5309 = vld [vmem:[#allocation2 + $0x474] sm:$0xff]
    %v5310 = vld [vmem:[#allocation2 + $0x47c] sm:$0xf]
    %v5311 = vld [vmem:[#allocation2 + $0x480] sm:$0xff]
    %v5312 = vld [vmem:[#allocation2 + $0x488] sm:$0xf]
    %v5313 = vld [vmem:[#allocation2 + $0x48c] sm:$0xff]
    %v5314 = vld [vmem:[#allocation2 + $0x494] sm:$0xf]
    %v5315 = vld [vmem:[#allocation2 + $0x498] sm:$0xff]
    %v5316 = vld [vmem:[#allocation2 + $0x4a0] sm:$0xf]
    %v5317 = vld [vmem:[#allocation2 + $0x4a4] sm:$0xff]
    %v5318 = vld [vmem:[#allocation2 + $0x4ac] sm:$0xf]
    %v5319 = vld [vmem:[#allocation2 + $0x4b0] sm:$0xff]
    %v5320 = vld [vmem:[#allocation2 + $0x4b8] sm:$0xf]
    %v5321 = vld [vmem:[#allocation2 + $0x4bc] sm:$0xff]
    %v5322 = vld [vmem:[#allocation2 + $0x4c4] sm:$0xf]
    %v5323 = vld [vmem:[#allocation2 + $0x4c8] sm:$0xff]
    %v5324 = vld [vmem:[#allocation2 + $0x4d0] sm:$0xf]
    %v5325 = vld [vmem:[#allocation2 + $0x4d4] sm:$0xff]
    %v5326 = vld [vmem:[#allocation2 + $0x4dc] sm:$0xf]
    %v5327 = vld [vmem:[#allocation2 + $0x4e0] sm:$0xff]
    %v5328 = vld [vmem:[#allocation2 + $0x4e8] sm:$0xf]
    %v5329 = vld [vmem:[#allocation2 + $0x4ec] sm:$0xff]
    %v5330 = vld [vmem:[#allocation2 + $0x4f4] sm:$0xf]
    %v5331 = vld [vmem:[#allocation2 + $0x4f8] sm:$0xff]
    %v5332 = vld [vmem:[#allocation2 + $0x500] sm:$0xf]
    %v5333 = vld [vmem:[#allocation2 + $0x504] sm:$0xff]
    %v5334 = vld [vmem:[#allocation2 + $0x50c] sm:$0xf]
    %v5335 = vld [vmem:[#allocation2 + $0x510] sm:$0xff]
    %v5336 = vld [vmem:[#allocation2 + $0x518] sm:$0xf]
    %v5337 = vld [vmem:[#allocation2 + $0x51c] sm:$0xff]
    %v5338 = vld [vmem:[#allocation2 + $0x524] sm:$0xf]
    %v5339 = vld [vmem:[#allocation2 + $0x528] sm:$0xff]
    %v5340 = vld [vmem:[#allocation2 + $0x530] sm:$0xf]
    %v5341 = vld [vmem:[#allocation2 + $0x534] sm:$0xff]
    %v5342 = vld [vmem:[#allocation2 + $0x53c] sm:$0xf]
    %v5343 = vld [vmem:[#allocation2 + $0x540] sm:$0xff]
    %v5344 = vld [vmem:[#allocation2 + $0x548] sm:$0xf]
    %v5345 = vld [vmem:[#allocation2 + $0x54c] sm:$0xff]
    %v5346 = vld [vmem:[#allocation2 + $0x554] sm:$0xf]
    %v5347 = vld [vmem:[#allocation2 + $0x558] sm:$0xff]
    %v5348 = vld [vmem:[#allocation2 + $0x560] sm:$0xf]
    %v5349 = vld [vmem:[#allocation2 + $0x564] sm:$0xff]
    %v5350 = vld [vmem:[#allocation2 + $0x56c] sm:$0xf]
    %v5351 = vld [vmem:[#allocation2 + $0x570] sm:$0xff]
    %v5352 = vld [vmem:[#allocation2 + $0x578] sm:$0xf]
    %v5353 = vld [vmem:[#allocation2 + $0x57c] sm:$0xff]
    %v5354 = vld [vmem:[#allocation2 + $0x584] sm:$0xf]
    %v5355 = vld [vmem:[#allocation2 + $0x588] sm:$0xff]
    %v5356 = vld [vmem:[#allocation2 + $0x590] sm:$0xf]
    %v5357 = vld [vmem:[#allocation2 + $0x594] sm:$0xff]
    %v5358 = vld [vmem:[#allocation2 + $0x59c] sm:$0xf]
    %v5359 = vld [vmem:[#allocation16] sm:$0x7]
    %v5361 = vperm.slane %v5359, 0
    %v5362 = vperm.slane %v5359, 1
    %v5363 = vperm.slane %v5359, 2
    %v5375 = vunpack.c.l.b16 %v5111
    %v5376 = vunpack.c.h.b16 %v5111
    %v5377 = vunpack.c.l.b16 %v5112
    %v5378 = vunpack.c.h.b16 %v5112
    %v5379 = vunpack.c.l.b16 %v5113
    %v5380 = vunpack.c.h.b16 %v5113
    %v5381 = vunpack.c.l.b16 %v5114
    %v5382 = vunpack.c.h.b16 %v5114
    %v5383 = vunpack.c.l.b16 %v5115
    %v5384 = vunpack.c.h.b16 %v5115
    %v5385 = vunpack.c.l.b16 %v5116
    %v5386 = vunpack.c.h.b16 %v5116
    %v5387 = vunpack.c.l.b16 %v5117
    %v5388 = vunpack.c.h.b16 %v5117
    %v5389 = vunpack.c.l.b16 %v5118
    %v5390 = vunpack.c.h.b16 %v5118
    %v5391 = vpack.c.b16 %v5383, %v5375
    %v5392 = vpack.c.b16 %v5384, %v5376
    %v5393 = vpack.c.b16 %v5385, %v5377
    %v5394 = vpack.c.b16 %v5386, %v5378
    %v5395 = vpack.c.b16 %v5387, %v5379
    %v5396 = vpack.c.b16 %v5388, %v5380
    %v5397 = vpack.c.b16 %v5389, %v5381
    %v5398 = vpack.c.b16 %v5390, %v5382
    %v5646 = vunpack.c.l.b16 %v5119
    %v5647 = vunpack.c.h.b16 %v5119
    %v5648 = vunpack.c.l.b16 %v5120
    %v5649 = vunpack.c.l.b16 %v5121
    %v5650 = vunpack.c.h.b16 %v5121
    %v5651 = vunpack.c.l.b16 %v5122
    %v5652 = vunpack.c.l.b16 %v5123
    %v5653 = vunpack.c.h.b16 %v5123
    %v5654 = vunpack.c.l.b16 %v5124
    %v5655 = vunpack.c.l.b16 %v5125
    %v5656 = vunpack.c.h.b16 %v5125
    %v5657 = vunpack.c.l.b16 %v5126
    %v5658 = vunpack.c.l.b16 %v5127
    %v5659 = vunpack.c.h.b16 %v5127
    %v5660 = vunpack.c.l.b16 %v5128
    %v5661 = vunpack.c.l.b16 %v5129
    %v5662 = vunpack.c.h.b16 %v5129
    %v5663 = vunpack.c.l.b16 %v5130
    %v5664 = vunpack.c.l.b16 %v5131
    %v5665 = vunpack.c.h.b16 %v5131
    %v5666 = vunpack.c.l.b16 %v5132
    %v5667 = vunpack.c.l.b16 %v5133
    %v5668 = vunpack.c.h.b16 %v5133
    %v5669 = vunpack.c.l.b16 %v5134
    %v5670 = vunpack.c.l.b16 %v5135
    %v5671 = vunpack.c.h.b16 %v5135
    %v5672 = vunpack.c.l.b16 %v5136
    %v5673 = vunpack.c.l.b16 %v5137
    %v5674 = vunpack.c.h.b16 %v5137
    %v5675 = vunpack.c.l.b16 %v5138
    %v5676 = vunpack.c.l.b16 %v5139
    %v5677 = vunpack.c.h.b16 %v5139
    %v5678 = vunpack.c.l.b16 %v5140
    %v5679 = vunpack.c.l.b16 %v5141
    %v5680 = vunpack.c.h.b16 %v5141
    %v5681 = vunpack.c.l.b16 %v5142
    %v5682 = vunpack.c.l.b16 %v5143
    %v5683 = vunpack.c.h.b16 %v5143
    %v5684 = vunpack.c.l.b16 %v5144
    %v5685 = vunpack.c.l.b16 %v5145
    %v5686 = vunpack.c.h.b16 %v5145
    %v5687 = vunpack.c.l.b16 %v5146
    %v5688 = vunpack.c.l.b16 %v5147
    %v5689 = vunpack.c.h.b16 %v5147
    %v5690 = vunpack.c.l.b16 %v5148
    %v5691 = vunpack.c.l.b16 %v5149
    %v5692 = vunpack.c.h.b16 %v5149
    %v5693 = vunpack.c.l.b16 %v5150
    %v5694 = vunpack.c.l.b16 %v5151
    %v5695 = vunpack.c.h.b16 %v5151
    %v5696 = vunpack.c.l.b16 %v5152
    %v5697 = vunpack.c.l.b16 %v5153
    %v5698 = vunpack.c.h.b16 %v5153
    %v5699 = vunpack.c.l.b16 %v5154
    %v5700 = vunpack.c.l.b16 %v5155
    %v5701 = vunpack.c.h.b16 %v5155
    %v5702 = vunpack.c.l.b16 %v5156
    %v5703 = vunpack.c.l.b16 %v5157
    %v5704 = vunpack.c.h.b16 %v5157
    %v5705 = vunpack.c.l.b16 %v5158
    %v5706 = vunpack.c.l.b16 %v5159
    %v5707 = vunpack.c.h.b16 %v5159
    %v5708 = vunpack.c.l.b16 %v5160
    %v5709 = vunpack.c.l.b16 %v5161
    %v5710 = vunpack.c.h.b16 %v5161
    %v5711 = vunpack.c.l.b16 %v5162
    %v5712 = vunpack.c.l.b16 %v5163
    %v5713 = vunpack.c.h.b16 %v5163
    %v5714 = vunpack.c.l.b16 %v5164
    %v5715 = vunpack.c.l.b16 %v5165
    %v5716 = vunpack.c.h.b16 %v5165
    %v5717 = vunpack.c.l.b16 %v5166
    %v5718 = vunpack.c.l.b16 %v5167
    %v5719 = vunpack.c.h.b16 %v5167
    %v5720 = vunpack.c.l.b16 %v5168
    %v5721 = vunpack.c.l.b16 %v5169
    %v5722 = vunpack.c.h.b16 %v5169
    %v5723 = vunpack.c.l.b16 %v5170
    %v5724 = vunpack.c.l.b16 %v5171
    %v5725 = vunpack.c.h.b16 %v5171
    %v5726 = vunpack.c.l.b16 %v5172
    %v5727 = vunpack.c.l.b16 %v5173
    %v5728 = vunpack.c.h.b16 %v5173
    %v5729 = vunpack.c.l.b16 %v5174
    %v5730 = vunpack.c.l.b16 %v5175
    %v5731 = vunpack.c.h.b16 %v5175
    %v5732 = vunpack.c.l.b16 %v5176
    %v5733 = vunpack.c.l.b16 %v5177
    %v5734 = vunpack.c.h.b16 %v5177
    %v5735 = vunpack.c.l.b16 %v5178
    %v5736 = vunpack.c.l.b16 %v5179
    %v5737 = vunpack.c.h.b16 %v5179
    %v5738 = vunpack.c.l.b16 %v5180
    %v5739 = vunpack.c.l.b16 %v5181
    %v5740 = vunpack.c.h.b16 %v5181
    %v5741 = vunpack.c.l.b16 %v5182
    %v5742 = vunpack.c.l.b16 %v5183
    %v5743 = vunpack.c.h.b16 %v5183
    %v5744 = vunpack.c.l.b16 %v5184
    %v5745 = vunpack.c.l.b16 %v5185
    %v5746 = vunpack.c.h.b16 %v5185
    %v5747 = vunpack.c.l.b16 %v5186
    %v5748 = vunpack.c.l.b16 %v5187
    %v5749 = vunpack.c.h.b16 %v5187
    %v5750 = vunpack.c.l.b16 %v5188
    %v5751 = vunpack.c.l.b16 %v5189
    %v5752 = vunpack.c.h.b16 %v5189
    %v5753 = vunpack.c.l.b16 %v5190
    %v5754 = vunpack.c.l.b16 %v5191
    %v5755 = vunpack.c.h.b16 %v5191
    %v5756 = vunpack.c.l.b16 %v5192
    %v5757 = vunpack.c.l.b16 %v5193
    %v5758 = vunpack.c.h.b16 %v5193
    %v5759 = vunpack.c.l.b16 %v5194
    %v5760 = vunpack.c.l.b16 %v5195
    %v5761 = vunpack.c.h.b16 %v5195
    %v5762 = vunpack.c.l.b16 %v5196
    %v5763 = vunpack.c.l.b16 %v5197
    %v5764 = vunpack.c.h.b16 %v5197
    %v5765 = vunpack.c.l.b16 %v5198
    %v5766 = vunpack.c.l.b16 %v5199
    %v5767 = vunpack.c.h.b16 %v5199
    %v5768 = vunpack.c.l.b16 %v5200
    %v5769 = vunpack.c.l.b16 %v5201
    %v5770 = vunpack.c.h.b16 %v5201
    %v5771 = vunpack.c.l.b16 %v5202
    %v5772 = vunpack.c.l.b16 %v5203
    %v5773 = vunpack.c.h.b16 %v5203
    %v5774 = vunpack.c.l.b16 %v5204
    %v5775 = vunpack.c.l.b16 %v5205
    %v5776 = vunpack.c.h.b16 %v5205
    %v5777 = vunpack.c.l.b16 %v5206
    %v5778 = vunpack.c.l.b16 %v5207
    %v5779 = vunpack.c.h.b16 %v5207
    %v5780 = vunpack.c.l.b16 %v5208
    %v5781 = vunpack.c.l.b16 %v5209
    %v5782 = vunpack.c.h.b16 %v5209
    %v5783 = vunpack.c.l.b16 %v5210
    %v5784 = vunpack.c.l.b16 %v5211
    %v5785 = vunpack.c.h.b16 %v5211
    %v5786 = vunpack.c.l.b16 %v5212
    %v5787 = vunpack.c.l.b16 %v5213
    %v5788 = vunpack.c.h.b16 %v5213
    %v5789 = vunpack.c.l.b16 %v5214
    %v5790 = vunpack.c.l.b16 %v5215
    %v5791 = vunpack.c.h.b16 %v5215
    %v5792 = vunpack.c.l.b16 %v5216
    %v5793 = vunpack.c.l.b16 %v5217
    %v5794 = vunpack.c.h.b16 %v5217
    %v5795 = vunpack.c.l.b16 %v5218
    %v5796 = vunpack.c.l.b16 %v5219
    %v5797 = vunpack.c.h.b16 %v5219
    %v5798 = vunpack.c.l.b16 %v5220
    %v5799 = vunpack.c.l.b16 %v5221
    %v5800 = vunpack.c.h.b16 %v5221
    %v5801 = vunpack.c.l.b16 %v5222
    %v5802 = vunpack.c.l.b16 %v5223
    %v5803 = vunpack.c.h.b16 %v5223
    %v5804 = vunpack.c.l.b16 %v5224
    %v5805 = vunpack.c.l.b16 %v5225
    %v5806 = vunpack.c.h.b16 %v5225
    %v5807 = vunpack.c.l.b16 %v5226
    %v5808 = vunpack.c.l.b16 %v5227
    %v5809 = vunpack.c.h.b16 %v5227
    %v5810 = vunpack.c.l.b16 %v5228
    %v5811 = vunpack.c.l.b16 %v5229
    %v5812 = vunpack.c.h.b16 %v5229
    %v5813 = vunpack.c.l.b16 %v5230
    %v5814 = vunpack.c.l.b16 %v5231
    %v5815 = vunpack.c.h.b16 %v5231
    %v5816 = vunpack.c.l.b16 %v5232
    %v5817 = vunpack.c.l.b16 %v5233
    %v5818 = vunpack.c.h.b16 %v5233
    %v5819 = vunpack.c.l.b16 %v5234
    %v5820 = vunpack.c.l.b16 %v5235
    %v5821 = vunpack.c.h.b16 %v5235
    %v5822 = vunpack.c.l.b16 %v5236
    %v5823 = vunpack.c.l.b16 %v5237
    %v5824 = vunpack.c.h.b16 %v5237
    %v5825 = vunpack.c.l.b16 %v5238
    %v5826 = vunpack.c.l.b16 %v5239
    %v5827 = vunpack.c.h.b16 %v5239
    %v5828 = vunpack.c.l.b16 %v5240
    %v5829 = vunpack.c.l.b16 %v5241
    %v5830 = vunpack.c.h.b16 %v5241
    %v5831 = vunpack.c.l.b16 %v5242
    %v5832 = vunpack.c.l.b16 %v5243
    %v5833 = vunpack.c.h.b16 %v5243
    %v5834 = vunpack.c.l.b16 %v5244
    %v5835 = vunpack.c.l.b16 %v5245
    %v5836 = vunpack.c.h.b16 %v5245
    %v5837 = vunpack.c.l.b16 %v5246
    %v5838 = vunpack.c.l.b16 %v5247
    %v5839 = vunpack.c.h.b16 %v5247
    %v5840 = vunpack.c.l.b16 %v5248
    %v5841 = vunpack.c.l.b16 %v5249
    %v5842 = vunpack.c.h.b16 %v5249
    %v5843 = vunpack.c.l.b16 %v5250
    %v5844 = vunpack.c.l.b16 %v5251
    %v5845 = vunpack.c.h.b16 %v5251
    %v5846 = vunpack.c.l.b16 %v5252
    %v5847 = vunpack.c.l.b16 %v5253
    %v5848 = vunpack.c.h.b16 %v5253
    %v5849 = vunpack.c.l.b16 %v5254
    %v5850 = vunpack.c.l.b16 %v5255
    %v5851 = vunpack.c.h.b16 %v5255
    %v5852 = vunpack.c.l.b16 %v5256
    %v5853 = vunpack.c.l.b16 %v5257
    %v5854 = vunpack.c.h.b16 %v5257
    %v5855 = vunpack.c.l.b16 %v5258
    %v5856 = vunpack.c.l.b16 %v5259
    %v5857 = vunpack.c.h.b16 %v5259
    %v5858 = vunpack.c.l.b16 %v5260
    %v5859 = vunpack.c.l.b16 %v5261
    %v5860 = vunpack.c.h.b16 %v5261
    %v5861 = vunpack.c.l.b16 %v5262
    %v5862 = vunpack.c.l.b16 %v5263
    %v5863 = vunpack.c.h.b16 %v5263
    %v5864 = vunpack.c.l.b16 %v5264
    %v5865 = vunpack.c.l.b16 %v5265
    %v5866 = vunpack.c.h.b16 %v5265
    %v5867 = vunpack.c.l.b16 %v5266
    %v5868 = vunpack.c.l.b16 %v5267
    %v5869 = vunpack.c.h.b16 %v5267
    %v5870 = vunpack.c.l.b16 %v5268
    %v5871 = vunpack.c.l.b16 %v5269
    %v5872 = vunpack.c.h.b16 %v5269
    %v5873 = vunpack.c.l.b16 %v5270
    %v5874 = vunpack.c.l.b16 %v5271
    %v5875 = vunpack.c.h.b16 %v5271
    %v5876 = vunpack.c.l.b16 %v5272
    %v5877 = vunpack.c.l.b16 %v5273
    %v5878 = vunpack.c.h.b16 %v5273
    %v5879 = vunpack.c.l.b16 %v5274
    %v5880 = vunpack.c.l.b16 %v5275
    %v5881 = vunpack.c.h.b16 %v5275
    %v5882 = vunpack.c.l.b16 %v5276
    %v5883 = vunpack.c.l.b16 %v5277
    %v5884 = vunpack.c.h.b16 %v5277
    %v5885 = vunpack.c.l.b16 %v5278
    %v5886 = vunpack.c.l.b16 %v5279
    %v5887 = vunpack.c.h.b16 %v5279
    %v5888 = vunpack.c.l.b16 %v5280
    %v5889 = vunpack.c.l.b16 %v5281
    %v5890 = vunpack.c.h.b16 %v5281
    %v5891 = vunpack.c.l.b16 %v5282
    %v5892 = vunpack.c.l.b16 %v5283
    %v5893 = vunpack.c.h.b16 %v5283
    %v5894 = vunpack.c.l.b16 %v5284
    %v5895 = vunpack.c.l.b16 %v5285
    %v5896 = vunpack.c.h.b16 %v5285
    %v5897 = vunpack.c.l.b16 %v5286
    %v5898 = vunpack.c.l.b16 %v5287
    %v5899 = vunpack.c.h.b16 %v5287
    %v5900 = vunpack.c.l.b16 %v5288
    %v5901 = vunpack.c.l.b16 %v5289
    %v5902 = vunpack.c.h.b16 %v5289
    %v5903 = vunpack.c.l.b16 %v5290
    %v5904 = vunpack.c.l.b16 %v5291
    %v5905 = vunpack.c.h.b16 %v5291
    %v5906 = vunpack.c.l.b16 %v5292
    %v5907 = vunpack.c.l.b16 %v5293
    %v5908 = vunpack.c.h.b16 %v5293
    %v5909 = vunpack.c.l.b16 %v5294
    %v5910 = vunpack.c.l.b16 %v5295
    %v5911 = vunpack.c.h.b16 %v5295
    %v5912 = vunpack.c.l.b16 %v5296
    %v5913 = vunpack.c.l.b16 %v5297
    %v5914 = vunpack.c.h.b16 %v5297
    %v5915 = vunpack.c.l.b16 %v5298
    %v5916 = vunpack.c.l.b16 %v5299
    %v5917 = vunpack.c.h.b16 %v5299
    %v5918 = vunpack.c.l.b16 %v5300
    %v5919 = vunpack.c.l.b16 %v5301
    %v5920 = vunpack.c.h.b16 %v5301
    %v5921 = vunpack.c.l.b16 %v5302
    %v5922 = vunpack.c.l.b16 %v5303
    %v5923 = vunpack.c.h.b16 %v5303
    %v5924 = vunpack.c.l.b16 %v5304
    %v5925 = vunpack.c.l.b16 %v5305
    %v5926 = vunpack.c.h.b16 %v5305
    %v5927 = vunpack.c.l.b16 %v5306
    %v5928 = vunpack.c.l.b16 %v5307
    %v5929 = vunpack.c.h.b16 %v5307
    %v5930 = vunpack.c.l.b16 %v5308
    %v5931 = vunpack.c.l.b16 %v5309
    %v5932 = vunpack.c.h.b16 %v5309
    %v5933 = vunpack.c.l.b16 %v5310
    %v5934 = vunpack.c.l.b16 %v5311
    %v5935 = vunpack.c.h.b16 %v5311
    %v5936 = vunpack.c.l.b16 %v5312
    %v5937 = vunpack.c.l.b16 %v5313
    %v5938 = vunpack.c.h.b16 %v5313
    %v5939 = vunpack.c.l.b16 %v5314
    %v5940 = vunpack.c.l.b16 %v5315
    %v5941 = vunpack.c.h.b16 %v5315
    %v5942 = vunpack.c.l.b16 %v5316
    %v5943 = vunpack.c.l.b16 %v5317
    %v5944 = vunpack.c.h.b16 %v5317
    %v5945 = vunpack.c.l.b16 %v5318
    %v5946 = vunpack.c.l.b16 %v5319
    %v5947 = vunpack.c.h.b16 %v5319
    %v5948 = vunpack.c.l.b16 %v5320
    %v5949 = vunpack.c.l.b16 %v5321
    %v5950 = vunpack.c.h.b16 %v5321
    %v5951 = vunpack.c.l.b16 %v5322
    %v5952 = vunpack.c.l.b16 %v5323
    %v5953 = vunpack.c.h.b16 %v5323
    %v5954 = vunpack.c.l.b16 %v5324
    %v5955 = vunpack.c.l.b16 %v5325
    %v5956 = vunpack.c.h.b16 %v5325
    %v5957 = vunpack.c.l.b16 %v5326
    %v5958 = vunpack.c.l.b16 %v5327
    %v5959 = vunpack.c.h.b16 %v5327
    %v5960 = vunpack.c.l.b16 %v5328
    %v5961 = vunpack.c.l.b16 %v5329
    %v5962 = vunpack.c.h.b16 %v5329
    %v5963 = vunpack.c.l.b16 %v5330
    %v5964 = vunpack.c.l.b16 %v5331
    %v5965 = vunpack.c.h.b16 %v5331
    %v5966 = vunpack.c.l.b16 %v5332
    %v5967 = vunpack.c.l.b16 %v5333
    %v5968 = vunpack.c.h.b16 %v5333
    %v5969 = vunpack.c.l.b16 %v5334
    %v5970 = vunpack.c.l.b16 %v5335
    %v5971 = vunpack.c.h.b16 %v5335
    %v5972 = vunpack.c.l.b16 %v5336
    %v5973 = vunpack.c.l.b16 %v5337
    %v5974 = vunpack.c.h.b16 %v5337
    %v5975 = vunpack.c.l.b16 %v5338
    %v5976 = vunpack.c.l.b16 %v5339
    %v5977 = vunpack.c.h.b16 %v5339
    %v5978 = vunpack.c.l.b16 %v5340
    %v5979 = vunpack.c.l.b16 %v5341
    %v5980 = vunpack.c.h.b16 %v5341
    %v5981 = vunpack.c.l.b16 %v5342
    %v5982 = vunpack.c.l.b16 %v5343
    %v5983 = vunpack.c.h.b16 %v5343
    %v5984 = vunpack.c.l.b16 %v5344
    %v5985 = vunpack.c.l.b16 %v5345
    %v5986 = vunpack.c.h.b16 %v5345
    %v5987 = vunpack.c.l.b16 %v5346
    %v5988 = vunpack.c.l.b16 %v5347
    %v5989 = vunpack.c.h.b16 %v5347
    %v5990 = vunpack.c.l.b16 %v5348
    %v5991 = vunpack.c.l.b16 %v5349
    %v5992 = vunpack.c.h.b16 %v5349
    %v5993 = vunpack.c.l.b16 %v5350
    %v5994 = vunpack.c.l.b16 %v5351
    %v5995 = vunpack.c.h.b16 %v5351
    %v5996 = vunpack.c.l.b16 %v5352
    %v5997 = vunpack.c.l.b16 %v5353
    %v5998 = vunpack.c.h.b16 %v5353
    %v5999 = vunpack.c.l.b16 %v5354
    %v6000 = vunpack.c.l.b16 %v5355
    %v6001 = vunpack.c.h.b16 %v5355
    %v6002 = vunpack.c.l.b16 %v5356
    %v6003 = vunpack.c.l.b16 %v5357
    %v6004 = vunpack.c.h.b16 %v5357
    %v6005 = vunpack.c.l.b16 %v5358
    %v6006 = vpack.c.b16 %v5649, %v5646
    %v6007 = vpack.c.b16 %v5650, %v5647
    %v6008 = vpack.c.b16 %v5651, %v5648
    %v6009 = vpack.c.b16 %v5655, %v5652
    %v6010 = vpack.c.b16 %v5656, %v5653
    %v6011 = vpack.c.b16 %v5657, %v5654
    %v6012 = vpack.c.b16 %v5661, %v5658
    %v6013 = vpack.c.b16 %v5662, %v5659
    %v6014 = vpack.c.b16 %v5663, %v5660
    %v6015 = vpack.c.b16 %v5667, %v5664
    %v6016 = vpack.c.b16 %v5668, %v5665
    %v6017 = vpack.c.b16 %v5669, %v5666
    %v6018 = vpack.c.b16 %v5673, %v5670
    %v6019 = vpack.c.b16 %v5674, %v5671
    %v6020 = vpack.c.b16 %v5675, %v5672
    %v6021 = vpack.c.b16 %v5679, %v5676
    %v6022 = vpack.c.b16 %v5680, %v5677
    %v6023 = vpack.c.b16 %v5681, %v5678
    %v6024 = vpack.c.b16 %v5685, %v5682
    %v6025 = vpack.c.b16 %v5686, %v5683
    %v6026 = vpack.c.b16 %v5687, %v5684
    %v6027 = vpack.c.b16 %v5691, %v5688
    %v6028 = vpack.c.b16 %v5692, %v5689
    %v6029 = vpack.c.b16 %v5693, %v5690
    %v6030 = vpack.c.b16 %v5697, %v5694
    %v6031 = vpack.c.b16 %v5698, %v5695
    %v6032 = vpack.c.b16 %v5699, %v5696
    %v6033 = vpack.c.b16 %v5703, %v5700
    %v6034 = vpack.c.b16 %v5704, %v5701
    %v6035 = vpack.c.b16 %v5705, %v5702
    %v6036 = vpack.c.b16 %v5709, %v5706
    %v6037 = vpack.c.b16 %v5710, %v5707
    %v6038 = vpack.c.b16 %v5711, %v5708
    %v6039 = vpack.c.b16 %v5715, %v5712
    %v6040 = vpack.c.b16 %v5716, %v5713
    %v6041 = vpack.c.b16 %v5717, %v5714
    %v6042 = vpack.c.b16 %v5721, %v5718
    %v6043 = vpack.c.b16 %v5722, %v5719
    %v6044 = vpack.c.b16 %v5723, %v5720
    %v6045 = vpack.c.b16 %v5727, %v5724
    %v6046 = vpack.c.b16 %v5728, %v5725
    %v6047 = vpack.c.b16 %v5729, %v5726
    %v6048 = vpack.c.b16 %v5733, %v5730
    %v6049 = vpack.c.b16 %v5734, %v5731
    %v6050 = vpack.c.b16 %v5735, %v5732
    %v6051 = vpack.c.b16 %v5739, %v5736
    %v6052 = vpack.c.b16 %v5740, %v5737
    %v6053 = vpack.c.b16 %v5741, %v5738
    %v6054 = vpack.c.b16 %v5745, %v5742
    %v6055 = vpack.c.b16 %v5746, %v5743
    %v6056 = vpack.c.b16 %v5747, %v5744
    %v6057 = vpack.c.b16 %v5751, %v5748
    %v6058 = vpack.c.b16 %v5752, %v5749
    %v6059 = vpack.c.b16 %v5753, %v5750
    %v6060 = vpack.c.b16 %v5757, %v5754
    %v6061 = vpack.c.b16 %v5758, %v5755
    %v6062 = vpack.c.b16 %v5759, %v5756
    %v6063 = vpack.c.b16 %v5763, %v5760
    %v6064 = vpack.c.b16 %v5764, %v5761
    %v6065 = vpack.c.b16 %v5765, %v5762
    %v6066 = vpack.c.b16 %v5769, %v5766
    %v6067 = vpack.c.b16 %v5770, %v5767
    %v6068 = vpack.c.b16 %v5771, %v5768
    %v6069 = vpack.c.b16 %v5775, %v5772
    %v6070 = vpack.c.b16 %v5776, %v5773
    %v6071 = vpack.c.b16 %v5777, %v5774
    %v6072 = vpack.c.b16 %v5781, %v5778
    %v6073 = vpack.c.b16 %v5782, %v5779
    %v6074 = vpack.c.b16 %v5783, %v5780
    %v6075 = vpack.c.b16 %v5787, %v5784
    %v6076 = vpack.c.b16 %v5788, %v5785
    %v6077 = vpack.c.b16 %v5789, %v5786
    %v6078 = vpack.c.b16 %v5793, %v5790
    %v6079 = vpack.c.b16 %v5794, %v5791
    %v6080 = vpack.c.b16 %v5795, %v5792
    %v6081 = vpack.c.b16 %v5799, %v5796
    %v6082 = vpack.c.b16 %v5800, %v5797
    %v6083 = vpack.c.b16 %v5801, %v5798
    %v6084 = vpack.c.b16 %v5805, %v5802
    %v6085 = vpack.c.b16 %v5806, %v5803
    %v6086 = vpack.c.b16 %v5807, %v5804
    %v6087 = vpack.c.b16 %v5811, %v5808
    %v6088 = vpack.c.b16 %v5812, %v5809
    %v6089 = vpack.c.b16 %v5813, %v5810
    %v6090 = vpack.c.b16 %v5817, %v5814
    %v6091 = vpack.c.b16 %v5818, %v5815
    %v6092 = vpack.c.b16 %v5819, %v5816
    %v6093 = vpack.c.b16 %v5823, %v5820
    %v6094 = vpack.c.b16 %v5824, %v5821
    %v6095 = vpack.c.b16 %v5825, %v5822
    %v6096 = vpack.c.b16 %v5829, %v5826
    %v6097 = vpack.c.b16 %v5830, %v5827
    %v6098 = vpack.c.b16 %v5831, %v5828
    %v6099 = vpack.c.b16 %v5835, %v5832
    %v6100 = vpack.c.b16 %v5836, %v5833
    %v6101 = vpack.c.b16 %v5837, %v5834
    %v6102 = vpack.c.b16 %v5841, %v5838
    %v6103 = vpack.c.b16 %v5842, %v5839
    %v6104 = vpack.c.b16 %v5843, %v5840
    %v6105 = vpack.c.b16 %v5847, %v5844
    %v6106 = vpack.c.b16 %v5848, %v5845
    %v6107 = vpack.c.b16 %v5849, %v5846
    %v6108 = vpack.c.b16 %v5853, %v5850
    %v6109 = vpack.c.b16 %v5854, %v5851
    %v6110 = vpack.c.b16 %v5855, %v5852
    %v6111 = vpack.c.b16 %v5859, %v5856
    %v6112 = vpack.c.b16 %v5860, %v5857
    %v6113 = vpack.c.b16 %v5861, %v5858
    %v6114 = vpack.c.b16 %v5865, %v5862
    %v6115 = vpack.c.b16 %v5866, %v5863
    %v6116 = vpack.c.b16 %v5867, %v5864
    %v6117 = vpack.c.b16 %v5871, %v5868
    %v6118 = vpack.c.b16 %v5872, %v5869
    %v6119 = vpack.c.b16 %v5873, %v5870
    %v6120 = vpack.c.b16 %v5877, %v5874
    %v6121 = vpack.c.b16 %v5878, %v5875
    %v6122 = vpack.c.b16 %v5879, %v5876
    %v6123 = vpack.c.b16 %v5883, %v5880
    %v6124 = vpack.c.b16 %v5884, %v5881
    %v6125 = vpack.c.b16 %v5885, %v5882
    %v6126 = vpack.c.b16 %v5889, %v5886
    %v6127 = vpack.c.b16 %v5890, %v5887
    %v6128 = vpack.c.b16 %v5891, %v5888
    %v6129 = vpack.c.b16 %v5895, %v5892
    %v6130 = vpack.c.b16 %v5896, %v5893
    %v6131 = vpack.c.b16 %v5897, %v5894
    %v6132 = vpack.c.b16 %v5901, %v5898
    %v6133 = vpack.c.b16 %v5902, %v5899
    %v6134 = vpack.c.b16 %v5903, %v5900
    %v6135 = vpack.c.b16 %v5907, %v5904
    %v6136 = vpack.c.b16 %v5908, %v5905
    %v6137 = vpack.c.b16 %v5909, %v5906
    %v6138 = vpack.c.b16 %v5913, %v5910
    %v6139 = vpack.c.b16 %v5914, %v5911
    %v6140 = vpack.c.b16 %v5915, %v5912
    %v6141 = vpack.c.b16 %v5919, %v5916
    %v6142 = vpack.c.b16 %v5920, %v5917
    %v6143 = vpack.c.b16 %v5921, %v5918
    %v6144 = vpack.c.b16 %v5925, %v5922
    %v6145 = vpack.c.b16 %v5926, %v5923
    %v6146 = vpack.c.b16 %v5927, %v5924
    %v6147 = vpack.c.b16 %v5931, %v5928
    %v6148 = vpack.c.b16 %v5932, %v5929
    %v6149 = vpack.c.b16 %v5933, %v5930
    %v6150 = vpack.c.b16 %v5937, %v5934
    %v6151 = vpack.c.b16 %v5938, %v5935
    %v6152 = vpack.c.b16 %v5939, %v5936
    %v6153 = vpack.c.b16 %v5943, %v5940
    %v6154 = vpack.c.b16 %v5944, %v5941
    %v6155 = vpack.c.b16 %v5945, %v5942
    %v6156 = vpack.c.b16 %v5949, %v5946
    %v6157 = vpack.c.b16 %v5950, %v5947
    %v6158 = vpack.c.b16 %v5951, %v5948
    %v6159 = vpack.c.b16 %v5955, %v5952
    %v6160 = vpack.c.b16 %v5956, %v5953
    %v6161 = vpack.c.b16 %v5957, %v5954
    %v6162 = vpack.c.b16 %v5961, %v5958
    %v6163 = vpack.c.b16 %v5962, %v5959
    %v6164 = vpack.c.b16 %v5963, %v5960
    %v6165 = vpack.c.b16 %v5967, %v5964
    %v6166 = vpack.c.b16 %v5968, %v5965
    %v6167 = vpack.c.b16 %v5969, %v5966
    %v6168 = vpack.c.b16 %v5973, %v5970
    %v6169 = vpack.c.b16 %v5974, %v5971
    %v6170 = vpack.c.b16 %v5975, %v5972
    %v6171 = vpack.c.b16 %v5979, %v5976
    %v6172 = vpack.c.b16 %v5980, %v5977
    %v6173 = vpack.c.b16 %v5981, %v5978
    %v6174 = vpack.c.b16 %v5985, %v5982
    %v6175 = vpack.c.b16 %v5986, %v5983
    %v6176 = vpack.c.b16 %v5987, %v5984
    %v6177 = vpack.c.b16 %v5991, %v5988
    %v6178 = vpack.c.b16 %v5992, %v5989
    %v6179 = vpack.c.b16 %v5993, %v5990
    %v6180 = vpack.c.b16 %v5997, %v5994
    %v6181 = vpack.c.b16 %v5998, %v5995
    %v6182 = vpack.c.b16 %v5999, %v5996
    %v6183 = vpack.c.b16 %v6003, %v6000
    %v6184 = vpack.c.b16 %v6004, %v6001
    %v6185 = vpack.c.b16 %v6005, %v6002
    %vm6366 = vcmask 523264
    %v6368 = vsel %vm6366, %v5398, 0
    %6370 = vmatpush.bf16.msra.mxu0 %v6027
    %6371 = vmatpush.bf16.msra.mxu0 %v6024
    %6372 = vmatpush.bf16.msra.mxu0 %v6021
    %6373 = vmatpush.bf16.msra.mxu0 %v6018
    %6374 = vmatpush.bf16.msra.mxu0 %v6015
    %6375 = vmatpush.bf16.msra.mxu0 %v6012
    %6376 = vmatpush.bf16.msra.mxu0 %v6009
    %6377 = vmatpush.bf16.msra.mxu0 %v6006
    %6378 = vmatmul.bf16.gmra.mxu0 %v5391
    %v6379 = vpop.f32.mrf.mxu0
    %v6380 = vadd.f32 %v5361, %v6379
    %v6381 = vpop.f32.mrf.mxu0
    %v6382 = vadd.f32 %v5361, %v6381
    %6383 = vdwg.mxu0
    %6384 = vmatpush.bf16.msra.mxu0 %v6051
    %6385 = vmatpush.bf16.msra.mxu0 %v6048
    %6386 = vmatpush.bf16.msra.mxu0 %v6045
    %6387 = vmatpush.bf16.msra.mxu0 %v6042
    %6388 = vmatpush.bf16.msra.mxu0 %v6039
    %6389 = vmatpush.bf16.msra.mxu0 %v6036
    %6390 = vmatpush.bf16.msra.mxu0 %v6033
    %6391 = vmatpush.bf16.msra.mxu0 %v6030
    %6392 = vmatmul.bf16.gmra.mxu0 %v5392
    %v6393 = vpop.f32.mrf.mxu0
    %v6394 = vadd.f32 %v6380, %v6393
    %v6395 = vpop.f32.mrf.mxu0
    %v6396 = vadd.f32 %v6382, %v6395
    %6397 = vdwg.mxu0
    %6398 = vmatpush.bf16.msra.mxu0 %v6075
    %6399 = vmatpush.bf16.msra.mxu0 %v6072
    %6400 = vmatpush.bf16.msra.mxu0 %v6069
    %6401 = vmatpush.bf16.msra.mxu0 %v6066
    %6402 = vmatpush.bf16.msra.mxu0 %v6063
    %6403 = vmatpush.bf16.msra.mxu0 %v6060
    %6404 = vmatpush.bf16.msra.mxu0 %v6057
    %6405 = vmatpush.bf16.msra.mxu0 %v6054
    %6406 = vmatmul.bf16.gmra.mxu0 %v5393
    %v6407 = vpop.f32.mrf.mxu0
    %v6408 = vadd.f32 %v6394, %v6407
    %v6409 = vpop.f32.mrf.mxu0
    %v6410 = vadd.f32 %v6396, %v6409
    %6411 = vdwg.mxu0
    %6412 = vmatpush.bf16.msra.mxu0 %v6099
    %6413 = vmatpush.bf16.msra.mxu0 %v6096
    %6414 = vmatpush.bf16.msra.mxu0 %v6093
    %6415 = vmatpush.bf16.msra.mxu0 %v6090
    %6416 = vmatpush.bf16.msra.mxu0 %v6087
    %6417 = vmatpush.bf16.msra.mxu0 %v6084
    %6418 = vmatpush.bf16.msra.mxu0 %v6081
    %6419 = vmatpush.bf16.msra.mxu0 %v6078
    %6420 = vmatmul.bf16.gmra.mxu0 %v5394
    %v6421 = vpop.f32.mrf.mxu0
    %v6422 = vadd.f32 %v6408, %v6421
    %v6423 = vpop.f32.mrf.mxu0
    %v6424 = vadd.f32 %v6410, %v6423
    %6425 = vdwg.mxu0
    %6426 = vmatpush.bf16.msra.mxu0 %v6123
    %6427 = vmatpush.bf16.msra.mxu0 %v6120
    %6428 = vmatpush.bf16.msra.mxu0 %v6117
    %6429 = vmatpush.bf16.msra.mxu0 %v6114
    %6430 = vmatpush.bf16.msra.mxu0 %v6111
    %6431 = vmatpush.bf16.msra.mxu0 %v6108
    %6432 = vmatpush.bf16.msra.mxu0 %v6105
    %6433 = vmatpush.bf16.msra.mxu0 %v6102
    %6434 = vmatmul.bf16.gmra.mxu0 %v5395
    %v6435 = vpop.f32.mrf.mxu0
    %v6436 = vadd.f32 %v6422, %v6435
    %v6437 = vpop.f32.mrf.mxu0
    %v6438 = vadd.f32 %v6424, %v6437
    %6439 = vdwg.mxu0
    %6440 = vmatpush.bf16.msra.mxu0 %v6147
    %6441 = vmatpush.bf16.msra.mxu0 %v6144
    %6442 = vmatpush.bf16.msra.mxu0 %v6141
    %6443 = vmatpush.bf16.msra.mxu0 %v6138
    %6444 = vmatpush.bf16.msra.mxu0 %v6135
    %6445 = vmatpush.bf16.msra.mxu0 %v6132
    %6446 = vmatpush.bf16.msra.mxu0 %v6129
    %6447 = vmatpush.bf16.msra.mxu0 %v6126
    %6448 = vmatmul.bf16.gmra.mxu0 %v5396
    %v6449 = vpop.f32.mrf.mxu0
    %v6450 = vadd.f32 %v6436, %v6449
    %v6451 = vpop.f32.mrf.mxu0
    %v6452 = vadd.f32 %v6438, %v6451
    %6453 = vdwg.mxu0
    %6454 = vmatpush.bf16.msra.mxu0 %v6171
    %6455 = vmatpush.bf16.msra.mxu0 %v6168
    %6456 = vmatpush.bf16.msra.mxu0 %v6165
    %6457 = vmatpush.bf16.msra.mxu0 %v6162
    %6458 = vmatpush.bf16.msra.mxu0 %v6159
    %6459 = vmatpush.bf16.msra.mxu0 %v6156
    %6460 = vmatpush.bf16.msra.mxu0 %v6153
    %6461 = vmatpush.bf16.msra.mxu0 %v6150
    %6462 = vmatmul.bf16.gmra.mxu0 %v5397
    %v6463 = vpop.f32.mrf.mxu0
    %v6464 = vadd.f32 %v6450, %v6463
    %v6465 = vpop.f32.mrf.mxu0
    %v6466 = vadd.f32 %v6452, %v6465
    %6467 = vdwg.mxu0
    %6468 = vmatpush.bf16.msra.mxu0 0
    %6469 = vmatpush.bf16.msra.mxu0 0
    %6470 = vmatpush.bf16.msra.mxu0 0
    %6471 = vmatpush.bf16.msra.mxu0 0
    %6472 = vmatpush.bf16.msra.mxu0 %v6183
    %6473 = vmatpush.bf16.msra.mxu0 %v6180
    %6474 = vmatpush.bf16.msra.mxu0 %v6177
    %6475 = vmatpush.bf16.msra.mxu0 %v6174
    %6476 = vmatmul.bf16.gmra.mxu0 %v6368
    %v6477 = vpop.f32.mrf.mxu0
    %v6478 = vadd.f32 %v6464, %v6477
    %v6479 = vpop.f32.mrf.mxu0
    %v6480 = vadd.f32 %v6466, %v6479
    %6481 = vdwg.mxu0
    %6482 = vmatpush.bf16.msra.mxu0 %v6028
    %6483 = vmatpush.bf16.msra.mxu0 %v6025
    %6484 = vmatpush.bf16.msra.mxu0 %v6022
    %6485 = vmatpush.bf16.msra.mxu0 %v6019
    %6486 = vmatpush.bf16.msra.mxu0 %v6016
    %6487 = vmatpush.bf16.msra.mxu0 %v6013
    %6488 = vmatpush.bf16.msra.mxu0 %v6010
    %6489 = vmatpush.bf16.msra.mxu0 %v6007
    %6490 = vmatmul.bf16.gmra.mxu0 %v5391
    %v6491 = vpop.f32.mrf.mxu0
    %v6492 = vadd.f32 %v5362, %v6491
    %v6493 = vpop.f32.mrf.mxu0
    %v6494 = vadd.f32 %v5362, %v6493
    %6495 = vdwg.mxu0
    %6496 = vmatpush.bf16.msra.mxu0 %v6052
    %6497 = vmatpush.bf16.msra.mxu0 %v6049
    %6498 = vmatpush.bf16.msra.mxu0 %v6046
    %6499 = vmatpush.bf16.msra.mxu0 %v6043
    %6500 = vmatpush.bf16.msra.mxu0 %v6040
    %6501 = vmatpush.bf16.msra.mxu0 %v6037
    %6502 = vmatpush.bf16.msra.mxu0 %v6034
    %6503 = vmatpush.bf16.msra.mxu0 %v6031
    %6504 = vmatmul.bf16.gmra.mxu0 %v5392
    %v6505 = vpop.f32.mrf.mxu0
    %v6506 = vadd.f32 %v6492, %v6505
    %v6507 = vpop.f32.mrf.mxu0
    %v6508 = vadd.f32 %v6494, %v6507
    %6509 = vdwg.mxu0
    %6510 = vmatpush.bf16.msra.mxu0 %v6076
    %6511 = vmatpush.bf16.msra.mxu0 %v6073
    %6512 = vmatpush.bf16.msra.mxu0 %v6070
    %6513 = vmatpush.bf16.msra.mxu0 %v6067
    %6514 = vmatpush.bf16.msra.mxu0 %v6064
    %6515 = vmatpush.bf16.msra.mxu0 %v6061
    %6516 = vmatpush.bf16.msra.mxu0 %v6058
    %6517 = vmatpush.bf16.msra.mxu0 %v6055
    %6518 = vmatmul.bf16.gmra.mxu0 %v5393
    %v6519 = vpop.f32.mrf.mxu0
    %v6520 = vadd.f32 %v6506, %v6519
    %v6521 = vpop.f32.mrf.mxu0
    %v6522 = vadd.f32 %v6508, %v6521
    %6523 = vdwg.mxu0
    %6524 = vmatpush.bf16.msra.mxu0 %v6100
    %6525 = vmatpush.bf16.msra.mxu0 %v6097
    %6526 = vmatpush.bf16.msra.mxu0 %v6094
    %6527 = vmatpush.bf16.msra.mxu0 %v6091
    %6528 = vmatpush.bf16.msra.mxu0 %v6088
    %6529 = vmatpush.bf16.msra.mxu0 %v6085
    %6530 = vmatpush.bf16.msra.mxu0 %v6082
    %6531 = vmatpush.bf16.msra.mxu0 %v6079
    %6532 = vmatmul.bf16.gmra.mxu0 %v5394
    %v6533 = vpop.f32.mrf.mxu0
    %v6534 = vadd.f32 %v6520, %v6533
    %v6535 = vpop.f32.mrf.mxu0
    %v6536 = vadd.f32 %v6522, %v6535
    %6537 = vdwg.mxu0
    %6538 = vmatpush.bf16.msra.mxu0 %v6124
    %6539 = vmatpush.bf16.msra.mxu0 %v6121
    %6540 = vmatpush.bf16.msra.mxu0 %v6118
    %6541 = vmatpush.bf16.msra.mxu0 %v6115
    %6542 = vmatpush.bf16.msra.mxu0 %v6112
    %6543 = vmatpush.bf16.msra.mxu0 %v6109
    %6544 = vmatpush.bf16.msra.mxu0 %v6106
    %6545 = vmatpush.bf16.msra.mxu0 %v6103
    %6546 = vmatmul.bf16.gmra.mxu0 %v5395
    %v6547 = vpop.f32.mrf.mxu0
    %v6548 = vadd.f32 %v6534, %v6547
    %v6549 = vpop.f32.mrf.mxu0
    %v6550 = vadd.f32 %v6536, %v6549
    %6551 = vdwg.mxu0
    %6552 = vmatpush.bf16.msra.mxu0 %v6148
    %6553 = vmatpush.bf16.msra.mxu0 %v6145
    %6554 = vmatpush.bf16.msra.mxu0 %v6142
    %6555 = vmatpush.bf16.msra.mxu0 %v6139
    %6556 = vmatpush.bf16.msra.mxu0 %v6136
    %6557 = vmatpush.bf16.msra.mxu0 %v6133
    %6558 = vmatpush.bf16.msra.mxu0 %v6130
    %6559 = vmatpush.bf16.msra.mxu0 %v6127
    %6560 = vmatmul.bf16.gmra.mxu0 %v5396
    %v6561 = vpop.f32.mrf.mxu0
    %v6562 = vadd.f32 %v6548, %v6561
    %v6563 = vpop.f32.mrf.mxu0
    %v6564 = vadd.f32 %v6550, %v6563
    %6565 = vdwg.mxu0
    %6566 = vmatpush.bf16.msra.mxu0 %v6172
    %6567 = vmatpush.bf16.msra.mxu0 %v6169
    %6568 = vmatpush.bf16.msra.mxu0 %v6166
    %6569 = vmatpush.bf16.msra.mxu0 %v6163
    %6570 = vmatpush.bf16.msra.mxu0 %v6160
    %6571 = vmatpush.bf16.msra.mxu0 %v6157
    %6572 = vmatpush.bf16.msra.mxu0 %v6154
    %6573 = vmatpush.bf16.msra.mxu0 %v6151
    %6574 = vmatmul.bf16.gmra.mxu0 %v5397
    %v6575 = vpop.f32.mrf.mxu0
    %v6576 = vadd.f32 %v6562, %v6575
    %v6577 = vpop.f32.mrf.mxu0
    %v6578 = vadd.f32 %v6564, %v6577
    %6579 = vdwg.mxu0
    %6580 = vmatpush.bf16.msra.mxu0 0
    %6581 = vmatpush.bf16.msra.mxu0 0
    %6582 = vmatpush.bf16.msra.mxu0 0
    %6583 = vmatpush.bf16.msra.mxu0 0
    %6584 = vmatpush.bf16.msra.mxu0 %v6184
    %6585 = vmatpush.bf16.msra.mxu0 %v6181
    %6586 = vmatpush.bf16.msra.mxu0 %v6178
    %6587 = vmatpush.bf16.msra.mxu0 %v6175
    %6588 = vmatmul.bf16.gmra.mxu0 %v6368
    %v6589 = vpop.f32.mrf.mxu0
    %v6590 = vadd.f32 %v6576, %v6589
    %v6591 = vpop.f32.mrf.mxu0
    %v6592 = vadd.f32 %v6578, %v6591
    %6593 = vdwg.mxu0
    %6594 = vmatpush.bf16.msra.mxu0 %v6029
    %6595 = vmatpush.bf16.msra.mxu0 %v6026
    %6596 = vmatpush.bf16.msra.mxu0 %v6023
    %6597 = vmatpush.bf16.msra.mxu0 %v6020
    %6598 = vmatpush.bf16.msra.mxu0 %v6017
    %6599 = vmatpush.bf16.msra.mxu0 %v6014
    %6600 = vmatpush.bf16.msra.mxu0 %v6011
    %6601 = vmatpush.bf16.msra.mxu0 %v6008
    %6602 = vmatmul.bf16.gmra.mxu0 %v5391
    %v6603 = vpop.f32.mrf.mxu0
    %v6604 = vadd.f32 %v5363, %v6603
    %v6605 = vpop.f32.mrf.mxu0
    %v6606 = vadd.f32 %v5363, %v6605
    %6607 = vdwg.mxu0
    %6608 = vmatpush.bf16.msra.mxu0 %v6053
    %6609 = vmatpush.bf16.msra.mxu0 %v6050
    %6610 = vmatpush.bf16.msra.mxu0 %v6047
    %6611 = vmatpush.bf16.msra.mxu0 %v6044
    %6612 = vmatpush.bf16.msra.mxu0 %v6041
    %6613 = vmatpush.bf16.msra.mxu0 %v6038
    %6614 = vmatpush.bf16.msra.mxu0 %v6035
    %6615 = vmatpush.bf16.msra.mxu0 %v6032
    %6616 = vmatmul.bf16.gmra.mxu0 %v5392
    %v6617 = vpop.f32.mrf.mxu0
    %v6618 = vadd.f32 %v6604, %v6617
    %v6619 = vpop.f32.mrf.mxu0
    %v6620 = vadd.f32 %v6606, %v6619
    %6621 = vdwg.mxu0
    %6622 = vmatpush.bf16.msra.mxu0 %v6077
    %6623 = vmatpush.bf16.msra.mxu0 %v6074
    %6624 = vmatpush.bf16.msra.mxu0 %v6071
    %6625 = vmatpush.bf16.msra.mxu0 %v6068
    %6626 = vmatpush.bf16.msra.mxu0 %v6065
    %6627 = vmatpush.bf16.msra.mxu0 %v6062
    %6628 = vmatpush.bf16.msra.mxu0 %v6059
    %6629 = vmatpush.bf16.msra.mxu0 %v6056
    %6630 = vmatmul.bf16.gmra.mxu0 %v5393
    %v6631 = vpop.f32.mrf.mxu0
    %v6632 = vadd.f32 %v6618, %v6631
    %v6633 = vpop.f32.mrf.mxu0
    %v6634 = vadd.f32 %v6620, %v6633
    %6635 = vdwg.mxu0
    %6636 = vmatpush.bf16.msra.mxu0 %v6101
    %6637 = vmatpush.bf16.msra.mxu0 %v6098
    %6638 = vmatpush.bf16.msra.mxu0 %v6095
    %6639 = vmatpush.bf16.msra.mxu0 %v6092
    %6640 = vmatpush.bf16.msra.mxu0 %v6089
    %6641 = vmatpush.bf16.msra.mxu0 %v6086
    %6642 = vmatpush.bf16.msra.mxu0 %v6083
    %6643 = vmatpush.bf16.msra.mxu0 %v6080
    %6644 = vmatmul.bf16.gmra.mxu0 %v5394
    %v6645 = vpop.f32.mrf.mxu0
    %v6646 = vadd.f32 %v6632, %v6645
    %v6647 = vpop.f32.mrf.mxu0
    %v6648 = vadd.f32 %v6634, %v6647
    %6649 = vdwg.mxu0
    %6650 = vmatpush.bf16.msra.mxu0 %v6125
    %6651 = vmatpush.bf16.msra.mxu0 %v6122
    %6652 = vmatpush.bf16.msra.mxu0 %v6119
    %6653 = vmatpush.bf16.msra.mxu0 %v6116
    %6654 = vmatpush.bf16.msra.mxu0 %v6113
    %6655 = vmatpush.bf16.msra.mxu0 %v6110
    %6656 = vmatpush.bf16.msra.mxu0 %v6107
    %6657 = vmatpush.bf16.msra.mxu0 %v6104
    %6658 = vmatmul.bf16.gmra.mxu0 %v5395
    %v6659 = vpop.f32.mrf.mxu0
    %v6660 = vadd.f32 %v6646, %v6659
    %v6661 = vpop.f32.mrf.mxu0
    %v6662 = vadd.f32 %v6648, %v6661
    %6663 = vdwg.mxu0
    %6664 = vmatpush.bf16.msra.mxu0 %v6149
    %6665 = vmatpush.bf16.msra.mxu0 %v6146
    %6666 = vmatpush.bf16.msra.mxu0 %v6143
    %6667 = vmatpush.bf16.msra.mxu0 %v6140
    %6668 = vmatpush.bf16.msra.mxu0 %v6137
    %6669 = vmatpush.bf16.msra.mxu0 %v6134
    %6670 = vmatpush.bf16.msra.mxu0 %v6131
    %6671 = vmatpush.bf16.msra.mxu0 %v6128
    %6672 = vmatmul.bf16.gmra.mxu0 %v5396
    %v6673 = vpop.f32.mrf.mxu0
    %v6674 = vadd.f32 %v6660, %v6673
    %v6675 = vpop.f32.mrf.mxu0
    %v6676 = vadd.f32 %v6662, %v6675
    %6677 = vdwg.mxu0
    %6678 = vmatpush.bf16.msra.mxu0 %v6173
    %6679 = vmatpush.bf16.msra.mxu0 %v6170
    %6680 = vmatpush.bf16.msra.mxu0 %v6167
    %6681 = vmatpush.bf16.msra.mxu0 %v6164
    %6682 = vmatpush.bf16.msra.mxu0 %v6161
    %6683 = vmatpush.bf16.msra.mxu0 %v6158
    %6684 = vmatpush.bf16.msra.mxu0 %v6155
    %6685 = vmatpush.bf16.msra.mxu0 %v6152
    %6686 = vmatmul.bf16.gmra.mxu0 %v5397
    %v6687 = vpop.f32.mrf.mxu0
    %v6688 = vadd.f32 %v6674, %v6687
    %v6689 = vpop.f32.mrf.mxu0
    %v6690 = vadd.f32 %v6676, %v6689
    %6691 = vdwg.mxu0
    %6692 = vmatpush.bf16.msra.mxu0 0
    %6693 = vmatpush.bf16.msra.mxu0 0
    %6694 = vmatpush.bf16.msra.mxu0 0
    %6695 = vmatpush.bf16.msra.mxu0 0
    %6696 = vmatpush.bf16.msra.mxu0 %v6185
    %6697 = vmatpush.bf16.msra.mxu0 %v6182
    %6698 = vmatpush.bf16.msra.mxu0 %v6179
    %6699 = vmatpush.bf16.msra.mxu0 %v6176
    %6700 = vmatmul.bf16.gmra.mxu0 %v6368
    %v6701 = vpop.f32.mrf.mxu0
    %v6702 = vadd.f32 %v6688, %v6701
    %v6703 = vpop.f32.mrf.mxu0
    %v6704 = vadd.f32 %v6690, %v6703
    %6705 = vdwg.mxu0
    %v6706 = vmax.f32 %v6478, 0.0
    %v6707 = vmax.f32 %v6590, 0.0
    %v6708 = vmax.f32 %v6702, 0.0
    %v6709 = vmax.f32 %v6480, 0.0
    %v6710 = vmax.f32 %v6592, 0.0
    %v6711 = vmax.f32 %v6704, 0.0
    %6714 = vrot.lane.b32.xlu0 %v6706, 64
    %v6715 = vpop.permute.xlu0 %6714
    %6716 = vrot.lane.b32.xlu0 %v6709, 64
    %v6717 = vpop.permute.xlu0 %6716
    %v6720 = vmax.f32 %v6706, %v6715
    %v6721 = vmax.f32 %v6709, %v6717
    %6722 = vst.msk [vmem:[#allocation9] sm:$0xff] %vm6366, %v6720
    %vm6723 = vcmask 519168
    %6724 = vst.msk [vmem:[#allocation9 + $0x10] sm:$0xf] %vm6723, %v6721
    %6727 = vrot.lane.b32.xlu0 %v6707, 64
    %v6728 = vpop.permute.xlu0 %6727
    %6729 = vrot.lane.b32.xlu0 %v6710, 64
    %v6730 = vpop.permute.xlu0 %6729
    %v6733 = vmax.f32 %v6707, %v6728
    %v6734 = vmax.f32 %v6710, %v6730
    %6737 = vrot.lane.b32.xlu0 %v6733, 64
    %v6738 = vpop.permute.xlu0 %6737
    %6739 = vrot.lane.b32.xlu0 %v6734, 64
    %v6740 = vpop.permute.xlu0 %6739
    %vm6743 = vcmask 1048064
    %6744 = vst.msk [vmem:[#allocation9] sm:$0xff] %vm6743, %v6738
    %6745 = vst.msk [vmem:[#allocation9 + $0x10] sm:$0xf] %vm5057, %v6740
    %6748 = vrot.lane.b32.xlu0 %v6708, 64
    %v6749 = vpop.permute.xlu0 %6748
    %6750 = vrot.lane.b32.xlu0 %v6711, 64
    %v6751 = vpop.permute.xlu0 %6750
    %v6754 = vmax.f32 %v6708, %v6749
    %v6755 = vmax.f32 %v6711, %v6751
    %6756 = vst.msk [vmem:[#allocation9 + $0x8] sm:$0xff] %vm6366, %v6754
    %6757 = vst.msk [vmem:[#allocation9 + $0x18] sm:$0xf] %vm6723, %v6755
    %v6758 = vld [vmem:[#allocation9] sm:$0x3]
    %v6759 = vld [vmem:[#allocation9 + $0x8] sm:$0x3]
    %v6760 = vld [vmem:[#allocation9] sm:$0xc]
    %v6761 = vld [vmem:[#allocation9 + $0x8] sm:$0xc]
    %v6764 = vrot.slane %v6760, 2
    %v6765 = vrot.slane %v6761, 2
    %v6768 = vmax.f32 %v6758, %v6764
    %v6769 = vmax.f32 %v6759, %v6765
    %v6770 = vpack.c.bf16 %v6769, %v6768
    %v6772 = vrot.slane %v6770, 3
    %v6775 = vsel %vm4971, %v6770, %v6772
    %vm6777 = vcmask 517121
    %vm6778 = vmor %vm6777, %vm4971
    %6779 = vst.msk [vmem:[#allocation10] sm:$0x3] %vm6778, %v6775
    %v6780 = vld [vmem:[#allocation9] sm:$0x30]
    %v6781 = vld [vmem:[#allocation9 + $0x8] sm:$0x30]
    %v6782 = vld [vmem:[#allocation9] sm:$0xc0]
    %v6783 = vld [vmem:[#allocation9 + $0x8] sm:$0xc0]
    %v6786 = vrot.slane %v6782, 2
    %v6787 = vrot.slane %v6783, 2
    %v6790 = vmax.f32 %v6780, %v6786
    %v6791 = vmax.f32 %v6781, %v6787
    %v6792 = vpack.c.bf16 %v6791, %v6790
    %6794 = vst [vmem:[#allocation1] sm:$0xff] %v6792
    %s6795 = scalar_lea.vmem [#allocation1], 2
    %v6796 = vld [vmem:[%s6795] ss:$4 sm:$0xff]
    %6798 = vrot.lane.b32.xlu0 %v6796, 64
    %v6799 = vpop.permute.xlu0 %6798
    %v6800 = vrot.slane %v6799, 7
    %v6801 = vsel %vm5052, %v6800, %v6799
    %vm6803 = vcmask 1040896
    %vm6804 = vmor %vm4992, %vm6803
    %6805 = vst.msk [vmem:[#allocation10 + $0x1] sm:$0x3] %vm6804, %v6801
    %v6806 = vld [vmem:[#allocation9 + $0x10] sm:$0x3]
    %v6807 = vld [vmem:[#allocation9 + $0x18] sm:$0x3]
    %v6808 = vld [vmem:[#allocation9 + $0x10] sm:$0xc]
    %v6809 = vld [vmem:[#allocation9 + $0x18] sm:$0xc]
    %v6812 = vrot.slane %v6808, 2
    %v6813 = vrot.slane %v6809, 2
    %v6816 = vmax.f32 %v6806, %v6812
    %v6817 = vmax.f32 %v6807, %v6813
    %v6818 = vpack.c.bf16 %v6817, %v6816
    %v6820 = vrot.slane %v6818, 3
    %v6823 = vsel %vm4971, %v6818, %v6820
    %6825 = vst.msk [vmem:[#allocation10 + $0x3] sm:$0x3] %vm6778, %v6823
    %s6826 = smul.u32 4, 72
    %s6827 = smul.u32 %s6826, 8
    %s6828 = sshll.u32 %s6827, 4
    %6829 = dma.done %s113, %s6828
    %v6830 = vld [vmem:[#allocation10] sm:$0x1f]
    %v6831 = vld [vmem:[#allocation3] sm:$0xff]
    %v6832 = vld [vmem:[#allocation3 + $0x8] sm:$0xff]
    %v6833 = vld [vmem:[#allocation3 + $0x10] sm:$0xff]
    %v6834 = vld [vmem:[#allocation3 + $0x18] sm:$0xff]
    %v6835 = vld [vmem:[#allocation3 + $0x20] sm:$0xff]
    %v6836 = vld [vmem:[#allocation3 + $0x28] sm:$0xff]
    %v6837 = vld [vmem:[#allocation3 + $0x30] sm:$0xff]
    %v6838 = vld [vmem:[#allocation3 + $0x38] sm:$0xff]
    %v6839 = vld [vmem:[#allocation3 + $0x40] sm:$0xff]
    %v6840 = vld [vmem:[#allocation3 + $0x48] sm:$0xff]
    %v6841 = vld [vmem:[#allocation3 + $0x50] sm:$0xff]
    %v6842 = vld [vmem:[#allocation3 + $0x58] sm:$0xff]
    %v6843 = vld [vmem:[#allocation3 + $0x60] sm:$0xff]
    %v6844 = vld [vmem:[#allocation3 + $0x68] sm:$0xff]
    %v6845 = vld [vmem:[#allocation3 + $0x70] sm:$0xff]
    %v6846 = vld [vmem:[#allocation3 + $0x78] sm:$0xff]
    %v6847 = vld [vmem:[#allocation3 + $0x80] sm:$0xff]
    %v6848 = vld [vmem:[#allocation3 + $0x88] sm:$0xff]
    %v6849 = vld [vmem:[#allocation3 + $0x90] sm:$0xff]
    %v6850 = vld [vmem:[#allocation3 + $0x98] sm:$0xff]
    %v6851 = vld [vmem:[#allocation3 + $0xa0] sm:$0xff]
    %v6852 = vld [vmem:[#allocation3 + $0xa8] sm:$0xff]
    %v6853 = vld [vmem:[#allocation3 + $0xb0] sm:$0xff]
    %v6854 = vld [vmem:[#allocation3 + $0xb8] sm:$0xff]
    %v6855 = vld [vmem:[#allocation3 + $0xc0] sm:$0xff]
    %v6856 = vld [vmem:[#allocation3 + $0xc8] sm:$0xff]
    %v6857 = vld [vmem:[#allocation3 + $0xd0] sm:$0xff]
    %v6858 = vld [vmem:[#allocation3 + $0xd8] sm:$0xff]
    %v6859 = vld [vmem:[#allocation3 + $0xe0] sm:$0xff]
    %v6860 = vld [vmem:[#allocation3 + $0xe8] sm:$0xff]
    %v6861 = vld [vmem:[#allocation3 + $0xf0] sm:$0xff]
    %v6862 = vld [vmem:[#allocation3 + $0xf8] sm:$0xff]
    %v6863 = vld [vmem:[#allocation3 + $0x100] sm:$0xff]
    %v6864 = vld [vmem:[#allocation3 + $0x108] sm:$0xff]
    %v6865 = vld [vmem:[#allocation3 + $0x110] sm:$0xff]
    %v6866 = vld [vmem:[#allocation3 + $0x118] sm:$0xff]
    %v6867 = vld [vmem:[#allocation3 + $0x120] sm:$0xff]
    %v6868 = vld [vmem:[#allocation3 + $0x128] sm:$0xff]
    %v6869 = vld [vmem:[#allocation3 + $0x130] sm:$0xff]
    %v6870 = vld [vmem:[#allocation3 + $0x138] sm:$0xff]
    %v6871 = vld [vmem:[#allocation3 + $0x140] sm:$0xff]
    %v6872 = vld [vmem:[#allocation3 + $0x148] sm:$0xff]
    %v6873 = vld [vmem:[#allocation3 + $0x150] sm:$0xff]
    %v6874 = vld [vmem:[#allocation3 + $0x158] sm:$0xff]
    %v6875 = vld [vmem:[#allocation3 + $0x160] sm:$0xff]
    %v6876 = vld [vmem:[#allocation3 + $0x168] sm:$0xff]
    %v6877 = vld [vmem:[#allocation3 + $0x170] sm:$0xff]
    %v6878 = vld [vmem:[#allocation3 + $0x178] sm:$0xff]
    %v6879 = vld [vmem:[#allocation3 + $0x180] sm:$0xff]
    %v6880 = vld [vmem:[#allocation3 + $0x188] sm:$0xff]
    %v6881 = vld [vmem:[#allocation3 + $0x190] sm:$0xff]
    %v6882 = vld [vmem:[#allocation3 + $0x198] sm:$0xff]
    %v6883 = vld [vmem:[#allocation3 + $0x1a0] sm:$0xff]
    %v6884 = vld [vmem:[#allocation3 + $0x1a8] sm:$0xff]
    %v6885 = vld [vmem:[#allocation3 + $0x1b0] sm:$0xff]
    %v6886 = vld [vmem:[#allocation3 + $0x1b8] sm:$0xff]
    %v6887 = vld [vmem:[#allocation3 + $0x1c0] sm:$0xff]
    %v6888 = vld [vmem:[#allocation3 + $0x1c8] sm:$0xff]
    %v6889 = vld [vmem:[#allocation3 + $0x1d0] sm:$0xff]
    %v6890 = vld [vmem:[#allocation3 + $0x1d8] sm:$0xff]
    %v6891 = vld [vmem:[#allocation3 + $0x1e0] sm:$0xff]
    %v6892 = vld [vmem:[#allocation3 + $0x1e8] sm:$0xff]
    %v6893 = vld [vmem:[#allocation3 + $0x1f0] sm:$0xff]
    %v6894 = vld [vmem:[#allocation3 + $0x1f8] sm:$0xff]
    %v6895 = vld [vmem:[#allocation3 + $0x200] sm:$0xff]
    %v6896 = vld [vmem:[#allocation3 + $0x208] sm:$0xff]
    %v6897 = vld [vmem:[#allocation3 + $0x210] sm:$0xff]
    %v6898 = vld [vmem:[#allocation3 + $0x218] sm:$0xff]
    %v6899 = vld [vmem:[#allocation3 + $0x220] sm:$0xff]
    %v6900 = vld [vmem:[#allocation3 + $0x228] sm:$0xff]
    %v6901 = vld [vmem:[#allocation3 + $0x230] sm:$0xff]
    %v6902 = vld [vmem:[#allocation3 + $0x238] sm:$0xff]
    %v6903 = vld [vmem:[#allocation3 + $0x240] sm:$0xff]
    %v6904 = vld [vmem:[#allocation3 + $0x248] sm:$0xff]
    %v6905 = vld [vmem:[#allocation3 + $0x250] sm:$0xff]
    %v6906 = vld [vmem:[#allocation3 + $0x258] sm:$0xff]
    %v6907 = vld [vmem:[#allocation3 + $0x260] sm:$0xff]
    %v6908 = vld [vmem:[#allocation3 + $0x268] sm:$0xff]
    %v6909 = vld [vmem:[#allocation3 + $0x270] sm:$0xff]
    %v6910 = vld [vmem:[#allocation3 + $0x278] sm:$0xff]
    %v6911 = vld [vmem:[#allocation3 + $0x280] sm:$0xff]
    %v6912 = vld [vmem:[#allocation3 + $0x288] sm:$0xff]
    %v6913 = vld [vmem:[#allocation3 + $0x290] sm:$0xff]
    %v6914 = vld [vmem:[#allocation3 + $0x298] sm:$0xff]
    %v6915 = vld [vmem:[#allocation3 + $0x2a0] sm:$0xff]
    %v6916 = vld [vmem:[#allocation3 + $0x2a8] sm:$0xff]
    %v6917 = vld [vmem:[#allocation3 + $0x2b0] sm:$0xff]
    %v6918 = vld [vmem:[#allocation3 + $0x2b8] sm:$0xff]
    %v6919 = vld [vmem:[#allocation3 + $0x2c0] sm:$0xff]
    %v6920 = vld [vmem:[#allocation3 + $0x2c8] sm:$0xff]
    %v6921 = vld [vmem:[#allocation3 + $0x2d0] sm:$0xff]
    %v6922 = vld [vmem:[#allocation3 + $0x2d8] sm:$0xff]
    %v6923 = vld [vmem:[#allocation3 + $0x2e0] sm:$0xff]
    %v6924 = vld [vmem:[#allocation3 + $0x2e8] sm:$0xff]
    %v6925 = vld [vmem:[#allocation3 + $0x2f0] sm:$0xff]
    %v6926 = vld [vmem:[#allocation3 + $0x2f8] sm:$0xff]
    %v6927 = vld [vmem:[#allocation3 + $0x300] sm:$0xff]
    %v6928 = vld [vmem:[#allocation3 + $0x308] sm:$0xff]
    %v6929 = vld [vmem:[#allocation3 + $0x310] sm:$0xff]
    %v6930 = vld [vmem:[#allocation3 + $0x318] sm:$0xff]
    %v6931 = vld [vmem:[#allocation3 + $0x320] sm:$0xff]
    %v6932 = vld [vmem:[#allocation3 + $0x328] sm:$0xff]
    %v6933 = vld [vmem:[#allocation3 + $0x330] sm:$0xff]
    %v6934 = vld [vmem:[#allocation3 + $0x338] sm:$0xff]
    %v6935 = vld [vmem:[#allocation3 + $0x340] sm:$0xff]
    %v6936 = vld [vmem:[#allocation3 + $0x348] sm:$0xff]
    %v6937 = vld [vmem:[#allocation3 + $0x350] sm:$0xff]
    %v6938 = vld [vmem:[#allocation3 + $0x358] sm:$0xff]
    %v6939 = vld [vmem:[#allocation3 + $0x360] sm:$0xff]
    %v6940 = vld [vmem:[#allocation3 + $0x368] sm:$0xff]
    %v6941 = vld [vmem:[#allocation3 + $0x370] sm:$0xff]
    %v6942 = vld [vmem:[#allocation3 + $0x378] sm:$0xff]
    %v6943 = vld [vmem:[#allocation3 + $0x380] sm:$0xff]
    %v6944 = vld [vmem:[#allocation3 + $0x388] sm:$0xff]
    %v6945 = vld [vmem:[#allocation3 + $0x390] sm:$0xff]
    %v6946 = vld [vmem:[#allocation3 + $0x398] sm:$0xff]
    %v6947 = vld [vmem:[#allocation3 + $0x3a0] sm:$0xff]
    %v6948 = vld [vmem:[#allocation3 + $0x3a8] sm:$0xff]
    %v6949 = vld [vmem:[#allocation3 + $0x3b0] sm:$0xff]
    %v6950 = vld [vmem:[#allocation3 + $0x3b8] sm:$0xff]
    %v6951 = vld [vmem:[#allocation3 + $0x3c0] sm:$0xff]
    %v6952 = vld [vmem:[#allocation3 + $0x3c8] sm:$0xff]
    %v6953 = vld [vmem:[#allocation3 + $0x3d0] sm:$0xff]
    %v6954 = vld [vmem:[#allocation3 + $0x3d8] sm:$0xff]
    %v6955 = vld [vmem:[#allocation3 + $0x3e0] sm:$0xff]
    %v6956 = vld [vmem:[#allocation3 + $0x3e8] sm:$0xff]
    %v6957 = vld [vmem:[#allocation3 + $0x3f0] sm:$0xff]
    %v6958 = vld [vmem:[#allocation3 + $0x3f8] sm:$0xff]
    %v6959 = vld [vmem:[#allocation3 + $0x400] sm:$0xff]
    %v6960 = vld [vmem:[#allocation3 + $0x408] sm:$0xff]
    %v6961 = vld [vmem:[#allocation3 + $0x410] sm:$0xff]
    %v6962 = vld [vmem:[#allocation3 + $0x418] sm:$0xff]
    %v6963 = vld [vmem:[#allocation3 + $0x420] sm:$0xff]
    %v6964 = vld [vmem:[#allocation3 + $0x428] sm:$0xff]
    %v6965 = vld [vmem:[#allocation3 + $0x430] sm:$0xff]
    %v6966 = vld [vmem:[#allocation3 + $0x438] sm:$0xff]
    %v6967 = vld [vmem:[#allocation3 + $0x440] sm:$0xff]
    %v6968 = vld [vmem:[#allocation3 + $0x448] sm:$0xff]
    %v6969 = vld [vmem:[#allocation3 + $0x450] sm:$0xff]
    %v6970 = vld [vmem:[#allocation3 + $0x458] sm:$0xff]
    %v6971 = vld [vmem:[#allocation3 + $0x460] sm:$0xff]
    %v6972 = vld [vmem:[#allocation3 + $0x468] sm:$0xff]
    %v6973 = vld [vmem:[#allocation3 + $0x470] sm:$0xff]
    %v6974 = vld [vmem:[#allocation3 + $0x478] sm:$0xff]
    %v6975 = vld [vmem:[#allocation3 + $0x480] sm:$0xff]
    %v6976 = vld [vmem:[#allocation3 + $0x488] sm:$0xff]
    %v6977 = vld [vmem:[#allocation3 + $0x490] sm:$0xff]
    %v6978 = vld [vmem:[#allocation3 + $0x498] sm:$0xff]
    %v6979 = vld [vmem:[#allocation3 + $0x4a0] sm:$0xff]
    %v6980 = vld [vmem:[#allocation3 + $0x4a8] sm:$0xff]
    %v6981 = vld [vmem:[#allocation3 + $0x4b0] sm:$0xff]
    %v6982 = vld [vmem:[#allocation3 + $0x4b8] sm:$0xff]
    %v6983 = vld [vmem:[#allocation3 + $0x4c0] sm:$0xff]
    %v6984 = vld [vmem:[#allocation3 + $0x4c8] sm:$0xff]
    %v6985 = vld [vmem:[#allocation3 + $0x4d0] sm:$0xff]
    %v6986 = vld [vmem:[#allocation3 + $0x4d8] sm:$0xff]
    %v6987 = vld [vmem:[#allocation3 + $0x4e0] sm:$0xff]
    %v6988 = vld [vmem:[#allocation3 + $0x4e8] sm:$0xff]
    %v6989 = vld [vmem:[#allocation3 + $0x4f0] sm:$0xff]
    %v6990 = vld [vmem:[#allocation3 + $0x4f8] sm:$0xff]
    %v6991 = vld [vmem:[#allocation3 + $0x500] sm:$0xff]
    %v6992 = vld [vmem:[#allocation3 + $0x508] sm:$0xff]
    %v6993 = vld [vmem:[#allocation3 + $0x510] sm:$0xff]
    %v6994 = vld [vmem:[#allocation3 + $0x518] sm:$0xff]
    %v6995 = vld [vmem:[#allocation3 + $0x520] sm:$0xff]
    %v6996 = vld [vmem:[#allocation3 + $0x528] sm:$0xff]
    %v6997 = vld [vmem:[#allocation3 + $0x530] sm:$0xff]
    %v6998 = vld [vmem:[#allocation3 + $0x538] sm:$0xff]
    %v6999 = vld [vmem:[#allocation3 + $0x540] sm:$0xff]
    %v7000 = vld [vmem:[#allocation3 + $0x548] sm:$0xff]
    %v7001 = vld [vmem:[#allocation3 + $0x550] sm:$0xff]
    %v7002 = vld [vmem:[#allocation3 + $0x558] sm:$0xff]
    %v7003 = vld [vmem:[#allocation3 + $0x560] sm:$0xff]
    %v7004 = vld [vmem:[#allocation3 + $0x568] sm:$0xff]
    %v7005 = vld [vmem:[#allocation3 + $0x570] sm:$0xff]
    %v7006 = vld [vmem:[#allocation3 + $0x578] sm:$0xff]
    %v7007 = vld [vmem:[#allocation3 + $0x580] sm:$0xff]
    %v7008 = vld [vmem:[#allocation3 + $0x588] sm:$0xff]
    %v7009 = vld [vmem:[#allocation3 + $0x590] sm:$0xff]
    %v7010 = vld [vmem:[#allocation3 + $0x598] sm:$0xff]
    %v7011 = vld [vmem:[#allocation3 + $0x5a0] sm:$0xff]
    %v7012 = vld [vmem:[#allocation3 + $0x5a8] sm:$0xff]
    %v7013 = vld [vmem:[#allocation3 + $0x5b0] sm:$0xff]
    %v7014 = vld [vmem:[#allocation3 + $0x5b8] sm:$0xff]
    %v7015 = vld [vmem:[#allocation3 + $0x5c0] sm:$0xff]
    %v7016 = vld [vmem:[#allocation3 + $0x5c8] sm:$0xff]
    %v7017 = vld [vmem:[#allocation3 + $0x5d0] sm:$0xff]
    %v7018 = vld [vmem:[#allocation3 + $0x5d8] sm:$0xff]
    %v7019 = vld [vmem:[#allocation3 + $0x5e0] sm:$0xff]
    %v7020 = vld [vmem:[#allocation3 + $0x5e8] sm:$0xff]
    %v7021 = vld [vmem:[#allocation3 + $0x5f0] sm:$0xff]
    %v7022 = vld [vmem:[#allocation3 + $0x5f8] sm:$0xff]
    %v7023 = vld [vmem:[#allocation3 + $0x600] sm:$0xff]
    %v7024 = vld [vmem:[#allocation3 + $0x608] sm:$0xff]
    %v7025 = vld [vmem:[#allocation3 + $0x610] sm:$0xff]
    %v7026 = vld [vmem:[#allocation3 + $0x618] sm:$0xff]
    %v7027 = vld [vmem:[#allocation3 + $0x620] sm:$0xff]
    %v7028 = vld [vmem:[#allocation3 + $0x628] sm:$0xff]
    %v7029 = vld [vmem:[#allocation3 + $0x630] sm:$0xff]
    %v7030 = vld [vmem:[#allocation3 + $0x638] sm:$0xff]
    %v7031 = vld [vmem:[#allocation3 + $0x640] sm:$0xff]
    %v7032 = vld [vmem:[#allocation3 + $0x648] sm:$0xff]
    %v7033 = vld [vmem:[#allocation3 + $0x650] sm:$0xff]
    %v7034 = vld [vmem:[#allocation3 + $0x658] sm:$0xff]
    %v7035 = vld [vmem:[#allocation3 + $0x660] sm:$0xff]
    %v7036 = vld [vmem:[#allocation3 + $0x668] sm:$0xff]
    %v7037 = vld [vmem:[#allocation3 + $0x670] sm:$0xff]
    %v7038 = vld [vmem:[#allocation3 + $0x678] sm:$0xff]
    %v7039 = vld [vmem:[#allocation3 + $0x680] sm:$0xff]
    %v7040 = vld [vmem:[#allocation3 + $0x688] sm:$0xff]
    %v7041 = vld [vmem:[#allocation3 + $0x690] sm:$0xff]
    %v7042 = vld [vmem:[#allocation3 + $0x698] sm:$0xff]
    %v7043 = vld [vmem:[#allocation3 + $0x6a0] sm:$0xff]
    %v7044 = vld [vmem:[#allocation3 + $0x6a8] sm:$0xff]
    %v7045 = vld [vmem:[#allocation3 + $0x6b0] sm:$0xff]
    %v7046 = vld [vmem:[#allocation3 + $0x6b8] sm:$0xff]
    %v7047 = vld [vmem:[#allocation3 + $0x6c0] sm:$0xff]
    %v7048 = vld [vmem:[#allocation3 + $0x6c8] sm:$0xff]
    %v7049 = vld [vmem:[#allocation3 + $0x6d0] sm:$0xff]
    %v7050 = vld [vmem:[#allocation3 + $0x6d8] sm:$0xff]
    %v7051 = vld [vmem:[#allocation3 + $0x6e0] sm:$0xff]
    %v7052 = vld [vmem:[#allocation3 + $0x6e8] sm:$0xff]
    %v7053 = vld [vmem:[#allocation3 + $0x6f0] sm:$0xff]
    %v7054 = vld [vmem:[#allocation3 + $0x6f8] sm:$0xff]
    %v7055 = vld [vmem:[#allocation3 + $0x700] sm:$0xff]
    %v7056 = vld [vmem:[#allocation3 + $0x708] sm:$0xff]
    %v7057 = vld [vmem:[#allocation3 + $0x710] sm:$0xff]
    %v7058 = vld [vmem:[#allocation3 + $0x718] sm:$0xff]
    %v7059 = vld [vmem:[#allocation3 + $0x720] sm:$0xff]
    %v7060 = vld [vmem:[#allocation3 + $0x728] sm:$0xff]
    %v7061 = vld [vmem:[#allocation3 + $0x730] sm:$0xff]
    %v7062 = vld [vmem:[#allocation3 + $0x738] sm:$0xff]
    %v7063 = vld [vmem:[#allocation3 + $0x740] sm:$0xff]
    %v7064 = vld [vmem:[#allocation3 + $0x748] sm:$0xff]
    %v7065 = vld [vmem:[#allocation3 + $0x750] sm:$0xff]
    %v7066 = vld [vmem:[#allocation3 + $0x758] sm:$0xff]
    %v7067 = vld [vmem:[#allocation3 + $0x760] sm:$0xff]
    %v7068 = vld [vmem:[#allocation3 + $0x768] sm:$0xff]
    %v7069 = vld [vmem:[#allocation3 + $0x770] sm:$0xff]
    %v7070 = vld [vmem:[#allocation3 + $0x778] sm:$0xff]
    %v7071 = vld [vmem:[#allocation3 + $0x780] sm:$0xff]
    %v7072 = vld [vmem:[#allocation3 + $0x788] sm:$0xff]
    %v7073 = vld [vmem:[#allocation3 + $0x790] sm:$0xff]
    %v7074 = vld [vmem:[#allocation3 + $0x798] sm:$0xff]
    %v7075 = vld [vmem:[#allocation3 + $0x7a0] sm:$0xff]
    %v7076 = vld [vmem:[#allocation3 + $0x7a8] sm:$0xff]
    %v7077 = vld [vmem:[#allocation3 + $0x7b0] sm:$0xff]
    %v7078 = vld [vmem:[#allocation3 + $0x7b8] sm:$0xff]
    %v7079 = vld [vmem:[#allocation3 + $0x7c0] sm:$0xff]
    %v7080 = vld [vmem:[#allocation3 + $0x7c8] sm:$0xff]
    %v7081 = vld [vmem:[#allocation3 + $0x7d0] sm:$0xff]
    %v7082 = vld [vmem:[#allocation3 + $0x7d8] sm:$0xff]
    %v7083 = vld [vmem:[#allocation3 + $0x7e0] sm:$0xff]
    %v7084 = vld [vmem:[#allocation3 + $0x7e8] sm:$0xff]
    %v7085 = vld [vmem:[#allocation3 + $0x7f0] sm:$0xff]
    %v7086 = vld [vmem:[#allocation3 + $0x7f8] sm:$0xff]
    %v7087 = vld [vmem:[#allocation3 + $0x800] sm:$0xff]
    %v7088 = vld [vmem:[#allocation3 + $0x808] sm:$0xff]
    %v7089 = vld [vmem:[#allocation3 + $0x810] sm:$0xff]
    %v7090 = vld [vmem:[#allocation3 + $0x818] sm:$0xff]
    %v7091 = vld [vmem:[#allocation3 + $0x820] sm:$0xff]
    %v7092 = vld [vmem:[#allocation3 + $0x828] sm:$0xff]
    %v7093 = vld [vmem:[#allocation3 + $0x830] sm:$0xff]
    %v7094 = vld [vmem:[#allocation3 + $0x838] sm:$0xff]
    %v7095 = vld [vmem:[#allocation3 + $0x840] sm:$0xff]
    %v7096 = vld [vmem:[#allocation3 + $0x848] sm:$0xff]
    %v7097 = vld [vmem:[#allocation3 + $0x850] sm:$0xff]
    %v7098 = vld [vmem:[#allocation3 + $0x858] sm:$0xff]
    %v7099 = vld [vmem:[#allocation3 + $0x860] sm:$0xff]
    %v7100 = vld [vmem:[#allocation3 + $0x868] sm:$0xff]
    %v7101 = vld [vmem:[#allocation3 + $0x870] sm:$0xff]
    %v7102 = vld [vmem:[#allocation3 + $0x878] sm:$0xff]
    %v7103 = vld [vmem:[#allocation3 + $0x880] sm:$0xff]
    %v7104 = vld [vmem:[#allocation3 + $0x888] sm:$0xff]
    %v7105 = vld [vmem:[#allocation3 + $0x890] sm:$0xff]
    %v7106 = vld [vmem:[#allocation3 + $0x898] sm:$0xff]
    %v7107 = vld [vmem:[#allocation3 + $0x8a0] sm:$0xff]
    %v7108 = vld [vmem:[#allocation3 + $0x8a8] sm:$0xff]
    %v7109 = vld [vmem:[#allocation3 + $0x8b0] sm:$0xff]
    %v7110 = vld [vmem:[#allocation3 + $0x8b8] sm:$0xff]
    %v7111 = vld [vmem:[#allocation3 + $0x8c0] sm:$0xff]
    %v7112 = vld [vmem:[#allocation3 + $0x8c8] sm:$0xff]
    %v7113 = vld [vmem:[#allocation3 + $0x8d0] sm:$0xff]
    %v7114 = vld [vmem:[#allocation3 + $0x8d8] sm:$0xff]
    %v7115 = vld [vmem:[#allocation3 + $0x8e0] sm:$0xff]
    %v7116 = vld [vmem:[#allocation3 + $0x8e8] sm:$0xff]
    %v7117 = vld [vmem:[#allocation3 + $0x8f0] sm:$0xff]
    %v7118 = vld [vmem:[#allocation3 + $0x8f8] sm:$0xff]
    %v7119 = vld [vmem:[#allocation17] sm:$0xff]
    %v7121 = vperm.slane %v7119, 0
    %v7122 = vperm.slane %v7119, 1
    %v7123 = vperm.slane %v7119, 2
    %v7124 = vperm.slane %v7119, 3
    %v7125 = vperm.slane %v7119, 4
    %v7126 = vperm.slane %v7119, 5
    %v7127 = vperm.slane %v7119, 6
    %v7128 = vperm.slane %v7119, 7
    %7138 = vst [vmem:[#allocation1] ss:$9 sm:$0xff] %v6830
    %v7139 = vld [vmem:[#allocation1] sm:$0xff]
    %v7140 = vld [vmem:[#allocation1 + $0x9] sm:$0xff]
    %v7141 = vld [vmem:[#allocation1 + $0x12] sm:$0xff]
    %v7142 = vld [vmem:[#allocation1 + $0x1b] sm:$0xff]
    %v7143 = vld [vmem:[#allocation1 + $0x24] sm:$0xff]
    %v7436 = vunpack.c.l.b16 %v6831
    %v7437 = vunpack.c.h.b16 %v6831
    %v7438 = vunpack.c.l.b16 %v6832
    %v7439 = vunpack.c.h.b16 %v6832
    %v7440 = vunpack.c.l.b16 %v6833
    %v7441 = vunpack.c.h.b16 %v6833
    %v7442 = vunpack.c.l.b16 %v6834
    %v7443 = vunpack.c.h.b16 %v6834
    %v7444 = vunpack.c.l.b16 %v6835
    %v7445 = vunpack.c.h.b16 %v6835
    %v7446 = vunpack.c.l.b16 %v6836
    %v7447 = vunpack.c.h.b16 %v6836
    %v7448 = vunpack.c.l.b16 %v6837
    %v7449 = vunpack.c.h.b16 %v6837
    %v7450 = vunpack.c.l.b16 %v6838
    %v7451 = vunpack.c.h.b16 %v6838
    %v7452 = vunpack.c.l.b16 %v6839
    %v7453 = vunpack.c.h.b16 %v6839
    %v7454 = vunpack.c.l.b16 %v6840
    %v7455 = vunpack.c.h.b16 %v6840
    %v7456 = vunpack.c.l.b16 %v6841
    %v7457 = vunpack.c.h.b16 %v6841
    %v7458 = vunpack.c.l.b16 %v6842
    %v7459 = vunpack.c.h.b16 %v6842
    %v7460 = vunpack.c.l.b16 %v6843
    %v7461 = vunpack.c.h.b16 %v6843
    %v7462 = vunpack.c.l.b16 %v6844
    %v7463 = vunpack.c.h.b16 %v6844
    %v7464 = vunpack.c.l.b16 %v6845
    %v7465 = vunpack.c.h.b16 %v6845
    %v7466 = vunpack.c.l.b16 %v6846
    %v7467 = vunpack.c.h.b16 %v6846
    %v7468 = vunpack.c.l.b16 %v6847
    %v7469 = vunpack.c.h.b16 %v6847
    %v7470 = vunpack.c.l.b16 %v6848
    %v7471 = vunpack.c.h.b16 %v6848
    %v7472 = vunpack.c.l.b16 %v6849
    %v7473 = vunpack.c.h.b16 %v6849
    %v7474 = vunpack.c.l.b16 %v6850
    %v7475 = vunpack.c.h.b16 %v6850
    %v7476 = vunpack.c.l.b16 %v6851
    %v7477 = vunpack.c.h.b16 %v6851
    %v7478 = vunpack.c.l.b16 %v6852
    %v7479 = vunpack.c.h.b16 %v6852
    %v7480 = vunpack.c.l.b16 %v6853
    %v7481 = vunpack.c.h.b16 %v6853
    %v7482 = vunpack.c.l.b16 %v6854
    %v7483 = vunpack.c.h.b16 %v6854
    %v7484 = vunpack.c.l.b16 %v6855
    %v7485 = vunpack.c.h.b16 %v6855
    %v7486 = vunpack.c.l.b16 %v6856
    %v7487 = vunpack.c.h.b16 %v6856
    %v7488 = vunpack.c.l.b16 %v6857
    %v7489 = vunpack.c.h.b16 %v6857
    %v7490 = vunpack.c.l.b16 %v6858
    %v7491 = vunpack.c.h.b16 %v6858
    %v7492 = vunpack.c.l.b16 %v6859
    %v7493 = vunpack.c.h.b16 %v6859
    %v7494 = vunpack.c.l.b16 %v6860
    %v7495 = vunpack.c.h.b16 %v6860
    %v7496 = vunpack.c.l.b16 %v6861
    %v7497 = vunpack.c.h.b16 %v6861
    %v7498 = vunpack.c.l.b16 %v6862
    %v7499 = vunpack.c.h.b16 %v6862
    %v7500 = vunpack.c.l.b16 %v6863
    %v7501 = vunpack.c.h.b16 %v6863
    %v7502 = vunpack.c.l.b16 %v6864
    %v7503 = vunpack.c.h.b16 %v6864
    %v7504 = vunpack.c.l.b16 %v6865
    %v7505 = vunpack.c.h.b16 %v6865
    %v7506 = vunpack.c.l.b16 %v6866
    %v7507 = vunpack.c.h.b16 %v6866
    %v7508 = vunpack.c.l.b16 %v6867
    %v7509 = vunpack.c.h.b16 %v6867
    %v7510 = vunpack.c.l.b16 %v6868
    %v7511 = vunpack.c.h.b16 %v6868
    %v7512 = vunpack.c.l.b16 %v6869
    %v7513 = vunpack.c.h.b16 %v6869
    %v7514 = vunpack.c.l.b16 %v6870
    %v7515 = vunpack.c.h.b16 %v6870
    %v7516 = vunpack.c.l.b16 %v6871
    %v7517 = vunpack.c.h.b16 %v6871
    %v7518 = vunpack.c.l.b16 %v6872
    %v7519 = vunpack.c.h.b16 %v6872
    %v7520 = vunpack.c.l.b16 %v6873
    %v7521 = vunpack.c.h.b16 %v6873
    %v7522 = vunpack.c.l.b16 %v6874
    %v7523 = vunpack.c.h.b16 %v6874
    %v7524 = vunpack.c.l.b16 %v6875
    %v7525 = vunpack.c.h.b16 %v6875
    %v7526 = vunpack.c.l.b16 %v6876
    %v7527 = vunpack.c.h.b16 %v6876
    %v7528 = vunpack.c.l.b16 %v6877
    %v7529 = vunpack.c.h.b16 %v6877
    %v7530 = vunpack.c.l.b16 %v6878
    %v7531 = vunpack.c.h.b16 %v6878
    %v7532 = vunpack.c.l.b16 %v6879
    %v7533 = vunpack.c.h.b16 %v6879
    %v7534 = vunpack.c.l.b16 %v6880
    %v7535 = vunpack.c.h.b16 %v6880
    %v7536 = vunpack.c.l.b16 %v6881
    %v7537 = vunpack.c.h.b16 %v6881
    %v7538 = vunpack.c.l.b16 %v6882
    %v7539 = vunpack.c.h.b16 %v6882
    %v7540 = vunpack.c.l.b16 %v6883
    %v7541 = vunpack.c.h.b16 %v6883
    %v7542 = vunpack.c.l.b16 %v6884
    %v7543 = vunpack.c.h.b16 %v6884
    %v7544 = vunpack.c.l.b16 %v6885
    %v7545 = vunpack.c.h.b16 %v6885
    %v7546 = vunpack.c.l.b16 %v6886
    %v7547 = vunpack.c.h.b16 %v6886
    %v7548 = vunpack.c.l.b16 %v6887
    %v7549 = vunpack.c.h.b16 %v6887
    %v7550 = vunpack.c.l.b16 %v6888
    %v7551 = vunpack.c.h.b16 %v6888
    %v7552 = vunpack.c.l.b16 %v6889
    %v7553 = vunpack.c.h.b16 %v6889
    %v7554 = vunpack.c.l.b16 %v6890
    %v7555 = vunpack.c.h.b16 %v6890
    %v7556 = vunpack.c.l.b16 %v6891
    %v7557 = vunpack.c.h.b16 %v6891
    %v7558 = vunpack.c.l.b16 %v6892
    %v7559 = vunpack.c.h.b16 %v6892
    %v7560 = vunpack.c.l.b16 %v6893
    %v7561 = vunpack.c.h.b16 %v6893
    %v7562 = vunpack.c.l.b16 %v6894
    %v7563 = vunpack.c.h.b16 %v6894
    %v7564 = vunpack.c.l.b16 %v6895
    %v7565 = vunpack.c.h.b16 %v6895
    %v7566 = vunpack.c.l.b16 %v6896
    %v7567 = vunpack.c.h.b16 %v6896
    %v7568 = vunpack.c.l.b16 %v6897
    %v7569 = vunpack.c.h.b16 %v6897
    %v7570 = vunpack.c.l.b16 %v6898
    %v7571 = vunpack.c.h.b16 %v6898
    %v7572 = vunpack.c.l.b16 %v6899
    %v7573 = vunpack.c.h.b16 %v6899
    %v7574 = vunpack.c.l.b16 %v6900
    %v7575 = vunpack.c.h.b16 %v6900
    %v7576 = vunpack.c.l.b16 %v6901
    %v7577 = vunpack.c.h.b16 %v6901
    %v7578 = vunpack.c.l.b16 %v6902
    %v7579 = vunpack.c.h.b16 %v6902
    %v7580 = vunpack.c.l.b16 %v6903
    %v7581 = vunpack.c.h.b16 %v6903
    %v7582 = vunpack.c.l.b16 %v6904
    %v7583 = vunpack.c.h.b16 %v6904
    %v7584 = vunpack.c.l.b16 %v6905
    %v7585 = vunpack.c.h.b16 %v6905
    %v7586 = vunpack.c.l.b16 %v6906
    %v7587 = vunpack.c.h.b16 %v6906
    %v7588 = vunpack.c.l.b16 %v6907
    %v7589 = vunpack.c.h.b16 %v6907
    %v7590 = vunpack.c.l.b16 %v6908
    %v7591 = vunpack.c.h.b16 %v6908
    %v7592 = vunpack.c.l.b16 %v6909
    %v7593 = vunpack.c.h.b16 %v6909
    %v7594 = vunpack.c.l.b16 %v6910
    %v7595 = vunpack.c.h.b16 %v6910
    %v7596 = vunpack.c.l.b16 %v6911
    %v7597 = vunpack.c.h.b16 %v6911
    %v7598 = vunpack.c.l.b16 %v6912
    %v7599 = vunpack.c.h.b16 %v6912
    %v7600 = vunpack.c.l.b16 %v6913
    %v7601 = vunpack.c.h.b16 %v6913
    %v7602 = vunpack.c.l.b16 %v6914
    %v7603 = vunpack.c.h.b16 %v6914
    %v7604 = vunpack.c.l.b16 %v6915
    %v7605 = vunpack.c.h.b16 %v6915
    %v7606 = vunpack.c.l.b16 %v6916
    %v7607 = vunpack.c.h.b16 %v6916
    %v7608 = vunpack.c.l.b16 %v6917
    %v7609 = vunpack.c.h.b16 %v6917
    %v7610 = vunpack.c.l.b16 %v6918
    %v7611 = vunpack.c.h.b16 %v6918
    %v7612 = vunpack.c.l.b16 %v6919
    %v7613 = vunpack.c.h.b16 %v6919
    %v7614 = vunpack.c.l.b16 %v6920
    %v7615 = vunpack.c.h.b16 %v6920
    %v7616 = vunpack.c.l.b16 %v6921
    %v7617 = vunpack.c.h.b16 %v6921
    %v7618 = vunpack.c.l.b16 %v6922
    %v7619 = vunpack.c.h.b16 %v6922
    %v7620 = vunpack.c.l.b16 %v6923
    %v7621 = vunpack.c.h.b16 %v6923
    %v7622 = vunpack.c.l.b16 %v6924
    %v7623 = vunpack.c.h.b16 %v6924
    %v7624 = vunpack.c.l.b16 %v6925
    %v7625 = vunpack.c.h.b16 %v6925
    %v7626 = vunpack.c.l.b16 %v6926
    %v7627 = vunpack.c.h.b16 %v6926
    %v7628 = vunpack.c.l.b16 %v6927
    %v7629 = vunpack.c.h.b16 %v6927
    %v7630 = vunpack.c.l.b16 %v6928
    %v7631 = vunpack.c.h.b16 %v6928
    %v7632 = vunpack.c.l.b16 %v6929
    %v7633 = vunpack.c.h.b16 %v6929
    %v7634 = vunpack.c.l.b16 %v6930
    %v7635 = vunpack.c.h.b16 %v6930
    %v7636 = vunpack.c.l.b16 %v6931
    %v7637 = vunpack.c.h.b16 %v6931
    %v7638 = vunpack.c.l.b16 %v6932
    %v7639 = vunpack.c.h.b16 %v6932
    %v7640 = vunpack.c.l.b16 %v6933
    %v7641 = vunpack.c.h.b16 %v6933
    %v7642 = vunpack.c.l.b16 %v6934
    %v7643 = vunpack.c.h.b16 %v6934
    %v7644 = vunpack.c.l.b16 %v6935
    %v7645 = vunpack.c.h.b16 %v6935
    %v7646 = vunpack.c.l.b16 %v6936
    %v7647 = vunpack.c.h.b16 %v6936
    %v7648 = vunpack.c.l.b16 %v6937
    %v7649 = vunpack.c.h.b16 %v6937
    %v7650 = vunpack.c.l.b16 %v6938
    %v7651 = vunpack.c.h.b16 %v6938
    %v7652 = vunpack.c.l.b16 %v6939
    %v7653 = vunpack.c.h.b16 %v6939
    %v7654 = vunpack.c.l.b16 %v6940
    %v7655 = vunpack.c.h.b16 %v6940
    %v7656 = vunpack.c.l.b16 %v6941
    %v7657 = vunpack.c.h.b16 %v6941
    %v7658 = vunpack.c.l.b16 %v6942
    %v7659 = vunpack.c.h.b16 %v6942
    %v7660 = vunpack.c.l.b16 %v6943
    %v7661 = vunpack.c.h.b16 %v6943
    %v7662 = vunpack.c.l.b16 %v6944
    %v7663 = vunpack.c.h.b16 %v6944
    %v7664 = vunpack.c.l.b16 %v6945
    %v7665 = vunpack.c.h.b16 %v6945
    %v7666 = vunpack.c.l.b16 %v6946
    %v7667 = vunpack.c.h.b16 %v6946
    %v7668 = vunpack.c.l.b16 %v6947
    %v7669 = vunpack.c.h.b16 %v6947
    %v7670 = vunpack.c.l.b16 %v6948
    %v7671 = vunpack.c.h.b16 %v6948
    %v7672 = vunpack.c.l.b16 %v6949
    %v7673 = vunpack.c.h.b16 %v6949
    %v7674 = vunpack.c.l.b16 %v6950
    %v7675 = vunpack.c.h.b16 %v6950
    %v7676 = vunpack.c.l.b16 %v6951
    %v7677 = vunpack.c.h.b16 %v6951
    %v7678 = vunpack.c.l.b16 %v6952
    %v7679 = vunpack.c.h.b16 %v6952
    %v7680 = vunpack.c.l.b16 %v6953
    %v7681 = vunpack.c.h.b16 %v6953
    %v7682 = vunpack.c.l.b16 %v6954
    %v7683 = vunpack.c.h.b16 %v6954
    %v7684 = vunpack.c.l.b16 %v6955
    %v7685 = vunpack.c.h.b16 %v6955
    %v7686 = vunpack.c.l.b16 %v6956
    %v7687 = vunpack.c.h.b16 %v6956
    %v7688 = vunpack.c.l.b16 %v6957
    %v7689 = vunpack.c.h.b16 %v6957
    %v7690 = vunpack.c.l.b16 %v6958
    %v7691 = vunpack.c.h.b16 %v6958
    %v7692 = vunpack.c.l.b16 %v6959
    %v7693 = vunpack.c.h.b16 %v6959
    %v7694 = vunpack.c.l.b16 %v6960
    %v7695 = vunpack.c.h.b16 %v6960
    %v7696 = vunpack.c.l.b16 %v6961
    %v7697 = vunpack.c.h.b16 %v6961
    %v7698 = vunpack.c.l.b16 %v6962
    %v7699 = vunpack.c.h.b16 %v6962
    %v7700 = vunpack.c.l.b16 %v6963
    %v7701 = vunpack.c.h.b16 %v6963
    %v7702 = vunpack.c.l.b16 %v6964
    %v7703 = vunpack.c.h.b16 %v6964
    %v7704 = vunpack.c.l.b16 %v6965
    %v7705 = vunpack.c.h.b16 %v6965
    %v7706 = vunpack.c.l.b16 %v6966
    %v7707 = vunpack.c.h.b16 %v6966
    %v7708 = vunpack.c.l.b16 %v6967
    %v7709 = vunpack.c.h.b16 %v6967
    %v7710 = vunpack.c.l.b16 %v6968
    %v7711 = vunpack.c.h.b16 %v6968
    %v7712 = vunpack.c.l.b16 %v6969
    %v7713 = vunpack.c.h.b16 %v6969
    %v7714 = vunpack.c.l.b16 %v6970
    %v7715 = vunpack.c.h.b16 %v6970
    %v7716 = vunpack.c.l.b16 %v6971
    %v7717 = vunpack.c.h.b16 %v6971
    %v7718 = vunpack.c.l.b16 %v6972
    %v7719 = vunpack.c.h.b16 %v6972
    %v7720 = vunpack.c.l.b16 %v6973
    %v7721 = vunpack.c.h.b16 %v6973
    %v7722 = vunpack.c.l.b16 %v6974
    %v7723 = vunpack.c.h.b16 %v6974
    %v7724 = vunpack.c.l.b16 %v6975
    %v7725 = vunpack.c.h.b16 %v6975
    %v7726 = vunpack.c.l.b16 %v6976
    %v7727 = vunpack.c.h.b16 %v6976
    %v7728 = vunpack.c.l.b16 %v6977
    %v7729 = vunpack.c.h.b16 %v6977
    %v7730 = vunpack.c.l.b16 %v6978
    %v7731 = vunpack.c.h.b16 %v6978
    %v7732 = vunpack.c.l.b16 %v6979
    %v7733 = vunpack.c.h.b16 %v6979
    %v7734 = vunpack.c.l.b16 %v6980
    %v7735 = vunpack.c.h.b16 %v6980
    %v7736 = vunpack.c.l.b16 %v6981
    %v7737 = vunpack.c.h.b16 %v6981
    %v7738 = vunpack.c.l.b16 %v6982
    %v7739 = vunpack.c.h.b16 %v6982
    %v7740 = vunpack.c.l.b16 %v6983
    %v7741 = vunpack.c.h.b16 %v6983
    %v7742 = vunpack.c.l.b16 %v6984
    %v7743 = vunpack.c.h.b16 %v6984
    %v7744 = vunpack.c.l.b16 %v6985
    %v7745 = vunpack.c.h.b16 %v6985
    %v7746 = vunpack.c.l.b16 %v6986
    %v7747 = vunpack.c.h.b16 %v6986
    %v7748 = vunpack.c.l.b16 %v6987
    %v7749 = vunpack.c.h.b16 %v6987
    %v7750 = vunpack.c.l.b16 %v6988
    %v7751 = vunpack.c.h.b16 %v6988
    %v7752 = vunpack.c.l.b16 %v6989
    %v7753 = vunpack.c.h.b16 %v6989
    %v7754 = vunpack.c.l.b16 %v6990
    %v7755 = vunpack.c.h.b16 %v6990
    %v7756 = vunpack.c.l.b16 %v6991
    %v7757 = vunpack.c.h.b16 %v6991
    %v7758 = vunpack.c.l.b16 %v6992
    %v7759 = vunpack.c.h.b16 %v6992
    %v7760 = vunpack.c.l.b16 %v6993
    %v7761 = vunpack.c.h.b16 %v6993
    %v7762 = vunpack.c.l.b16 %v6994
    %v7763 = vunpack.c.h.b16 %v6994
    %v7764 = vunpack.c.l.b16 %v6995
    %v7765 = vunpack.c.h.b16 %v6995
    %v7766 = vunpack.c.l.b16 %v6996
    %v7767 = vunpack.c.h.b16 %v6996
    %v7768 = vunpack.c.l.b16 %v6997
    %v7769 = vunpack.c.h.b16 %v6997
    %v7770 = vunpack.c.l.b16 %v6998
    %v7771 = vunpack.c.h.b16 %v6998
    %v7772 = vunpack.c.l.b16 %v6999
    %v7773 = vunpack.c.h.b16 %v6999
    %v7774 = vunpack.c.l.b16 %v7000
    %v7775 = vunpack.c.h.b16 %v7000
    %v7776 = vunpack.c.l.b16 %v7001
    %v7777 = vunpack.c.h.b16 %v7001
    %v7778 = vunpack.c.l.b16 %v7002
    %v7779 = vunpack.c.h.b16 %v7002
    %v7780 = vunpack.c.l.b16 %v7003
    %v7781 = vunpack.c.h.b16 %v7003
    %v7782 = vunpack.c.l.b16 %v7004
    %v7783 = vunpack.c.h.b16 %v7004
    %v7784 = vunpack.c.l.b16 %v7005
    %v7785 = vunpack.c.h.b16 %v7005
    %v7786 = vunpack.c.l.b16 %v7006
    %v7787 = vunpack.c.h.b16 %v7006
    %v7788 = vunpack.c.l.b16 %v7007
    %v7789 = vunpack.c.h.b16 %v7007
    %v7790 = vunpack.c.l.b16 %v7008
    %v7791 = vunpack.c.h.b16 %v7008
    %v7792 = vunpack.c.l.b16 %v7009
    %v7793 = vunpack.c.h.b16 %v7009
    %v7794 = vunpack.c.l.b16 %v7010
    %v7795 = vunpack.c.h.b16 %v7010
    %v7796 = vunpack.c.l.b16 %v7011
    %v7797 = vunpack.c.h.b16 %v7011
    %v7798 = vunpack.c.l.b16 %v7012
    %v7799 = vunpack.c.h.b16 %v7012
    %v7800 = vunpack.c.l.b16 %v7013
    %v7801 = vunpack.c.h.b16 %v7013
    %v7802 = vunpack.c.l.b16 %v7014
    %v7803 = vunpack.c.h.b16 %v7014
    %v7804 = vunpack.c.l.b16 %v7015
    %v7805 = vunpack.c.h.b16 %v7015
    %v7806 = vunpack.c.l.b16 %v7016
    %v7807 = vunpack.c.h.b16 %v7016
    %v7808 = vunpack.c.l.b16 %v7017
    %v7809 = vunpack.c.h.b16 %v7017
    %v7810 = vunpack.c.l.b16 %v7018
    %v7811 = vunpack.c.h.b16 %v7018
    %v7812 = vunpack.c.l.b16 %v7019
    %v7813 = vunpack.c.h.b16 %v7019
    %v7814 = vunpack.c.l.b16 %v7020
    %v7815 = vunpack.c.h.b16 %v7020
    %v7816 = vunpack.c.l.b16 %v7021
    %v7817 = vunpack.c.h.b16 %v7021
    %v7818 = vunpack.c.l.b16 %v7022
    %v7819 = vunpack.c.h.b16 %v7022
    %v7820 = vunpack.c.l.b16 %v7023
    %v7821 = vunpack.c.h.b16 %v7023
    %v7822 = vunpack.c.l.b16 %v7024
    %v7823 = vunpack.c.h.b16 %v7024
    %v7824 = vunpack.c.l.b16 %v7025
    %v7825 = vunpack.c.h.b16 %v7025
    %v7826 = vunpack.c.l.b16 %v7026
    %v7827 = vunpack.c.h.b16 %v7026
    %v7828 = vunpack.c.l.b16 %v7027
    %v7829 = vunpack.c.h.b16 %v7027
    %v7830 = vunpack.c.l.b16 %v7028
    %v7831 = vunpack.c.h.b16 %v7028
    %v7832 = vunpack.c.l.b16 %v7029
    %v7833 = vunpack.c.h.b16 %v7029
    %v7834 = vunpack.c.l.b16 %v7030
    %v7835 = vunpack.c.h.b16 %v7030
    %v7836 = vunpack.c.l.b16 %v7031
    %v7837 = vunpack.c.h.b16 %v7031
    %v7838 = vunpack.c.l.b16 %v7032
    %v7839 = vunpack.c.h.b16 %v7032
    %v7840 = vunpack.c.l.b16 %v7033
    %v7841 = vunpack.c.h.b16 %v7033
    %v7842 = vunpack.c.l.b16 %v7034
    %v7843 = vunpack.c.h.b16 %v7034
    %v7844 = vunpack.c.l.b16 %v7035
    %v7845 = vunpack.c.h.b16 %v7035
    %v7846 = vunpack.c.l.b16 %v7036
    %v7847 = vunpack.c.h.b16 %v7036
    %v7848 = vunpack.c.l.b16 %v7037
    %v7849 = vunpack.c.h.b16 %v7037
    %v7850 = vunpack.c.l.b16 %v7038
    %v7851 = vunpack.c.h.b16 %v7038
    %v7852 = vunpack.c.l.b16 %v7039
    %v7853 = vunpack.c.h.b16 %v7039
    %v7854 = vunpack.c.l.b16 %v7040
    %v7855 = vunpack.c.h.b16 %v7040
    %v7856 = vunpack.c.l.b16 %v7041
    %v7857 = vunpack.c.h.b16 %v7041
    %v7858 = vunpack.c.l.b16 %v7042
    %v7859 = vunpack.c.h.b16 %v7042
    %v7860 = vunpack.c.l.b16 %v7043
    %v7861 = vunpack.c.h.b16 %v7043
    %v7862 = vunpack.c.l.b16 %v7044
    %v7863 = vunpack.c.h.b16 %v7044
    %v7864 = vunpack.c.l.b16 %v7045
    %v7865 = vunpack.c.h.b16 %v7045
    %v7866 = vunpack.c.l.b16 %v7046
    %v7867 = vunpack.c.h.b16 %v7046
    %v7868 = vunpack.c.l.b16 %v7047
    %v7869 = vunpack.c.h.b16 %v7047
    %v7870 = vunpack.c.l.b16 %v7048
    %v7871 = vunpack.c.h.b16 %v7048
    %v7872 = vunpack.c.l.b16 %v7049
    %v7873 = vunpack.c.h.b16 %v7049
    %v7874 = vunpack.c.l.b16 %v7050
    %v7875 = vunpack.c.h.b16 %v7050
    %v7876 = vunpack.c.l.b16 %v7051
    %v7877 = vunpack.c.h.b16 %v7051
    %v7878 = vunpack.c.l.b16 %v7052
    %v7879 = vunpack.c.h.b16 %v7052
    %v7880 = vunpack.c.l.b16 %v7053
    %v7881 = vunpack.c.h.b16 %v7053
    %v7882 = vunpack.c.l.b16 %v7054
    %v7883 = vunpack.c.h.b16 %v7054
    %v7884 = vunpack.c.l.b16 %v7055
    %v7885 = vunpack.c.h.b16 %v7055
    %v7886 = vunpack.c.l.b16 %v7056
    %v7887 = vunpack.c.h.b16 %v7056
    %v7888 = vunpack.c.l.b16 %v7057
    %v7889 = vunpack.c.h.b16 %v7057
    %v7890 = vunpack.c.l.b16 %v7058
    %v7891 = vunpack.c.h.b16 %v7058
    %v7892 = vunpack.c.l.b16 %v7059
    %v7893 = vunpack.c.h.b16 %v7059
    %v7894 = vunpack.c.l.b16 %v7060
    %v7895 = vunpack.c.h.b16 %v7060
    %v7896 = vunpack.c.l.b16 %v7061
    %v7897 = vunpack.c.h.b16 %v7061
    %v7898 = vunpack.c.l.b16 %v7062
    %v7899 = vunpack.c.h.b16 %v7062
    %v7900 = vunpack.c.l.b16 %v7063
    %v7901 = vunpack.c.h.b16 %v7063
    %v7902 = vunpack.c.l.b16 %v7064
    %v7903 = vunpack.c.h.b16 %v7064
    %v7904 = vunpack.c.l.b16 %v7065
    %v7905 = vunpack.c.h.b16 %v7065
    %v7906 = vunpack.c.l.b16 %v7066
    %v7907 = vunpack.c.h.b16 %v7066
    %v7908 = vunpack.c.l.b16 %v7067
    %v7909 = vunpack.c.h.b16 %v7067
    %v7910 = vunpack.c.l.b16 %v7068
    %v7911 = vunpack.c.h.b16 %v7068
    %v7912 = vunpack.c.l.b16 %v7069
    %v7913 = vunpack.c.h.b16 %v7069
    %v7914 = vunpack.c.l.b16 %v7070
    %v7915 = vunpack.c.h.b16 %v7070
    %v7916 = vunpack.c.l.b16 %v7071
    %v7917 = vunpack.c.h.b16 %v7071
    %v7918 = vunpack.c.l.b16 %v7072
    %v7919 = vunpack.c.h.b16 %v7072
    %v7920 = vunpack.c.l.b16 %v7073
    %v7921 = vunpack.c.h.b16 %v7073
    %v7922 = vunpack.c.l.b16 %v7074
    %v7923 = vunpack.c.h.b16 %v7074
    %v7924 = vunpack.c.l.b16 %v7075
    %v7925 = vunpack.c.h.b16 %v7075
    %v7926 = vunpack.c.l.b16 %v7076
    %v7927 = vunpack.c.h.b16 %v7076
    %v7928 = vunpack.c.l.b16 %v7077
    %v7929 = vunpack.c.h.b16 %v7077
    %v7930 = vunpack.c.l.b16 %v7078
    %v7931 = vunpack.c.h.b16 %v7078
    %v7932 = vunpack.c.l.b16 %v7079
    %v7933 = vunpack.c.h.b16 %v7079
    %v7934 = vunpack.c.l.b16 %v7080
    %v7935 = vunpack.c.h.b16 %v7080
    %v7936 = vunpack.c.l.b16 %v7081
    %v7937 = vunpack.c.h.b16 %v7081
    %v7938 = vunpack.c.l.b16 %v7082
    %v7939 = vunpack.c.h.b16 %v7082
    %v7940 = vunpack.c.l.b16 %v7083
    %v7941 = vunpack.c.h.b16 %v7083
    %v7942 = vunpack.c.l.b16 %v7084
    %v7943 = vunpack.c.h.b16 %v7084
    %v7944 = vunpack.c.l.b16 %v7085
    %v7945 = vunpack.c.h.b16 %v7085
    %v7946 = vunpack.c.l.b16 %v7086
    %v7947 = vunpack.c.h.b16 %v7086
    %v7948 = vunpack.c.l.b16 %v7087
    %v7949 = vunpack.c.h.b16 %v7087
    %v7950 = vunpack.c.l.b16 %v7088
    %v7951 = vunpack.c.h.b16 %v7088
    %v7952 = vunpack.c.l.b16 %v7089
    %v7953 = vunpack.c.h.b16 %v7089
    %v7954 = vunpack.c.l.b16 %v7090
    %v7955 = vunpack.c.h.b16 %v7090
    %v7956 = vunpack.c.l.b16 %v7091
    %v7957 = vunpack.c.h.b16 %v7091
    %v7958 = vunpack.c.l.b16 %v7092
    %v7959 = vunpack.c.h.b16 %v7092
    %v7960 = vunpack.c.l.b16 %v7093
    %v7961 = vunpack.c.h.b16 %v7093
    %v7962 = vunpack.c.l.b16 %v7094
    %v7963 = vunpack.c.h.b16 %v7094
    %v7964 = vunpack.c.l.b16 %v7095
    %v7965 = vunpack.c.h.b16 %v7095
    %v7966 = vunpack.c.l.b16 %v7096
    %v7967 = vunpack.c.h.b16 %v7096
    %v7968 = vunpack.c.l.b16 %v7097
    %v7969 = vunpack.c.h.b16 %v7097
    %v7970 = vunpack.c.l.b16 %v7098
    %v7971 = vunpack.c.h.b16 %v7098
    %v7972 = vunpack.c.l.b16 %v7099
    %v7973 = vunpack.c.h.b16 %v7099
    %v7974 = vunpack.c.l.b16 %v7100
    %v7975 = vunpack.c.h.b16 %v7100
    %v7976 = vunpack.c.l.b16 %v7101
    %v7977 = vunpack.c.h.b16 %v7101
    %v7978 = vunpack.c.l.b16 %v7102
    %v7979 = vunpack.c.h.b16 %v7102
    %v7980 = vunpack.c.l.b16 %v7103
    %v7981 = vunpack.c.h.b16 %v7103
    %v7982 = vunpack.c.l.b16 %v7104
    %v7983 = vunpack.c.h.b16 %v7104
    %v7984 = vunpack.c.l.b16 %v7105
    %v7985 = vunpack.c.h.b16 %v7105
    %v7986 = vunpack.c.l.b16 %v7106
    %v7987 = vunpack.c.h.b16 %v7106
    %v7988 = vunpack.c.l.b16 %v7107
    %v7989 = vunpack.c.h.b16 %v7107
    %v7990 = vunpack.c.l.b16 %v7108
    %v7991 = vunpack.c.h.b16 %v7108
    %v7992 = vunpack.c.l.b16 %v7109
    %v7993 = vunpack.c.h.b16 %v7109
    %v7994 = vunpack.c.l.b16 %v7110
    %v7995 = vunpack.c.h.b16 %v7110
    %v7996 = vunpack.c.l.b16 %v7111
    %v7997 = vunpack.c.h.b16 %v7111
    %v7998 = vunpack.c.l.b16 %v7112
    %v7999 = vunpack.c.h.b16 %v7112
    %v8000 = vunpack.c.l.b16 %v7113
    %v8001 = vunpack.c.h.b16 %v7113
    %v8002 = vunpack.c.l.b16 %v7114
    %v8003 = vunpack.c.h.b16 %v7114
    %v8004 = vunpack.c.l.b16 %v7115
    %v8005 = vunpack.c.h.b16 %v7115
    %v8006 = vunpack.c.l.b16 %v7116
    %v8007 = vunpack.c.h.b16 %v7116
    %v8008 = vunpack.c.l.b16 %v7117
    %v8009 = vunpack.c.h.b16 %v7117
    %v8010 = vunpack.c.l.b16 %v7118
    %v8011 = vunpack.c.h.b16 %v7118
    %v8012 = vpack.c.b16 %v7444, %v7436
    %v8013 = vpack.c.b16 %v7445, %v7437
    %v8014 = vpack.c.b16 %v7446, %v7438
    %v8015 = vpack.c.b16 %v7447, %v7439
    %v8016 = vpack.c.b16 %v7448, %v7440
    %v8017 = vpack.c.b16 %v7449, %v7441
    %v8018 = vpack.c.b16 %v7450, %v7442
    %v8019 = vpack.c.b16 %v7451, %v7443
    %v8020 = vpack.c.b16 %v7460, %v7452
    %v8021 = vpack.c.b16 %v7461, %v7453
    %v8022 = vpack.c.b16 %v7462, %v7454
    %v8023 = vpack.c.b16 %v7463, %v7455
    %v8024 = vpack.c.b16 %v7464, %v7456
    %v8025 = vpack.c.b16 %v7465, %v7457
    %v8026 = vpack.c.b16 %v7466, %v7458
    %v8027 = vpack.c.b16 %v7467, %v7459
    %v8028 = vpack.c.b16 %v7476, %v7468
    %v8029 = vpack.c.b16 %v7477, %v7469
    %v8030 = vpack.c.b16 %v7478, %v7470
    %v8031 = vpack.c.b16 %v7479, %v7471
    %v8032 = vpack.c.b16 %v7480, %v7472
    %v8033 = vpack.c.b16 %v7481, %v7473
    %v8034 = vpack.c.b16 %v7482, %v7474
    %v8035 = vpack.c.b16 %v7483, %v7475
    %v8036 = vpack.c.b16 %v7492, %v7484
    %v8037 = vpack.c.b16 %v7493, %v7485
    %v8038 = vpack.c.b16 %v7494, %v7486
    %v8039 = vpack.c.b16 %v7495, %v7487
    %v8040 = vpack.c.b16 %v7496, %v7488
    %v8041 = vpack.c.b16 %v7497, %v7489
    %v8042 = vpack.c.b16 %v7498, %v7490
    %v8043 = vpack.c.b16 %v7499, %v7491
    %v8044 = vpack.c.b16 %v7508, %v7500
    %v8045 = vpack.c.b16 %v7509, %v7501
    %v8046 = vpack.c.b16 %v7510, %v7502
    %v8047 = vpack.c.b16 %v7511, %v7503
    %v8048 = vpack.c.b16 %v7512, %v7504
    %v8049 = vpack.c.b16 %v7513, %v7505
    %v8050 = vpack.c.b16 %v7514, %v7506
    %v8051 = vpack.c.b16 %v7515, %v7507
    %v8052 = vpack.c.b16 %v7524, %v7516
    %v8053 = vpack.c.b16 %v7525, %v7517
    %v8054 = vpack.c.b16 %v7526, %v7518
    %v8055 = vpack.c.b16 %v7527, %v7519
    %v8056 = vpack.c.b16 %v7528, %v7520
    %v8057 = vpack.c.b16 %v7529, %v7521
    %v8058 = vpack.c.b16 %v7530, %v7522
    %v8059 = vpack.c.b16 %v7531, %v7523
    %v8060 = vpack.c.b16 %v7540, %v7532
    %v8061 = vpack.c.b16 %v7541, %v7533
    %v8062 = vpack.c.b16 %v7542, %v7534
    %v8063 = vpack.c.b16 %v7543, %v7535
    %v8064 = vpack.c.b16 %v7544, %v7536
    %v8065 = vpack.c.b16 %v7545, %v7537
    %v8066 = vpack.c.b16 %v7546, %v7538
    %v8067 = vpack.c.b16 %v7547, %v7539
    %v8068 = vpack.c.b16 %v7556, %v7548
    %v8069 = vpack.c.b16 %v7557, %v7549
    %v8070 = vpack.c.b16 %v7558, %v7550
    %v8071 = vpack.c.b16 %v7559, %v7551
    %v8072 = vpack.c.b16 %v7560, %v7552
    %v8073 = vpack.c.b16 %v7561, %v7553
    %v8074 = vpack.c.b16 %v7562, %v7554
    %v8075 = vpack.c.b16 %v7563, %v7555
    %v8076 = vpack.c.b16 %v7572, %v7564
    %v8077 = vpack.c.b16 %v7573, %v7565
    %v8078 = vpack.c.b16 %v7574, %v7566
    %v8079 = vpack.c.b16 %v7575, %v7567
    %v8080 = vpack.c.b16 %v7576, %v7568
    %v8081 = vpack.c.b16 %v7577, %v7569
    %v8082 = vpack.c.b16 %v7578, %v7570
    %v8083 = vpack.c.b16 %v7579, %v7571
    %v8084 = vpack.c.b16 %v7588, %v7580
    %v8085 = vpack.c.b16 %v7589, %v7581
    %v8086 = vpack.c.b16 %v7590, %v7582
    %v8087 = vpack.c.b16 %v7591, %v7583
    %v8088 = vpack.c.b16 %v7592, %v7584
    %v8089 = vpack.c.b16 %v7593, %v7585
    %v8090 = vpack.c.b16 %v7594, %v7586
    %v8091 = vpack.c.b16 %v7595, %v7587
    %v8092 = vpack.c.b16 %v7604, %v7596
    %v8093 = vpack.c.b16 %v7605, %v7597
    %v8094 = vpack.c.b16 %v7606, %v7598
    %v8095 = vpack.c.b16 %v7607, %v7599
    %v8096 = vpack.c.b16 %v7608, %v7600
    %v8097 = vpack.c.b16 %v7609, %v7601
    %v8098 = vpack.c.b16 %v7610, %v7602
    %v8099 = vpack.c.b16 %v7611, %v7603
    %v8100 = vpack.c.b16 %v7620, %v7612
    %v8101 = vpack.c.b16 %v7621, %v7613
    %v8102 = vpack.c.b16 %v7622, %v7614
    %v8103 = vpack.c.b16 %v7623, %v7615
    %v8104 = vpack.c.b16 %v7624, %v7616
    %v8105 = vpack.c.b16 %v7625, %v7617
    %v8106 = vpack.c.b16 %v7626, %v7618
    %v8107 = vpack.c.b16 %v7627, %v7619
    %v8108 = vpack.c.b16 %v7636, %v7628
    %v8109 = vpack.c.b16 %v7637, %v7629
    %v8110 = vpack.c.b16 %v7638, %v7630
    %v8111 = vpack.c.b16 %v7639, %v7631
    %v8112 = vpack.c.b16 %v7640, %v7632
    %v8113 = vpack.c.b16 %v7641, %v7633
    %v8114 = vpack.c.b16 %v7642, %v7634
    %v8115 = vpack.c.b16 %v7643, %v7635
    %v8116 = vpack.c.b16 %v7652, %v7644
    %v8117 = vpack.c.b16 %v7653, %v7645
    %v8118 = vpack.c.b16 %v7654, %v7646
    %v8119 = vpack.c.b16 %v7655, %v7647
    %v8120 = vpack.c.b16 %v7656, %v7648
    %v8121 = vpack.c.b16 %v7657, %v7649
    %v8122 = vpack.c.b16 %v7658, %v7650
    %v8123 = vpack.c.b16 %v7659, %v7651
    %v8124 = vpack.c.b16 %v7668, %v7660
    %v8125 = vpack.c.b16 %v7669, %v7661
    %v8126 = vpack.c.b16 %v7670, %v7662
    %v8127 = vpack.c.b16 %v7671, %v7663
    %v8128 = vpack.c.b16 %v7672, %v7664
    %v8129 = vpack.c.b16 %v7673, %v7665
    %v8130 = vpack.c.b16 %v7674, %v7666
    %v8131 = vpack.c.b16 %v7675, %v7667
    %v8132 = vpack.c.b16 %v7684, %v7676
    %v8133 = vpack.c.b16 %v7685, %v7677
    %v8134 = vpack.c.b16 %v7686, %v7678
    %v8135 = vpack.c.b16 %v7687, %v7679
    %v8136 = vpack.c.b16 %v7688, %v7680
    %v8137 = vpack.c.b16 %v7689, %v7681
    %v8138 = vpack.c.b16 %v7690, %v7682
    %v8139 = vpack.c.b16 %v7691, %v7683
    %v8140 = vpack.c.b16 %v7700, %v7692
    %v8141 = vpack.c.b16 %v7701, %v7693
    %v8142 = vpack.c.b16 %v7702, %v7694
    %v8143 = vpack.c.b16 %v7703, %v7695
    %v8144 = vpack.c.b16 %v7704, %v7696
    %v8145 = vpack.c.b16 %v7705, %v7697
    %v8146 = vpack.c.b16 %v7706, %v7698
    %v8147 = vpack.c.b16 %v7707, %v7699
    %v8148 = vpack.c.b16 %v7716, %v7708
    %v8149 = vpack.c.b16 %v7717, %v7709
    %v8150 = vpack.c.b16 %v7718, %v7710
    %v8151 = vpack.c.b16 %v7719, %v7711
    %v8152 = vpack.c.b16 %v7720, %v7712
    %v8153 = vpack.c.b16 %v7721, %v7713
    %v8154 = vpack.c.b16 %v7722, %v7714
    %v8155 = vpack.c.b16 %v7723, %v7715
    %v8156 = vpack.c.b16 %v7732, %v7724
    %v8157 = vpack.c.b16 %v7733, %v7725
    %v8158 = vpack.c.b16 %v7734, %v7726
    %v8159 = vpack.c.b16 %v7735, %v7727
    %v8160 = vpack.c.b16 %v7736, %v7728
    %v8161 = vpack.c.b16 %v7737, %v7729
    %v8162 = vpack.c.b16 %v7738, %v7730
    %v8163 = vpack.c.b16 %v7739, %v7731
    %v8164 = vpack.c.b16 %v7748, %v7740
    %v8165 = vpack.c.b16 %v7749, %v7741
    %v8166 = vpack.c.b16 %v7750, %v7742
    %v8167 = vpack.c.b16 %v7751, %v7743
    %v8168 = vpack.c.b16 %v7752, %v7744
    %v8169 = vpack.c.b16 %v7753, %v7745
    %v8170 = vpack.c.b16 %v7754, %v7746
    %v8171 = vpack.c.b16 %v7755, %v7747
    %v8172 = vpack.c.b16 %v7764, %v7756
    %v8173 = vpack.c.b16 %v7765, %v7757
    %v8174 = vpack.c.b16 %v7766, %v7758
    %v8175 = vpack.c.b16 %v7767, %v7759
    %v8176 = vpack.c.b16 %v7768, %v7760
    %v8177 = vpack.c.b16 %v7769, %v7761
    %v8178 = vpack.c.b16 %v7770, %v7762
    %v8179 = vpack.c.b16 %v7771, %v7763
    %v8180 = vpack.c.b16 %v7780, %v7772
    %v8181 = vpack.c.b16 %v7781, %v7773
    %v8182 = vpack.c.b16 %v7782, %v7774
    %v8183 = vpack.c.b16 %v7783, %v7775
    %v8184 = vpack.c.b16 %v7784, %v7776
    %v8185 = vpack.c.b16 %v7785, %v7777
    %v8186 = vpack.c.b16 %v7786, %v7778
    %v8187 = vpack.c.b16 %v7787, %v7779
    %v8188 = vpack.c.b16 %v7796, %v7788
    %v8189 = vpack.c.b16 %v7797, %v7789
    %v8190 = vpack.c.b16 %v7798, %v7790
    %v8191 = vpack.c.b16 %v7799, %v7791
    %v8192 = vpack.c.b16 %v7800, %v7792
    %v8193 = vpack.c.b16 %v7801, %v7793
    %v8194 = vpack.c.b16 %v7802, %v7794
    %v8195 = vpack.c.b16 %v7803, %v7795
    %v8196 = vpack.c.b16 %v7812, %v7804
    %v8197 = vpack.c.b16 %v7813, %v7805
    %v8198 = vpack.c.b16 %v7814, %v7806
    %v8199 = vpack.c.b16 %v7815, %v7807
    %v8200 = vpack.c.b16 %v7816, %v7808
    %v8201 = vpack.c.b16 %v7817, %v7809
    %v8202 = vpack.c.b16 %v7818, %v7810
    %v8203 = vpack.c.b16 %v7819, %v7811
    %v8204 = vpack.c.b16 %v7828, %v7820
    %v8205 = vpack.c.b16 %v7829, %v7821
    %v8206 = vpack.c.b16 %v7830, %v7822
    %v8207 = vpack.c.b16 %v7831, %v7823
    %v8208 = vpack.c.b16 %v7832, %v7824
    %v8209 = vpack.c.b16 %v7833, %v7825
    %v8210 = vpack.c.b16 %v7834, %v7826
    %v8211 = vpack.c.b16 %v7835, %v7827
    %v8212 = vpack.c.b16 %v7844, %v7836
    %v8213 = vpack.c.b16 %v7845, %v7837
    %v8214 = vpack.c.b16 %v7846, %v7838
    %v8215 = vpack.c.b16 %v7847, %v7839
    %v8216 = vpack.c.b16 %v7848, %v7840
    %v8217 = vpack.c.b16 %v7849, %v7841
    %v8218 = vpack.c.b16 %v7850, %v7842
    %v8219 = vpack.c.b16 %v7851, %v7843
    %v8220 = vpack.c.b16 %v7860, %v7852
    %v8221 = vpack.c.b16 %v7861, %v7853
    %v8222 = vpack.c.b16 %v7862, %v7854
    %v8223 = vpack.c.b16 %v7863, %v7855
    %v8224 = vpack.c.b16 %v7864, %v7856
    %v8225 = vpack.c.b16 %v7865, %v7857
    %v8226 = vpack.c.b16 %v7866, %v7858
    %v8227 = vpack.c.b16 %v7867, %v7859
    %v8228 = vpack.c.b16 %v7876, %v7868
    %v8229 = vpack.c.b16 %v7877, %v7869
    %v8230 = vpack.c.b16 %v7878, %v7870
    %v8231 = vpack.c.b16 %v7879, %v7871
    %v8232 = vpack.c.b16 %v7880, %v7872
    %v8233 = vpack.c.b16 %v7881, %v7873
    %v8234 = vpack.c.b16 %v7882, %v7874
    %v8235 = vpack.c.b16 %v7883, %v7875
    %v8236 = vpack.c.b16 %v7892, %v7884
    %v8237 = vpack.c.b16 %v7893, %v7885
    %v8238 = vpack.c.b16 %v7894, %v7886
    %v8239 = vpack.c.b16 %v7895, %v7887
    %v8240 = vpack.c.b16 %v7896, %v7888
    %v8241 = vpack.c.b16 %v7897, %v7889
    %v8242 = vpack.c.b16 %v7898, %v7890
    %v8243 = vpack.c.b16 %v7899, %v7891
    %v8244 = vpack.c.b16 %v7908, %v7900
    %v8245 = vpack.c.b16 %v7909, %v7901
    %v8246 = vpack.c.b16 %v7910, %v7902
    %v8247 = vpack.c.b16 %v7911, %v7903
    %v8248 = vpack.c.b16 %v7912, %v7904
    %v8249 = vpack.c.b16 %v7913, %v7905
    %v8250 = vpack.c.b16 %v7914, %v7906
    %v8251 = vpack.c.b16 %v7915, %v7907
    %v8252 = vpack.c.b16 %v7924, %v7916
    %v8253 = vpack.c.b16 %v7925, %v7917
    %v8254 = vpack.c.b16 %v7926, %v7918
    %v8255 = vpack.c.b16 %v7927, %v7919
    %v8256 = vpack.c.b16 %v7928, %v7920
    %v8257 = vpack.c.b16 %v7929, %v7921
    %v8258 = vpack.c.b16 %v7930, %v7922
    %v8259 = vpack.c.b16 %v7931, %v7923
    %v8260 = vpack.c.b16 %v7940, %v7932
    %v8261 = vpack.c.b16 %v7941, %v7933
    %v8262 = vpack.c.b16 %v7942, %v7934
    %v8263 = vpack.c.b16 %v7943, %v7935
    %v8264 = vpack.c.b16 %v7944, %v7936
    %v8265 = vpack.c.b16 %v7945, %v7937
    %v8266 = vpack.c.b16 %v7946, %v7938
    %v8267 = vpack.c.b16 %v7947, %v7939
    %v8268 = vpack.c.b16 %v7956, %v7948
    %v8269 = vpack.c.b16 %v7957, %v7949
    %v8270 = vpack.c.b16 %v7958, %v7950
    %v8271 = vpack.c.b16 %v7959, %v7951
    %v8272 = vpack.c.b16 %v7960, %v7952
    %v8273 = vpack.c.b16 %v7961, %v7953
    %v8274 = vpack.c.b16 %v7962, %v7954
    %v8275 = vpack.c.b16 %v7963, %v7955
    %v8276 = vpack.c.b16 %v7972, %v7964
    %v8277 = vpack.c.b16 %v7973, %v7965
    %v8278 = vpack.c.b16 %v7974, %v7966
    %v8279 = vpack.c.b16 %v7975, %v7967
    %v8280 = vpack.c.b16 %v7976, %v7968
    %v8281 = vpack.c.b16 %v7977, %v7969
    %v8282 = vpack.c.b16 %v7978, %v7970
    %v8283 = vpack.c.b16 %v7979, %v7971
    %v8284 = vpack.c.b16 %v7988, %v7980
    %v8285 = vpack.c.b16 %v7989, %v7981
    %v8286 = vpack.c.b16 %v7990, %v7982
    %v8287 = vpack.c.b16 %v7991, %v7983
    %v8288 = vpack.c.b16 %v7992, %v7984
    %v8289 = vpack.c.b16 %v7993, %v7985
    %v8290 = vpack.c.b16 %v7994, %v7986
    %v8291 = vpack.c.b16 %v7995, %v7987
    %v8292 = vpack.c.b16 %v8004, %v7996
    %v8293 = vpack.c.b16 %v8005, %v7997
    %v8294 = vpack.c.b16 %v8006, %v7998
    %v8295 = vpack.c.b16 %v8007, %v7999
    %v8296 = vpack.c.b16 %v8008, %v8000
    %v8297 = vpack.c.b16 %v8009, %v8001
    %v8298 = vpack.c.b16 %v8010, %v8002
    %v8299 = vpack.c.b16 %v8011, %v8003
    %v8588 = vsel %vm6366, %v7143, 0
    %8590 = vmatpush.bf16.msra.mxu0 %v8068
    %8591 = vmatpush.bf16.msra.mxu0 %v8060
    %8592 = vmatpush.bf16.msra.mxu0 %v8052
    %8593 = vmatpush.bf16.msra.mxu0 %v8044
    %8594 = vmatpush.bf16.msra.mxu0 %v8036
    %8595 = vmatpush.bf16.msra.mxu0 %v8028
    %8596 = vmatpush.bf16.msra.mxu0 %v8020
    %8597 = vmatpush.bf16.msra.mxu0 %v8012
    %8598 = vmatmul.bf16.gmra.mxu0 %v7139
    %v8599 = vpop.f32.mrf.mxu0
    %v8600 = vadd.f32 %v7121, %v8599
    %v8601 = vpop.f32.mrf.mxu0
    %8602 = vdwg.mxu0
    %8603 = vmatpush.bf16.msra.mxu0 %v8132
    %8604 = vmatpush.bf16.msra.mxu0 %v8124
    %8605 = vmatpush.bf16.msra.mxu0 %v8116
    %8606 = vmatpush.bf16.msra.mxu0 %v8108
    %8607 = vmatpush.bf16.msra.mxu0 %v8100
    %8608 = vmatpush.bf16.msra.mxu0 %v8092
    %8609 = vmatpush.bf16.msra.mxu0 %v8084
    %8610 = vmatpush.bf16.msra.mxu0 %v8076
    %8611 = vmatmul.bf16.gmra.mxu0 %v7140
    %v8612 = vpop.f32.mrf.mxu0
    %v8613 = vadd.f32 %v8600, %v8612
    %v8614 = vpop.f32.mrf.mxu0
    %8615 = vdwg.mxu0
    %8616 = vmatpush.bf16.msra.mxu0 %v8196
    %8617 = vmatpush.bf16.msra.mxu0 %v8188
    %8618 = vmatpush.bf16.msra.mxu0 %v8180
    %8619 = vmatpush.bf16.msra.mxu0 %v8172
    %8620 = vmatpush.bf16.msra.mxu0 %v8164
    %8621 = vmatpush.bf16.msra.mxu0 %v8156
    %8622 = vmatpush.bf16.msra.mxu0 %v8148
    %8623 = vmatpush.bf16.msra.mxu0 %v8140
    %8624 = vmatmul.bf16.gmra.mxu0 %v7141
    %v8625 = vpop.f32.mrf.mxu0
    %v8626 = vadd.f32 %v8613, %v8625
    %v8627 = vpop.f32.mrf.mxu0
    %8628 = vdwg.mxu0
    %8629 = vmatpush.bf16.msra.mxu0 %v8260
    %8630 = vmatpush.bf16.msra.mxu0 %v8252
    %8631 = vmatpush.bf16.msra.mxu0 %v8244
    %8632 = vmatpush.bf16.msra.mxu0 %v8236
    %8633 = vmatpush.bf16.msra.mxu0 %v8228
    %8634 = vmatpush.bf16.msra.mxu0 %v8220
    %8635 = vmatpush.bf16.msra.mxu0 %v8212
    %8636 = vmatpush.bf16.msra.mxu0 %v8204
    %8637 = vmatmul.bf16.gmra.mxu0 %v7142
    %v8638 = vpop.f32.mrf.mxu0
    %v8639 = vadd.f32 %v8626, %v8638
    %v8640 = vpop.f32.mrf.mxu0
    %8641 = vdwg.mxu0
    %8642 = vmatpush.bf16.msra.mxu0 0
    %8643 = vmatpush.bf16.msra.mxu0 0
    %8644 = vmatpush.bf16.msra.mxu0 0
    %8645 = vmatpush.bf16.msra.mxu0 0
    %8646 = vmatpush.bf16.msra.mxu0 %v8292
    %8647 = vmatpush.bf16.msra.mxu0 %v8284
    %8648 = vmatpush.bf16.msra.mxu0 %v8276
    %8649 = vmatpush.bf16.msra.mxu0 %v8268
    %8650 = vmatmul.bf16.gmra.mxu0 %v8588
    %v8651 = vpop.f32.mrf.mxu0
    %v8652 = vadd.f32 %v8639, %v8651
    %v8653 = vpop.f32.mrf.mxu0
    %8654 = vdwg.mxu0
    %8655 = vmatpush.bf16.msra.mxu0 %v8069
    %8656 = vmatpush.bf16.msra.mxu0 %v8061
    %8657 = vmatpush.bf16.msra.mxu0 %v8053
    %8658 = vmatpush.bf16.msra.mxu0 %v8045
    %8659 = vmatpush.bf16.msra.mxu0 %v8037
    %8660 = vmatpush.bf16.msra.mxu0 %v8029
    %8661 = vmatpush.bf16.msra.mxu0 %v8021
    %8662 = vmatpush.bf16.msra.mxu0 %v8013
    %8663 = vmatmul.bf16.gmra.mxu0 %v7139
    %v8664 = vpop.f32.mrf.mxu0
    %v8665 = vadd.f32 %v7122, %v8664
    %v8666 = vpop.f32.mrf.mxu0
    %8667 = vdwg.mxu0
    %8668 = vmatpush.bf16.msra.mxu0 %v8133
    %8669 = vmatpush.bf16.msra.mxu0 %v8125
    %8670 = vmatpush.bf16.msra.mxu0 %v8117
    %8671 = vmatpush.bf16.msra.mxu0 %v8109
    %8672 = vmatpush.bf16.msra.mxu0 %v8101
    %8673 = vmatpush.bf16.msra.mxu0 %v8093
    %8674 = vmatpush.bf16.msra.mxu0 %v8085
    %8675 = vmatpush.bf16.msra.mxu0 %v8077
    %8676 = vmatmul.bf16.gmra.mxu0 %v7140
    %v8677 = vpop.f32.mrf.mxu0
    %v8678 = vadd.f32 %v8665, %v8677
    %v8679 = vpop.f32.mrf.mxu0
    %8680 = vdwg.mxu0
    %8681 = vmatpush.bf16.msra.mxu0 %v8197
    %8682 = vmatpush.bf16.msra.mxu0 %v8189
    %8683 = vmatpush.bf16.msra.mxu0 %v8181
    %8684 = vmatpush.bf16.msra.mxu0 %v8173
    %8685 = vmatpush.bf16.msra.mxu0 %v8165
    %8686 = vmatpush.bf16.msra.mxu0 %v8157
    %8687 = vmatpush.bf16.msra.mxu0 %v8149
    %8688 = vmatpush.bf16.msra.mxu0 %v8141
    %8689 = vmatmul.bf16.gmra.mxu0 %v7141
    %v8690 = vpop.f32.mrf.mxu0
    %v8691 = vadd.f32 %v8678, %v8690
    %v8692 = vpop.f32.mrf.mxu0
    %8693 = vdwg.mxu0
    %8694 = vmatpush.bf16.msra.mxu0 %v8261
    %8695 = vmatpush.bf16.msra.mxu0 %v8253
    %8696 = vmatpush.bf16.msra.mxu0 %v8245
    %8697 = vmatpush.bf16.msra.mxu0 %v8237
    %8698 = vmatpush.bf16.msra.mxu0 %v8229
    %8699 = vmatpush.bf16.msra.mxu0 %v8221
    %8700 = vmatpush.bf16.msra.mxu0 %v8213
    %8701 = vmatpush.bf16.msra.mxu0 %v8205
    %8702 = vmatmul.bf16.gmra.mxu0 %v7142
    %v8703 = vpop.f32.mrf.mxu0
    %v8704 = vadd.f32 %v8691, %v8703
    %v8705 = vpop.f32.mrf.mxu0
    %8706 = vdwg.mxu0
    %8707 = vmatpush.bf16.msra.mxu0 0
    %8708 = vmatpush.bf16.msra.mxu0 0
    %8709 = vmatpush.bf16.msra.mxu0 0
    %8710 = vmatpush.bf16.msra.mxu0 0
    %8711 = vmatpush.bf16.msra.mxu0 %v8293
    %8712 = vmatpush.bf16.msra.mxu0 %v8285
    %8713 = vmatpush.bf16.msra.mxu0 %v8277
    %8714 = vmatpush.bf16.msra.mxu0 %v8269
    %8715 = vmatmul.bf16.gmra.mxu0 %v8588
    %v8716 = vpop.f32.mrf.mxu0
    %v8717 = vadd.f32 %v8704, %v8716
    %v8718 = vpop.f32.mrf.mxu0
    %8719 = vdwg.mxu0
    %8720 = vmatpush.bf16.msra.mxu0 %v8070
    %8721 = vmatpush.bf16.msra.mxu0 %v8062
    %8722 = vmatpush.bf16.msra.mxu0 %v8054
    %8723 = vmatpush.bf16.msra.mxu0 %v8046
    %8724 = vmatpush.bf16.msra.mxu0 %v8038
    %8725 = vmatpush.bf16.msra.mxu0 %v8030
    %8726 = vmatpush.bf16.msra.mxu0 %v8022
    %8727 = vmatpush.bf16.msra.mxu0 %v8014
    %8728 = vmatmul.bf16.gmra.mxu0 %v7139
    %v8729 = vpop.f32.mrf.mxu0
    %v8730 = vadd.f32 %v7123, %v8729
    %v8731 = vpop.f32.mrf.mxu0
    %8732 = vdwg.mxu0
    %8733 = vmatpush.bf16.msra.mxu0 %v8134
    %8734 = vmatpush.bf16.msra.mxu0 %v8126
    %8735 = vmatpush.bf16.msra.mxu0 %v8118
    %8736 = vmatpush.bf16.msra.mxu0 %v8110
    %8737 = vmatpush.bf16.msra.mxu0 %v8102
    %8738 = vmatpush.bf16.msra.mxu0 %v8094
    %8739 = vmatpush.bf16.msra.mxu0 %v8086
    %8740 = vmatpush.bf16.msra.mxu0 %v8078
    %8741 = vmatmul.bf16.gmra.mxu0 %v7140
    %v8742 = vpop.f32.mrf.mxu0
    %v8743 = vadd.f32 %v8730, %v8742
    %v8744 = vpop.f32.mrf.mxu0
    %8745 = vdwg.mxu0
    %8746 = vmatpush.bf16.msra.mxu0 %v8198
    %8747 = vmatpush.bf16.msra.mxu0 %v8190
    %8748 = vmatpush.bf16.msra.mxu0 %v8182
    %8749 = vmatpush.bf16.msra.mxu0 %v8174
    %8750 = vmatpush.bf16.msra.mxu0 %v8166
    %8751 = vmatpush.bf16.msra.mxu0 %v8158
    %8752 = vmatpush.bf16.msra.mxu0 %v8150
    %8753 = vmatpush.bf16.msra.mxu0 %v8142
    %8754 = vmatmul.bf16.gmra.mxu0 %v7141
    %v8755 = vpop.f32.mrf.mxu0
    %v8756 = vadd.f32 %v8743, %v8755
    %v8757 = vpop.f32.mrf.mxu0
    %8758 = vdwg.mxu0
    %8759 = vmatpush.bf16.msra.mxu0 %v8262
    %8760 = vmatpush.bf16.msra.mxu0 %v8254
    %8761 = vmatpush.bf16.msra.mxu0 %v8246
    %8762 = vmatpush.bf16.msra.mxu0 %v8238
    %8763 = vmatpush.bf16.msra.mxu0 %v8230
    %8764 = vmatpush.bf16.msra.mxu0 %v8222
    %8765 = vmatpush.bf16.msra.mxu0 %v8214
    %8766 = vmatpush.bf16.msra.mxu0 %v8206
    %8767 = vmatmul.bf16.gmra.mxu0 %v7142
    %v8768 = vpop.f32.mrf.mxu0
    %v8769 = vadd.f32 %v8756, %v8768
    %v8770 = vpop.f32.mrf.mxu0
    %8771 = vdwg.mxu0
    %8772 = vmatpush.bf16.msra.mxu0 0
    %8773 = vmatpush.bf16.msra.mxu0 0
    %8774 = vmatpush.bf16.msra.mxu0 0
    %8775 = vmatpush.bf16.msra.mxu0 0
    %8776 = vmatpush.bf16.msra.mxu0 %v8294
    %8777 = vmatpush.bf16.msra.mxu0 %v8286
    %8778 = vmatpush.bf16.msra.mxu0 %v8278
    %8779 = vmatpush.bf16.msra.mxu0 %v8270
    %8780 = vmatmul.bf16.gmra.mxu0 %v8588
    %v8781 = vpop.f32.mrf.mxu0
    %v8782 = vadd.f32 %v8769, %v8781
    %v8783 = vpop.f32.mrf.mxu0
    %8784 = vdwg.mxu0
    %8785 = vmatpush.bf16.msra.mxu0 %v8071
    %8786 = vmatpush.bf16.msra.mxu0 %v8063
    %8787 = vmatpush.bf16.msra.mxu0 %v8055
    %8788 = vmatpush.bf16.msra.mxu0 %v8047
    %8789 = vmatpush.bf16.msra.mxu0 %v8039
    %8790 = vmatpush.bf16.msra.mxu0 %v8031
    %8791 = vmatpush.bf16.msra.mxu0 %v8023
    %8792 = vmatpush.bf16.msra.mxu0 %v8015
    %8793 = vmatmul.bf16.gmra.mxu0 %v7139
    %v8794 = vpop.f32.mrf.mxu0
    %v8795 = vadd.f32 %v7124, %v8794
    %v8796 = vpop.f32.mrf.mxu0
    %8797 = vdwg.mxu0
    %8798 = vmatpush.bf16.msra.mxu0 %v8135
    %8799 = vmatpush.bf16.msra.mxu0 %v8127
    %8800 = vmatpush.bf16.msra.mxu0 %v8119
    %8801 = vmatpush.bf16.msra.mxu0 %v8111
    %8802 = vmatpush.bf16.msra.mxu0 %v8103
    %8803 = vmatpush.bf16.msra.mxu0 %v8095
    %8804 = vmatpush.bf16.msra.mxu0 %v8087
    %8805 = vmatpush.bf16.msra.mxu0 %v8079
    %8806 = vmatmul.bf16.gmra.mxu0 %v7140
    %v8807 = vpop.f32.mrf.mxu0
    %v8808 = vadd.f32 %v8795, %v8807
    %v8809 = vpop.f32.mrf.mxu0
    %8810 = vdwg.mxu0
    %8811 = vmatpush.bf16.msra.mxu0 %v8199
    %8812 = vmatpush.bf16.msra.mxu0 %v8191
    %8813 = vmatpush.bf16.msra.mxu0 %v8183
    %8814 = vmatpush.bf16.msra.mxu0 %v8175
    %8815 = vmatpush.bf16.msra.mxu0 %v8167
    %8816 = vmatpush.bf16.msra.mxu0 %v8159
    %8817 = vmatpush.bf16.msra.mxu0 %v8151
    %8818 = vmatpush.bf16.msra.mxu0 %v8143
    %8819 = vmatmul.bf16.gmra.mxu0 %v7141
    %v8820 = vpop.f32.mrf.mxu0
    %v8821 = vadd.f32 %v8808, %v8820
    %v8822 = vpop.f32.mrf.mxu0
    %8823 = vdwg.mxu0
    %8824 = vmatpush.bf16.msra.mxu0 %v8263
    %8825 = vmatpush.bf16.msra.mxu0 %v8255
    %8826 = vmatpush.bf16.msra.mxu0 %v8247
    %8827 = vmatpush.bf16.msra.mxu0 %v8239
    %8828 = vmatpush.bf16.msra.mxu0 %v8231
    %8829 = vmatpush.bf16.msra.mxu0 %v8223
    %8830 = vmatpush.bf16.msra.mxu0 %v8215
    %8831 = vmatpush.bf16.msra.mxu0 %v8207
    %8832 = vmatmul.bf16.gmra.mxu0 %v7142
    %v8833 = vpop.f32.mrf.mxu0
    %v8834 = vadd.f32 %v8821, %v8833
    %v8835 = vpop.f32.mrf.mxu0
    %8836 = vdwg.mxu0
    %8837 = vmatpush.bf16.msra.mxu0 0
    %8838 = vmatpush.bf16.msra.mxu0 0
    %8839 = vmatpush.bf16.msra.mxu0 0
    %8840 = vmatpush.bf16.msra.mxu0 0
    %8841 = vmatpush.bf16.msra.mxu0 %v8295
    %8842 = vmatpush.bf16.msra.mxu0 %v8287
    %8843 = vmatpush.bf16.msra.mxu0 %v8279
    %8844 = vmatpush.bf16.msra.mxu0 %v8271
    %8845 = vmatmul.bf16.gmra.mxu0 %v8588
    %v8846 = vpop.f32.mrf.mxu0
    %v8847 = vadd.f32 %v8834, %v8846
    %v8848 = vpop.f32.mrf.mxu0
    %8849 = vdwg.mxu0
    %8850 = vmatpush.bf16.msra.mxu0 %v8072
    %8851 = vmatpush.bf16.msra.mxu0 %v8064
    %8852 = vmatpush.bf16.msra.mxu0 %v8056
    %8853 = vmatpush.bf16.msra.mxu0 %v8048
    %8854 = vmatpush.bf16.msra.mxu0 %v8040
    %8855 = vmatpush.bf16.msra.mxu0 %v8032
    %8856 = vmatpush.bf16.msra.mxu0 %v8024
    %8857 = vmatpush.bf16.msra.mxu0 %v8016
    %8858 = vmatmul.bf16.gmra.mxu0 %v7139
    %v8859 = vpop.f32.mrf.mxu0
    %v8860 = vadd.f32 %v7125, %v8859
    %v8861 = vpop.f32.mrf.mxu0
    %8862 = vdwg.mxu0
    %8863 = vmatpush.bf16.msra.mxu0 %v8136
    %8864 = vmatpush.bf16.msra.mxu0 %v8128
    %8865 = vmatpush.bf16.msra.mxu0 %v8120
    %8866 = vmatpush.bf16.msra.mxu0 %v8112
    %8867 = vmatpush.bf16.msra.mxu0 %v8104
    %8868 = vmatpush.bf16.msra.mxu0 %v8096
    %8869 = vmatpush.bf16.msra.mxu0 %v8088
    %8870 = vmatpush.bf16.msra.mxu0 %v8080
    %8871 = vmatmul.bf16.gmra.mxu0 %v7140
    %v8872 = vpop.f32.mrf.mxu0
    %v8873 = vadd.f32 %v8860, %v8872
    %v8874 = vpop.f32.mrf.mxu0
    %8875 = vdwg.mxu0
    %8876 = vmatpush.bf16.msra.mxu0 %v8200
    %8877 = vmatpush.bf16.msra.mxu0 %v8192
    %8878 = vmatpush.bf16.msra.mxu0 %v8184
    %8879 = vmatpush.bf16.msra.mxu0 %v8176
    %8880 = vmatpush.bf16.msra.mxu0 %v8168
    %8881 = vmatpush.bf16.msra.mxu0 %v8160
    %8882 = vmatpush.bf16.msra.mxu0 %v8152
    %8883 = vmatpush.bf16.msra.mxu0 %v8144
    %8884 = vmatmul.bf16.gmra.mxu0 %v7141
    %v8885 = vpop.f32.mrf.mxu0
    %v8886 = vadd.f32 %v8873, %v8885
    %v8887 = vpop.f32.mrf.mxu0
    %8888 = vdwg.mxu0
    %8889 = vmatpush.bf16.msra.mxu0 %v8264
    %8890 = vmatpush.bf16.msra.mxu0 %v8256
    %8891 = vmatpush.bf16.msra.mxu0 %v8248
    %8892 = vmatpush.bf16.msra.mxu0 %v8240
    %8893 = vmatpush.bf16.msra.mxu0 %v8232
    %8894 = vmatpush.bf16.msra.mxu0 %v8224
    %8895 = vmatpush.bf16.msra.mxu0 %v8216
    %8896 = vmatpush.bf16.msra.mxu0 %v8208
    %8897 = vmatmul.bf16.gmra.mxu0 %v7142
    %v8898 = vpop.f32.mrf.mxu0
    %v8899 = vadd.f32 %v8886, %v8898
    %v8900 = vpop.f32.mrf.mxu0
    %8901 = vdwg.mxu0
    %8902 = vmatpush.bf16.msra.mxu0 0
    %8903 = vmatpush.bf16.msra.mxu0 0
    %8904 = vmatpush.bf16.msra.mxu0 0
    %8905 = vmatpush.bf16.msra.mxu0 0
    %8906 = vmatpush.bf16.msra.mxu0 %v8296
    %8907 = vmatpush.bf16.msra.mxu0 %v8288
    %8908 = vmatpush.bf16.msra.mxu0 %v8280
    %8909 = vmatpush.bf16.msra.mxu0 %v8272
    %8910 = vmatmul.bf16.gmra.mxu0 %v8588
    %v8911 = vpop.f32.mrf.mxu0
    %v8912 = vadd.f32 %v8899, %v8911
    %v8913 = vpop.f32.mrf.mxu0
    %8914 = vdwg.mxu0
    %8915 = vmatpush.bf16.msra.mxu0 %v8073
    %8916 = vmatpush.bf16.msra.mxu0 %v8065
    %8917 = vmatpush.bf16.msra.mxu0 %v8057
    %8918 = vmatpush.bf16.msra.mxu0 %v8049
    %8919 = vmatpush.bf16.msra.mxu0 %v8041
    %8920 = vmatpush.bf16.msra.mxu0 %v8033
    %8921 = vmatpush.bf16.msra.mxu0 %v8025
    %8922 = vmatpush.bf16.msra.mxu0 %v8017
    %8923 = vmatmul.bf16.gmra.mxu0 %v7139
    %v8924 = vpop.f32.mrf.mxu0
    %v8925 = vadd.f32 %v7126, %v8924
    %v8926 = vpop.f32.mrf.mxu0
    %8927 = vdwg.mxu0
    %8928 = vmatpush.bf16.msra.mxu0 %v8137
    %8929 = vmatpush.bf16.msra.mxu0 %v8129
    %8930 = vmatpush.bf16.msra.mxu0 %v8121
    %8931 = vmatpush.bf16.msra.mxu0 %v8113
    %8932 = vmatpush.bf16.msra.mxu0 %v8105
    %8933 = vmatpush.bf16.msra.mxu0 %v8097
    %8934 = vmatpush.bf16.msra.mxu0 %v8089
    %8935 = vmatpush.bf16.msra.mxu0 %v8081
    %8936 = vmatmul.bf16.gmra.mxu0 %v7140
    %v8937 = vpop.f32.mrf.mxu0
    %v8938 = vadd.f32 %v8925, %v8937
    %v8939 = vpop.f32.mrf.mxu0
    %8940 = vdwg.mxu0
    %8941 = vmatpush.bf16.msra.mxu0 %v8201
    %8942 = vmatpush.bf16.msra.mxu0 %v8193
    %8943 = vmatpush.bf16.msra.mxu0 %v8185
    %8944 = vmatpush.bf16.msra.mxu0 %v8177
    %8945 = vmatpush.bf16.msra.mxu0 %v8169
    %8946 = vmatpush.bf16.msra.mxu0 %v8161
    %8947 = vmatpush.bf16.msra.mxu0 %v8153
    %8948 = vmatpush.bf16.msra.mxu0 %v8145
    %8949 = vmatmul.bf16.gmra.mxu0 %v7141
    %v8950 = vpop.f32.mrf.mxu0
    %v8951 = vadd.f32 %v8938, %v8950
    %v8952 = vpop.f32.mrf.mxu0
    %8953 = vdwg.mxu0
    %8954 = vmatpush.bf16.msra.mxu0 %v8265
    %8955 = vmatpush.bf16.msra.mxu0 %v8257
    %8956 = vmatpush.bf16.msra.mxu0 %v8249
    %8957 = vmatpush.bf16.msra.mxu0 %v8241
    %8958 = vmatpush.bf16.msra.mxu0 %v8233
    %8959 = vmatpush.bf16.msra.mxu0 %v8225
    %8960 = vmatpush.bf16.msra.mxu0 %v8217
    %8961 = vmatpush.bf16.msra.mxu0 %v8209
    %8962 = vmatmul.bf16.gmra.mxu0 %v7142
    %v8963 = vpop.f32.mrf.mxu0
    %v8964 = vadd.f32 %v8951, %v8963
    %v8965 = vpop.f32.mrf.mxu0
    %8966 = vdwg.mxu0
    %8967 = vmatpush.bf16.msra.mxu0 0
    %8968 = vmatpush.bf16.msra.mxu0 0
    %8969 = vmatpush.bf16.msra.mxu0 0
    %8970 = vmatpush.bf16.msra.mxu0 0
    %8971 = vmatpush.bf16.msra.mxu0 %v8297
    %8972 = vmatpush.bf16.msra.mxu0 %v8289
    %8973 = vmatpush.bf16.msra.mxu0 %v8281
    %8974 = vmatpush.bf16.msra.mxu0 %v8273
    %8975 = vmatmul.bf16.gmra.mxu0 %v8588
    %v8976 = vpop.f32.mrf.mxu0
    %v8977 = vadd.f32 %v8964, %v8976
    %v8978 = vpop.f32.mrf.mxu0
    %8979 = vdwg.mxu0
    %8980 = vmatpush.bf16.msra.mxu0 %v8074
    %8981 = vmatpush.bf16.msra.mxu0 %v8066
    %8982 = vmatpush.bf16.msra.mxu0 %v8058
    %8983 = vmatpush.bf16.msra.mxu0 %v8050
    %8984 = vmatpush.bf16.msra.mxu0 %v8042
    %8985 = vmatpush.bf16.msra.mxu0 %v8034
    %8986 = vmatpush.bf16.msra.mxu0 %v8026
    %8987 = vmatpush.bf16.msra.mxu0 %v8018
    %8988 = vmatmul.bf16.gmra.mxu0 %v7139
    %v8989 = vpop.f32.mrf.mxu0
    %v8990 = vadd.f32 %v7127, %v8989
    %v8991 = vpop.f32.mrf.mxu0
    %8992 = vdwg.mxu0
    %8993 = vmatpush.bf16.msra.mxu0 %v8138
    %8994 = vmatpush.bf16.msra.mxu0 %v8130
    %8995 = vmatpush.bf16.msra.mxu0 %v8122
    %8996 = vmatpush.bf16.msra.mxu0 %v8114
    %8997 = vmatpush.bf16.msra.mxu0 %v8106
    %8998 = vmatpush.bf16.msra.mxu0 %v8098
    %8999 = vmatpush.bf16.msra.mxu0 %v8090
    %9000 = vmatpush.bf16.msra.mxu0 %v8082
    %9001 = vmatmul.bf16.gmra.mxu0 %v7140
    %v9002 = vpop.f32.mrf.mxu0
    %v9003 = vadd.f32 %v8990, %v9002
    %v9004 = vpop.f32.mrf.mxu0
    %9005 = vdwg.mxu0
    %9006 = vmatpush.bf16.msra.mxu0 %v8202
    %9007 = vmatpush.bf16.msra.mxu0 %v8194
    %9008 = vmatpush.bf16.msra.mxu0 %v8186
    %9009 = vmatpush.bf16.msra.mxu0 %v8178
    %9010 = vmatpush.bf16.msra.mxu0 %v8170
    %9011 = vmatpush.bf16.msra.mxu0 %v8162
    %9012 = vmatpush.bf16.msra.mxu0 %v8154
    %9013 = vmatpush.bf16.msra.mxu0 %v8146
    %9014 = vmatmul.bf16.gmra.mxu0 %v7141
    %v9015 = vpop.f32.mrf.mxu0
    %v9016 = vadd.f32 %v9003, %v9015
    %v9017 = vpop.f32.mrf.mxu0
    %9018 = vdwg.mxu0
    %9019 = vmatpush.bf16.msra.mxu0 %v8266
    %9020 = vmatpush.bf16.msra.mxu0 %v8258
    %9021 = vmatpush.bf16.msra.mxu0 %v8250
    %9022 = vmatpush.bf16.msra.mxu0 %v8242
    %9023 = vmatpush.bf16.msra.mxu0 %v8234
    %9024 = vmatpush.bf16.msra.mxu0 %v8226
    %9025 = vmatpush.bf16.msra.mxu0 %v8218
    %9026 = vmatpush.bf16.msra.mxu0 %v8210
    %9027 = vmatmul.bf16.gmra.mxu0 %v7142
    %v9028 = vpop.f32.mrf.mxu0
    %v9029 = vadd.f32 %v9016, %v9028
    %v9030 = vpop.f32.mrf.mxu0
    %9031 = vdwg.mxu0
    %9032 = vmatpush.bf16.msra.mxu0 0
    %9033 = vmatpush.bf16.msra.mxu0 0
    %9034 = vmatpush.bf16.msra.mxu0 0
    %9035 = vmatpush.bf16.msra.mxu0 0
    %9036 = vmatpush.bf16.msra.mxu0 %v8298
    %9037 = vmatpush.bf16.msra.mxu0 %v8290
    %9038 = vmatpush.bf16.msra.mxu0 %v8282
    %9039 = vmatpush.bf16.msra.mxu0 %v8274
    %9040 = vmatmul.bf16.gmra.mxu0 %v8588
    %v9041 = vpop.f32.mrf.mxu0
    %v9042 = vadd.f32 %v9029, %v9041
    %v9043 = vpop.f32.mrf.mxu0
    %9044 = vdwg.mxu0
    %9045 = vmatpush.bf16.msra.mxu0 %v8075
    %9046 = vmatpush.bf16.msra.mxu0 %v8067
    %9047 = vmatpush.bf16.msra.mxu0 %v8059
    %9048 = vmatpush.bf16.msra.mxu0 %v8051
    %9049 = vmatpush.bf16.msra.mxu0 %v8043
    %9050 = vmatpush.bf16.msra.mxu0 %v8035
    %9051 = vmatpush.bf16.msra.mxu0 %v8027
    %9052 = vmatpush.bf16.msra.mxu0 %v8019
    %9053 = vmatmul.bf16.gmra.mxu0 %v7139
    %v9054 = vpop.f32.mrf.mxu0
    %v9055 = vadd.f32 %v7128, %v9054
    %v9056 = vpop.f32.mrf.mxu0
    %9057 = vdwg.mxu0
    %9058 = vmatpush.bf16.msra.mxu0 %v8139
    %9059 = vmatpush.bf16.msra.mxu0 %v8131
    %9060 = vmatpush.bf16.msra.mxu0 %v8123
    %9061 = vmatpush.bf16.msra.mxu0 %v8115
    %9062 = vmatpush.bf16.msra.mxu0 %v8107
    %9063 = vmatpush.bf16.msra.mxu0 %v8099
    %9064 = vmatpush.bf16.msra.mxu0 %v8091
    %9065 = vmatpush.bf16.msra.mxu0 %v8083
    %9066 = vmatmul.bf16.gmra.mxu0 %v7140
    %v9067 = vpop.f32.mrf.mxu0
    %v9068 = vadd.f32 %v9055, %v9067
    %v9069 = vpop.f32.mrf.mxu0
    %9070 = vdwg.mxu0
    %9071 = vmatpush.bf16.msra.mxu0 %v8203
    %9072 = vmatpush.bf16.msra.mxu0 %v8195
    %9073 = vmatpush.bf16.msra.mxu0 %v8187
    %9074 = vmatpush.bf16.msra.mxu0 %v8179
    %9075 = vmatpush.bf16.msra.mxu0 %v8171
    %9076 = vmatpush.bf16.msra.mxu0 %v8163
    %9077 = vmatpush.bf16.msra.mxu0 %v8155
    %9078 = vmatpush.bf16.msra.mxu0 %v8147
    %9079 = vmatmul.bf16.gmra.mxu0 %v7141
    %v9080 = vpop.f32.mrf.mxu0
    %v9081 = vadd.f32 %v9068, %v9080
    %v9082 = vpop.f32.mrf.mxu0
    %9083 = vdwg.mxu0
    %9084 = vmatpush.bf16.msra.mxu0 %v8267
    %9085 = vmatpush.bf16.msra.mxu0 %v8259
    %9086 = vmatpush.bf16.msra.mxu0 %v8251
    %9087 = vmatpush.bf16.msra.mxu0 %v8243
    %9088 = vmatpush.bf16.msra.mxu0 %v8235
    %9089 = vmatpush.bf16.msra.mxu0 %v8227
    %9090 = vmatpush.bf16.msra.mxu0 %v8219
    %9091 = vmatpush.bf16.msra.mxu0 %v8211
    %9092 = vmatmul.bf16.gmra.mxu0 %v7142
    %v9093 = vpop.f32.mrf.mxu0
    %v9094 = vadd.f32 %v9081, %v9093
    %v9095 = vpop.f32.mrf.mxu0
    %9096 = vdwg.mxu0
    %9097 = vmatpush.bf16.msra.mxu0 0
    %9098 = vmatpush.bf16.msra.mxu0 0
    %9099 = vmatpush.bf16.msra.mxu0 0
    %9100 = vmatpush.bf16.msra.mxu0 0
    %9101 = vmatpush.bf16.msra.mxu0 %v8299
    %9102 = vmatpush.bf16.msra.mxu0 %v8291
    %9103 = vmatpush.bf16.msra.mxu0 %v8283
    %9104 = vmatpush.bf16.msra.mxu0 %v8275
    %9105 = vmatmul.bf16.gmra.mxu0 %v8588
    %v9106 = vpop.f32.mrf.mxu0
    %v9107 = vadd.f32 %v9094, %v9106
    %v9108 = vpop.f32.mrf.mxu0
    %9109 = vdwg.mxu0
    %v9110 = vmax.f32 %v8652, 0.0
    %v9111 = vmax.f32 %v8717, 0.0
    %v9112 = vmax.f32 %v8782, 0.0
    %v9113 = vmax.f32 %v8847, 0.0
    %v9114 = vmax.f32 %v8912, 0.0
    %v9115 = vmax.f32 %v8977, 0.0
    %v9116 = vmax.f32 %v9042, 0.0
    %v9117 = vmax.f32 %v9107, 0.0
    %v9118 = vpack.c.bf16 %v9110, %v9110
    %v9119 = vpack.c.bf16 %v9111, %v9111
    %v9120 = vpack.c.bf16 %v9112, %v9112
    %v9121 = vpack.c.bf16 %v9113, %v9113
    %v9122 = vpack.c.bf16 %v9114, %v9114
    %v9123 = vpack.c.bf16 %v9115, %v9115
    %v9124 = vpack.c.bf16 %v9116, %v9116
    %v9125 = vpack.c.bf16 %v9117, %v9117
    %v9126 = vld [vmem:[%s7] sm:$0xf]
    %v9127 = vld [vmem:[%s7 + $0x4] sm:$0xf]
    %v9128 = vld [vmem:[%s7 + $0x8] sm:$0xf]
    %v9129 = vld [vmem:[%s7 + $0xc] sm:$0xf]
    %v9130 = vld [vmem:[%s7 + $0x10] sm:$0xf]
    %v9131 = vld [vmem:[%s7 + $0x14] sm:$0xf]
    %v9132 = vld [vmem:[%s7 + $0x18] sm:$0xf]
    %v9133 = vld [vmem:[%s7 + $0x1c] sm:$0xf]
    %v9134 = vld [vmem:[%s7 + $0x20] sm:$0xf]
    %v9135 = vld [vmem:[%s7 + $0x24] sm:$0xf]
    %v9136 = vld [vmem:[%s7 + $0x28] sm:$0xf]
    %v9137 = vld [vmem:[%s7 + $0x2c] sm:$0xf]
    %v9138 = vld [vmem:[%s7 + $0x30] sm:$0xf]
    %v9139 = vld [vmem:[%s7 + $0x34] sm:$0xf]
    %v9140 = vld [vmem:[%s7 + $0x38] sm:$0xf]
    %v9141 = vld [vmem:[%s7 + $0x3c] sm:$0xf]
    %v9142 = vld [vmem:[%s7 + $0x40] sm:$0xf]
    %v9143 = vld [vmem:[%s7 + $0x44] sm:$0xf]
    %v9144 = vld [vmem:[%s7 + $0x48] sm:$0xf]
    %v9145 = vld [vmem:[%s7 + $0x4c] sm:$0xf]
    %v9146 = vld [vmem:[%s7 + $0x50] sm:$0xf]
    %v9147 = vld [vmem:[%s7 + $0x54] sm:$0xf]
    %v9148 = vld [vmem:[%s7 + $0x58] sm:$0xf]
    %v9149 = vld [vmem:[%s7 + $0x5c] sm:$0xf]
    %v9150 = vld [vmem:[%s7 + $0x60] sm:$0xf]
    %v9151 = vld [vmem:[%s7 + $0x64] sm:$0xf]
    %v9152 = vld [vmem:[%s7 + $0x68] sm:$0xf]
    %v9153 = vld [vmem:[%s7 + $0x6c] sm:$0xf]
    %v9154 = vld [vmem:[%s7 + $0x70] sm:$0xf]
    %v9155 = vld [vmem:[%s7 + $0x74] sm:$0xf]
    %v9156 = vld [vmem:[%s7 + $0x78] sm:$0xf]
    %v9157 = vld [vmem:[%s7 + $0x7c] sm:$0xf]
    %v9158 = vld [vmem:[%s7 + $0x80] sm:$0xf]
    %v9159 = vld [vmem:[%s7 + $0x84] sm:$0xf]
    %v9160 = vld [vmem:[%s7 + $0x88] sm:$0xf]
    %v9161 = vld [vmem:[%s7 + $0x8c] sm:$0xf]
    %v9162 = vld [vmem:[%s7 + $0x90] sm:$0xf]
    %v9163 = vld [vmem:[%s7 + $0x94] sm:$0xf]
    %v9164 = vld [vmem:[%s7 + $0x98] sm:$0xf]
    %v9165 = vld [vmem:[%s7 + $0x9c] sm:$0xf]
    %v9166 = vld [vmem:[%s7 + $0xa0] sm:$0xf]
    %v9167 = vld [vmem:[%s7 + $0xa4] sm:$0xf]
    %v9168 = vld [vmem:[%s7 + $0xa8] sm:$0xf]
    %v9169 = vld [vmem:[%s7 + $0xac] sm:$0xf]
    %v9170 = vld [vmem:[%s7 + $0xb0] sm:$0xf]
    %v9171 = vld [vmem:[%s7 + $0xb4] sm:$0xf]
    %v9172 = vld [vmem:[%s7 + $0xb8] sm:$0xf]
    %v9173 = vld [vmem:[%s7 + $0xbc] sm:$0xf]
    %v9174 = vld [vmem:[%s7 + $0xc0] sm:$0xf]
    %v9175 = vld [vmem:[%s7 + $0xc4] sm:$0xf]
    %v9176 = vld [vmem:[%s7 + $0xc8] sm:$0xf]
    %v9177 = vld [vmem:[%s7 + $0xcc] sm:$0xf]
    %v9178 = vld [vmem:[%s7 + $0xd0] sm:$0xf]
    %v9179 = vld [vmem:[%s7 + $0xd4] sm:$0xf]
    %v9180 = vld [vmem:[%s7 + $0xd8] sm:$0xf]
    %v9181 = vld [vmem:[%s7 + $0xdc] sm:$0xf]
    %v9182 = vld [vmem:[%s7 + $0xe0] sm:$0xf]
    %v9183 = vld [vmem:[%s7 + $0xe4] sm:$0xf]
    %v9184 = vld [vmem:[%s7 + $0xe8] sm:$0xf]
    %v9185 = vld [vmem:[%s7 + $0xec] sm:$0xf]
    %v9186 = vld [vmem:[%s7 + $0xf0] sm:$0xf]
    %v9187 = vld [vmem:[%s7 + $0xf4] sm:$0xf]
    %v9188 = vld [vmem:[%s7 + $0xf8] sm:$0xf]
    %v9189 = vld [vmem:[%s7 + $0xfc] sm:$0xf]
    %v9190 = vld [vmem:[%s7 + $0x100] sm:$0xf]
    %v9191 = vld [vmem:[%s7 + $0x104] sm:$0xf]
    %v9192 = vld [vmem:[%s7 + $0x108] sm:$0xf]
    %v9193 = vld [vmem:[%s7 + $0x10c] sm:$0xf]
    %v9194 = vld [vmem:[%s7 + $0x110] sm:$0xf]
    %v9195 = vld [vmem:[%s7 + $0x114] sm:$0xf]
    %v9196 = vld [vmem:[%s7 + $0x118] sm:$0xf]
    %v9197 = vld [vmem:[%s7 + $0x11c] sm:$0xf]
    %v9198 = vld [vmem:[%s7 + $0x120] sm:$0xf]
    %v9199 = vld [vmem:[%s7 + $0x124] sm:$0xf]
    %v9200 = vld [vmem:[%s7 + $0x128] sm:$0xf]
    %v9201 = vld [vmem:[%s7 + $0x12c] sm:$0xf]
    %v9202 = vld [vmem:[%s7 + $0x130] sm:$0xf]
    %v9203 = vld [vmem:[%s7 + $0x134] sm:$0xf]
    %v9204 = vld [vmem:[%s7 + $0x138] sm:$0xf]
    %v9205 = vld [vmem:[%s7 + $0x13c] sm:$0xf]
    %v9206 = vld [vmem:[%s7 + $0x140] sm:$0xf]
    %v9207 = vld [vmem:[%s7 + $0x144] sm:$0xf]
    %v9208 = vld [vmem:[%s7 + $0x148] sm:$0xf]
    %v9209 = vld [vmem:[%s7 + $0x14c] sm:$0xf]
    %v9210 = vld [vmem:[%s7 + $0x150] sm:$0xf]
    %v9211 = vld [vmem:[%s7 + $0x154] sm:$0xf]
    %v9212 = vld [vmem:[%s7 + $0x158] sm:$0xf]
    %v9213 = vld [vmem:[%s7 + $0x15c] sm:$0xf]
    %v9214 = vld [vmem:[%s7 + $0x160] sm:$0xf]
    %v9215 = vld [vmem:[%s7 + $0x164] sm:$0xf]
    %v9216 = vld [vmem:[%s7 + $0x168] sm:$0xf]
    %v9217 = vld [vmem:[%s7 + $0x16c] sm:$0xf]
    %v9218 = vld [vmem:[%s7 + $0x170] sm:$0xf]
    %v9219 = vld [vmem:[%s7 + $0x174] sm:$0xf]
    %v9220 = vld [vmem:[%s7 + $0x178] sm:$0xf]
    %v9221 = vld [vmem:[%s7 + $0x17c] sm:$0xf]
    %v9222 = vld [vmem:[%s7 + $0x180] sm:$0xf]
    %v9223 = vld [vmem:[%s7 + $0x184] sm:$0xf]
    %v9224 = vld [vmem:[%s7 + $0x188] sm:$0xf]
    %v9225 = vld [vmem:[%s7 + $0x18c] sm:$0xf]
    %v9226 = vld [vmem:[%s7 + $0x190] sm:$0xf]
    %v9227 = vld [vmem:[%s7 + $0x194] sm:$0xf]
    %v9228 = vld [vmem:[%s7 + $0x198] sm:$0xf]
    %v9229 = vld [vmem:[%s7 + $0x19c] sm:$0xf]
    %v9230 = vld [vmem:[%s7 + $0x1a0] sm:$0xf]
    %v9231 = vld [vmem:[%s7 + $0x1a4] sm:$0xf]
    %v9232 = vld [vmem:[%s7 + $0x1a8] sm:$0xf]
    %v9233 = vld [vmem:[%s7 + $0x1ac] sm:$0xf]
    %v9234 = vld [vmem:[%s7 + $0x1b0] sm:$0xf]
    %v9235 = vld [vmem:[%s7 + $0x1b4] sm:$0xf]
    %v9236 = vld [vmem:[%s7 + $0x1b8] sm:$0xf]
    %v9237 = vld [vmem:[%s7 + $0x1bc] sm:$0xf]
    %v9238 = vld [vmem:[%s7 + $0x1c0] sm:$0xf]
    %v9239 = vld [vmem:[%s7 + $0x1c4] sm:$0xf]
    %v9240 = vld [vmem:[%s7 + $0x1c8] sm:$0xf]
    %v9241 = vld [vmem:[%s7 + $0x1cc] sm:$0xf]
    %v9242 = vld [vmem:[%s7 + $0x1d0] sm:$0xf]
    %v9243 = vld [vmem:[%s7 + $0x1d4] sm:$0xf]
    %v9244 = vld [vmem:[%s7 + $0x1d8] sm:$0xf]
    %v9245 = vld [vmem:[%s7 + $0x1dc] sm:$0xf]
    %v9246 = vld [vmem:[%s7 + $0x1e0] sm:$0xf]
    %v9247 = vld [vmem:[%s7 + $0x1e4] sm:$0xf]
    %v9248 = vld [vmem:[%s7 + $0x1e8] sm:$0xf]
    %v9249 = vld [vmem:[%s7 + $0x1ec] sm:$0xf]
    %v9250 = vld [vmem:[%s7 + $0x1f0] sm:$0xf]
    %v9251 = vld [vmem:[%s7 + $0x1f4] sm:$0xf]
    %v9252 = vld [vmem:[%s7 + $0x1f8] sm:$0xf]
    %v9253 = vld [vmem:[%s7 + $0x1fc] sm:$0xf]
    %v9254 = vld [vmem:[#allocation19] sm:$0x1]
    %v9256 = vperm.slane %v9254, 0
    %v9386 = vunpack.c.l.b16 %v9126
    %v9387 = vunpack.c.l.b16 %v9127
    %v9388 = vunpack.c.l.b16 %v9128
    %v9389 = vunpack.c.l.b16 %v9129
    %v9390 = vunpack.c.l.b16 %v9130
    %v9391 = vunpack.c.l.b16 %v9131
    %v9392 = vunpack.c.l.b16 %v9132
    %v9393 = vunpack.c.l.b16 %v9133
    %v9394 = vunpack.c.l.b16 %v9134
    %v9395 = vunpack.c.l.b16 %v9135
    %v9396 = vunpack.c.l.b16 %v9136
    %v9397 = vunpack.c.l.b16 %v9137
    %v9398 = vunpack.c.l.b16 %v9138
    %v9399 = vunpack.c.l.b16 %v9139
    %v9400 = vunpack.c.l.b16 %v9140
    %v9401 = vunpack.c.l.b16 %v9141
    %v9402 = vunpack.c.l.b16 %v9142
    %v9403 = vunpack.c.l.b16 %v9143
    %v9404 = vunpack.c.l.b16 %v9144
    %v9405 = vunpack.c.l.b16 %v9145
    %v9406 = vunpack.c.l.b16 %v9146
    %v9407 = vunpack.c.l.b16 %v9147
    %v9408 = vunpack.c.l.b16 %v9148
    %v9409 = vunpack.c.l.b16 %v9149
    %v9410 = vunpack.c.l.b16 %v9150
    %v9411 = vunpack.c.l.b16 %v9151
    %v9412 = vunpack.c.l.b16 %v9152
    %v9413 = vunpack.c.l.b16 %v9153
    %v9414 = vunpack.c.l.b16 %v9154
    %v9415 = vunpack.c.l.b16 %v9155
    %v9416 = vunpack.c.l.b16 %v9156
    %v9417 = vunpack.c.l.b16 %v9157
    %v9418 = vunpack.c.l.b16 %v9158
    %v9419 = vunpack.c.l.b16 %v9159
    %v9420 = vunpack.c.l.b16 %v9160
    %v9421 = vunpack.c.l.b16 %v9161
    %v9422 = vunpack.c.l.b16 %v9162
    %v9423 = vunpack.c.l.b16 %v9163
    %v9424 = vunpack.c.l.b16 %v9164
    %v9425 = vunpack.c.l.b16 %v9165
    %v9426 = vunpack.c.l.b16 %v9166
    %v9427 = vunpack.c.l.b16 %v9167
    %v9428 = vunpack.c.l.b16 %v9168
    %v9429 = vunpack.c.l.b16 %v9169
    %v9430 = vunpack.c.l.b16 %v9170
    %v9431 = vunpack.c.l.b16 %v9171
    %v9432 = vunpack.c.l.b16 %v9172
    %v9433 = vunpack.c.l.b16 %v9173
    %v9434 = vunpack.c.l.b16 %v9174
    %v9435 = vunpack.c.l.b16 %v9175
    %v9436 = vunpack.c.l.b16 %v9176
    %v9437 = vunpack.c.l.b16 %v9177
    %v9438 = vunpack.c.l.b16 %v9178
    %v9439 = vunpack.c.l.b16 %v9179
    %v9440 = vunpack.c.l.b16 %v9180
    %v9441 = vunpack.c.l.b16 %v9181
    %v9442 = vunpack.c.l.b16 %v9182
    %v9443 = vunpack.c.l.b16 %v9183
    %v9444 = vunpack.c.l.b16 %v9184
    %v9445 = vunpack.c.l.b16 %v9185
    %v9446 = vunpack.c.l.b16 %v9186
    %v9447 = vunpack.c.l.b16 %v9187
    %v9448 = vunpack.c.l.b16 %v9188
    %v9449 = vunpack.c.l.b16 %v9189
    %v9450 = vunpack.c.l.b16 %v9190
    %v9451 = vunpack.c.l.b16 %v9191
    %v9452 = vunpack.c.l.b16 %v9192
    %v9453 = vunpack.c.l.b16 %v9193
    %v9454 = vunpack.c.l.b16 %v9194
    %v9455 = vunpack.c.l.b16 %v9195
    %v9456 = vunpack.c.l.b16 %v9196
    %v9457 = vunpack.c.l.b16 %v9197
    %v9458 = vunpack.c.l.b16 %v9198
    %v9459 = vunpack.c.l.b16 %v9199
    %v9460 = vunpack.c.l.b16 %v9200
    %v9461 = vunpack.c.l.b16 %v9201
    %v9462 = vunpack.c.l.b16 %v9202
    %v9463 = vunpack.c.l.b16 %v9203
    %v9464 = vunpack.c.l.b16 %v9204
    %v9465 = vunpack.c.l.b16 %v9205
    %v9466 = vunpack.c.l.b16 %v9206
    %v9467 = vunpack.c.l.b16 %v9207
    %v9468 = vunpack.c.l.b16 %v9208
    %v9469 = vunpack.c.l.b16 %v9209
    %v9470 = vunpack.c.l.b16 %v9210
    %v9471 = vunpack.c.l.b16 %v9211
    %v9472 = vunpack.c.l.b16 %v9212
    %v9473 = vunpack.c.l.b16 %v9213
    %v9474 = vunpack.c.l.b16 %v9214
    %v9475 = vunpack.c.l.b16 %v9215
    %v9476 = vunpack.c.l.b16 %v9216
    %v9477 = vunpack.c.l.b16 %v9217
    %v9478 = vunpack.c.l.b16 %v9218
    %v9479 = vunpack.c.l.b16 %v9219
    %v9480 = vunpack.c.l.b16 %v9220
    %v9481 = vunpack.c.l.b16 %v9221
    %v9482 = vunpack.c.l.b16 %v9222
    %v9483 = vunpack.c.l.b16 %v9223
    %v9484 = vunpack.c.l.b16 %v9224
    %v9485 = vunpack.c.l.b16 %v9225
    %v9486 = vunpack.c.l.b16 %v9226
    %v9487 = vunpack.c.l.b16 %v9227
    %v9488 = vunpack.c.l.b16 %v9228
    %v9489 = vunpack.c.l.b16 %v9229
    %v9490 = vunpack.c.l.b16 %v9230
    %v9491 = vunpack.c.l.b16 %v9231
    %v9492 = vunpack.c.l.b16 %v9232
    %v9493 = vunpack.c.l.b16 %v9233
    %v9494 = vunpack.c.l.b16 %v9234
    %v9495 = vunpack.c.l.b16 %v9235
    %v9496 = vunpack.c.l.b16 %v9236
    %v9497 = vunpack.c.l.b16 %v9237
    %v9498 = vunpack.c.l.b16 %v9238
    %v9499 = vunpack.c.l.b16 %v9239
    %v9500 = vunpack.c.l.b16 %v9240
    %v9501 = vunpack.c.l.b16 %v9241
    %v9502 = vunpack.c.l.b16 %v9242
    %v9503 = vunpack.c.l.b16 %v9243
    %v9504 = vunpack.c.l.b16 %v9244
    %v9505 = vunpack.c.l.b16 %v9245
    %v9506 = vunpack.c.l.b16 %v9246
    %v9507 = vunpack.c.l.b16 %v9247
    %v9508 = vunpack.c.l.b16 %v9248
    %v9509 = vunpack.c.l.b16 %v9249
    %v9510 = vunpack.c.l.b16 %v9250
    %v9511 = vunpack.c.l.b16 %v9251
    %v9512 = vunpack.c.l.b16 %v9252
    %v9513 = vunpack.c.l.b16 %v9253
    %v9514 = vpack.c.b16 %v9387, %v9386
    %v9515 = vpack.c.b16 %v9389, %v9388
    %v9516 = vpack.c.b16 %v9391, %v9390
    %v9517 = vpack.c.b16 %v9393, %v9392
    %v9518 = vpack.c.b16 %v9395, %v9394
    %v9519 = vpack.c.b16 %v9397, %v9396
    %v9520 = vpack.c.b16 %v9399, %v9398
    %v9521 = vpack.c.b16 %v9401, %v9400
    %v9522 = vpack.c.b16 %v9403, %v9402
    %v9523 = vpack.c.b16 %v9405, %v9404
    %v9524 = vpack.c.b16 %v9407, %v9406
    %v9525 = vpack.c.b16 %v9409, %v9408
    %v9526 = vpack.c.b16 %v9411, %v9410
    %v9527 = vpack.c.b16 %v9413, %v9412
    %v9528 = vpack.c.b16 %v9415, %v9414
    %v9529 = vpack.c.b16 %v9417, %v9416
    %v9530 = vpack.c.b16 %v9419, %v9418
    %v9531 = vpack.c.b16 %v9421, %v9420
    %v9532 = vpack.c.b16 %v9423, %v9422
    %v9533 = vpack.c.b16 %v9425, %v9424
    %v9534 = vpack.c.b16 %v9427, %v9426
    %v9535 = vpack.c.b16 %v9429, %v9428
    %v9536 = vpack.c.b16 %v9431, %v9430
    %v9537 = vpack.c.b16 %v9433, %v9432
    %v9538 = vpack.c.b16 %v9435, %v9434
    %v9539 = vpack.c.b16 %v9437, %v9436
    %v9540 = vpack.c.b16 %v9439, %v9438
    %v9541 = vpack.c.b16 %v9441, %v9440
    %v9542 = vpack.c.b16 %v9443, %v9442
    %v9543 = vpack.c.b16 %v9445, %v9444
    %v9544 = vpack.c.b16 %v9447, %v9446
    %v9545 = vpack.c.b16 %v9449, %v9448
    %v9546 = vpack.c.b16 %v9451, %v9450
    %v9547 = vpack.c.b16 %v9453, %v9452
    %v9548 = vpack.c.b16 %v9455, %v9454
    %v9549 = vpack.c.b16 %v9457, %v9456
    %v9550 = vpack.c.b16 %v9459, %v9458
    %v9551 = vpack.c.b16 %v9461, %v9460
    %v9552 = vpack.c.b16 %v9463, %v9462
    %v9553 = vpack.c.b16 %v9465, %v9464
    %v9554 = vpack.c.b16 %v9467, %v9466
    %v9555 = vpack.c.b16 %v9469, %v9468
    %v9556 = vpack.c.b16 %v9471, %v9470
    %v9557 = vpack.c.b16 %v9473, %v9472
    %v9558 = vpack.c.b16 %v9475, %v9474
    %v9559 = vpack.c.b16 %v9477, %v9476
    %v9560 = vpack.c.b16 %v9479, %v9478
    %v9561 = vpack.c.b16 %v9481, %v9480
    %v9562 = vpack.c.b16 %v9483, %v9482
    %v9563 = vpack.c.b16 %v9485, %v9484
    %v9564 = vpack.c.b16 %v9487, %v9486
    %v9565 = vpack.c.b16 %v9489, %v9488
    %v9566 = vpack.c.b16 %v9491, %v9490
    %v9567 = vpack.c.b16 %v9493, %v9492
    %v9568 = vpack.c.b16 %v9495, %v9494
    %v9569 = vpack.c.b16 %v9497, %v9496
    %v9570 = vpack.c.b16 %v9499, %v9498
    %v9571 = vpack.c.b16 %v9501, %v9500
    %v9572 = vpack.c.b16 %v9503, %v9502
    %v9573 = vpack.c.b16 %v9505, %v9504
    %v9574 = vpack.c.b16 %v9507, %v9506
    %v9575 = vpack.c.b16 %v9509, %v9508
    %v9576 = vpack.c.b16 %v9511, %v9510
    %v9577 = vpack.c.b16 %v9513, %v9512
    %9642 = vmatpush.bf16.msra.mxu0 %v9521
    %9643 = vmatpush.bf16.msra.mxu0 %v9520
    %9644 = vmatpush.bf16.msra.mxu0 %v9519
    %9645 = vmatpush.bf16.msra.mxu0 %v9518
    %9646 = vmatpush.bf16.msra.mxu0 %v9517
    %9647 = vmatpush.bf16.msra.mxu0 %v9516
    %9648 = vmatpush.bf16.msra.mxu0 %v9515
    %9649 = vmatpush.bf16.msra.mxu0 %v9514
    %9650 = vmatmul.bf16.gmra.mxu0 %v9118
    %v9651 = vpop.f32.mrf.mxu0
    %v9652 = vadd.f32 %v9256, %v9651
    %v9653 = vpop.f32.mrf.mxu0
    %9654 = vdwg.mxu0
    %9655 = vmatpush.bf16.msra.mxu0 %v9529
    %9656 = vmatpush.bf16.msra.mxu0 %v9528
    %9657 = vmatpush.bf16.msra.mxu0 %v9527
    %9658 = vmatpush.bf16.msra.mxu0 %v9526
    %9659 = vmatpush.bf16.msra.mxu0 %v9525
    %9660 = vmatpush.bf16.msra.mxu0 %v9524
    %9661 = vmatpush.bf16.msra.mxu0 %v9523
    %9662 = vmatpush.bf16.msra.mxu0 %v9522
    %9663 = vmatmul.bf16.gmra.mxu0 %v9119
    %v9664 = vpop.f32.mrf.mxu0
    %v9665 = vadd.f32 %v9652, %v9664
    %v9666 = vpop.f32.mrf.mxu0
    %9667 = vdwg.mxu0
    %9668 = vmatpush.bf16.msra.mxu0 %v9537
    %9669 = vmatpush.bf16.msra.mxu0 %v9536
    %9670 = vmatpush.bf16.msra.mxu0 %v9535
    %9671 = vmatpush.bf16.msra.mxu0 %v9534
    %9672 = vmatpush.bf16.msra.mxu0 %v9533
    %9673 = vmatpush.bf16.msra.mxu0 %v9532
    %9674 = vmatpush.bf16.msra.mxu0 %v9531
    %9675 = vmatpush.bf16.msra.mxu0 %v9530
    %9676 = vmatmul.bf16.gmra.mxu0 %v9120
    %v9677 = vpop.f32.mrf.mxu0
    %v9678 = vadd.f32 %v9665, %v9677
    %v9679 = vpop.f32.mrf.mxu0
    %9680 = vdwg.mxu0
    %9681 = vmatpush.bf16.msra.mxu0 %v9545
    %9682 = vmatpush.bf16.msra.mxu0 %v9544
    %9683 = vmatpush.bf16.msra.mxu0 %v9543
    %9684 = vmatpush.bf16.msra.mxu0 %v9542
    %9685 = vmatpush.bf16.msra.mxu0 %v9541
    %9686 = vmatpush.bf16.msra.mxu0 %v9540
    %9687 = vmatpush.bf16.msra.mxu0 %v9539
    %9688 = vmatpush.bf16.msra.mxu0 %v9538
    %9689 = vmatmul.bf16.gmra.mxu0 %v9121
    %v9690 = vpop.f32.mrf.mxu0
    %v9691 = vadd.f32 %v9678, %v9690
    %v9692 = vpop.f32.mrf.mxu0
    %9693 = vdwg.mxu0
    %9694 = vmatpush.bf16.msra.mxu0 %v9553
    %9695 = vmatpush.bf16.msra.mxu0 %v9552
    %9696 = vmatpush.bf16.msra.mxu0 %v9551
    %9697 = vmatpush.bf16.msra.mxu0 %v9550
    %9698 = vmatpush.bf16.msra.mxu0 %v9549
    %9699 = vmatpush.bf16.msra.mxu0 %v9548
    %9700 = vmatpush.bf16.msra.mxu0 %v9547
    %9701 = vmatpush.bf16.msra.mxu0 %v9546
    %9702 = vmatmul.bf16.gmra.mxu0 %v9122
    %v9703 = vpop.f32.mrf.mxu0
    %v9704 = vadd.f32 %v9691, %v9703
    %v9705 = vpop.f32.mrf.mxu0
    %9706 = vdwg.mxu0
    %9707 = vmatpush.bf16.msra.mxu0 %v9561
    %9708 = vmatpush.bf16.msra.mxu0 %v9560
    %9709 = vmatpush.bf16.msra.mxu0 %v9559
    %9710 = vmatpush.bf16.msra.mxu0 %v9558
    %9711 = vmatpush.bf16.msra.mxu0 %v9557
    %9712 = vmatpush.bf16.msra.mxu0 %v9556
    %9713 = vmatpush.bf16.msra.mxu0 %v9555
    %9714 = vmatpush.bf16.msra.mxu0 %v9554
    %9715 = vmatmul.bf16.gmra.mxu0 %v9123
    %v9716 = vpop.f32.mrf.mxu0
    %v9717 = vadd.f32 %v9704, %v9716
    %v9718 = vpop.f32.mrf.mxu0
    %9719 = vdwg.mxu0
    %9720 = vmatpush.bf16.msra.mxu0 %v9569
    %9721 = vmatpush.bf16.msra.mxu0 %v9568
    %9722 = vmatpush.bf16.msra.mxu0 %v9567
    %9723 = vmatpush.bf16.msra.mxu0 %v9566
    %9724 = vmatpush.bf16.msra.mxu0 %v9565
    %9725 = vmatpush.bf16.msra.mxu0 %v9564
    %9726 = vmatpush.bf16.msra.mxu0 %v9563
    %9727 = vmatpush.bf16.msra.mxu0 %v9562
    %9728 = vmatmul.bf16.gmra.mxu0 %v9124
    %v9729 = vpop.f32.mrf.mxu0
    %v9730 = vadd.f32 %v9717, %v9729
    %v9731 = vpop.f32.mrf.mxu0
    %9732 = vdwg.mxu0
    %9733 = vmatpush.bf16.msra.mxu0 %v9577
    %9734 = vmatpush.bf16.msra.mxu0 %v9576
    %9735 = vmatpush.bf16.msra.mxu0 %v9575
    %9736 = vmatpush.bf16.msra.mxu0 %v9574
    %9737 = vmatpush.bf16.msra.mxu0 %v9573
    %9738 = vmatpush.bf16.msra.mxu0 %v9572
    %9739 = vmatpush.bf16.msra.mxu0 %v9571
    %9740 = vmatpush.bf16.msra.mxu0 %v9570
    %9741 = vmatmul.bf16.gmra.mxu0 %v9125
    %v9742 = vpop.f32.mrf.mxu0
    %v9743 = vadd.f32 %v9730, %v9742
    %v9744 = vpop.f32.mrf.mxu0
    %9745 = vdwg.mxu0
    %vm9746 = vcmask 17408
    %9747 = vst.msk [vmem:[#allocation20] sm:$0x3] %vm9746, %v9743
    // Predicated region
    $region58: #{vanilla_classifier_cnn_forward.1} parent=1 // pred_check
      _
    $region59: #{vanilla_classifier_cnn_forward.1} parent=1 // pred_check_branch
      %9749 = sbr.rel (0) target = $region61
    $region60: #{vanilla_classifier_cnn_forward.1} parent=1 // pred_region
      %9751 = vsyncadd [#allocation13], 0
      %s9753 = sshll.u32 [#allocation20], 4
      %s9754 = int_to_ptr.vmem [resolvable:$true] %s9753
      %s9755 = sshll.u32 %s9, 4
      %s9756 = int_to_ptr.hbm [resolvable:$true] %s9755
      %9758 = dma.vmem_to_hbm [thread:$0]  %s9754, 32, %s9756, [#allocation13]
    $region61: #{vanilla_classifier_cnn_forward.1} parent=1 // pred_fallthru
      _
    // Predicated region
    $region62: #{vanilla_classifier_cnn_forward.1} parent=1 // pred_check
      _
    $region63: #{vanilla_classifier_cnn_forward.1} parent=1 // pred_check_branch
      %9760 = sbr.rel (0) target = $region65
    $region64: #{vanilla_classifier_cnn_forward.1} parent=1 // pred_region
      %9762 = dma.done [#allocation13], 32
    $region65: #{vanilla_classifier_cnn_forward.1} parent=1 // pred_fallthru
      _
    %9763 = vsyncpa [#allocation12], 1
    %9764 = vsyncpa [#allocation15], 1
    %9765 = vsyncpa [#allocation18], 1
    %9766 = vsyncpa [#allocation13], 1
  %9767 = vsyncmov [#allocation4]
  %s9768 = vpop.sfrf %9767
  %p9769 = scmp.eq.s32.totalorder %s9768, 0
  %p9770 = pneg %p9769
  %9772 = shalt.err (%p9770)
  %s9773 = scalar_lea.sflag [#allocation4], 1
  %9774 = vsyncmov %s9773
  %s9775 = vpop.sfrf %9774
  %p9776 = scmp.eq.s32.totalorder %s9775, 0
  %p9777 = pneg %p9776
  %9779 = shalt.err (%p9777)

</llo_original>
